<compile_context>
chip_gen: v7x
topology: tpu7x:2x2x1
jax: 0.10.0
libtpu: 0.0.40
codegen_flags: <defaults>
</compile_context>

<pallas_src>
import functools

import jax
import jax.numpy as jnp
from jax.experimental import pallas as pl
from jax.experimental.pallas import tpu as pltpu


# ----------------------------------------------------------------------------
# Fused GSC kernel: (optional channel-bias add) -> GroupNorm -> SiLU -> 3x3 conv
# ----------------------------------------------------------------------------
def gsc_fused_kernel(*refs, num_group, eps, H, W, has_bias, has_P):
    it = iter(refs)
    x_ref = next(it)                              # (1, H*W, C)
    bias_ref = next(it) if has_bias else None     # (1, 1, C)   time-emb channel bias
    P_ref = next(it) if has_P else None           # (C, C)      group-averaging matrix
    gamma_ref = next(it)                          # (1, C)
    beta_ref = next(it)                           # (1, C)
    w_ref = next(it)                              # (3, 3, Cin, Cout)
    b_ref = next(it)                              # (1, Cout)
    o_ref = next(it)                              # (1, H*W, Cout)
    pad_ref = next(it)                            # VMEM scratch ((H+3)*(W+2), Cin) f32

    C = x_ref.shape[-1]
    Cout = w_ref.shape[-1]
    HW = H * W
    Wp = W + 2
    Cg = C // num_group
    inv_n = 1.0 / float(Cg * HW)

    # ---- load + optional time-embedding bias (x + t) ----
    x = x_ref[0].astype(jnp.float32)                         # (HW, C)
    if has_bias:
        x = x + bias_ref[0].astype(jnp.float32)              # (1, C) broadcast

    # ---- GroupNorm statistics: single pass (sum & sum of squares) ----
    s = jnp.sum(x, axis=0, keepdims=True)                    # (1, C)
    sq = jnp.sum(x * x, axis=0, keepdims=True)               # (1, C)
    if has_P:
        # spread per-channel sums to per-group sums (P[c,c'] = 1 iff same group)
        s = jnp.dot(s, P_ref[...], preferred_element_type=jnp.float32)
        sq = jnp.dot(sq, P_ref[...], preferred_element_type=jnp.float32)
    mean = s * inv_n
    var = sq * inv_n - mean * mean                           # biased variance (nn.GroupNorm)

    # ---- normalize + affine + SiLU ----
    y = (x - mean) * jax.lax.rsqrt(var + eps)
    y = y * gamma_ref[...].astype(jnp.float32) + beta_ref[...].astype(jnp.float32)
    y = y * (1.0 / (1.0 + jnp.exp(-y)))                      # SiLU (exp -> EUP slot)

    # ---- stage into a zero-padded flat slab: flat row r*Wp + c <-> padded pixel (r, c) ----
    pad_ref[...] = jnp.zeros_like(pad_ref)
    for h in range(H):
        pad_ref[pl.ds((h + 1) * Wp + 1, W), :] = y[h * W:(h + 1) * W, :]

    # ---- 3x3 conv as 9 MXU matmuls over contiguous-sublane slices (no relayout) ----
    # acc[h*Wp + w] == out(h, w) for w < W  (columns W, W+1 are padding, discarded below).
    acc = jnp.zeros((H * Wp, Cout), jnp.float32)
    for dy in range(3):
        for dx in range(3):
            t = (dy - 1) * Wp + (dx - 1)
            patch = pad_ref[pl.ds(Wp + 1 + t, H * Wp), :]    # (H*Wp, Cin)
            acc = acc + jnp.dot(patch, w_ref[dy, dx].astype(jnp.float32),
                                preferred_element_type=jnp.float32)

    cb = b_ref[...].astype(jnp.float32)                      # (1, Cout)
    for h in range(H):
        o_ref[0, pl.ds(h * W, W), :] = (acc[h * Wp:h * Wp + W, :] + cb).astype(o_ref.dtype)


def gsc_forward(x2d, bias, p, num_group, H, W, eps=1e-5):
    """x2d: (B, H*W, C) NHWC-flattened. bias: None or (B, 1, C). Returns (B, H*W, C)."""
    B, HW, C = x2d.shape
    if C % num_group != 0:
        raise ValueError(f"channels ({C}) must be divisible by num_group ({num_group})")
    has_bias = bias is not None
    has_P = num_group != C            # num_group == C -> P is the identity, skip it
    Wp = W + 2

    kernel = functools.partial(gsc_fused_kernel, num_group=num_group, eps=eps,
                               H=H, W=W, has_bias=has_bias, has_P=has_P)

    args = [x2d]
    in_specs = [pl.BlockSpec((1, HW, C), lambda b: (b, 0, 0))]
    if has_bias:
        args.append(bias)
        in_specs.append(pl.BlockSpec((1, 1, C), lambda b: (b, 0, 0)))
    if has_P:
        gidx = jnp.arange(C, dtype=jnp.int32) // (C // num_group)
        P = (gidx[:, None] == gidx[None, :]).astype(jnp.float32)   # constant, built once
        args.append(P)
        in_specs.append(pl.BlockSpec((C, C), lambda b: (0, 0)))
    args += [p["gamma"], p["beta"], p["conv_w"], p["conv_b"]]
    in_specs += [
        pl.BlockSpec((1, C), lambda b: (0, 0)),
        pl.BlockSpec((1, C), lambda b: (0, 0)),
        pl.BlockSpec((3, 3, C, C), lambda b: (0, 0, 0, 0)),
        pl.BlockSpec((1, C), lambda b: (0, 0)),
    ]

    return pl.pallas_call(
        kernel,
        out_shape=jax.ShapeDtypeStruct((B, HW, C), x2d.dtype),
        grid=(B,),
        in_specs=in_specs,
        out_specs=pl.BlockSpec((1, HW, C), lambda b: (b, 0, 0)),
        scratch_shapes=[pltpu.VMEM(((H + 3) * Wp, C), jnp.float32)],
        compiler_params=pltpu.CompilerParams(dimension_semantics=("parallel",)),
    )(*args)


# ----------------------------------------------------------------------------
# Module forward
# ----------------------------------------------------------------------------
def rtr_forward(x, t_emb, params, num_group):
    # x: (B, C, H, W) NCHW (PyTorch convention), t_emb: (B, T)
    B, C, H, W = x.shape
    x2d = jnp.transpose(x, (0, 2, 3, 1)).reshape(B, H * W, C)        # NCHW -> NHWC, flatten HW

    h = gsc_forward(x2d, None, params["gsc1"], num_group, H, W)       # first_res_block
    t = t_emb @ params["time_w"] + params["time_b"]                   # tiny Linear: plain JAX
    h = gsc_forward(h, t.reshape(B, 1, C), params["gsc2"], C, H, W)   # (x + t) fused into GN
    return jnp.transpose(h.reshape(B, H, W, C), (0, 3, 1, 2))         # NHWC -> NCHW


# ----------------------------------------------------------------------------
# Plain-JAX reference (for correctness check)
# ----------------------------------------------------------------------------
def _gsc_reference(x, gamma, beta, w, b, num_group, eps=1e-5):
    B, C, H, W = x.shape
    G = num_group
    xg = x.reshape(B, G, C // G, H, W)
    mean = xg.mean(axis=(2, 3, 4), keepdims=True)
    var = ((xg - mean) ** 2).mean(axis=(2, 3, 4), keepdims=True)
    xn = ((xg - mean) * jax.lax.rsqrt(var + eps)).reshape(B, C, H, W)
    y = xn * gamma.reshape(1, C, 1, 1) + beta.reshape(1, C, 1, 1)
    y = y * jax.nn.sigmoid(y)
    out = jax.lax.conv_general_dilated(
        y, w, window_strides=(1, 1), padding="SAME",
        dimension_numbers=("NCHW", "HWIO", "NCHW"))
    return out + b.reshape(1, C, 1, 1)


def rtr_reference(x, t_emb, params, num_group):
    C = x.shape[1]
    g1, g2 = params["gsc1"], params["gsc2"]
    h = _gsc_reference(x, g1["gamma"], g1["beta"], g1["conv_w"], g1["conv_b"], num_group)
    t = t_emb @ params["time_w"] + params["time_b"]
    h = h + t.reshape(t.shape[0], -1, 1, 1)
    return _gsc_reference(h, g2["gamma"], g2["beta"], g2["conv_w"], g2["conv_b"], C)


# ----------------------------------------------------------------------------
# Deterministic parameter init (shapes per nn.GroupNorm / nn.Conv2d(3x3) / nn.Linear)
# ----------------------------------------------------------------------------
def init_params(key, channels, t_emb_dim):
    k1, k2, k3, k4, k5, k6 = jax.random.split(key, 6)

    def conv_init(kw, kb, cin, cout):
        bound = 1.0 / jnp.sqrt(jnp.float32(cin * 9))
        w = jax.random.uniform(kw, (3, 3, cin, cout), jnp.float32, -bound, bound)
        b = jax.random.uniform(kb, (1, cout), jnp.float32, -bound, bound)
        return w, b

    w1, b1 = conv_init(k1, k2, channels, channels)
    w2, b2 = conv_init(k3, k4, channels, channels)
    lb = 1.0 / jnp.sqrt(jnp.float32(t_emb_dim))
    tw = jax.random.uniform(k5, (t_emb_dim, channels), jnp.float32, -lb, lb)
    tb = jax.random.uniform(k6, (1, channels), jnp.float32, -lb, lb)

    gn = lambda: (jnp.ones((1, channels), jnp.float32), jnp.zeros((1, channels), jnp.float32))
    g1, be1 = gn()
    g2, be2 = gn()
    return {
        "gsc1": {"gamma": g1, "beta": be1, "conv_w": w1, "conv_b": b1},
        "gsc2": {"gamma": g2, "beta": be2, "conv_w": w2, "conv_b": b2},
        "time_w": tw, "time_b": tb,
    }


if __name__ == "__main__":
    B, C, H, W = 2, 4, 16, 16
    NUM_GROUP = 2
    T_EMB_DIM = 8

    key = jax.random.PRNGKey(0)
    kx, kt, kp = jax.random.split(key, 3)
    x = jax.random.normal(kx, (B, C, H, W), jnp.float32)
    t_emb = jax.random.normal(kt, (B, T_EMB_DIM), jnp.float32)
    params = init_params(kp, C, T_EMB_DIM)

    fwd = jax.jit(rtr_forward, static_argnames=("num_group",))
    out = fwd(x, t_emb, params, num_group=NUM_GROUP)
    jax.block_until_ready(out)
    assert out.shape == (B, C, H, W)

    # Numerical check against a plain-JAX reference (loose tol: TPU default matmul/conv precision).
    ref = rtr_reference(x, t_emb, params, NUM_GROUP)
    err = float(jnp.max(jnp.abs(out - ref)))
    assert err < 5e-2, f"max abs err {err}"

    print("KERNEL_OK")
</pallas_src>

<mosaic_0001>
module attributes {stable_mosaic.version = 11 : i64} {
  func.func @gsc_fused_kernel(%arg0: i32, %arg1: memref<1x256x4xf32, #tpu.memory_space<vmem>>, %arg2: memref<4x4xf32, #tpu.memory_space<vmem>>, %arg3: memref<1x4xf32, #tpu.memory_space<vmem>>, %arg4: memref<1x4xf32, #tpu.memory_space<vmem>>, %arg5: memref<3x3x4x4xf32, #tpu.memory_space<vmem>>, %arg6: memref<1x4xf32, #tpu.memory_space<vmem>>, %arg7: memref<1x256x4xf32, #tpu.memory_space<vmem>>, %arg8: memref<342x4xf32, #tpu.memory_space<vmem>>) attributes {dimension_semantics = [#tpu.dimension_semantics<parallel>], iteration_bounds = array<i64: 2>, scalar_prefetch = 0 : i64, scratch_operands = 1 : i64, tpu.core_type = #tpu.core_type<tc>, window_params = [{transform_indices = @transform_0, window_bounds = array<i64: 1, 256, 4>}, {pipeline_mode = #tpu.pipeline_mode<synchronous>, transform_indices = @transform_1, window_bounds = array<i64: 4, 4>}, {pipeline_mode = #tpu.pipeline_mode<synchronous>, transform_indices = @transform_2, window_bounds = array<i64: 1, 4>}, {pipeline_mode = #tpu.pipeline_mode<synchronous>, transform_indices = @transform_3, window_bounds = array<i64: 1, 4>}, {pipeline_mode = #tpu.pipeline_mode<synchronous>, transform_indices = @transform_4, window_bounds = array<i64: 3, 3, 4, 4>}, {pipeline_mode = #tpu.pipeline_mode<synchronous>, transform_indices = @transform_5, window_bounds = array<i64: 1, 4>}, {transform_indices = @transform_6, window_bounds = array<i64: 1, 256, 4>}]} {
    %c0 = arith.constant 0 : index
    %c0_0 = arith.constant 0 : index
    %c0_1 = arith.constant 0 : index
    %0 = vector.load %arg1[%c0, %c0_0, %c0_1] : memref<1x256x4xf32, #tpu.memory_space<vmem>>, vector<1x256x4xf32>
    %1 = vector.shape_cast %0 : vector<1x256x4xf32> to vector<256x4xf32>
    %cst = arith.constant dense<0.000000e+00> : vector<4xf32>
    %2 = vector.multi_reduction <add>, %1, %cst [0] : vector<256x4xf32> to vector<4xf32>
    %3 = vector.shape_cast %2 : vector<4xf32> to vector<1x4xf32>
    %4 = arith.mulf %1, %1 : vector<256x4xf32>
    %cst_2 = arith.constant dense<0.000000e+00> : vector<4xf32>
    %5 = vector.multi_reduction <add>, %4, %cst_2 [0] : vector<256x4xf32> to vector<4xf32>
    %6 = vector.shape_cast %5 : vector<4xf32> to vector<1x4xf32>
    %c0_3 = arith.constant 0 : index
    %c0_4 = arith.constant 0 : index
    %7 = vector.load %arg2[%c0_3, %c0_4] : memref<4x4xf32, #tpu.memory_space<vmem>>, vector<4x4xf32>
    %cst_5 = arith.constant dense<0.000000e+00> : vector<1x4xf32>
    %8 = tpu.matmul %3, %7, %cst_5 {dimension_numbers = #tpu.dot_dimension_numbers<[1], [0], [0], [1], [0, 0, 1, 1], [], []>} : vector<1x4xf32>, vector<4x4xf32>, vector<1x4xf32> -> vector<1x4xf32>
    %c0_6 = arith.constant 0 : index
    %c0_7 = arith.constant 0 : index
    %9 = vector.load %arg2[%c0_6, %c0_7] : memref<4x4xf32, #tpu.memory_space<vmem>>, vector<4x4xf32>
    %cst_8 = arith.constant dense<0.000000e+00> : vector<1x4xf32>
    %10 = tpu.matmul %6, %9, %cst_8 {dimension_numbers = #tpu.dot_dimension_numbers<[1], [0], [0], [1], [0, 0, 1, 1], [], []>} : vector<1x4xf32>, vector<4x4xf32>, vector<1x4xf32> -> vector<1x4xf32>
    %cst_9 = arith.constant 0.001953125 : f32
    %11 = vector.broadcast %cst_9 : f32 to vector<1x4xf32>
    %12 = arith.mulf %8, %11 : vector<1x4xf32>
    %cst_10 = arith.constant 0.001953125 : f32
    %13 = vector.broadcast %cst_10 : f32 to vector<1x4xf32>
    %14 = arith.mulf %10, %13 : vector<1x4xf32>
    %15 = arith.mulf %12, %12 : vector<1x4xf32>
    %16 = arith.subf %14, %15 : vector<1x4xf32>
    %17 = vector.broadcast %12 : vector<1x4xf32> to vector<256x4xf32>
    %18 = arith.subf %1, %17 : vector<256x4xf32>
    %cst_11 = arith.constant 9.99999974E-6 : f32
    %19 = vector.broadcast %cst_11 : f32 to vector<1x4xf32>
    %20 = arith.addf %16, %19 : vector<1x4xf32>
    %21 = math.rsqrt %20 : vector<1x4xf32>
    %22 = vector.broadcast %21 : vector<1x4xf32> to vector<256x4xf32>
    %23 = arith.mulf %18, %22 : vector<256x4xf32>
    %c0_12 = arith.constant 0 : index
    %c0_13 = arith.constant 0 : index
    %24 = vector.load %arg3[%c0_12, %c0_13] : memref<1x4xf32, #tpu.memory_space<vmem>>, vector<1x4xf32>
    %25 = vector.broadcast %24 : vector<1x4xf32> to vector<256x4xf32>
    %26 = arith.mulf %23, %25 : vector<256x4xf32>
    %c0_14 = arith.constant 0 : index
    %c0_15 = arith.constant 0 : index
    %27 = vector.load %arg4[%c0_14, %c0_15] : memref<1x4xf32, #tpu.memory_space<vmem>>, vector<1x4xf32>
    %28 = vector.broadcast %27 : vector<1x4xf32> to vector<256x4xf32>
    %29 = arith.addf %26, %28 : vector<256x4xf32>
    %cst_16 = arith.constant 0.000000e+00 : f32
    %30 = vector.broadcast %cst_16 : f32 to vector<256x4xf32>
    %31 = arith.subf %30, %29 : vector<256x4xf32>
    %32 = math.exp %31 : vector<256x4xf32>
    %cst_17 = arith.constant 1.000000e+00 : f32
    %33 = vector.broadcast %cst_17 : f32 to vector<256x4xf32>
    %34 = arith.addf %33, %32 : vector<256x4xf32>
    %cst_18 = arith.constant 1.000000e+00 : f32
    %35 = vector.broadcast %cst_18 : f32 to vector<256x4xf32>
    %36 = arith.divf %35, %34 : vector<256x4xf32>
    %37 = arith.mulf %29, %36 : vector<256x4xf32>
    %cst_19 = arith.constant 0.000000e+00 : f32
    %38 = vector.broadcast %cst_19 : f32 to vector<342x4xf32>
    %c0_20 = arith.constant 0 : index
    %c0_21 = arith.constant 0 : index
    %39 = vector.load %arg8[%c0_20, %c0_21] : memref<342x4xf32, #tpu.memory_space<vmem>>, vector<342x4xf32>
    tpu.vector_store %arg8[%c0_20, %c0_21], %38 {strides = array<i32>} : memref<342x4xf32, #tpu.memory_space<vmem>>, vector<342x4xf32>,
    %40 = vector.extract_strided_slice %37 {offsets = [0, 0], sizes = [16, 4], strides = [1, 1]} : vector<256x4xf32> to vector<16x4xf32>
    %c19 = arith.constant 19 : index
    %c0_22 = arith.constant 0 : index
    %41 = vector.load %arg8[%c19, %c0_22] : memref<342x4xf32, #tpu.memory_space<vmem>>, vector<16x4xf32>
    tpu.vector_store %arg8[%c19, %c0_22], %40 {strides = array<i32>} : memref<342x4xf32, #tpu.memory_space<vmem>>, vector<16x4xf32>,
    %42 = vector.extract_strided_slice %37 {offsets = [16, 0], sizes = [16, 4], strides = [1, 1]} : vector<256x4xf32> to vector<16x4xf32>
    %c37 = arith.constant 37 : index
    %c0_23 = arith.constant 0 : index
    %43 = vector.load %arg8[%c37, %c0_23] : memref<342x4xf32, #tpu.memory_space<vmem>>, vector<16x4xf32>
    tpu.vector_store %arg8[%c37, %c0_23], %42 {strides = array<i32>} : memref<342x4xf32, #tpu.memory_space<vmem>>, vector<16x4xf32>,
    %44 = vector.extract_strided_slice %37 {offsets = [32, 0], sizes = [16, 4], strides = [1, 1]} : vector<256x4xf32> to vector<16x4xf32>
    %c55 = arith.constant 55 : index
    %c0_24 = arith.constant 0 : index
    %45 = vector.load %arg8[%c55, %c0_24] : memref<342x4xf32, #tpu.memory_space<vmem>>, vector<16x4xf32>
    tpu.vector_store %arg8[%c55, %c0_24], %44 {strides = array<i32>} : memref<342x4xf32, #tpu.memory_space<vmem>>, vector<16x4xf32>,
    %46 = vector.extract_strided_slice %37 {offsets = [48, 0], sizes = [16, 4], strides = [1, 1]} : vector<256x4xf32> to vector<16x4xf32>
    %c73 = arith.constant 73 : index
    %c0_25 = arith.constant 0 : index
    %47 = vector.load %arg8[%c73, %c0_25] : memref<342x4xf32, #tpu.memory_space<vmem>>, vector<16x4xf32>
    tpu.vector_store %arg8[%c73, %c0_25], %46 {strides = array<i32>} : memref<342x4xf32, #tpu.memory_space<vmem>>, vector<16x4xf32>,
    %48 = vector.extract_strided_slice %37 {offsets = [64, 0], sizes = [16, 4], strides = [1, 1]} : vector<256x4xf32> to vector<16x4xf32>
    %c91 = arith.constant 91 : index
    %c0_26 = arith.constant 0 : index
    %49 = vector.load %arg8[%c91, %c0_26] : memref<342x4xf32, #tpu.memory_space<vmem>>, vector<16x4xf32>
    tpu.vector_store %arg8[%c91, %c0_26], %48 {strides = array<i32>} : memref<342x4xf32, #tpu.memory_space<vmem>>, vector<16x4xf32>,
    %50 = vector.extract_strided_slice %37 {offsets = [80, 0], sizes = [16, 4], strides = [1, 1]} : vector<256x4xf32> to vector<16x4xf32>
    %c109 = arith.constant 109 : index
    %c0_27 = arith.constant 0 : index
    %51 = vector.load %arg8[%c109, %c0_27] : memref<342x4xf32, #tpu.memory_space<vmem>>, vector<16x4xf32>
    tpu.vector_store %arg8[%c109, %c0_27], %50 {strides = array<i32>} : memref<342x4xf32, #tpu.memory_space<vmem>>, vector<16x4xf32>,
    %52 = vector.extract_strided_slice %37 {offsets = [96, 0], sizes = [16, 4], strides = [1, 1]} : vector<256x4xf32> to vector<16x4xf32>
    %c127 = arith.constant 127 : index
    %c0_28 = arith.constant 0 : index
    %53 = vector.load %arg8[%c127, %c0_28] : memref<342x4xf32, #tpu.memory_space<vmem>>, vector<16x4xf32>
    tpu.vector_store %arg8[%c127, %c0_28], %52 {strides = array<i32>} : memref<342x4xf32, #tpu.memory_space<vmem>>, vector<16x4xf32>,
    %54 = vector.extract_strided_slice %37 {offsets = [112, 0], sizes = [16, 4], strides = [1, 1]} : vector<256x4xf32> to vector<16x4xf32>
    %c145 = arith.constant 145 : index
    %c0_29 = arith.constant 0 : index
    %55 = vector.load %arg8[%c145, %c0_29] : memref<342x4xf32, #tpu.memory_space<vmem>>, vector<16x4xf32>
    tpu.vector_store %arg8[%c145, %c0_29], %54 {strides = array<i32>} : memref<342x4xf32, #tpu.memory_space<vmem>>, vector<16x4xf32>,
    %56 = vector.extract_strided_slice %37 {offsets = [128, 0], sizes = [16, 4], strides = [1, 1]} : vector<256x4xf32> to vector<16x4xf32>
    %c163 = arith.constant 163 : index
    %c0_30 = arith.constant 0 : index
    %57 = vector.load %arg8[%c163, %c0_30] : memref<342x4xf32, #tpu.memory_space<vmem>>, vector<16x4xf32>
    tpu.vector_store %arg8[%c163, %c0_30], %56 {strides = array<i32>} : memref<342x4xf32, #tpu.memory_space<vmem>>, vector<16x4xf32>,
    %58 = vector.extract_strided_slice %37 {offsets = [144, 0], sizes = [16, 4], strides = [1, 1]} : vector<256x4xf32> to vector<16x4xf32>
    %c181 = arith.constant 181 : index
    %c0_31 = arith.constant 0 : index
    %59 = vector.load %arg8[%c181, %c0_31] : memref<342x4xf32, #tpu.memory_space<vmem>>, vector<16x4xf32>
    tpu.vector_store %arg8[%c181, %c0_31], %58 {strides = array<i32>} : memref<342x4xf32, #tpu.memory_space<vmem>>, vector<16x4xf32>,
    %60 = vector.extract_strided_slice %37 {offsets = [160, 0], sizes = [16, 4], strides = [1, 1]} : vector<256x4xf32> to vector<16x4xf32>
    %c199 = arith.constant 199 : index
    %c0_32 = arith.constant 0 : index
    %61 = vector.load %arg8[%c199, %c0_32] : memref<342x4xf32, #tpu.memory_space<vmem>>, vector<16x4xf32>
    tpu.vector_store %arg8[%c199, %c0_32], %60 {strides = array<i32>} : memref<342x4xf32, #tpu.memory_space<vmem>>, vector<16x4xf32>,
    %62 = vector.extract_strided_slice %37 {offsets = [176, 0], sizes = [16, 4], strides = [1, 1]} : vector<256x4xf32> to vector<16x4xf32>
    %c217 = arith.constant 217 : index
    %c0_33 = arith.constant 0 : index
    %63 = vector.load %arg8[%c217, %c0_33] : memref<342x4xf32, #tpu.memory_space<vmem>>, vector<16x4xf32>
    tpu.vector_store %arg8[%c217, %c0_33], %62 {strides = array<i32>} : memref<342x4xf32, #tpu.memory_space<vmem>>, vector<16x4xf32>,
    %64 = vector.extract_strided_slice %37 {offsets = [192, 0], sizes = [16, 4], strides = [1, 1]} : vector<256x4xf32> to vector<16x4xf32>
    %c235 = arith.constant 235 : index
    %c0_34 = arith.constant 0 : index
    %65 = vector.load %arg8[%c235, %c0_34] : memref<342x4xf32, #tpu.memory_space<vmem>>, vector<16x4xf32>
    tpu.vector_store %arg8[%c235, %c0_34], %64 {strides = array<i32>} : memref<342x4xf32, #tpu.memory_space<vmem>>, vector<16x4xf32>,
    %66 = vector.extract_strided_slice %37 {offsets = [208, 0], sizes = [16, 4], strides = [1, 1]} : vector<256x4xf32> to vector<16x4xf32>
    %c253 = arith.constant 253 : index
    %c0_35 = arith.constant 0 : index
    %67 = vector.load %arg8[%c253, %c0_35] : memref<342x4xf32, #tpu.memory_space<vmem>>, vector<16x4xf32>
    tpu.vector_store %arg8[%c253, %c0_35], %66 {strides = array<i32>} : memref<342x4xf32, #tpu.memory_space<vmem>>, vector<16x4xf32>,
    %68 = vector.extract_strided_slice %37 {offsets = [224, 0], sizes = [16, 4], strides = [1, 1]} : vector<256x4xf32> to vector<16x4xf32>
    %c271 = arith.constant 271 : index
    %c0_36 = arith.constant 0 : index
    %69 = vector.load %arg8[%c271, %c0_36] : memref<342x4xf32, #tpu.memory_space<vmem>>, vector<16x4xf32>
    tpu.vector_store %arg8[%c271, %c0_36], %68 {strides = array<i32>} : memref<342x4xf32, #tpu.memory_space<vmem>>, vector<16x4xf32>,
    %70 = vector.extract_strided_slice %37 {offsets = [240, 0], sizes = [16, 4], strides = [1, 1]} : vector<256x4xf32> to vector<16x4xf32>
    %c289 = arith.constant 289 : index
    %c0_37 = arith.constant 0 : index
    %71 = vector.load %arg8[%c289, %c0_37] : memref<342x4xf32, #tpu.memory_space<vmem>>, vector<16x4xf32>
    tpu.vector_store %arg8[%c289, %c0_37], %70 {strides = array<i32>} : memref<342x4xf32, #tpu.memory_space<vmem>>, vector<16x4xf32>,
    %cst_38 = arith.constant 0.000000e+00 : f32
    %72 = vector.broadcast %cst_38 : f32 to vector<288x4xf32>
    %c0_39 = arith.constant 0 : index
    %c0_40 = arith.constant 0 : index
    %73 = vector.load %arg8[%c0_39, %c0_40] : memref<342x4xf32, #tpu.memory_space<vmem>>, vector<288x4xf32>
    %c0_41 = arith.constant 0 : index
    %c0_42 = arith.constant 0 : index
    %c0_43 = arith.constant 0 : index
    %c0_44 = arith.constant 0 : index
    %74 = vector.load %arg5[%c0_41, %c0_42, %c0_43, %c0_44] : memref<3x3x4x4xf32, #tpu.memory_space<vmem>>, vector<1x1x4x4xf32>
    %75 = vector.shape_cast %74 : vector<1x1x4x4xf32> to vector<4x4xf32>
    %cst_45 = arith.constant dense<0.000000e+00> : vector<288x4xf32>
    %76 = tpu.matmul %73, %75, %cst_45 {dimension_numbers = #tpu.dot_dimension_numbers<[1], [0], [0], [1], [0, 0, 1, 1], [], []>} : vector<288x4xf32>, vector<4x4xf32>, vector<288x4xf32> -> vector<288x4xf32>
    %77 = arith.addf %72, %76 : vector<288x4xf32>
    %c1 = arith.constant 1 : index
    %c0_46 = arith.constant 0 : index
    %78 = vector.load %arg8[%c1, %c0_46] : memref<342x4xf32, #tpu.memory_space<vmem>>, vector<288x4xf32>
    %c0_47 = arith.constant 0 : index
    %c1_48 = arith.constant 1 : index
    %c0_49 = arith.constant 0 : index
    %c0_50 = arith.constant 0 : index
    %79 = vector.load %arg5[%c0_47, %c1_48, %c0_49, %c0_50] : memref<3x3x4x4xf32, #tpu.memory_space<vmem>>, vector<1x1x4x4xf32>
    %80 = vector.shape_cast %79 : vector<1x1x4x4xf32> to vector<4x4xf32>
    %cst_51 = arith.constant dense<0.000000e+00> : vector<288x4xf32>
    %81 = tpu.matmul %78, %80, %cst_51 {dimension_numbers = #tpu.dot_dimension_numbers<[1], [0], [0], [1], [0, 0, 1, 1], [], []>} : vector<288x4xf32>, vector<4x4xf32>, vector<288x4xf32> -> vector<288x4xf32>
    %82 = arith.addf %77, %81 : vector<288x4xf32>
    %c2 = arith.constant 2 : index
    %c0_52 = arith.constant 0 : index
    %83 = vector.load %arg8[%c2, %c0_52] : memref<342x4xf32, #tpu.memory_space<vmem>>, vector<288x4xf32>
    %c0_53 = arith.constant 0 : index
    %c2_54 = arith.constant 2 : index
    %c0_55 = arith.constant 0 : index
    %c0_56 = arith.constant 0 : index
    %84 = vector.load %arg5[%c0_53, %c2_54, %c0_55, %c0_56] : memref<3x3x4x4xf32, #tpu.memory_space<vmem>>, vector<1x1x4x4xf32>
    %85 = vector.shape_cast %84 : vector<1x1x4x4xf32> to vector<4x4xf32>
    %cst_57 = arith.constant dense<0.000000e+00> : vector<288x4xf32>
    %86 = tpu.matmul %83, %85, %cst_57 {dimension_numbers = #tpu.dot_dimension_numbers<[1], [0], [0], [1], [0, 0, 1, 1], [], []>} : vector<288x4xf32>, vector<4x4xf32>, vector<288x4xf32> -> vector<288x4xf32>
    %87 = arith.addf %82, %86 : vector<288x4xf32>
    %c18 = arith.constant 18 : index
    %c0_58 = arith.constant 0 : index
    %88 = vector.load %arg8[%c18, %c0_58] : memref<342x4xf32, #tpu.memory_space<vmem>>, vector<288x4xf32>
    %c1_59 = arith.constant 1 : index
    %c0_60 = arith.constant 0 : index
    %c0_61 = arith.constant 0 : index
    %c0_62 = arith.constant 0 : index
    %89 = vector.load %arg5[%c1_59, %c0_60, %c0_61, %c0_62] : memref<3x3x4x4xf32, #tpu.memory_space<vmem>>, vector<1x1x4x4xf32>
    %90 = vector.shape_cast %89 : vector<1x1x4x4xf32> to vector<4x4xf32>
    %cst_63 = arith.constant dense<0.000000e+00> : vector<288x4xf32>
    %91 = tpu.matmul %88, %90, %cst_63 {dimension_numbers = #tpu.dot_dimension_numbers<[1], [0], [0], [1], [0, 0, 1, 1], [], []>} : vector<288x4xf32>, vector<4x4xf32>, vector<288x4xf32> -> vector<288x4xf32>
    %92 = arith.addf %87, %91 : vector<288x4xf32>
    %c19_64 = arith.constant 19 : index
    %c0_65 = arith.constant 0 : index
    %93 = vector.load %arg8[%c19_64, %c0_65] : memref<342x4xf32, #tpu.memory_space<vmem>>, vector<288x4xf32>
    %c1_66 = arith.constant 1 : index
    %c1_67 = arith.constant 1 : index
    %c0_68 = arith.constant 0 : index
    %c0_69 = arith.constant 0 : index
    %94 = vector.load %arg5[%c1_66, %c1_67, %c0_68, %c0_69] : memref<3x3x4x4xf32, #tpu.memory_space<vmem>>, vector<1x1x4x4xf32>
    %95 = vector.shape_cast %94 : vector<1x1x4x4xf32> to vector<4x4xf32>
    %cst_70 = arith.constant dense<0.000000e+00> : vector<288x4xf32>
    %96 = tpu.matmul %93, %95, %cst_70 {dimension_numbers = #tpu.dot_dimension_numbers<[1], [0], [0], [1], [0, 0, 1, 1], [], []>} : vector<288x4xf32>, vector<4x4xf32>, vector<288x4xf32> -> vector<288x4xf32>
    %97 = arith.addf %92, %96 : vector<288x4xf32>
    %c20 = arith.constant 20 : index
    %c0_71 = arith.constant 0 : index
    %98 = vector.load %arg8[%c20, %c0_71] : memref<342x4xf32, #tpu.memory_space<vmem>>, vector<288x4xf32>
    %c1_72 = arith.constant 1 : index
    %c2_73 = arith.constant 2 : index
    %c0_74 = arith.constant 0 : index
    %c0_75 = arith.constant 0 : index
    %99 = vector.load %arg5[%c1_72, %c2_73, %c0_74, %c0_75] : memref<3x3x4x4xf32, #tpu.memory_space<vmem>>, vector<1x1x4x4xf32>
    %100 = vector.shape_cast %99 : vector<1x1x4x4xf32> to vector<4x4xf32>
    %cst_76 = arith.constant dense<0.000000e+00> : vector<288x4xf32>
    %101 = tpu.matmul %98, %100, %cst_76 {dimension_numbers = #tpu.dot_dimension_numbers<[1], [0], [0], [1], [0, 0, 1, 1], [], []>} : vector<288x4xf32>, vector<4x4xf32>, vector<288x4xf32> -> vector<288x4xf32>
    %102 = arith.addf %97, %101 : vector<288x4xf32>
    %c36 = arith.constant 36 : index
    %c0_77 = arith.constant 0 : index
    %103 = vector.load %arg8[%c36, %c0_77] : memref<342x4xf32, #tpu.memory_space<vmem>>, vector<288x4xf32>
    %c2_78 = arith.constant 2 : index
    %c0_79 = arith.constant 0 : index
    %c0_80 = arith.constant 0 : index
    %c0_81 = arith.constant 0 : index
    %104 = vector.load %arg5[%c2_78, %c0_79, %c0_80, %c0_81] : memref<3x3x4x4xf32, #tpu.memory_space<vmem>>, vector<1x1x4x4xf32>
    %105 = vector.shape_cast %104 : vector<1x1x4x4xf32> to vector<4x4xf32>
    %cst_82 = arith.constant dense<0.000000e+00> : vector<288x4xf32>
    %106 = tpu.matmul %103, %105, %cst_82 {dimension_numbers = #tpu.dot_dimension_numbers<[1], [0], [0], [1], [0, 0, 1, 1], [], []>} : vector<288x4xf32>, vector<4x4xf32>, vector<288x4xf32> -> vector<288x4xf32>
    %107 = arith.addf %102, %106 : vector<288x4xf32>
    %c37_83 = arith.constant 37 : index
    %c0_84 = arith.constant 0 : index
    %108 = vector.load %arg8[%c37_83, %c0_84] : memref<342x4xf32, #tpu.memory_space<vmem>>, vector<288x4xf32>
    %c2_85 = arith.constant 2 : index
    %c1_86 = arith.constant 1 : index
    %c0_87 = arith.constant 0 : index
    %c0_88 = arith.constant 0 : index
    %109 = vector.load %arg5[%c2_85, %c1_86, %c0_87, %c0_88] : memref<3x3x4x4xf32, #tpu.memory_space<vmem>>, vector<1x1x4x4xf32>
    %110 = vector.shape_cast %109 : vector<1x1x4x4xf32> to vector<4x4xf32>
    %cst_89 = arith.constant dense<0.000000e+00> : vector<288x4xf32>
    %111 = tpu.matmul %108, %110, %cst_89 {dimension_numbers = #tpu.dot_dimension_numbers<[1], [0], [0], [1], [0, 0, 1, 1], [], []>} : vector<288x4xf32>, vector<4x4xf32>, vector<288x4xf32> -> vector<288x4xf32>
    %112 = arith.addf %107, %111 : vector<288x4xf32>
    %c38 = arith.constant 38 : index
    %c0_90 = arith.constant 0 : index
    %113 = vector.load %arg8[%c38, %c0_90] : memref<342x4xf32, #tpu.memory_space<vmem>>, vector<288x4xf32>
    %c2_91 = arith.constant 2 : index
    %c2_92 = arith.constant 2 : index
    %c0_93 = arith.constant 0 : index
    %c0_94 = arith.constant 0 : index
    %114 = vector.load %arg5[%c2_91, %c2_92, %c0_93, %c0_94] : memref<3x3x4x4xf32, #tpu.memory_space<vmem>>, vector<1x1x4x4xf32>
    %115 = vector.shape_cast %114 : vector<1x1x4x4xf32> to vector<4x4xf32>
    %cst_95 = arith.constant dense<0.000000e+00> : vector<288x4xf32>
    %116 = tpu.matmul %113, %115, %cst_95 {dimension_numbers = #tpu.dot_dimension_numbers<[1], [0], [0], [1], [0, 0, 1, 1], [], []>} : vector<288x4xf32>, vector<4x4xf32>, vector<288x4xf32> -> vector<288x4xf32>
    %117 = arith.addf %112, %116 : vector<288x4xf32>
    %c0_96 = arith.constant 0 : index
    %c0_97 = arith.constant 0 : index
    %118 = vector.load %arg6[%c0_96, %c0_97] : memref<1x4xf32, #tpu.memory_space<vmem>>, vector<1x4xf32>
    %119 = vector.extract_strided_slice %117 {offsets = [0, 0], sizes = [16, 4], strides = [1, 1]} : vector<288x4xf32> to vector<16x4xf32>
    %120 = vector.broadcast %118 : vector<1x4xf32> to vector<16x4xf32>
    %121 = arith.addf %119, %120 : vector<16x4xf32>
    %c0_98 = arith.constant 0 : index
    %c0_99 = arith.constant 0 : index
    %c0_100 = arith.constant 0 : index
    %122 = vector.load %arg7[%c0_98, %c0_99, %c0_100] : memref<1x256x4xf32, #tpu.memory_space<vmem>>, vector<1x16x4xf32>
    %123 = vector.shape_cast %122 : vector<1x16x4xf32> to vector<16x4xf32>
    %124 = vector.shape_cast %121 : vector<16x4xf32> to vector<1x16x4xf32>
    tpu.vector_store %arg7[%c0_98, %c0_99, %c0_100], %124 {strides = array<i32>} : memref<1x256x4xf32, #tpu.memory_space<vmem>>, vector<1x16x4xf32>,
    %125 = vector.extract_strided_slice %117 {offsets = [18, 0], sizes = [16, 4], strides = [1, 1]} : vector<288x4xf32> to vector<16x4xf32>
    %126 = vector.broadcast %118 : vector<1x4xf32> to vector<16x4xf32>
    %127 = arith.addf %125, %126 : vector<16x4xf32>
    %c0_101 = arith.constant 0 : index
    %c16 = arith.constant 16 : index
    %c0_102 = arith.constant 0 : index
    %128 = vector.load %arg7[%c0_101, %c16, %c0_102] : memref<1x256x4xf32, #tpu.memory_space<vmem>>, vector<1x16x4xf32>
    %129 = vector.shape_cast %128 : vector<1x16x4xf32> to vector<16x4xf32>
    %130 = vector.shape_cast %127 : vector<16x4xf32> to vector<1x16x4xf32>
    tpu.vector_store %arg7[%c0_101, %c16, %c0_102], %130 {strides = array<i32>} : memref<1x256x4xf32, #tpu.memory_space<vmem>>, vector<1x16x4xf32>,
    %131 = vector.extract_strided_slice %117 {offsets = [36, 0], sizes = [16, 4], strides = [1, 1]} : vector<288x4xf32> to vector<16x4xf32>
    %132 = vector.broadcast %118 : vector<1x4xf32> to vector<16x4xf32>
    %133 = arith.addf %131, %132 : vector<16x4xf32>
    %c0_103 = arith.constant 0 : index
    %c32 = arith.constant 32 : index
    %c0_104 = arith.constant 0 : index
    %134 = vector.load %arg7[%c0_103, %c32, %c0_104] : memref<1x256x4xf32, #tpu.memory_space<vmem>>, vector<1x16x4xf32>
    %135 = vector.shape_cast %134 : vector<1x16x4xf32> to vector<16x4xf32>
    %136 = vector.shape_cast %133 : vector<16x4xf32> to vector<1x16x4xf32>
    tpu.vector_store %arg7[%c0_103, %c32, %c0_104], %136 {strides = array<i32>} : memref<1x256x4xf32, #tpu.memory_space<vmem>>, vector<1x16x4xf32>,
    %137 = vector.extract_strided_slice %117 {offsets = [54, 0], sizes = [16, 4], strides = [1, 1]} : vector<288x4xf32> to vector<16x4xf32>
    %138 = vector.broadcast %118 : vector<1x4xf32> to vector<16x4xf32>
    %139 = arith.addf %137, %138 : vector<16x4xf32>
    %c0_105 = arith.constant 0 : index
    %c48 = arith.constant 48 : index
    %c0_106 = arith.constant 0 : index
    %140 = vector.load %arg7[%c0_105, %c48, %c0_106] : memref<1x256x4xf32, #tpu.memory_space<vmem>>, vector<1x16x4xf32>
    %141 = vector.shape_cast %140 : vector<1x16x4xf32> to vector<16x4xf32>
    %142 = vector.shape_cast %139 : vector<16x4xf32> to vector<1x16x4xf32>
    tpu.vector_store %arg7[%c0_105, %c48, %c0_106], %142 {strides = array<i32>} : memref<1x256x4xf32, #tpu.memory_space<vmem>>, vector<1x16x4xf32>,
    %143 = vector.extract_strided_slice %117 {offsets = [72, 0], sizes = [16, 4], strides = [1, 1]} : vector<288x4xf32> to vector<16x4xf32>
    %144 = vector.broadcast %118 : vector<1x4xf32> to vector<16x4xf32>
    %145 = arith.addf %143, %144 : vector<16x4xf32>
    %c0_107 = arith.constant 0 : index
    %c64 = arith.constant 64 : index
    %c0_108 = arith.constant 0 : index
    %146 = vector.load %arg7[%c0_107, %c64, %c0_108] : memref<1x256x4xf32, #tpu.memory_space<vmem>>, vector<1x16x4xf32>
    %147 = vector.shape_cast %146 : vector<1x16x4xf32> to vector<16x4xf32>
    %148 = vector.shape_cast %145 : vector<16x4xf32> to vector<1x16x4xf32>
    tpu.vector_store %arg7[%c0_107, %c64, %c0_108], %148 {strides = array<i32>} : memref<1x256x4xf32, #tpu.memory_space<vmem>>, vector<1x16x4xf32>,
    %149 = vector.extract_strided_slice %117 {offsets = [90, 0], sizes = [16, 4], strides = [1, 1]} : vector<288x4xf32> to vector<16x4xf32>
    %150 = vector.broadcast %118 : vector<1x4xf32> to vector<16x4xf32>
    %151 = arith.addf %149, %150 : vector<16x4xf32>
    %c0_109 = arith.constant 0 : index
    %c80 = arith.constant 80 : index
    %c0_110 = arith.constant 0 : index
    %152 = vector.load %arg7[%c0_109, %c80, %c0_110] : memref<1x256x4xf32, #tpu.memory_space<vmem>>, vector<1x16x4xf32>
    %153 = vector.shape_cast %152 : vector<1x16x4xf32> to vector<16x4xf32>
    %154 = vector.shape_cast %151 : vector<16x4xf32> to vector<1x16x4xf32>
    tpu.vector_store %arg7[%c0_109, %c80, %c0_110], %154 {strides = array<i32>} : memref<1x256x4xf32, #tpu.memory_space<vmem>>, vector<1x16x4xf32>,
    %155 = vector.extract_strided_slice %117 {offsets = [108, 0], sizes = [16, 4], strides = [1, 1]} : vector<288x4xf32> to vector<16x4xf32>
    %156 = vector.broadcast %118 : vector<1x4xf32> to vector<16x4xf32>
    %157 = arith.addf %155, %156 : vector<16x4xf32>
    %c0_111 = arith.constant 0 : index
    %c96 = arith.constant 96 : index
    %c0_112 = arith.constant 0 : index
    %158 = vector.load %arg7[%c0_111, %c96, %c0_112] : memref<1x256x4xf32, #tpu.memory_space<vmem>>, vector<1x16x4xf32>
    %159 = vector.shape_cast %158 : vector<1x16x4xf32> to vector<16x4xf32>
    %160 = vector.shape_cast %157 : vector<16x4xf32> to vector<1x16x4xf32>
    tpu.vector_store %arg7[%c0_111, %c96, %c0_112], %160 {strides = array<i32>} : memref<1x256x4xf32, #tpu.memory_space<vmem>>, vector<1x16x4xf32>,
    %161 = vector.extract_strided_slice %117 {offsets = [126, 0], sizes = [16, 4], strides = [1, 1]} : vector<288x4xf32> to vector<16x4xf32>
    %162 = vector.broadcast %118 : vector<1x4xf32> to vector<16x4xf32>
    %163 = arith.addf %161, %162 : vector<16x4xf32>
    %c0_113 = arith.constant 0 : index
    %c112 = arith.constant 112 : index
    %c0_114 = arith.constant 0 : index
    %164 = vector.load %arg7[%c0_113, %c112, %c0_114] : memref<1x256x4xf32, #tpu.memory_space<vmem>>, vector<1x16x4xf32>
    %165 = vector.shape_cast %164 : vector<1x16x4xf32> to vector<16x4xf32>
    %166 = vector.shape_cast %163 : vector<16x4xf32> to vector<1x16x4xf32>
    tpu.vector_store %arg7[%c0_113, %c112, %c0_114], %166 {strides = array<i32>} : memref<1x256x4xf32, #tpu.memory_space<vmem>>, vector<1x16x4xf32>,
    %167 = vector.extract_strided_slice %117 {offsets = [144, 0], sizes = [16, 4], strides = [1, 1]} : vector<288x4xf32> to vector<16x4xf32>
    %168 = vector.broadcast %118 : vector<1x4xf32> to vector<16x4xf32>
    %169 = arith.addf %167, %168 : vector<16x4xf32>
    %c0_115 = arith.constant 0 : index
    %c128 = arith.constant 128 : index
    %c0_116 = arith.constant 0 : index
    %170 = vector.load %arg7[%c0_115, %c128, %c0_116] : memref<1x256x4xf32, #tpu.memory_space<vmem>>, vector<1x16x4xf32>
    %171 = vector.shape_cast %170 : vector<1x16x4xf32> to vector<16x4xf32>
    %172 = vector.shape_cast %169 : vector<16x4xf32> to vector<1x16x4xf32>
    tpu.vector_store %arg7[%c0_115, %c128, %c0_116], %172 {strides = array<i32>} : memref<1x256x4xf32, #tpu.memory_space<vmem>>, vector<1x16x4xf32>,
    %173 = vector.extract_strided_slice %117 {offsets = [162, 0], sizes = [16, 4], strides = [1, 1]} : vector<288x4xf32> to vector<16x4xf32>
    %174 = vector.broadcast %118 : vector<1x4xf32> to vector<16x4xf32>
    %175 = arith.addf %173, %174 : vector<16x4xf32>
    %c0_117 = arith.constant 0 : index
    %c144 = arith.constant 144 : index
    %c0_118 = arith.constant 0 : index
    %176 = vector.load %arg7[%c0_117, %c144, %c0_118] : memref<1x256x4xf32, #tpu.memory_space<vmem>>, vector<1x16x4xf32>
    %177 = vector.shape_cast %176 : vector<1x16x4xf32> to vector<16x4xf32>
    %178 = vector.shape_cast %175 : vector<16x4xf32> to vector<1x16x4xf32>
    tpu.vector_store %arg7[%c0_117, %c144, %c0_118], %178 {strides = array<i32>} : memref<1x256x4xf32, #tpu.memory_space<vmem>>, vector<1x16x4xf32>,
    %179 = vector.extract_strided_slice %117 {offsets = [180, 0], sizes = [16, 4], strides = [1, 1]} : vector<288x4xf32> to vector<16x4xf32>
    %180 = vector.broadcast %118 : vector<1x4xf32> to vector<16x4xf32>
    %181 = arith.addf %179, %180 : vector<16x4xf32>
    %c0_119 = arith.constant 0 : index
    %c160 = arith.constant 160 : index
    %c0_120 = arith.constant 0 : index
    %182 = vector.load %arg7[%c0_119, %c160, %c0_120] : memref<1x256x4xf32, #tpu.memory_space<vmem>>, vector<1x16x4xf32>
    %183 = vector.shape_cast %182 : vector<1x16x4xf32> to vector<16x4xf32>
    %184 = vector.shape_cast %181 : vector<16x4xf32> to vector<1x16x4xf32>
    tpu.vector_store %arg7[%c0_119, %c160, %c0_120], %184 {strides = array<i32>} : memref<1x256x4xf32, #tpu.memory_space<vmem>>, vector<1x16x4xf32>,
    %185 = vector.extract_strided_slice %117 {offsets = [198, 0], sizes = [16, 4], strides = [1, 1]} : vector<288x4xf32> to vector<16x4xf32>
    %186 = vector.broadcast %118 : vector<1x4xf32> to vector<16x4xf32>
    %187 = arith.addf %185, %186 : vector<16x4xf32>
    %c0_121 = arith.constant 0 : index
    %c176 = arith.constant 176 : index
    %c0_122 = arith.constant 0 : index
    %188 = vector.load %arg7[%c0_121, %c176, %c0_122] : memref<1x256x4xf32, #tpu.memory_space<vmem>>, vector<1x16x4xf32>
    %189 = vector.shape_cast %188 : vector<1x16x4xf32> to vector<16x4xf32>
    %190 = vector.shape_cast %187 : vector<16x4xf32> to vector<1x16x4xf32>
    tpu.vector_store %arg7[%c0_121, %c176, %c0_122], %190 {strides = array<i32>} : memref<1x256x4xf32, #tpu.memory_space<vmem>>, vector<1x16x4xf32>,
    %191 = vector.extract_strided_slice %117 {offsets = [216, 0], sizes = [16, 4], strides = [1, 1]} : vector<288x4xf32> to vector<16x4xf32>
    %192 = vector.broadcast %118 : vector<1x4xf32> to vector<16x4xf32>
    %193 = arith.addf %191, %192 : vector<16x4xf32>
    %c0_123 = arith.constant 0 : index
    %c192 = arith.constant 192 : index
    %c0_124 = arith.constant 0 : index
    %194 = vector.load %arg7[%c0_123, %c192, %c0_124] : memref<1x256x4xf32, #tpu.memory_space<vmem>>, vector<1x16x4xf32>
    %195 = vector.shape_cast %194 : vector<1x16x4xf32> to vector<16x4xf32>
    %196 = vector.shape_cast %193 : vector<16x4xf32> to vector<1x16x4xf32>
    tpu.vector_store %arg7[%c0_123, %c192, %c0_124], %196 {strides = array<i32>} : memref<1x256x4xf32, #tpu.memory_space<vmem>>, vector<1x16x4xf32>,
    %197 = vector.extract_strided_slice %117 {offsets = [234, 0], sizes = [16, 4], strides = [1, 1]} : vector<288x4xf32> to vector<16x4xf32>
    %198 = vector.broadcast %118 : vector<1x4xf32> to vector<16x4xf32>
    %199 = arith.addf %197, %198 : vector<16x4xf32>
    %c0_125 = arith.constant 0 : index
    %c208 = arith.constant 208 : index
    %c0_126 = arith.constant 0 : index
    %200 = vector.load %arg7[%c0_125, %c208, %c0_126] : memref<1x256x4xf32, #tpu.memory_space<vmem>>, vector<1x16x4xf32>
    %201 = vector.shape_cast %200 : vector<1x16x4xf32> to vector<16x4xf32>
    %202 = vector.shape_cast %199 : vector<16x4xf32> to vector<1x16x4xf32>
    tpu.vector_store %arg7[%c0_125, %c208, %c0_126], %202 {strides = array<i32>} : memref<1x256x4xf32, #tpu.memory_space<vmem>>, vector<1x16x4xf32>,
    %203 = vector.extract_strided_slice %117 {offsets = [252, 0], sizes = [16, 4], strides = [1, 1]} : vector<288x4xf32> to vector<16x4xf32>
    %204 = vector.broadcast %118 : vector<1x4xf32> to vector<16x4xf32>
    %205 = arith.addf %203, %204 : vector<16x4xf32>
    %c0_127 = arith.constant 0 : index
    %c224 = arith.constant 224 : index
    %c0_128 = arith.constant 0 : index
    %206 = vector.load %arg7[%c0_127, %c224, %c0_128] : memref<1x256x4xf32, #tpu.memory_space<vmem>>, vector<1x16x4xf32>
    %207 = vector.shape_cast %206 : vector<1x16x4xf32> to vector<16x4xf32>
    %208 = vector.shape_cast %205 : vector<16x4xf32> to vector<1x16x4xf32>
    tpu.vector_store %arg7[%c0_127, %c224, %c0_128], %208 {strides = array<i32>} : memref<1x256x4xf32, #tpu.memory_space<vmem>>, vector<1x16x4xf32>,
    %209 = vector.extract_strided_slice %117 {offsets = [270, 0], sizes = [16, 4], strides = [1, 1]} : vector<288x4xf32> to vector<16x4xf32>
    %210 = vector.broadcast %118 : vector<1x4xf32> to vector<16x4xf32>
    %211 = arith.addf %209, %210 : vector<16x4xf32>
    %c0_129 = arith.constant 0 : index
    %c240 = arith.constant 240 : index
    %c0_130 = arith.constant 0 : index
    %212 = vector.load %arg7[%c0_129, %c240, %c0_130] : memref<1x256x4xf32, #tpu.memory_space<vmem>>, vector<1x16x4xf32>
    %213 = vector.shape_cast %212 : vector<1x16x4xf32> to vector<16x4xf32>
    %214 = vector.shape_cast %211 : vector<16x4xf32> to vector<1x16x4xf32>
    tpu.vector_store %arg7[%c0_129, %c240, %c0_130], %214 {strides = array<i32>} : memref<1x256x4xf32, #tpu.memory_space<vmem>>, vector<1x16x4xf32>,
    return
  }
  func.func @transform_0(%arg0: i32) -> (i32, i32, i32) {
    %c0_i32 = arith.constant 0 : i32
    %c0_i32_0 = arith.constant 0 : i32
    %c0_i32_1 = arith.constant 0 : i32
    return %arg0, %c0_i32, %c0_i32_0 : i32, i32, i32
  }
  func.func @transform_1(%arg0: i32) -> (i32, i32) {
    %c0_i32 = arith.constant 0 : i32
    %c0_i32_0 = arith.constant 0 : i32
    %c0_i32_1 = arith.constant 0 : i32
    return %c0_i32, %c0_i32_0 : i32, i32
  }
  func.func @transform_2(%arg0: i32) -> (i32, i32) {
    %c0_i32 = arith.constant 0 : i32
    %c0_i32_0 = arith.constant 0 : i32
    %c0_i32_1 = arith.constant 0 : i32
    return %c0_i32, %c0_i32_0 : i32, i32
  }
  func.func @transform_3(%arg0: i32) -> (i32, i32) {
    %c0_i32 = arith.constant 0 : i32
    %c0_i32_0 = arith.constant 0 : i32
    %c0_i32_1 = arith.constant 0 : i32
    return %c0_i32, %c0_i32_0 : i32, i32
  }
  func.func @transform_4(%arg0: i32) -> (i32, i32, i32, i32) {
    %c0_i32 = arith.constant 0 : i32
    %c0_i32_0 = arith.constant 0 : i32
    %c0_i32_1 = arith.constant 0 : i32
    %c0_i32_2 = arith.constant 0 : i32
    %c0_i32_3 = arith.constant 0 : i32
    return %c0_i32, %c0_i32_0, %c0_i32_1, %c0_i32_2 : i32, i32, i32, i32
  }
  func.func @transform_5(%arg0: i32) -> (i32, i32) {
    %c0_i32 = arith.constant 0 : i32
    %c0_i32_0 = arith.constant 0 : i32
    %c0_i32_1 = arith.constant 0 : i32
    return %c0_i32, %c0_i32_0 : i32, i32
  }
  func.func @transform_6(%arg0: i32) -> (i32, i32, i32) {
    %c0_i32 = arith.constant 0 : i32
    %c0_i32_0 = arith.constant 0 : i32
    %c0_i32_1 = arith.constant 0 : i32
    return %arg0, %c0_i32, %c0_i32_0 : i32, i32, i32
  }
}

module attributes {stable_mosaic.version = 11 : i64} {
  func.func @gsc_fused_kernel(%arg0: i32, %arg1: memref<1x256x4xf32, #tpu.memory_space<vmem>>, %arg2: memref<1x1x4xf32, #tpu.memory_space<vmem>>, %arg3: memref<1x4xf32, #tpu.memory_space<vmem>>, %arg4: memref<1x4xf32, #tpu.memory_space<vmem>>, %arg5: memref<3x3x4x4xf32, #tpu.memory_space<vmem>>, %arg6: memref<1x4xf32, #tpu.memory_space<vmem>>, %arg7: memref<1x256x4xf32, #tpu.memory_space<vmem>>, %arg8: memref<342x4xf32, #tpu.memory_space<vmem>>) attributes {dimension_semantics = [#tpu.dimension_semantics<parallel>], iteration_bounds = array<i64: 2>, scalar_prefetch = 0 : i64, scratch_operands = 1 : i64, tpu.core_type = #tpu.core_type<tc>, window_params = [{transform_indices = @transform_0, window_bounds = array<i64: 1, 256, 4>}, {transform_indices = @transform_1, window_bounds = array<i64: 1, 1, 4>}, {pipeline_mode = #tpu.pipeline_mode<synchronous>, transform_indices = @transform_2, window_bounds = array<i64: 1, 4>}, {pipeline_mode = #tpu.pipeline_mode<synchronous>, transform_indices = @transform_3, window_bounds = array<i64: 1, 4>}, {pipeline_mode = #tpu.pipeline_mode<synchronous>, transform_indices = @transform_4, window_bounds = array<i64: 3, 3, 4, 4>}, {pipeline_mode = #tpu.pipeline_mode<synchronous>, transform_indices = @transform_5, window_bounds = array<i64: 1, 4>}, {transform_indices = @transform_6, window_bounds = array<i64: 1, 256, 4>}]} {
    %c0 = arith.constant 0 : index
    %c0_0 = arith.constant 0 : index
    %c0_1 = arith.constant 0 : index
    %0 = vector.load %arg1[%c0, %c0_0, %c0_1] : memref<1x256x4xf32, #tpu.memory_space<vmem>>, vector<1x256x4xf32>
    %1 = vector.shape_cast %0 : vector<1x256x4xf32> to vector<256x4xf32>
    %c0_2 = arith.constant 0 : index
    %c0_3 = arith.constant 0 : index
    %c0_4 = arith.constant 0 : index
    %2 = vector.load %arg2[%c0_2, %c0_3, %c0_4] : memref<1x1x4xf32, #tpu.memory_space<vmem>>, vector<1x1x4xf32>
    %3 = vector.shape_cast %2 : vector<1x1x4xf32> to vector<1x4xf32>
    %4 = vector.broadcast %3 : vector<1x4xf32> to vector<256x4xf32>
    %5 = arith.addf %1, %4 : vector<256x4xf32>
    %cst = arith.constant dense<0.000000e+00> : vector<4xf32>
    %6 = vector.multi_reduction <add>, %5, %cst [0] : vector<256x4xf32> to vector<4xf32>
    %7 = vector.shape_cast %6 : vector<4xf32> to vector<1x4xf32>
    %8 = arith.mulf %5, %5 : vector<256x4xf32>
    %cst_5 = arith.constant dense<0.000000e+00> : vector<4xf32>
    %9 = vector.multi_reduction <add>, %8, %cst_5 [0] : vector<256x4xf32> to vector<4xf32>
    %10 = vector.shape_cast %9 : vector<4xf32> to vector<1x4xf32>
    %cst_6 = arith.constant 3.906250e-03 : f32
    %11 = vector.broadcast %cst_6 : f32 to vector<1x4xf32>
    %12 = arith.mulf %7, %11 : vector<1x4xf32>
    %cst_7 = arith.constant 3.906250e-03 : f32
    %13 = vector.broadcast %cst_7 : f32 to vector<1x4xf32>
    %14 = arith.mulf %10, %13 : vector<1x4xf32>
    %15 = arith.mulf %12, %12 : vector<1x4xf32>
    %16 = arith.subf %14, %15 : vector<1x4xf32>
    %17 = vector.broadcast %12 : vector<1x4xf32> to vector<256x4xf32>
    %18 = arith.subf %5, %17 : vector<256x4xf32>
    %cst_8 = arith.constant 9.99999974E-6 : f32
    %19 = vector.broadcast %cst_8 : f32 to vector<1x4xf32>
    %20 = arith.addf %16, %19 : vector<1x4xf32>
    %21 = math.rsqrt %20 : vector<1x4xf32>
    %22 = vector.broadcast %21 : vector<1x4xf32> to vector<256x4xf32>
    %23 = arith.mulf %18, %22 : vector<256x4xf32>
    %c0_9 = arith.constant 0 : index
    %c0_10 = arith.constant 0 : index
    %24 = vector.load %arg3[%c0_9, %c0_10] : memref<1x4xf32, #tpu.memory_space<vmem>>, vector<1x4xf32>
    %25 = vector.broadcast %24 : vector<1x4xf32> to vector<256x4xf32>
    %26 = arith.mulf %23, %25 : vector<256x4xf32>
    %c0_11 = arith.constant 0 : index
    %c0_12 = arith.constant 0 : index
    %27 = vector.load %arg4[%c0_11, %c0_12] : memref<1x4xf32, #tpu.memory_space<vmem>>, vector<1x4xf32>
    %28 = vector.broadcast %27 : vector<1x4xf32> to vector<256x4xf32>
    %29 = arith.addf %26, %28 : vector<256x4xf32>
    %cst_13 = arith.constant 0.000000e+00 : f32
    %30 = vector.broadcast %cst_13 : f32 to vector<256x4xf32>
    %31 = arith.subf %30, %29 : vector<256x4xf32>
    %32 = math.exp %31 : vector<256x4xf32>
    %cst_14 = arith.constant 1.000000e+00 : f32
    %33 = vector.broadcast %cst_14 : f32 to vector<256x4xf32>
    %34 = arith.addf %33, %32 : vector<256x4xf32>
    %cst_15 = arith.constant 1.000000e+00 : f32
    %35 = vector.broadcast %cst_15 : f32 to vector<256x4xf32>
    %36 = arith.divf %35, %34 : vector<256x4xf32>
    %37 = arith.mulf %29, %36 : vector<256x4xf32>
    %cst_16 = arith.constant 0.000000e+00 : f32
    %38 = vector.broadcast %cst_16 : f32 to vector<342x4xf32>
    %c0_17 = arith.constant 0 : index
    %c0_18 = arith.constant 0 : index
    %39 = vector.load %arg8[%c0_17, %c0_18] : memref<342x4xf32, #tpu.memory_space<vmem>>, vector<342x4xf32>
    tpu.vector_store %arg8[%c0_17, %c0_18], %38 {strides = array<i32>} : memref<342x4xf32, #tpu.memory_space<vmem>>, vector<342x4xf32>,
    %40 = vector.extract_strided_slice %37 {offsets = [0, 0], sizes = [16, 4], strides = [1, 1]} : vector<256x4xf32> to vector<16x4xf32>
    %c19 = arith.constant 19 : index
    %c0_19 = arith.constant 0 : index
    %41 = vector.load %arg8[%c19, %c0_19] : memref<342x4xf32, #tpu.memory_space<vmem>>, vector<16x4xf32>
    tpu.vector_store %arg8[%c19, %c0_19], %40 {strides = array<i32>} : memref<342x4xf32, #tpu.memory_space<vmem>>, vector<16x4xf32>,
    %42 = vector.extract_strided_slice %37 {offsets = [16, 0], sizes = [16, 4], strides = [1, 1]} : vector<256x4xf32> to vector<16x4xf32>
    %c37 = arith.constant 37 : index
    %c0_20 = arith.constant 0 : index
    %43 = vector.load %arg8[%c37, %c0_20] : memref<342x4xf32, #tpu.memory_space<vmem>>, vector<16x4xf32>
    tpu.vector_store %arg8[%c37, %c0_20], %42 {strides = array<i32>} : memref<342x4xf32, #tpu.memory_space<vmem>>, vector<16x4xf32>,
    %44 = vector.extract_strided_slice %37 {offsets = [32, 0], sizes = [16, 4], strides = [1, 1]} : vector<256x4xf32> to vector<16x4xf32>
    %c55 = arith.constant 55 : index
    %c0_21 = arith.constant 0 : index
    %45 = vector.load %arg8[%c55, %c0_21] : memref<342x4xf32, #tpu.memory_space<vmem>>, vector<16x4xf32>
    tpu.vector_store %arg8[%c55, %c0_21], %44 {strides = array<i32>} : memref<342x4xf32, #tpu.memory_space<vmem>>, vector<16x4xf32>,
    %46 = vector.extract_strided_slice %37 {offsets = [48, 0], sizes = [16, 4], strides = [1, 1]} : vector<256x4xf32> to vector<16x4xf32>
    %c73 = arith.constant 73 : index
    %c0_22 = arith.constant 0 : index
    %47 = vector.load %arg8[%c73, %c0_22] : memref<342x4xf32, #tpu.memory_space<vmem>>, vector<16x4xf32>
    tpu.vector_store %arg8[%c73, %c0_22], %46 {strides = array<i32>} : memref<342x4xf32, #tpu.memory_space<vmem>>, vector<16x4xf32>,
    %48 = vector.extract_strided_slice %37 {offsets = [64, 0], sizes = [16, 4], strides = [1, 1]} : vector<256x4xf32> to vector<16x4xf32>
    %c91 = arith.constant 91 : index
    %c0_23 = arith.constant 0 : index
    %49 = vector.load %arg8[%c91, %c0_23] : memref<342x4xf32, #tpu.memory_space<vmem>>, vector<16x4xf32>
    tpu.vector_store %arg8[%c91, %c0_23], %48 {strides = array<i32>} : memref<342x4xf32, #tpu.memory_space<vmem>>, vector<16x4xf32>,
    %50 = vector.extract_strided_slice %37 {offsets = [80, 0], sizes = [16, 4], strides = [1, 1]} : vector<256x4xf32> to vector<16x4xf32>
    %c109 = arith.constant 109 : index
    %c0_24 = arith.constant 0 : index
    %51 = vector.load %arg8[%c109, %c0_24] : memref<342x4xf32, #tpu.memory_space<vmem>>, vector<16x4xf32>
    tpu.vector_store %arg8[%c109, %c0_24], %50 {strides = array<i32>} : memref<342x4xf32, #tpu.memory_space<vmem>>, vector<16x4xf32>,
    %52 = vector.extract_strided_slice %37 {offsets = [96, 0], sizes = [16, 4], strides = [1, 1]} : vector<256x4xf32> to vector<16x4xf32>
    %c127 = arith.constant 127 : index
    %c0_25 = arith.constant 0 : index
    %53 = vector.load %arg8[%c127, %c0_25] : memref<342x4xf32, #tpu.memory_space<vmem>>, vector<16x4xf32>
    tpu.vector_store %arg8[%c127, %c0_25], %52 {strides = array<i32>} : memref<342x4xf32, #tpu.memory_space<vmem>>, vector<16x4xf32>,
    %54 = vector.extract_strided_slice %37 {offsets = [112, 0], sizes = [16, 4], strides = [1, 1]} : vector<256x4xf32> to vector<16x4xf32>
    %c145 = arith.constant 145 : index
    %c0_26 = arith.constant 0 : index
    %55 = vector.load %arg8[%c145, %c0_26] : memref<342x4xf32, #tpu.memory_space<vmem>>, vector<16x4xf32>
    tpu.vector_store %arg8[%c145, %c0_26], %54 {strides = array<i32>} : memref<342x4xf32, #tpu.memory_space<vmem>>, vector<16x4xf32>,
    %56 = vector.extract_strided_slice %37 {offsets = [128, 0], sizes = [16, 4], strides = [1, 1]} : vector<256x4xf32> to vector<16x4xf32>
    %c163 = arith.constant 163 : index
    %c0_27 = arith.constant 0 : index
    %57 = vector.load %arg8[%c163, %c0_27] : memref<342x4xf32, #tpu.memory_space<vmem>>, vector<16x4xf32>
    tpu.vector_store %arg8[%c163, %c0_27], %56 {strides = array<i32>} : memref<342x4xf32, #tpu.memory_space<vmem>>, vector<16x4xf32>,
    %58 = vector.extract_strided_slice %37 {offsets = [144, 0], sizes = [16, 4], strides = [1, 1]} : vector<256x4xf32> to vector<16x4xf32>
    %c181 = arith.constant 181 : index
    %c0_28 = arith.constant 0 : index
    %59 = vector.load %arg8[%c181, %c0_28] : memref<342x4xf32, #tpu.memory_space<vmem>>, vector<16x4xf32>
    tpu.vector_store %arg8[%c181, %c0_28], %58 {strides = array<i32>} : memref<342x4xf32, #tpu.memory_space<vmem>>, vector<16x4xf32>,
    %60 = vector.extract_strided_slice %37 {offsets = [160, 0], sizes = [16, 4], strides = [1, 1]} : vector<256x4xf32> to vector<16x4xf32>
    %c199 = arith.constant 199 : index
    %c0_29 = arith.constant 0 : index
    %61 = vector.load %arg8[%c199, %c0_29] : memref<342x4xf32, #tpu.memory_space<vmem>>, vector<16x4xf32>
    tpu.vector_store %arg8[%c199, %c0_29], %60 {strides = array<i32>} : memref<342x4xf32, #tpu.memory_space<vmem>>, vector<16x4xf32>,
    %62 = vector.extract_strided_slice %37 {offsets = [176, 0], sizes = [16, 4], strides = [1, 1]} : vector<256x4xf32> to vector<16x4xf32>
    %c217 = arith.constant 217 : index
    %c0_30 = arith.constant 0 : index
    %63 = vector.load %arg8[%c217, %c0_30] : memref<342x4xf32, #tpu.memory_space<vmem>>, vector<16x4xf32>
    tpu.vector_store %arg8[%c217, %c0_30], %62 {strides = array<i32>} : memref<342x4xf32, #tpu.memory_space<vmem>>, vector<16x4xf32>,
    %64 = vector.extract_strided_slice %37 {offsets = [192, 0], sizes = [16, 4], strides = [1, 1]} : vector<256x4xf32> to vector<16x4xf32>
    %c235 = arith.constant 235 : index
    %c0_31 = arith.constant 0 : index
    %65 = vector.load %arg8[%c235, %c0_31] : memref<342x4xf32, #tpu.memory_space<vmem>>, vector<16x4xf32>
    tpu.vector_store %arg8[%c235, %c0_31], %64 {strides = array<i32>} : memref<342x4xf32, #tpu.memory_space<vmem>>, vector<16x4xf32>,
    %66 = vector.extract_strided_slice %37 {offsets = [208, 0], sizes = [16, 4], strides = [1, 1]} : vector<256x4xf32> to vector<16x4xf32>
    %c253 = arith.constant 253 : index
    %c0_32 = arith.constant 0 : index
    %67 = vector.load %arg8[%c253, %c0_32] : memref<342x4xf32, #tpu.memory_space<vmem>>, vector<16x4xf32>
    tpu.vector_store %arg8[%c253, %c0_32], %66 {strides = array<i32>} : memref<342x4xf32, #tpu.memory_space<vmem>>, vector<16x4xf32>,
    %68 = vector.extract_strided_slice %37 {offsets = [224, 0], sizes = [16, 4], strides = [1, 1]} : vector<256x4xf32> to vector<16x4xf32>
    %c271 = arith.constant 271 : index
    %c0_33 = arith.constant 0 : index
    %69 = vector.load %arg8[%c271, %c0_33] : memref<342x4xf32, #tpu.memory_space<vmem>>, vector<16x4xf32>
    tpu.vector_store %arg8[%c271, %c0_33], %68 {strides = array<i32>} : memref<342x4xf32, #tpu.memory_space<vmem>>, vector<16x4xf32>,
    %70 = vector.extract_strided_slice %37 {offsets = [240, 0], sizes = [16, 4], strides = [1, 1]} : vector<256x4xf32> to vector<16x4xf32>
    %c289 = arith.constant 289 : index
    %c0_34 = arith.constant 0 : index
    %71 = vector.load %arg8[%c289, %c0_34] : memref<342x4xf32, #tpu.memory_space<vmem>>, vector<16x4xf32>
    tpu.vector_store %arg8[%c289, %c0_34], %70 {strides = array<i32>} : memref<342x4xf32, #tpu.memory_space<vmem>>, vector<16x4xf32>,
    %cst_35 = arith.constant 0.000000e+00 : f32
    %72 = vector.broadcast %cst_35 : f32 to vector<288x4xf32>
    %c0_36 = arith.constant 0 : index
    %c0_37 = arith.constant 0 : index
    %73 = vector.load %arg8[%c0_36, %c0_37] : memref<342x4xf32, #tpu.memory_space<vmem>>, vector<288x4xf32>
    %c0_38 = arith.constant 0 : index
    %c0_39 = arith.constant 0 : index
    %c0_40 = arith.constant 0 : index
    %c0_41 = arith.constant 0 : index
    %74 = vector.load %arg5[%c0_38, %c0_39, %c0_40, %c0_41] : memref<3x3x4x4xf32, #tpu.memory_space<vmem>>, vector<1x1x4x4xf32>
    %75 = vector.shape_cast %74 : vector<1x1x4x4xf32> to vector<4x4xf32>
    %cst_42 = arith.constant dense<0.000000e+00> : vector<288x4xf32>
    %76 = tpu.matmul %73, %75, %cst_42 {dimension_numbers = #tpu.dot_dimension_numbers<[1], [0], [0], [1], [0, 0, 1, 1], [], []>} : vector<288x4xf32>, vector<4x4xf32>, vector<288x4xf32> -> vector<288x4xf32>
    %77 = arith.addf %72, %76 : vector<288x4xf32>
    %c1 = arith.constant 1 : index
    %c0_43 = arith.constant 0 : index
    %78 = vector.load %arg8[%c1, %c0_43] : memref<342x4xf32, #tpu.memory_space<vmem>>, vector<288x4xf32>
    %c0_44 = arith.constant 0 : index
    %c1_45 = arith.constant 1 : index
    %c0_46 = arith.constant 0 : index
    %c0_47 = arith.constant 0 : index
    %79 = vector.load %arg5[%c0_44, %c1_45, %c0_46, %c0_47] : memref<3x3x4x4xf32, #tpu.memory_space<vmem>>, vector<1x1x4x4xf32>
    %80 = vector.shape_cast %79 : vector<1x1x4x4xf32> to vector<4x4xf32>
    %cst_48 = arith.constant dense<0.000000e+00> : vector<288x4xf32>
    %81 = tpu.matmul %78, %80, %cst_48 {dimension_numbers = #tpu.dot_dimension_numbers<[1], [0], [0], [1], [0, 0, 1, 1], [], []>} : vector<288x4xf32>, vector<4x4xf32>, vector<288x4xf32> -> vector<288x4xf32>
    %82 = arith.addf %77, %81 : vector<288x4xf32>
    %c2 = arith.constant 2 : index
    %c0_49 = arith.constant 0 : index
    %83 = vector.load %arg8[%c2, %c0_49] : memref<342x4xf32, #tpu.memory_space<vmem>>, vector<288x4xf32>
    %c0_50 = arith.constant 0 : index
    %c2_51 = arith.constant 2 : index
    %c0_52 = arith.constant 0 : index
    %c0_53 = arith.constant 0 : index
    %84 = vector.load %arg5[%c0_50, %c2_51, %c0_52, %c0_53] : memref<3x3x4x4xf32, #tpu.memory_space<vmem>>, vector<1x1x4x4xf32>
    %85 = vector.shape_cast %84 : vector<1x1x4x4xf32> to vector<4x4xf32>
    %cst_54 = arith.constant dense<0.000000e+00> : vector<288x4xf32>
    %86 = tpu.matmul %83, %85, %cst_54 {dimension_numbers = #tpu.dot_dimension_numbers<[1], [0], [0], [1], [0, 0, 1, 1], [], []>} : vector<288x4xf32>, vector<4x4xf32>, vector<288x4xf32> -> vector<288x4xf32>
    %87 = arith.addf %82, %86 : vector<288x4xf32>
    %c18 = arith.constant 18 : index
    %c0_55 = arith.constant 0 : index
    %88 = vector.load %arg8[%c18, %c0_55] : memref<342x4xf32, #tpu.memory_space<vmem>>, vector<288x4xf32>
    %c1_56 = arith.constant 1 : index
    %c0_57 = arith.constant 0 : index
    %c0_58 = arith.constant 0 : index
    %c0_59 = arith.constant 0 : index
    %89 = vector.load %arg5[%c1_56, %c0_57, %c0_58, %c0_59] : memref<3x3x4x4xf32, #tpu.memory_space<vmem>>, vector<1x1x4x4xf32>
    %90 = vector.shape_cast %89 : vector<1x1x4x4xf32> to vector<4x4xf32>
    %cst_60 = arith.constant dense<0.000000e+00> : vector<288x4xf32>
    %91 = tpu.matmul %88, %90, %cst_60 {dimension_numbers = #tpu.dot_dimension_numbers<[1], [0], [0], [1], [0, 0, 1, 1], [], []>} : vector<288x4xf32>, vector<4x4xf32>, vector<288x4xf32> -> vector<288x4xf32>
    %92 = arith.addf %87, %91 : vector<288x4xf32>
    %c19_61 = arith.constant 19 : index
    %c0_62 = arith.constant 0 : index
    %93 = vector.load %arg8[%c19_61, %c0_62] : memref<342x4xf32, #tpu.memory_space<vmem>>, vector<288x4xf32>
    %c1_63 = arith.constant 1 : index
    %c1_64 = arith.constant 1 : index
    %c0_65 = arith.constant 0 : index
    %c0_66 = arith.constant 0 : index
    %94 = vector.load %arg5[%c1_63, %c1_64, %c0_65, %c0_66] : memref<3x3x4x4xf32, #tpu.memory_space<vmem>>, vector<1x1x4x4xf32>
    %95 = vector.shape_cast %94 : vector<1x1x4x4xf32> to vector<4x4xf32>
    %cst_67 = arith.constant dense<0.000000e+00> : vector<288x4xf32>
    %96 = tpu.matmul %93, %95, %cst_67 {dimension_numbers = #tpu.dot_dimension_numbers<[1], [0], [0], [1], [0, 0, 1, 1], [], []>} : vector<288x4xf32>, vector<4x4xf32>, vector<288x4xf32> -> vector<288x4xf32>
    %97 = arith.addf %92, %96 : vector<288x4xf32>
    %c20 = arith.constant 20 : index
    %c0_68 = arith.constant 0 : index
    %98 = vector.load %arg8[%c20, %c0_68] : memref<342x4xf32, #tpu.memory_space<vmem>>, vector<288x4xf32>
    %c1_69 = arith.constant 1 : index
    %c2_70 = arith.constant 2 : index
    %c0_71 = arith.constant 0 : index
    %c0_72 = arith.constant 0 : index
    %99 = vector.load %arg5[%c1_69, %c2_70, %c0_71, %c0_72] : memref<3x3x4x4xf32, #tpu.memory_space<vmem>>, vector<1x1x4x4xf32>
    %100 = vector.shape_cast %99 : vector<1x1x4x4xf32> to vector<4x4xf32>
    %cst_73 = arith.constant dense<0.000000e+00> : vector<288x4xf32>
    %101 = tpu.matmul %98, %100, %cst_73 {dimension_numbers = #tpu.dot_dimension_numbers<[1], [0], [0], [1], [0, 0, 1, 1], [], []>} : vector<288x4xf32>, vector<4x4xf32>, vector<288x4xf32> -> vector<288x4xf32>
    %102 = arith.addf %97, %101 : vector<288x4xf32>
    %c36 = arith.constant 36 : index
    %c0_74 = arith.constant 0 : index
    %103 = vector.load %arg8[%c36, %c0_74] : memref<342x4xf32, #tpu.memory_space<vmem>>, vector<288x4xf32>
    %c2_75 = arith.constant 2 : index
    %c0_76 = arith.constant 0 : index
    %c0_77 = arith.constant 0 : index
    %c0_78 = arith.constant 0 : index
    %104 = vector.load %arg5[%c2_75, %c0_76, %c0_77, %c0_78] : memref<3x3x4x4xf32, #tpu.memory_space<vmem>>, vector<1x1x4x4xf32>
    %105 = vector.shape_cast %104 : vector<1x1x4x4xf32> to vector<4x4xf32>
    %cst_79 = arith.constant dense<0.000000e+00> : vector<288x4xf32>
    %106 = tpu.matmul %103, %105, %cst_79 {dimension_numbers = #tpu.dot_dimension_numbers<[1], [0], [0], [1], [0, 0, 1, 1], [], []>} : vector<288x4xf32>, vector<4x4xf32>, vector<288x4xf32> -> vector<288x4xf32>
    %107 = arith.addf %102, %106 : vector<288x4xf32>
    %c37_80 = arith.constant 37 : index
    %c0_81 = arith.constant 0 : index
    %108 = vector.load %arg8[%c37_80, %c0_81] : memref<342x4xf32, #tpu.memory_space<vmem>>, vector<288x4xf32>
    %c2_82 = arith.constant 2 : index
    %c1_83 = arith.constant 1 : index
    %c0_84 = arith.constant 0 : index
    %c0_85 = arith.constant 0 : index
    %109 = vector.load %arg5[%c2_82, %c1_83, %c0_84, %c0_85] : memref<3x3x4x4xf32, #tpu.memory_space<vmem>>, vector<1x1x4x4xf32>
    %110 = vector.shape_cast %109 : vector<1x1x4x4xf32> to vector<4x4xf32>
    %cst_86 = arith.constant dense<0.000000e+00> : vector<288x4xf32>
    %111 = tpu.matmul %108, %110, %cst_86 {dimension_numbers = #tpu.dot_dimension_numbers<[1], [0], [0], [1], [0, 0, 1, 1], [], []>} : vector<288x4xf32>, vector<4x4xf32>, vector<288x4xf32> -> vector<288x4xf32>
    %112 = arith.addf %107, %111 : vector<288x4xf32>
    %c38 = arith.constant 38 : index
    %c0_87 = arith.constant 0 : index
    %113 = vector.load %arg8[%c38, %c0_87] : memref<342x4xf32, #tpu.memory_space<vmem>>, vector<288x4xf32>
    %c2_88 = arith.constant 2 : index
    %c2_89 = arith.constant 2 : index
    %c0_90 = arith.constant 0 : index
    %c0_91 = arith.constant 0 : index
    %114 = vector.load %arg5[%c2_88, %c2_89, %c0_90, %c0_91] : memref<3x3x4x4xf32, #tpu.memory_space<vmem>>, vector<1x1x4x4xf32>
    %115 = vector.shape_cast %114 : vector<1x1x4x4xf32> to vector<4x4xf32>
    %cst_92 = arith.constant dense<0.000000e+00> : vector<288x4xf32>
    %116 = tpu.matmul %113, %115, %cst_92 {dimension_numbers = #tpu.dot_dimension_numbers<[1], [0], [0], [1], [0, 0, 1, 1], [], []>} : vector<288x4xf32>, vector<4x4xf32>, vector<288x4xf32> -> vector<288x4xf32>
    %117 = arith.addf %112, %116 : vector<288x4xf32>
    %c0_93 = arith.constant 0 : index
    %c0_94 = arith.constant 0 : index
    %118 = vector.load %arg6[%c0_93, %c0_94] : memref<1x4xf32, #tpu.memory_space<vmem>>, vector<1x4xf32>
    %119 = vector.extract_strided_slice %117 {offsets = [0, 0], sizes = [16, 4], strides = [1, 1]} : vector<288x4xf32> to vector<16x4xf32>
    %120 = vector.broadcast %118 : vector<1x4xf32> to vector<16x4xf32>
    %121 = arith.addf %119, %120 : vector<16x4xf32>
    %c0_95 = arith.constant 0 : index
    %c0_96 = arith.constant 0 : index
    %c0_97 = arith.constant 0 : index
    %122 = vector.load %arg7[%c0_95, %c0_96, %c0_97] : memref<1x256x4xf32, #tpu.memory_space<vmem>>, vector<1x16x4xf32>
    %123 = vector.shape_cast %122 : vector<1x16x4xf32> to vector<16x4xf32>
    %124 = vector.shape_cast %121 : vector<16x4xf32> to vector<1x16x4xf32>
    tpu.vector_store %arg7[%c0_95, %c0_96, %c0_97], %124 {strides = array<i32>} : memref<1x256x4xf32, #tpu.memory_space<vmem>>, vector<1x16x4xf32>,
    %125 = vector.extract_strided_slice %117 {offsets = [18, 0], sizes = [16, 4], strides = [1, 1]} : vector<288x4xf32> to vector<16x4xf32>
    %126 = vector.broadcast %118 : vector<1x4xf32> to vector<16x4xf32>
    %127 = arith.addf %125, %126 : vector<16x4xf32>
    %c0_98 = arith.constant 0 : index
    %c16 = arith.constant 16 : index
    %c0_99 = arith.constant 0 : index
    %128 = vector.load %arg7[%c0_98, %c16, %c0_99] : memref<1x256x4xf32, #tpu.memory_space<vmem>>, vector<1x16x4xf32>
    %129 = vector.shape_cast %128 : vector<1x16x4xf32> to vector<16x4xf32>
    %130 = vector.shape_cast %127 : vector<16x4xf32> to vector<1x16x4xf32>
    tpu.vector_store %arg7[%c0_98, %c16, %c0_99], %130 {strides = array<i32>} : memref<1x256x4xf32, #tpu.memory_space<vmem>>, vector<1x16x4xf32>,
    %131 = vector.extract_strided_slice %117 {offsets = [36, 0], sizes = [16, 4], strides = [1, 1]} : vector<288x4xf32> to vector<16x4xf32>
    %132 = vector.broadcast %118 : vector<1x4xf32> to vector<16x4xf32>
    %133 = arith.addf %131, %132 : vector<16x4xf32>
    %c0_100 = arith.constant 0 : index
    %c32 = arith.constant 32 : index
    %c0_101 = arith.constant 0 : index
    %134 = vector.load %arg7[%c0_100, %c32, %c0_101] : memref<1x256x4xf32, #tpu.memory_space<vmem>>, vector<1x16x4xf32>
    %135 = vector.shape_cast %134 : vector<1x16x4xf32> to vector<16x4xf32>
    %136 = vector.shape_cast %133 : vector<16x4xf32> to vector<1x16x4xf32>
    tpu.vector_store %arg7[%c0_100, %c32, %c0_101], %136 {strides = array<i32>} : memref<1x256x4xf32, #tpu.memory_space<vmem>>, vector<1x16x4xf32>,
    %137 = vector.extract_strided_slice %117 {offsets = [54, 0], sizes = [16, 4], strides = [1, 1]} : vector<288x4xf32> to vector<16x4xf32>
    %138 = vector.broadcast %118 : vector<1x4xf32> to vector<16x4xf32>
    %139 = arith.addf %137, %138 : vector<16x4xf32>
    %c0_102 = arith.constant 0 : index
    %c48 = arith.constant 48 : index
    %c0_103 = arith.constant 0 : index
    %140 = vector.load %arg7[%c0_102, %c48, %c0_103] : memref<1x256x4xf32, #tpu.memory_space<vmem>>, vector<1x16x4xf32>
    %141 = vector.shape_cast %140 : vector<1x16x4xf32> to vector<16x4xf32>
    %142 = vector.shape_cast %139 : vector<16x4xf32> to vector<1x16x4xf32>
    tpu.vector_store %arg7[%c0_102, %c48, %c0_103], %142 {strides = array<i32>} : memref<1x256x4xf32, #tpu.memory_space<vmem>>, vector<1x16x4xf32>,
    %143 = vector.extract_strided_slice %117 {offsets = [72, 0], sizes = [16, 4], strides = [1, 1]} : vector<288x4xf32> to vector<16x4xf32>
    %144 = vector.broadcast %118 : vector<1x4xf32> to vector<16x4xf32>
    %145 = arith.addf %143, %144 : vector<16x4xf32>
    %c0_104 = arith.constant 0 : index
    %c64 = arith.constant 64 : index
    %c0_105 = arith.constant 0 : index
    %146 = vector.load %arg7[%c0_104, %c64, %c0_105] : memref<1x256x4xf32, #tpu.memory_space<vmem>>, vector<1x16x4xf32>
    %147 = vector.shape_cast %146 : vector<1x16x4xf32> to vector<16x4xf32>
    %148 = vector.shape_cast %145 : vector<16x4xf32> to vector<1x16x4xf32>
    tpu.vector_store %arg7[%c0_104, %c64, %c0_105], %148 {strides = array<i32>} : memref<1x256x4xf32, #tpu.memory_space<vmem>>, vector<1x16x4xf32>,
    %149 = vector.extract_strided_slice %117 {offsets = [90, 0], sizes = [16, 4], strides = [1, 1]} : vector<288x4xf32> to vector<16x4xf32>
    %150 = vector.broadcast %118 : vector<1x4xf32> to vector<16x4xf32>
    %151 = arith.addf %149, %150 : vector<16x4xf32>
    %c0_106 = arith.constant 0 : index
    %c80 = arith.constant 80 : index
    %c0_107 = arith.constant 0 : index
    %152 = vector.load %arg7[%c0_106, %c80, %c0_107] : memref<1x256x4xf32, #tpu.memory_space<vmem>>, vector<1x16x4xf32>
    %153 = vector.shape_cast %152 : vector<1x16x4xf32> to vector<16x4xf32>
    %154 = vector.shape_cast %151 : vector<16x4xf32> to vector<1x16x4xf32>
    tpu.vector_store %arg7[%c0_106, %c80, %c0_107], %154 {strides = array<i32>} : memref<1x256x4xf32, #tpu.memory_space<vmem>>, vector<1x16x4xf32>,
    %155 = vector.extract_strided_slice %117 {offsets = [108, 0], sizes = [16, 4], strides = [1, 1]} : vector<288x4xf32> to vector<16x4xf32>
    %156 = vector.broadcast %118 : vector<1x4xf32> to vector<16x4xf32>
    %157 = arith.addf %155, %156 : vector<16x4xf32>
    %c0_108 = arith.constant 0 : index
    %c96 = arith.constant 96 : index
    %c0_109 = arith.constant 0 : index
    %158 = vector.load %arg7[%c0_108, %c96, %c0_109] : memref<1x256x4xf32, #tpu.memory_space<vmem>>, vector<1x16x4xf32>
    %159 = vector.shape_cast %158 : vector<1x16x4xf32> to vector<16x4xf32>
    %160 = vector.shape_cast %157 : vector<16x4xf32> to vector<1x16x4xf32>
    tpu.vector_store %arg7[%c0_108, %c96, %c0_109], %160 {strides = array<i32>} : memref<1x256x4xf32, #tpu.memory_space<vmem>>, vector<1x16x4xf32>,
    %161 = vector.extract_strided_slice %117 {offsets = [126, 0], sizes = [16, 4], strides = [1, 1]} : vector<288x4xf32> to vector<16x4xf32>
    %162 = vector.broadcast %118 : vector<1x4xf32> to vector<16x4xf32>
    %163 = arith.addf %161, %162 : vector<16x4xf32>
    %c0_110 = arith.constant 0 : index
    %c112 = arith.constant 112 : index
    %c0_111 = arith.constant 0 : index
    %164 = vector.load %arg7[%c0_110, %c112, %c0_111] : memref<1x256x4xf32, #tpu.memory_space<vmem>>, vector<1x16x4xf32>
    %165 = vector.shape_cast %164 : vector<1x16x4xf32> to vector<16x4xf32>
    %166 = vector.shape_cast %163 : vector<16x4xf32> to vector<1x16x4xf32>
    tpu.vector_store %arg7[%c0_110, %c112, %c0_111], %166 {strides = array<i32>} : memref<1x256x4xf32, #tpu.memory_space<vmem>>, vector<1x16x4xf32>,
    %167 = vector.extract_strided_slice %117 {offsets = [144, 0], sizes = [16, 4], strides = [1, 1]} : vector<288x4xf32> to vector<16x4xf32>
    %168 = vector.broadcast %118 : vector<1x4xf32> to vector<16x4xf32>
    %169 = arith.addf %167, %168 : vector<16x4xf32>
    %c0_112 = arith.constant 0 : index
    %c128 = arith.constant 128 : index
    %c0_113 = arith.constant 0 : index
    %170 = vector.load %arg7[%c0_112, %c128, %c0_113] : memref<1x256x4xf32, #tpu.memory_space<vmem>>, vector<1x16x4xf32>
    %171 = vector.shape_cast %170 : vector<1x16x4xf32> to vector<16x4xf32>
    %172 = vector.shape_cast %169 : vector<16x4xf32> to vector<1x16x4xf32>
    tpu.vector_store %arg7[%c0_112, %c128, %c0_113], %172 {strides = array<i32>} : memref<1x256x4xf32, #tpu.memory_space<vmem>>, vector<1x16x4xf32>,
    %173 = vector.extract_strided_slice %117 {offsets = [162, 0], sizes = [16, 4], strides = [1, 1]} : vector<288x4xf32> to vector<16x4xf32>
    %174 = vector.broadcast %118 : vector<1x4xf32> to vector<16x4xf32>
    %175 = arith.addf %173, %174 : vector<16x4xf32>
    %c0_114 = arith.constant 0 : index
    %c144 = arith.constant 144 : index
    %c0_115 = arith.constant 0 : index
    %176 = vector.load %arg7[%c0_114, %c144, %c0_115] : memref<1x256x4xf32, #tpu.memory_space<vmem>>, vector<1x16x4xf32>
    %177 = vector.shape_cast %176 : vector<1x16x4xf32> to vector<16x4xf32>
    %178 = vector.shape_cast %175 : vector<16x4xf32> to vector<1x16x4xf32>
    tpu.vector_store %arg7[%c0_114, %c144, %c0_115], %178 {strides = array<i32>} : memref<1x256x4xf32, #tpu.memory_space<vmem>>, vector<1x16x4xf32>,
    %179 = vector.extract_strided_slice %117 {offsets = [180, 0], sizes = [16, 4], strides = [1, 1]} : vector<288x4xf32> to vector<16x4xf32>
    %180 = vector.broadcast %118 : vector<1x4xf32> to vector<16x4xf32>
    %181 = arith.addf %179, %180 : vector<16x4xf32>
    %c0_116 = arith.constant 0 : index
    %c160 = arith.constant 160 : index
    %c0_117 = arith.constant 0 : index
    %182 = vector.load %arg7[%c0_116, %c160, %c0_117] : memref<1x256x4xf32, #tpu.memory_space<vmem>>, vector<1x16x4xf32>
    %183 = vector.shape_cast %182 : vector<1x16x4xf32> to vector<16x4xf32>
    %184 = vector.shape_cast %181 : vector<16x4xf32> to vector<1x16x4xf32>
    tpu.vector_store %arg7[%c0_116, %c160, %c0_117], %184 {strides = array<i32>} : memref<1x256x4xf32, #tpu.memory_space<vmem>>, vector<1x16x4xf32>,
    %185 = vector.extract_strided_slice %117 {offsets = [198, 0], sizes = [16, 4], strides = [1, 1]} : vector<288x4xf32> to vector<16x4xf32>
    %186 = vector.broadcast %118 : vector<1x4xf32> to vector<16x4xf32>
    %187 = arith.addf %185, %186 : vector<16x4xf32>
    %c0_118 = arith.constant 0 : index
    %c176 = arith.constant 176 : index
    %c0_119 = arith.constant 0 : index
    %188 = vector.load %arg7[%c0_118, %c176, %c0_119] : memref<1x256x4xf32, #tpu.memory_space<vmem>>, vector<1x16x4xf32>
    %189 = vector.shape_cast %188 : vector<1x16x4xf32> to vector<16x4xf32>
    %190 = vector.shape_cast %187 : vector<16x4xf32> to vector<1x16x4xf32>
    tpu.vector_store %arg7[%c0_118, %c176, %c0_119], %190 {strides = array<i32>} : memref<1x256x4xf32, #tpu.memory_space<vmem>>, vector<1x16x4xf32>,
    %191 = vector.extract_strided_slice %117 {offsets = [216, 0], sizes = [16, 4], strides = [1, 1]} : vector<288x4xf32> to vector<16x4xf32>
    %192 = vector.broadcast %118 : vector<1x4xf32> to vector<16x4xf32>
    %193 = arith.addf %191, %192 : vector<16x4xf32>
    %c0_120 = arith.constant 0 : index
    %c192 = arith.constant 192 : index
    %c0_121 = arith.constant 0 : index
    %194 = vector.load %arg7[%c0_120, %c192, %c0_121] : memref<1x256x4xf32, #tpu.memory_space<vmem>>, vector<1x16x4xf32>
    %195 = vector.shape_cast %194 : vector<1x16x4xf32> to vector<16x4xf32>
    %196 = vector.shape_cast %193 : vector<16x4xf32> to vector<1x16x4xf32>
    tpu.vector_store %arg7[%c0_120, %c192, %c0_121], %196 {strides = array<i32>} : memref<1x256x4xf32, #tpu.memory_space<vmem>>, vector<1x16x4xf32>,
    %197 = vector.extract_strided_slice %117 {offsets = [234, 0], sizes = [16, 4], strides = [1, 1]} : vector<288x4xf32> to vector<16x4xf32>
    %198 = vector.broadcast %118 : vector<1x4xf32> to vector<16x4xf32>
    %199 = arith.addf %197, %198 : vector<16x4xf32>
    %c0_122 = arith.constant 0 : index
    %c208 = arith.constant 208 : index
    %c0_123 = arith.constant 0 : index
    %200 = vector.load %arg7[%c0_122, %c208, %c0_123] : memref<1x256x4xf32, #tpu.memory_space<vmem>>, vector<1x16x4xf32>
    %201 = vector.shape_cast %200 : vector<1x16x4xf32> to vector<16x4xf32>
    %202 = vector.shape_cast %199 : vector<16x4xf32> to vector<1x16x4xf32>
    tpu.vector_store %arg7[%c0_122, %c208, %c0_123], %202 {strides = array<i32>} : memref<1x256x4xf32, #tpu.memory_space<vmem>>, vector<1x16x4xf32>,
    %203 = vector.extract_strided_slice %117 {offsets = [252, 0], sizes = [16, 4], strides = [1, 1]} : vector<288x4xf32> to vector<16x4xf32>
    %204 = vector.broadcast %118 : vector<1x4xf32> to vector<16x4xf32>
    %205 = arith.addf %203, %204 : vector<16x4xf32>
    %c0_124 = arith.constant 0 : index
    %c224 = arith.constant 224 : index
    %c0_125 = arith.constant 0 : index
    %206 = vector.load %arg7[%c0_124, %c224, %c0_125] : memref<1x256x4xf32, #tpu.memory_space<vmem>>, vector<1x16x4xf32>
    %207 = vector.shape_cast %206 : vector<1x16x4xf32> to vector<16x4xf32>
    %208 = vector.shape_cast %205 : vector<16x4xf32> to vector<1x16x4xf32>
    tpu.vector_store %arg7[%c0_124, %c224, %c0_125], %208 {strides = array<i32>} : memref<1x256x4xf32, #tpu.memory_space<vmem>>, vector<1x16x4xf32>,
    %209 = vector.extract_strided_slice %117 {offsets = [270, 0], sizes = [16, 4], strides = [1, 1]} : vector<288x4xf32> to vector<16x4xf32>
    %210 = vector.broadcast %118 : vector<1x4xf32> to vector<16x4xf32>
    %211 = arith.addf %209, %210 : vector<16x4xf32>
    %c0_126 = arith.constant 0 : index
    %c240 = arith.constant 240 : index
    %c0_127 = arith.constant 0 : index
    %212 = vector.load %arg7[%c0_126, %c240, %c0_127] : memref<1x256x4xf32, #tpu.memory_space<vmem>>, vector<1x16x4xf32>
    %213 = vector.shape_cast %212 : vector<1x16x4xf32> to vector<16x4xf32>
    %214 = vector.shape_cast %211 : vector<16x4xf32> to vector<1x16x4xf32>
    tpu.vector_store %arg7[%c0_126, %c240, %c0_127], %214 {strides = array<i32>} : memref<1x256x4xf32, #tpu.memory_space<vmem>>, vector<1x16x4xf32>,
    return
  }
  func.func @transform_0(%arg0: i32) -> (i32, i32, i32) {
    %c0_i32 = arith.constant 0 : i32
    %c0_i32_0 = arith.constant 0 : i32
    %c0_i32_1 = arith.constant 0 : i32
    return %arg0, %c0_i32, %c0_i32_0 : i32, i32, i32
  }
  func.func @transform_1(%arg0: i32) -> (i32, i32, i32) {
    %c0_i32 = arith.constant 0 : i32
    %c0_i32_0 = arith.constant 0 : i32
    %c0_i32_1 = arith.constant 0 : i32
    return %arg0, %c0_i32, %c0_i32_0 : i32, i32, i32
  }
  func.func @transform_2(%arg0: i32) -> (i32, i32) {
    %c0_i32 = arith.constant 0 : i32
    %c0_i32_0 = arith.constant 0 : i32
    %c0_i32_1 = arith.constant 0 : i32
    return %c0_i32, %c0_i32_0 : i32, i32
  }
  func.func @transform_3(%arg0: i32) -> (i32, i32) {
    %c0_i32 = arith.constant 0 : i32
    %c0_i32_0 = arith.constant 0 : i32
    %c0_i32_1 = arith.constant 0 : i32
    return %c0_i32, %c0_i32_0 : i32, i32
  }
  func.func @transform_4(%arg0: i32) -> (i32, i32, i32, i32) {
    %c0_i32 = arith.constant 0 : i32
    %c0_i32_0 = arith.constant 0 : i32
    %c0_i32_1 = arith.constant 0 : i32
    %c0_i32_2 = arith.constant 0 : i32
    %c0_i32_3 = arith.constant 0 : i32
    return %c0_i32, %c0_i32_0, %c0_i32_1, %c0_i32_2 : i32, i32, i32, i32
  }
  func.func @transform_5(%arg0: i32) -> (i32, i32) {
    %c0_i32 = arith.constant 0 : i32
    %c0_i32_0 = arith.constant 0 : i32
    %c0_i32_1 = arith.constant 0 : i32
    return %c0_i32, %c0_i32_0 : i32, i32
  }
  func.func @transform_6(%arg0: i32) -> (i32, i32, i32) {
    %c0_i32 = arith.constant 0 : i32
    %c0_i32_0 = arith.constant 0 : i32
    %c0_i32_1 = arith.constant 0 : i32
    return %arg0, %c0_i32, %c0_i32_0 : i32, i32, i32
  }
}

</mosaic_0001>

<llo_original>
// kernel: rtr_forward.3
$region0: #{rtr_forward.3}
  #allocation0 [shape = 'u32[]', space=smem, size = 0x4, offset = 0x4, fixed_abs, tag = 'smem constant byte address 0x4 - core index']
  #allocation1 [shape = 'u32[144,128]{1,0:T(1,128)}', space=vmem, size = 0x12000, scoped, tag = 'internal scratch']
  #allocation2 [shape = 'f32[342,4]{1,0:T(8,128)}', space=vmem, size = 0x2b000, scoped, tag = 'scratch operand']
  %s0 = inlined_call_operand.vmem [shape: f32[2,256,4], index: 0, kind: input, shape index: {}]
  %s1 = inlined_call_operand.vmem [shape: f32[2,1,4], index: 1, kind: input, shape index: {}]
  %s2 = inlined_call_operand.vmem [shape: f32[1,4], index: 2, kind: input, shape index: {}]
  %s3 = inlined_call_operand.vmem [shape: f32[1,4], index: 3, kind: input, shape index: {}]
  %s4 = inlined_call_operand.vmem [shape: f32[3,3,4,4], index: 4, kind: input, shape index: {}]
  %s5 = inlined_call_operand.vmem [shape: f32[1,4], index: 5, kind: input, shape index: {}]
  %s6 = inlined_call_operand.vmem [shape: f32[2,256,4], index: 6, kind: output, shape index: {}]
  %s7 = sld [smem:[#allocation0]]
  $region57: #{rtr_forward.3} parent=0
    _
  %s9 = ssub.s32 1, %s7
  %s10 = scalar_select 0, %s9, %s7
  loop: start=0, step=1, limit=4
  $region2: #{rtr_forward.3} parent=0 // loop_pre_header
    _
  $region3: #{rtr_forward.3} parent=0 // loop_header
    %s12 = sphi 0, %s16
    %p13 = scmp.ge.s32.totalorder %s12, 4
    %s22 = sphi 0, %s24
    %s25 = sphi 0, %s22
    %s26 = sphi 0, %s25
    %s42 = sphi 0, %s26
    %s48 = sphi 0, %s50
    %s51 = sphi 0, %s48
    %s52 = sphi 0, %s51
    %s68 = sphi 0, %s52
    %s72 = sphi 0, %s72
    %s74 = sphi 0, %s72
    %s75 = sphi 0, %s74
    %s89 = sphi 0, %s75
    %s93 = sphi 0, %s93
    %s95 = sphi 0, %s93
    %s96 = sphi 0, %s95
    %s110 = sphi 0, %s96
    %s114 = sphi 0, %s114
    %s116 = sphi 0, %s114
    %s117 = sphi 0, %s116
    %s131 = sphi 0, %s117
    %s135 = sphi 0, %s135
    %s137 = sphi 0, %s135
    %s138 = sphi 0, %s137
    %s152 = sphi 0, %s138
    %s158 = sphi 0, %s160
    %s161 = sphi 0, %s158
    %s162 = sphi 0, %s161
    %s178 = sphi 0, %s162
  $region4: #{rtr_forward.3} parent=0 // loop_header_branch
    %15 = sbr.rel (%p13) target = $region8
  $region5: #{rtr_forward.3} parent=0 // loop_body
    %s17 = ssub.s32 %s12, 1
    %s18 = ssub.s32 %s12, 2
    %s19 = sadd.s32 %s12, 1
    %s20 = ssub.s32 %s12, %s19
    %p21 = scmp.eq.s32.totalorder %s20, 0
    %s23 = sadd.s32 %s22, 1
    %s24 = scalar_select %p21, %s22, %s23
    %p27 = pneg %p21
    %p28 = scmp.eq.s32.totalorder %s12, 1
    %p29 = por %p27, %p28
    %p30 = scmp.ne.s32.totalorder %s22, %s25
    %p31 = scmp.eq.s32.totalorder %s12, 0
    %p32 = por %p30, %p31
    %p33 = scmp.ne.s32.totalorder %s22, %s25
    %p34 = scmp.eq.s32.totalorder %s17, 1
    %p35 = por %p33, %p34
    %p36 = scmp.ne.s32.totalorder %s25, %s26
    %p37 = scmp.eq.s32.totalorder %s17, 0
    %p38 = por %p36, %p37
    %p39 = scmp.ne.s32.totalorder %s25, %s26
    %p40 = scmp.eq.s32.totalorder %s18, 1
    %p41 = por %p39, %p40
    %p43 = scmp.ne.s32.totalorder %s26, %s42
    %p44 = scmp.eq.s32.totalorder %s18, 0
    %p45 = por %p43, %p44
    %s46 = ssub.s32 %s12, %s19
    %p47 = scmp.eq.s32.totalorder %s46, 0
    %s49 = sadd.s32 %s48, 1
    %s50 = scalar_select %p47, %s48, %s49
    %p53 = pneg %p47
    %p54 = scmp.eq.s32.totalorder %s12, 1
    %p55 = por %p53, %p54
    %p56 = scmp.ne.s32.totalorder %s48, %s51
    %p57 = scmp.eq.s32.totalorder %s12, 0
    %p58 = por %p56, %p57
    %p59 = scmp.ne.s32.totalorder %s48, %s51
    %p60 = scmp.eq.s32.totalorder %s17, 1
    %p61 = por %p59, %p60
    %p62 = scmp.ne.s32.totalorder %s51, %s52
    %p63 = scmp.eq.s32.totalorder %s17, 0
    %p64 = por %p62, %p63
    %p65 = scmp.ne.s32.totalorder %s51, %s52
    %p66 = scmp.eq.s32.totalorder %s18, 1
    %p67 = por %p65, %p66
    %p69 = scmp.ne.s32.totalorder %s52, %s68
    %p70 = scmp.eq.s32.totalorder %s18, 0
    %p71 = por %p69, %p70
    %s73 = sadd.s32 %s72, 1
    %p76 = scmp.eq.s32.totalorder %s12, 1
    %p77 = scmp.ne.s32.totalorder %s72, %s74
    %p78 = scmp.eq.s32.totalorder %s12, 0
    %p79 = por %p77, %p78
    %p80 = scmp.ne.s32.totalorder %s72, %s74
    %p81 = scmp.eq.s32.totalorder %s17, 1
    %p82 = por %p80, %p81
    %p83 = scmp.ne.s32.totalorder %s74, %s75
    %p84 = scmp.eq.s32.totalorder %s17, 0
    %p85 = por %p83, %p84
    %p86 = scmp.ne.s32.totalorder %s74, %s75
    %p87 = scmp.eq.s32.totalorder %s18, 1
    %p88 = por %p86, %p87
    %p90 = scmp.ne.s32.totalorder %s75, %s89
    %p91 = scmp.eq.s32.totalorder %s18, 0
    %p92 = por %p90, %p91
    %s94 = sadd.s32 %s93, 1
    %p97 = scmp.eq.s32.totalorder %s12, 1
    %p98 = scmp.ne.s32.totalorder %s93, %s95
    %p99 = scmp.eq.s32.totalorder %s12, 0
    %p100 = por %p98, %p99
    %p101 = scmp.ne.s32.totalorder %s93, %s95
    %p102 = scmp.eq.s32.totalorder %s17, 1
    %p103 = por %p101, %p102
    %p104 = scmp.ne.s32.totalorder %s95, %s96
    %p105 = scmp.eq.s32.totalorder %s17, 0
    %p106 = por %p104, %p105
    %p107 = scmp.ne.s32.totalorder %s95, %s96
    %p108 = scmp.eq.s32.totalorder %s18, 1
    %p109 = por %p107, %p108
    %p111 = scmp.ne.s32.totalorder %s96, %s110
    %p112 = scmp.eq.s32.totalorder %s18, 0
    %p113 = por %p111, %p112
    %s115 = sadd.s32 %s114, 1
    %p118 = scmp.eq.s32.totalorder %s12, 1
    %p119 = scmp.ne.s32.totalorder %s114, %s116
    %p120 = scmp.eq.s32.totalorder %s12, 0
    %p121 = por %p119, %p120
    %p122 = scmp.ne.s32.totalorder %s114, %s116
    %p123 = scmp.eq.s32.totalorder %s17, 1
    %p124 = por %p122, %p123
    %p125 = scmp.ne.s32.totalorder %s116, %s117
    %p126 = scmp.eq.s32.totalorder %s17, 0
    %p127 = por %p125, %p126
    %p128 = scmp.ne.s32.totalorder %s116, %s117
    %p129 = scmp.eq.s32.totalorder %s18, 1
    %p130 = por %p128, %p129
    %p132 = scmp.ne.s32.totalorder %s117, %s131
    %p133 = scmp.eq.s32.totalorder %s18, 0
    %p134 = por %p132, %p133
    %s136 = sadd.s32 %s135, 1
    %p139 = scmp.eq.s32.totalorder %s12, 1
    %p140 = scmp.ne.s32.totalorder %s135, %s137
    %p141 = scmp.eq.s32.totalorder %s12, 0
    %p142 = por %p140, %p141
    %p143 = scmp.ne.s32.totalorder %s135, %s137
    %p144 = scmp.eq.s32.totalorder %s17, 1
    %p145 = por %p143, %p144
    %p146 = scmp.ne.s32.totalorder %s137, %s138
    %p147 = scmp.eq.s32.totalorder %s17, 0
    %p148 = por %p146, %p147
    %p149 = scmp.ne.s32.totalorder %s137, %s138
    %p150 = scmp.eq.s32.totalorder %s18, 1
    %p151 = por %p149, %p150
    %p153 = scmp.ne.s32.totalorder %s138, %s152
    %p154 = scmp.eq.s32.totalorder %s18, 0
    %p155 = por %p153, %p154
    %s156 = ssub.s32 %s12, %s19
    %p157 = scmp.eq.s32.totalorder %s156, 0
    %s159 = sadd.s32 %s158, 1
    %s160 = scalar_select %p157, %s158, %s159
    %p163 = pneg %p157
    %p164 = scmp.eq.s32.totalorder %s12, 1
    %p165 = por %p163, %p164
    %p166 = scmp.ne.s32.totalorder %s158, %s161
    %p167 = scmp.eq.s32.totalorder %s12, 0
    %p168 = por %p166, %p167
    %p169 = scmp.ne.s32.totalorder %s158, %s161
    %p170 = scmp.eq.s32.totalorder %s17, 1
    %p171 = por %p169, %p170
    %p172 = scmp.ne.s32.totalorder %s161, %s162
    %p173 = scmp.eq.s32.totalorder %s17, 0
    %p174 = por %p172, %p173
    %p175 = scmp.ne.s32.totalorder %s161, %s162
    %p176 = scmp.eq.s32.totalorder %s18, 1
    %p177 = por %p175, %p176
    %p179 = scmp.ne.s32.totalorder %s162, %s178
    %p180 = scmp.eq.s32.totalorder %s18, 0
    %p181 = por %p179, %p180
    %p182 = scmp.le.s32.totalorder 1, %s12
    %p183 = scmp.lt.s32.totalorder %s12, 3
    %p184 = pnand %p182, %p183
    %p185 = pneg %p184
    // Predicated region
    $region9: #{rtr_forward.3} parent=5 // pred_check
      _
    $region10: #{rtr_forward.3} parent=5 // pred_check_branch
      %187 = sbr.rel (%p184) target = $region12
    $region11: #{rtr_forward.3} parent=5 // pred_region
      %s188 = ssub.s32 %s12, 1
      // Predicated region
      $region13: #{rtr_forward.3} parent=11 // pred_check
        %p189 = pneg %p85
      $region14: #{rtr_forward.3} parent=11 // pred_check_branch
        %191 = sbr.rel (%p189) target = $region16
      $region15: #{rtr_forward.3} parent=11 // pred_region
        _
      $region16: #{rtr_forward.3} parent=11 // pred_fallthru
        _
      // Predicated region
      $region17: #{rtr_forward.3} parent=11 // pred_check
        %p192 = pneg %p106
      $region18: #{rtr_forward.3} parent=11 // pred_check_branch
        %194 = sbr.rel (%p192) target = $region20
      $region19: #{rtr_forward.3} parent=11 // pred_region
        _
      $region20: #{rtr_forward.3} parent=11 // pred_fallthru
        _
      // Predicated region
      $region21: #{rtr_forward.3} parent=11 // pred_check
        %p195 = pneg %p127
      $region22: #{rtr_forward.3} parent=11 // pred_check_branch
        %197 = sbr.rel (%p195) target = $region24
      $region23: #{rtr_forward.3} parent=11 // pred_region
        _
      $region24: #{rtr_forward.3} parent=11 // pred_fallthru
        _
      // Predicated region
      $region25: #{rtr_forward.3} parent=11 // pred_check
        %p198 = pneg %p148
      $region26: #{rtr_forward.3} parent=11 // pred_check_branch
        %200 = sbr.rel (%p198) target = $region28
      $region27: #{rtr_forward.3} parent=11 // pred_region
        _
      $region28: #{rtr_forward.3} parent=11 // pred_fallthru
        _
    $region12: #{rtr_forward.3} parent=5 // pred_fallthru
      _
    %p201 = scmp.lt.s32.totalorder %s12, 2
    // Predicated region
    $region29: #{rtr_forward.3} parent=5 // pred_check
      %p202 = pneg %p201
    $region30: #{rtr_forward.3} parent=5 // pred_check_branch
      %204 = sbr.rel (%p202) target = $region32
    $region31: #{rtr_forward.3} parent=5 // pred_region
      // Predicated region
      $region33: #{rtr_forward.3} parent=31 // pred_check
        %p205 = pneg %p32
      $region34: #{rtr_forward.3} parent=31 // pred_check_branch
        %207 = sbr.rel (%p205) target = $region36
      $region35: #{rtr_forward.3} parent=31 // pred_region
        %p208 = scmp.lt.s32.totalorder %s12, 1
        %s209 = scalar_select %p208, %s12, 1
        %s210 = smul.addr %s209, 32
        %s211 = smul.addr %s210, 8
        %s212 = scalar_lea.vmem %s0, %s211
      $region36: #{rtr_forward.3} parent=31 // pred_fallthru
        _
      // Predicated region
      $region37: #{rtr_forward.3} parent=31 // pred_check
        %p213 = pneg %p58
      $region38: #{rtr_forward.3} parent=31 // pred_check_branch
        %215 = sbr.rel (%p213) target = $region40
      $region39: #{rtr_forward.3} parent=31 // pred_region
        %p216 = scmp.lt.s32.totalorder %s12, 1
        %s217 = scalar_select %p216, %s12, 1
        %s218 = scalar_lea.vmem %s1, %s217
      $region40: #{rtr_forward.3} parent=31 // pred_fallthru
        _
    $region32: #{rtr_forward.3} parent=5 // pred_fallthru
      _
    %p219 = scmp.le.s32.totalorder 1, %s12
    %p220 = scmp.lt.s32.totalorder %s12, 3
    %p221 = pnand %p219, %p220
    %p222 = pneg %p221
    // Predicated region
    $region41: #{rtr_forward.3} parent=5 // pred_check
      _
    $region42: #{rtr_forward.3} parent=5 // pred_check_branch
      %224 = sbr.rel (%p221) target = $region44
    $region43: #{rtr_forward.3} parent=5 // pred_region
      %s225 = ssub.s32 %s12, 1
      %p226 = scmp.lt.s32.totalorder %s17, 1
      %s227 = scalar_select %p226, %s17, 1
      %s228 = smul.addr %s227, 32
      %s229 = smul.addr %s228, 8
      %s230 = scalar_lea.vmem %s0, %s229
      %p231 = pneg %p38
      %p232 = pneg %p35
      %p233 = scmp.lt.s32.totalorder %s17, 1
      %s234 = scalar_select %p233, %s17, 1
      %s235 = scalar_lea.vmem %s1, %s234
      %p236 = pneg %p64
      %p237 = pneg %p61
      %p238 = pneg %p85
      %p239 = pneg %p82
      %p240 = pneg %p106
      %p241 = pneg %p103
      %p242 = pneg %p127
      %p243 = pneg %p124
      %p244 = pneg %p148
      %p245 = pneg %p145
      %p246 = pneg %p174
      %p247 = pneg %p171
      %p248 = scmp.lt.s32.totalorder %s17, 1
      %s249 = scalar_select %p248, %s17, 1
      %s250 = smul.addr %s249, 32
      %s251 = smul.addr %s250, 8
      %s252 = scalar_lea.vmem %s6, %s251
      %p253 = scmp.lt.s32.totalorder %s17, 1
      %s254 = scalar_select %p253, %s17, 1
      %s255 = smul.addr %s254, 32
      %s256 = smul.addr %s255, 8
      %s257 = scalar_lea.vmem %s0, %s256
      %p258 = scmp.lt.s32.totalorder %s17, 1
      %s259 = scalar_select %p258, %s17, 1
      %s260 = scalar_lea.vmem %s1, %s259
      %p261 = scmp.lt.s32.totalorder %s17, 1
      %s262 = scalar_select %p261, %s17, 1
      %s263 = smul.addr %s262, 32
      %s264 = smul.addr %s263, 8
      %s265 = scalar_lea.vmem %s6, %s264
      %v266 = vld [vmem:[%s257] sm:$0xff]
      %v267 = vld [vmem:[%s257 + $0x8] sm:$0xff]
      %v268 = vld [vmem:[%s257 + $0x10] sm:$0xff]
      %v269 = vld [vmem:[%s257 + $0x18] sm:$0xff]
      %v270 = vld [vmem:[%s257 + $0x20] sm:$0xff]
      %v271 = vld [vmem:[%s257 + $0x28] sm:$0xff]
      %v272 = vld [vmem:[%s257 + $0x30] sm:$0xff]
      %v273 = vld [vmem:[%s257 + $0x38] sm:$0xff]
      %v274 = vld [vmem:[%s257 + $0x40] sm:$0xff]
      %v275 = vld [vmem:[%s257 + $0x48] sm:$0xff]
      %v276 = vld [vmem:[%s257 + $0x50] sm:$0xff]
      %v277 = vld [vmem:[%s257 + $0x58] sm:$0xff]
      %v278 = vld [vmem:[%s257 + $0x60] sm:$0xff]
      %v279 = vld [vmem:[%s257 + $0x68] sm:$0xff]
      %v280 = vld [vmem:[%s257 + $0x70] sm:$0xff]
      %v281 = vld [vmem:[%s257 + $0x78] sm:$0xff]
      %v282 = vld [vmem:[%s257 + $0x80] sm:$0xff]
      %v283 = vld [vmem:[%s257 + $0x88] sm:$0xff]
      %v284 = vld [vmem:[%s257 + $0x90] sm:$0xff]
      %v285 = vld [vmem:[%s257 + $0x98] sm:$0xff]
      %v286 = vld [vmem:[%s257 + $0xa0] sm:$0xff]
      %v287 = vld [vmem:[%s257 + $0xa8] sm:$0xff]
      %v288 = vld [vmem:[%s257 + $0xb0] sm:$0xff]
      %v289 = vld [vmem:[%s257 + $0xb8] sm:$0xff]
      %v290 = vld [vmem:[%s257 + $0xc0] sm:$0xff]
      %v291 = vld [vmem:[%s257 + $0xc8] sm:$0xff]
      %v292 = vld [vmem:[%s257 + $0xd0] sm:$0xff]
      %v293 = vld [vmem:[%s257 + $0xd8] sm:$0xff]
      %v294 = vld [vmem:[%s257 + $0xe0] sm:$0xff]
      %v295 = vld [vmem:[%s257 + $0xe8] sm:$0xff]
      %v296 = vld [vmem:[%s257 + $0xf0] sm:$0xff]
      %v297 = vld [vmem:[%s257 + $0xf8] sm:$0xff]
      %v298 = vld [vmem:[%s260] sm:$0x1]
      %v300 = vlaneseq
      %v301 = vshrl.u32 %v300, 7
      %v302 = vsub.s32 0, %v301
      %v303 = vrot.slane %v298, %v302
      %v305 = vadd.f32 %v266, %v303
      %v306 = vadd.f32 %v267, %v303
      %v307 = vadd.f32 %v268, %v303
      %v308 = vadd.f32 %v269, %v303
      %v309 = vadd.f32 %v270, %v303
      %v310 = vadd.f32 %v271, %v303
      %v311 = vadd.f32 %v272, %v303
      %v312 = vadd.f32 %v273, %v303
      %v313 = vadd.f32 %v274, %v303
      %v314 = vadd.f32 %v275, %v303
      %v315 = vadd.f32 %v276, %v303
      %v316 = vadd.f32 %v277, %v303
      %v317 = vadd.f32 %v278, %v303
      %v318 = vadd.f32 %v279, %v303
      %v319 = vadd.f32 %v280, %v303
      %v320 = vadd.f32 %v281, %v303
      %v321 = vadd.f32 %v282, %v303
      %v322 = vadd.f32 %v283, %v303
      %v323 = vadd.f32 %v284, %v303
      %v324 = vadd.f32 %v285, %v303
      %v325 = vadd.f32 %v286, %v303
      %v326 = vadd.f32 %v287, %v303
      %v327 = vadd.f32 %v288, %v303
      %v328 = vadd.f32 %v289, %v303
      %v329 = vadd.f32 %v290, %v303
      %v330 = vadd.f32 %v291, %v303
      %v331 = vadd.f32 %v292, %v303
      %v332 = vadd.f32 %v293, %v303
      %v333 = vadd.f32 %v294, %v303
      %v334 = vadd.f32 %v295, %v303
      %v335 = vadd.f32 %v296, %v303
      %v336 = vadd.f32 %v297, %v303
      %vm337 = vcmask 31744
      %v338 = vsel %vm337, %v305, 0.0
      %v339 = vsel %vm337, %v306, 0.0
      %v340 = vadd.f32 %v338, %v339
      %v341 = vsel %vm337, %v307, 0.0
      %v342 = vadd.f32 %v340, %v341
      %v343 = vsel %vm337, %v308, 0.0
      %v344 = vadd.f32 %v342, %v343
      %v345 = vsel %vm337, %v309, 0.0
      %v346 = vadd.f32 %v344, %v345
      %v347 = vsel %vm337, %v310, 0.0
      %v348 = vadd.f32 %v346, %v347
      %v349 = vsel %vm337, %v311, 0.0
      %v350 = vadd.f32 %v348, %v349
      %v351 = vsel %vm337, %v312, 0.0
      %v352 = vadd.f32 %v350, %v351
      %v353 = vsel %vm337, %v313, 0.0
      %v354 = vadd.f32 %v352, %v353
      %v355 = vsel %vm337, %v314, 0.0
      %v356 = vadd.f32 %v354, %v355
      %v357 = vsel %vm337, %v315, 0.0
      %v358 = vadd.f32 %v356, %v357
      %v359 = vsel %vm337, %v316, 0.0
      %v360 = vadd.f32 %v358, %v359
      %v361 = vsel %vm337, %v317, 0.0
      %v362 = vadd.f32 %v360, %v361
      %v363 = vsel %vm337, %v318, 0.0
      %v364 = vadd.f32 %v362, %v363
      %v365 = vsel %vm337, %v319, 0.0
      %v366 = vadd.f32 %v364, %v365
      %v367 = vsel %vm337, %v320, 0.0
      %v368 = vadd.f32 %v366, %v367
      %v369 = vsel %vm337, %v321, 0.0
      %v370 = vadd.f32 %v368, %v369
      %v371 = vsel %vm337, %v322, 0.0
      %v372 = vadd.f32 %v370, %v371
      %v373 = vsel %vm337, %v323, 0.0
      %v374 = vadd.f32 %v372, %v373
      %v375 = vsel %vm337, %v324, 0.0
      %v376 = vadd.f32 %v374, %v375
      %v377 = vsel %vm337, %v325, 0.0
      %v378 = vadd.f32 %v376, %v377
      %v379 = vsel %vm337, %v326, 0.0
      %v380 = vadd.f32 %v378, %v379
      %v381 = vsel %vm337, %v327, 0.0
      %v382 = vadd.f32 %v380, %v381
      %v383 = vsel %vm337, %v328, 0.0
      %v384 = vadd.f32 %v382, %v383
      %v385 = vsel %vm337, %v329, 0.0
      %v386 = vadd.f32 %v384, %v385
      %v387 = vsel %vm337, %v330, 0.0
      %v388 = vadd.f32 %v386, %v387
      %v389 = vsel %vm337, %v331, 0.0
      %v390 = vadd.f32 %v388, %v389
      %v391 = vsel %vm337, %v332, 0.0
      %v392 = vadd.f32 %v390, %v391
      %v393 = vsel %vm337, %v333, 0.0
      %v394 = vadd.f32 %v392, %v393
      %v395 = vsel %vm337, %v334, 0.0
      %v396 = vadd.f32 %v394, %v395
      %v397 = vsel %vm337, %v335, 0.0
      %v398 = vadd.f32 %v396, %v397
      %v399 = vsel %vm337, %v336, 0.0
      %v400 = vadd.f32 %v398, %v399
      %v401 = vrot.slane %v400, 4
      %v402 = vadd.f32 %v400, %v401
      %v403 = vrot.slane %v402, 2
      %v404 = vadd.f32 %v402, %v403
      %v405 = vrot.slane %v404, 1
      %v406 = vadd.f32 %v404, %v405
      %v407 = vmul.f32 %v305, %v305
      %v408 = vmul.f32 %v306, %v306
      %v409 = vmul.f32 %v307, %v307
      %v410 = vmul.f32 %v308, %v308
      %v411 = vmul.f32 %v309, %v309
      %v412 = vmul.f32 %v310, %v310
      %v413 = vmul.f32 %v311, %v311
      %v414 = vmul.f32 %v312, %v312
      %v415 = vmul.f32 %v313, %v313
      %v416 = vmul.f32 %v314, %v314
      %v417 = vmul.f32 %v315, %v315
      %v418 = vmul.f32 %v316, %v316
      %v419 = vmul.f32 %v317, %v317
      %v420 = vmul.f32 %v318, %v318
      %v421 = vmul.f32 %v319, %v319
      %v422 = vmul.f32 %v320, %v320
      %v423 = vmul.f32 %v321, %v321
      %v424 = vmul.f32 %v322, %v322
      %v425 = vmul.f32 %v323, %v323
      %v426 = vmul.f32 %v324, %v324
      %v427 = vmul.f32 %v325, %v325
      %v428 = vmul.f32 %v326, %v326
      %v429 = vmul.f32 %v327, %v327
      %v430 = vmul.f32 %v328, %v328
      %v431 = vmul.f32 %v329, %v329
      %v432 = vmul.f32 %v330, %v330
      %v433 = vmul.f32 %v331, %v331
      %v434 = vmul.f32 %v332, %v332
      %v435 = vmul.f32 %v333, %v333
      %v436 = vmul.f32 %v334, %v334
      %v437 = vmul.f32 %v335, %v335
      %v438 = vmul.f32 %v336, %v336
      %v439 = vsel %vm337, %v407, 0.0
      %v440 = vsel %vm337, %v408, 0.0
      %v441 = vadd.f32 %v439, %v440
      %v442 = vsel %vm337, %v409, 0.0
      %v443 = vadd.f32 %v441, %v442
      %v444 = vsel %vm337, %v410, 0.0
      %v445 = vadd.f32 %v443, %v444
      %v446 = vsel %vm337, %v411, 0.0
      %v447 = vadd.f32 %v445, %v446
      %v448 = vsel %vm337, %v412, 0.0
      %v449 = vadd.f32 %v447, %v448
      %v450 = vsel %vm337, %v413, 0.0
      %v451 = vadd.f32 %v449, %v450
      %v452 = vsel %vm337, %v414, 0.0
      %v453 = vadd.f32 %v451, %v452
      %v454 = vsel %vm337, %v415, 0.0
      %v455 = vadd.f32 %v453, %v454
      %v456 = vsel %vm337, %v416, 0.0
      %v457 = vadd.f32 %v455, %v456
      %v458 = vsel %vm337, %v417, 0.0
      %v459 = vadd.f32 %v457, %v458
      %v460 = vsel %vm337, %v418, 0.0
      %v461 = vadd.f32 %v459, %v460
      %v462 = vsel %vm337, %v419, 0.0
      %v463 = vadd.f32 %v461, %v462
      %v464 = vsel %vm337, %v420, 0.0
      %v465 = vadd.f32 %v463, %v464
      %v466 = vsel %vm337, %v421, 0.0
      %v467 = vadd.f32 %v465, %v466
      %v468 = vsel %vm337, %v422, 0.0
      %v469 = vadd.f32 %v467, %v468
      %v470 = vsel %vm337, %v423, 0.0
      %v471 = vadd.f32 %v469, %v470
      %v472 = vsel %vm337, %v424, 0.0
      %v473 = vadd.f32 %v471, %v472
      %v474 = vsel %vm337, %v425, 0.0
      %v475 = vadd.f32 %v473, %v474
      %v476 = vsel %vm337, %v426, 0.0
      %v477 = vadd.f32 %v475, %v476
      %v478 = vsel %vm337, %v427, 0.0
      %v479 = vadd.f32 %v477, %v478
      %v480 = vsel %vm337, %v428, 0.0
      %v481 = vadd.f32 %v479, %v480
      %v482 = vsel %vm337, %v429, 0.0
      %v483 = vadd.f32 %v481, %v482
      %v484 = vsel %vm337, %v430, 0.0
      %v485 = vadd.f32 %v483, %v484
      %v486 = vsel %vm337, %v431, 0.0
      %v487 = vadd.f32 %v485, %v486
      %v488 = vsel %vm337, %v432, 0.0
      %v489 = vadd.f32 %v487, %v488
      %v490 = vsel %vm337, %v433, 0.0
      %v491 = vadd.f32 %v489, %v490
      %v492 = vsel %vm337, %v434, 0.0
      %v493 = vadd.f32 %v491, %v492
      %v494 = vsel %vm337, %v435, 0.0
      %v495 = vadd.f32 %v493, %v494
      %v496 = vsel %vm337, %v436, 0.0
      %v497 = vadd.f32 %v495, %v496
      %v498 = vsel %vm337, %v437, 0.0
      %v499 = vadd.f32 %v497, %v498
      %v500 = vsel %vm337, %v438, 0.0
      %v501 = vadd.f32 %v499, %v500
      %v502 = vrot.slane %v501, 4
      %v503 = vadd.f32 %v501, %v502
      %v504 = vrot.slane %v503, 2
      %v505 = vadd.f32 %v503, %v504
      %v506 = vrot.slane %v505, 1
      %v507 = vadd.f32 %v505, %v506
      %v508 = vmul.f32 %v406, 0.00390625
      %v509 = vmul.f32 %v507, 0.00390625
      %v510 = vmul.f32 %v508, %v508
      %v511 = vsub.f32 %v509, %v510
      %v512 = vsub.f32 %v305, %v508
      %v513 = vsub.f32 %v306, %v508
      %v514 = vsub.f32 %v307, %v508
      %v515 = vsub.f32 %v308, %v508
      %v516 = vsub.f32 %v309, %v508
      %v517 = vsub.f32 %v310, %v508
      %v518 = vsub.f32 %v311, %v508
      %v519 = vsub.f32 %v312, %v508
      %v520 = vsub.f32 %v313, %v508
      %v521 = vsub.f32 %v314, %v508
      %v522 = vsub.f32 %v315, %v508
      %v523 = vsub.f32 %v316, %v508
      %v524 = vsub.f32 %v317, %v508
      %v525 = vsub.f32 %v318, %v508
      %v526 = vsub.f32 %v319, %v508
      %v527 = vsub.f32 %v320, %v508
      %v528 = vsub.f32 %v321, %v508
      %v529 = vsub.f32 %v322, %v508
      %v530 = vsub.f32 %v323, %v508
      %v531 = vsub.f32 %v324, %v508
      %v532 = vsub.f32 %v325, %v508
      %v533 = vsub.f32 %v326, %v508
      %v534 = vsub.f32 %v327, %v508
      %v535 = vsub.f32 %v328, %v508
      %v536 = vsub.f32 %v329, %v508
      %v537 = vsub.f32 %v330, %v508
      %v538 = vsub.f32 %v331, %v508
      %v539 = vsub.f32 %v332, %v508
      %v540 = vsub.f32 %v333, %v508
      %v541 = vsub.f32 %v334, %v508
      %v542 = vsub.f32 %v335, %v508
      %v543 = vsub.f32 %v336, %v508
      %v544 = vadd.f32 %v511, 1e-05
      %v545 = vrsqrt.pop %v544
      %v546 = vmul.f32 %v512, %v545
      %v547 = vmul.f32 %v513, %v545
      %v548 = vmul.f32 %v514, %v545
      %v549 = vmul.f32 %v515, %v545
      %v550 = vmul.f32 %v516, %v545
      %v551 = vmul.f32 %v517, %v545
      %v552 = vmul.f32 %v518, %v545
      %v553 = vmul.f32 %v519, %v545
      %v554 = vmul.f32 %v520, %v545
      %v555 = vmul.f32 %v521, %v545
      %v556 = vmul.f32 %v522, %v545
      %v557 = vmul.f32 %v523, %v545
      %v558 = vmul.f32 %v524, %v545
      %v559 = vmul.f32 %v525, %v545
      %v560 = vmul.f32 %v526, %v545
      %v561 = vmul.f32 %v527, %v545
      %v562 = vmul.f32 %v528, %v545
      %v563 = vmul.f32 %v529, %v545
      %v564 = vmul.f32 %v530, %v545
      %v565 = vmul.f32 %v531, %v545
      %v566 = vmul.f32 %v532, %v545
      %v567 = vmul.f32 %v533, %v545
      %v568 = vmul.f32 %v534, %v545
      %v569 = vmul.f32 %v535, %v545
      %v570 = vmul.f32 %v536, %v545
      %v571 = vmul.f32 %v537, %v545
      %v572 = vmul.f32 %v538, %v545
      %v573 = vmul.f32 %v539, %v545
      %v574 = vmul.f32 %v540, %v545
      %v575 = vmul.f32 %v541, %v545
      %v576 = vmul.f32 %v542, %v545
      %v577 = vmul.f32 %v543, %v545
      %v578 = vld [vmem:[%s2] sm:$0x1]
      %v580 = vlaneseq
      %v581 = vshrl.u32 %v580, 7
      %v582 = vsub.s32 0, %v581
      %v583 = vrot.slane %v578, %v582
      %v585 = vmul.f32 %v546, %v583
      %v586 = vmul.f32 %v547, %v583
      %v587 = vmul.f32 %v548, %v583
      %v588 = vmul.f32 %v549, %v583
      %v589 = vmul.f32 %v550, %v583
      %v590 = vmul.f32 %v551, %v583
      %v591 = vmul.f32 %v552, %v583
      %v592 = vmul.f32 %v553, %v583
      %v593 = vmul.f32 %v554, %v583
      %v594 = vmul.f32 %v555, %v583
      %v595 = vmul.f32 %v556, %v583
      %v596 = vmul.f32 %v557, %v583
      %v597 = vmul.f32 %v558, %v583
      %v598 = vmul.f32 %v559, %v583
      %v599 = vmul.f32 %v560, %v583
      %v600 = vmul.f32 %v561, %v583
      %v601 = vmul.f32 %v562, %v583
      %v602 = vmul.f32 %v563, %v583
      %v603 = vmul.f32 %v564, %v583
      %v604 = vmul.f32 %v565, %v583
      %v605 = vmul.f32 %v566, %v583
      %v606 = vmul.f32 %v567, %v583
      %v607 = vmul.f32 %v568, %v583
      %v608 = vmul.f32 %v569, %v583
      %v609 = vmul.f32 %v570, %v583
      %v610 = vmul.f32 %v571, %v583
      %v611 = vmul.f32 %v572, %v583
      %v612 = vmul.f32 %v573, %v583
      %v613 = vmul.f32 %v574, %v583
      %v614 = vmul.f32 %v575, %v583
      %v615 = vmul.f32 %v576, %v583
      %v616 = vmul.f32 %v577, %v583
      %v617 = vld [vmem:[%s3] sm:$0x1]
      %v619 = vlaneseq
      %v620 = vshrl.u32 %v619, 7
      %v621 = vsub.s32 0, %v620
      %v622 = vrot.slane %v617, %v621
      %v624 = vadd.f32 %v585, %v622
      %v625 = vadd.f32 %v586, %v622
      %v626 = vadd.f32 %v587, %v622
      %v627 = vadd.f32 %v588, %v622
      %v628 = vadd.f32 %v589, %v622
      %v629 = vadd.f32 %v590, %v622
      %v630 = vadd.f32 %v591, %v622
      %v631 = vadd.f32 %v592, %v622
      %v632 = vadd.f32 %v593, %v622
      %v633 = vadd.f32 %v594, %v622
      %v634 = vadd.f32 %v595, %v622
      %v635 = vadd.f32 %v596, %v622
      %v636 = vadd.f32 %v597, %v622
      %v637 = vadd.f32 %v598, %v622
      %v638 = vadd.f32 %v599, %v622
      %v639 = vadd.f32 %v600, %v622
      %v640 = vadd.f32 %v601, %v622
      %v641 = vadd.f32 %v602, %v622
      %v642 = vadd.f32 %v603, %v622
      %v643 = vadd.f32 %v604, %v622
      %v644 = vadd.f32 %v605, %v622
      %v645 = vadd.f32 %v606, %v622
      %v646 = vadd.f32 %v607, %v622
      %v647 = vadd.f32 %v608, %v622
      %v648 = vadd.f32 %v609, %v622
      %v649 = vadd.f32 %v610, %v622
      %v650 = vadd.f32 %v611, %v622
      %v651 = vadd.f32 %v612, %v622
      %v652 = vadd.f32 %v613, %v622
      %v653 = vadd.f32 %v614, %v622
      %v654 = vadd.f32 %v615, %v622
      %v655 = vadd.f32 %v616, %v622
      %v656 = vsub.f32 0.0, %v624
      %v657 = vsub.f32 0.0, %v625
      %v658 = vsub.f32 0.0, %v626
      %v659 = vsub.f32 0.0, %v627
      %v660 = vsub.f32 0.0, %v628
      %v661 = vsub.f32 0.0, %v629
      %v662 = vsub.f32 0.0, %v630
      %v663 = vsub.f32 0.0, %v631
      %v664 = vsub.f32 0.0, %v632
      %v665 = vsub.f32 0.0, %v633
      %v666 = vsub.f32 0.0, %v634
      %v667 = vsub.f32 0.0, %v635
      %v668 = vsub.f32 0.0, %v636
      %v669 = vsub.f32 0.0, %v637
      %v670 = vsub.f32 0.0, %v638
      %v671 = vsub.f32 0.0, %v639
      %v672 = vsub.f32 0.0, %v640
      %v673 = vsub.f32 0.0, %v641
      %v674 = vsub.f32 0.0, %v642
      %v675 = vsub.f32 0.0, %v643
      %v676 = vsub.f32 0.0, %v644
      %v677 = vsub.f32 0.0, %v645
      %v678 = vsub.f32 0.0, %v646
      %v679 = vsub.f32 0.0, %v647
      %v680 = vsub.f32 0.0, %v648
      %v681 = vsub.f32 0.0, %v649
      %v682 = vsub.f32 0.0, %v650
      %v683 = vsub.f32 0.0, %v651
      %v684 = vsub.f32 0.0, %v652
      %v685 = vsub.f32 0.0, %v653
      %v686 = vsub.f32 0.0, %v654
      %v687 = vsub.f32 0.0, %v655
      %v688 = vmul.f32 %v656, 1.442695
      %v689 = vpow.pop %v688
      %v690 = vmul.f32 %v657, 1.442695
      %v691 = vpow.pop %v690
      %v692 = vmul.f32 %v658, 1.442695
      %v693 = vpow.pop %v692
      %v694 = vmul.f32 %v659, 1.442695
      %v695 = vpow.pop %v694
      %v696 = vmul.f32 %v660, 1.442695
      %v697 = vpow.pop %v696
      %v698 = vmul.f32 %v661, 1.442695
      %v699 = vpow.pop %v698
      %v700 = vmul.f32 %v662, 1.442695
      %v701 = vpow.pop %v700
      %v702 = vmul.f32 %v663, 1.442695
      %v703 = vpow.pop %v702
      %v704 = vmul.f32 %v664, 1.442695
      %v705 = vpow.pop %v704
      %v706 = vmul.f32 %v665, 1.442695
      %v707 = vpow.pop %v706
      %v708 = vmul.f32 %v666, 1.442695
      %v709 = vpow.pop %v708
      %v710 = vmul.f32 %v667, 1.442695
      %v711 = vpow.pop %v710
      %v712 = vmul.f32 %v668, 1.442695
      %v713 = vpow.pop %v712
      %v714 = vmul.f32 %v669, 1.442695
      %v715 = vpow.pop %v714
      %v716 = vmul.f32 %v670, 1.442695
      %v717 = vpow.pop %v716
      %v718 = vmul.f32 %v671, 1.442695
      %v719 = vpow.pop %v718
      %v720 = vmul.f32 %v672, 1.442695
      %v721 = vpow.pop %v720
      %v722 = vmul.f32 %v673, 1.442695
      %v723 = vpow.pop %v722
      %v724 = vmul.f32 %v674, 1.442695
      %v725 = vpow.pop %v724
      %v726 = vmul.f32 %v675, 1.442695
      %v727 = vpow.pop %v726
      %v728 = vmul.f32 %v676, 1.442695
      %v729 = vpow.pop %v728
      %v730 = vmul.f32 %v677, 1.442695
      %v731 = vpow.pop %v730
      %v732 = vmul.f32 %v678, 1.442695
      %v733 = vpow.pop %v732
      %v734 = vmul.f32 %v679, 1.442695
      %v735 = vpow.pop %v734
      %v736 = vmul.f32 %v680, 1.442695
      %v737 = vpow.pop %v736
      %v738 = vmul.f32 %v681, 1.442695
      %v739 = vpow.pop %v738
      %v740 = vmul.f32 %v682, 1.442695
      %v741 = vpow.pop %v740
      %v742 = vmul.f32 %v683, 1.442695
      %v743 = vpow.pop %v742
      %v744 = vmul.f32 %v684, 1.442695
      %v745 = vpow.pop %v744
      %v746 = vmul.f32 %v685, 1.442695
      %v747 = vpow.pop %v746
      %v748 = vmul.f32 %v686, 1.442695
      %v749 = vpow.pop %v748
      %v750 = vmul.f32 %v687, 1.442695
      %v751 = vpow.pop %v750
      %v752 = vadd.f32 %v689, 1.0
      %v753 = vadd.f32 %v691, 1.0
      %v754 = vadd.f32 %v693, 1.0
      %v755 = vadd.f32 %v695, 1.0
      %v756 = vadd.f32 %v697, 1.0
      %v757 = vadd.f32 %v699, 1.0
      %v758 = vadd.f32 %v701, 1.0
      %v759 = vadd.f32 %v703, 1.0
      %v760 = vadd.f32 %v705, 1.0
      %v761 = vadd.f32 %v707, 1.0
      %v762 = vadd.f32 %v709, 1.0
      %v763 = vadd.f32 %v711, 1.0
      %v764 = vadd.f32 %v713, 1.0
      %v765 = vadd.f32 %v715, 1.0
      %v766 = vadd.f32 %v717, 1.0
      %v767 = vadd.f32 %v719, 1.0
      %v768 = vadd.f32 %v721, 1.0
      %v769 = vadd.f32 %v723, 1.0
      %v770 = vadd.f32 %v725, 1.0
      %v771 = vadd.f32 %v727, 1.0
      %v772 = vadd.f32 %v729, 1.0
      %v773 = vadd.f32 %v731, 1.0
      %v774 = vadd.f32 %v733, 1.0
      %v775 = vadd.f32 %v735, 1.0
      %v776 = vadd.f32 %v737, 1.0
      %v777 = vadd.f32 %v739, 1.0
      %v778 = vadd.f32 %v741, 1.0
      %v779 = vadd.f32 %v743, 1.0
      %v780 = vadd.f32 %v745, 1.0
      %v781 = vadd.f32 %v747, 1.0
      %v782 = vadd.f32 %v749, 1.0
      %v783 = vadd.f32 %v751, 1.0
      %v784 = vrcp.pop %v752
      %v785 = vmul.f32 1.0, %v784
      %v786 = vrcp.pop %v753
      %v787 = vmul.f32 1.0, %v786
      %v788 = vrcp.pop %v754
      %v789 = vmul.f32 1.0, %v788
      %v790 = vrcp.pop %v755
      %v791 = vmul.f32 1.0, %v790
      %v792 = vrcp.pop %v756
      %v793 = vmul.f32 1.0, %v792
      %v794 = vrcp.pop %v757
      %v795 = vmul.f32 1.0, %v794
      %v796 = vrcp.pop %v758
      %v797 = vmul.f32 1.0, %v796
      %v798 = vrcp.pop %v759
      %v799 = vmul.f32 1.0, %v798
      %v800 = vrcp.pop %v760
      %v801 = vmul.f32 1.0, %v800
      %v802 = vrcp.pop %v761
      %v803 = vmul.f32 1.0, %v802
      %v804 = vrcp.pop %v762
      %v805 = vmul.f32 1.0, %v804
      %v806 = vrcp.pop %v763
      %v807 = vmul.f32 1.0, %v806
      %v808 = vrcp.pop %v764
      %v809 = vmul.f32 1.0, %v808
      %v810 = vrcp.pop %v765
      %v811 = vmul.f32 1.0, %v810
      %v812 = vrcp.pop %v766
      %v813 = vmul.f32 1.0, %v812
      %v814 = vrcp.pop %v767
      %v815 = vmul.f32 1.0, %v814
      %v816 = vrcp.pop %v768
      %v817 = vmul.f32 1.0, %v816
      %v818 = vrcp.pop %v769
      %v819 = vmul.f32 1.0, %v818
      %v820 = vrcp.pop %v770
      %v821 = vmul.f32 1.0, %v820
      %v822 = vrcp.pop %v771
      %v823 = vmul.f32 1.0, %v822
      %v824 = vrcp.pop %v772
      %v825 = vmul.f32 1.0, %v824
      %v826 = vrcp.pop %v773
      %v827 = vmul.f32 1.0, %v826
      %v828 = vrcp.pop %v774
      %v829 = vmul.f32 1.0, %v828
      %v830 = vrcp.pop %v775
      %v831 = vmul.f32 1.0, %v830
      %v832 = vrcp.pop %v776
      %v833 = vmul.f32 1.0, %v832
      %v834 = vrcp.pop %v777
      %v835 = vmul.f32 1.0, %v834
      %v836 = vrcp.pop %v778
      %v837 = vmul.f32 1.0, %v836
      %v838 = vrcp.pop %v779
      %v839 = vmul.f32 1.0, %v838
      %v840 = vrcp.pop %v780
      %v841 = vmul.f32 1.0, %v840
      %v842 = vrcp.pop %v781
      %v843 = vmul.f32 1.0, %v842
      %v844 = vrcp.pop %v782
      %v845 = vmul.f32 1.0, %v844
      %v846 = vrcp.pop %v783
      %v847 = vmul.f32 1.0, %v846
      %v848 = vmul.f32 %v624, %v785
      %v849 = vmul.f32 %v625, %v787
      %v850 = vmul.f32 %v626, %v789
      %v851 = vmul.f32 %v627, %v791
      %v852 = vmul.f32 %v628, %v793
      %v853 = vmul.f32 %v629, %v795
      %v854 = vmul.f32 %v630, %v797
      %v855 = vmul.f32 %v631, %v799
      %v856 = vmul.f32 %v632, %v801
      %v857 = vmul.f32 %v633, %v803
      %v858 = vmul.f32 %v634, %v805
      %v859 = vmul.f32 %v635, %v807
      %v860 = vmul.f32 %v636, %v809
      %v861 = vmul.f32 %v637, %v811
      %v862 = vmul.f32 %v638, %v813
      %v863 = vmul.f32 %v639, %v815
      %v864 = vmul.f32 %v640, %v817
      %v865 = vmul.f32 %v641, %v819
      %v866 = vmul.f32 %v642, %v821
      %v867 = vmul.f32 %v643, %v823
      %v868 = vmul.f32 %v644, %v825
      %v869 = vmul.f32 %v645, %v827
      %v870 = vmul.f32 %v646, %v829
      %v871 = vmul.f32 %v647, %v831
      %v872 = vmul.f32 %v648, %v833
      %v873 = vmul.f32 %v649, %v835
      %v874 = vmul.f32 %v650, %v837
      %v875 = vmul.f32 %v651, %v839
      %v876 = vmul.f32 %v652, %v841
      %v877 = vmul.f32 %v653, %v843
      %v878 = vmul.f32 %v654, %v845
      %v879 = vmul.f32 %v655, %v847
      %880 = vst.msk [vmem:[#allocation2] sm:$0xff] %vm337, 0.0
      %881 = vst.msk [vmem:[#allocation2 + $0x8] sm:$0xff] %vm337, 0.0
      %882 = vst.msk [vmem:[#allocation2 + $0x10] sm:$0xff] %vm337, 0.0
      %883 = vst.msk [vmem:[#allocation2 + $0x18] sm:$0xff] %vm337, 0.0
      %884 = vst.msk [vmem:[#allocation2 + $0x20] sm:$0xff] %vm337, 0.0
      %885 = vst.msk [vmem:[#allocation2 + $0x28] sm:$0xff] %vm337, 0.0
      %886 = vst.msk [vmem:[#allocation2 + $0x30] sm:$0xff] %vm337, 0.0
      %887 = vst.msk [vmem:[#allocation2 + $0x38] sm:$0xff] %vm337, 0.0
      %888 = vst.msk [vmem:[#allocation2 + $0x40] sm:$0xff] %vm337, 0.0
      %889 = vst.msk [vmem:[#allocation2 + $0x48] sm:$0xff] %vm337, 0.0
      %890 = vst.msk [vmem:[#allocation2 + $0x50] sm:$0xff] %vm337, 0.0
      %891 = vst.msk [vmem:[#allocation2 + $0x58] sm:$0xff] %vm337, 0.0
      %892 = vst.msk [vmem:[#allocation2 + $0x60] sm:$0xff] %vm337, 0.0
      %893 = vst.msk [vmem:[#allocation2 + $0x68] sm:$0xff] %vm337, 0.0
      %894 = vst.msk [vmem:[#allocation2 + $0x70] sm:$0xff] %vm337, 0.0
      %895 = vst.msk [vmem:[#allocation2 + $0x78] sm:$0xff] %vm337, 0.0
      %896 = vst.msk [vmem:[#allocation2 + $0x80] sm:$0xff] %vm337, 0.0
      %897 = vst.msk [vmem:[#allocation2 + $0x88] sm:$0xff] %vm337, 0.0
      %898 = vst.msk [vmem:[#allocation2 + $0x90] sm:$0xff] %vm337, 0.0
      %899 = vst.msk [vmem:[#allocation2 + $0x98] sm:$0xff] %vm337, 0.0
      %900 = vst.msk [vmem:[#allocation2 + $0xa0] sm:$0xff] %vm337, 0.0
      %901 = vst.msk [vmem:[#allocation2 + $0xa8] sm:$0xff] %vm337, 0.0
      %902 = vst.msk [vmem:[#allocation2 + $0xb0] sm:$0xff] %vm337, 0.0
      %903 = vst.msk [vmem:[#allocation2 + $0xb8] sm:$0xff] %vm337, 0.0
      %904 = vst.msk [vmem:[#allocation2 + $0xc0] sm:$0xff] %vm337, 0.0
      %905 = vst.msk [vmem:[#allocation2 + $0xc8] sm:$0xff] %vm337, 0.0
      %906 = vst.msk [vmem:[#allocation2 + $0xd0] sm:$0xff] %vm337, 0.0
      %907 = vst.msk [vmem:[#allocation2 + $0xd8] sm:$0xff] %vm337, 0.0
      %908 = vst.msk [vmem:[#allocation2 + $0xe0] sm:$0xff] %vm337, 0.0
      %909 = vst.msk [vmem:[#allocation2 + $0xe8] sm:$0xff] %vm337, 0.0
      %910 = vst.msk [vmem:[#allocation2 + $0xf0] sm:$0xff] %vm337, 0.0
      %911 = vst.msk [vmem:[#allocation2 + $0xf8] sm:$0xff] %vm337, 0.0
      %912 = vst.msk [vmem:[#allocation2 + $0x100] sm:$0xff] %vm337, 0.0
      %913 = vst.msk [vmem:[#allocation2 + $0x108] sm:$0xff] %vm337, 0.0
      %914 = vst.msk [vmem:[#allocation2 + $0x110] sm:$0xff] %vm337, 0.0
      %915 = vst.msk [vmem:[#allocation2 + $0x118] sm:$0xff] %vm337, 0.0
      %916 = vst.msk [vmem:[#allocation2 + $0x120] sm:$0xff] %vm337, 0.0
      %917 = vst.msk [vmem:[#allocation2 + $0x128] sm:$0xff] %vm337, 0.0
      %918 = vst.msk [vmem:[#allocation2 + $0x130] sm:$0xff] %vm337, 0.0
      %919 = vst.msk [vmem:[#allocation2 + $0x138] sm:$0xff] %vm337, 0.0
      %920 = vst.msk [vmem:[#allocation2 + $0x140] sm:$0xff] %vm337, 0.0
      %921 = vst.msk [vmem:[#allocation2 + $0x148] sm:$0xff] %vm337, 0.0
      %vm922 = vcmask 29696
      %923 = vst.msk [vmem:[#allocation2 + $0x150] sm:$0x3f] %vm922, 0.0
      %924 = vst.msk [vmem:[#allocation2 + $0x13] sm:$0xff] %vm337, %v848
      %925 = vst.msk [vmem:[#allocation2 + $0x1b] sm:$0xff] %vm337, %v849
      %926 = vst.msk [vmem:[#allocation2 + $0x25] sm:$0xff] %vm337, %v850
      %927 = vst.msk [vmem:[#allocation2 + $0x2d] sm:$0xff] %vm337, %v851
      %928 = vst.msk [vmem:[#allocation2 + $0x37] sm:$0xff] %vm337, %v852
      %929 = vst.msk [vmem:[#allocation2 + $0x3f] sm:$0xff] %vm337, %v853
      %930 = vst.msk [vmem:[#allocation2 + $0x49] sm:$0xff] %vm337, %v854
      %931 = vst.msk [vmem:[#allocation2 + $0x51] sm:$0xff] %vm337, %v855
      %932 = vst.msk [vmem:[#allocation2 + $0x5b] sm:$0xff] %vm337, %v856
      %933 = vst.msk [vmem:[#allocation2 + $0x63] sm:$0xff] %vm337, %v857
      %934 = vst.msk [vmem:[#allocation2 + $0x6d] sm:$0xff] %vm337, %v858
      %935 = vst.msk [vmem:[#allocation2 + $0x75] sm:$0xff] %vm337, %v859
      %936 = vst.msk [vmem:[#allocation2 + $0x7f] sm:$0xff] %vm337, %v860
      %937 = vst.msk [vmem:[#allocation2 + $0x87] sm:$0xff] %vm337, %v861
      %938 = vst.msk [vmem:[#allocation2 + $0x91] sm:$0xff] %vm337, %v862
      %939 = vst.msk [vmem:[#allocation2 + $0x99] sm:$0xff] %vm337, %v863
      %940 = vst.msk [vmem:[#allocation2 + $0xa3] sm:$0xff] %vm337, %v864
      %941 = vst.msk [vmem:[#allocation2 + $0xab] sm:$0xff] %vm337, %v865
      %942 = vst.msk [vmem:[#allocation2 + $0xb5] sm:$0xff] %vm337, %v866
      %943 = vst.msk [vmem:[#allocation2 + $0xbd] sm:$0xff] %vm337, %v867
      %944 = vst.msk [vmem:[#allocation2 + $0xc7] sm:$0xff] %vm337, %v868
      %945 = vst.msk [vmem:[#allocation2 + $0xcf] sm:$0xff] %vm337, %v869
      %946 = vst.msk [vmem:[#allocation2 + $0xd9] sm:$0xff] %vm337, %v870
      %947 = vst.msk [vmem:[#allocation2 + $0xe1] sm:$0xff] %vm337, %v871
      %948 = vst.msk [vmem:[#allocation2 + $0xeb] sm:$0xff] %vm337, %v872
      %949 = vst.msk [vmem:[#allocation2 + $0xf3] sm:$0xff] %vm337, %v873
      %950 = vst.msk [vmem:[#allocation2 + $0xfd] sm:$0xff] %vm337, %v874
      %951 = vst.msk [vmem:[#allocation2 + $0x105] sm:$0xff] %vm337, %v875
      %952 = vst.msk [vmem:[#allocation2 + $0x10f] sm:$0xff] %vm337, %v876
      %953 = vst.msk [vmem:[#allocation2 + $0x117] sm:$0xff] %vm337, %v877
      %954 = vst.msk [vmem:[#allocation2 + $0x121] sm:$0xff] %vm337, %v878
      %955 = vst.msk [vmem:[#allocation2 + $0x129] sm:$0xff] %vm337, %v879
      %v956 = vld [vmem:[#allocation2] sm:$0xff]
      %v957 = vld [vmem:[#allocation2 + $0x8] sm:$0xff]
      %v958 = vld [vmem:[#allocation2 + $0x10] sm:$0xff]
      %v959 = vld [vmem:[#allocation2 + $0x18] sm:$0xff]
      %v960 = vld [vmem:[#allocation2 + $0x20] sm:$0xff]
      %v961 = vld [vmem:[#allocation2 + $0x28] sm:$0xff]
      %v962 = vld [vmem:[#allocation2 + $0x30] sm:$0xff]
      %v963 = vld [vmem:[#allocation2 + $0x38] sm:$0xff]
      %v964 = vld [vmem:[#allocation2 + $0x40] sm:$0xff]
      %v965 = vld [vmem:[#allocation2 + $0x48] sm:$0xff]
      %v966 = vld [vmem:[#allocation2 + $0x50] sm:$0xff]
      %v967 = vld [vmem:[#allocation2 + $0x58] sm:$0xff]
      %v968 = vld [vmem:[#allocation2 + $0x60] sm:$0xff]
      %v969 = vld [vmem:[#allocation2 + $0x68] sm:$0xff]
      %v970 = vld [vmem:[#allocation2 + $0x70] sm:$0xff]
      %v971 = vld [vmem:[#allocation2 + $0x78] sm:$0xff]
      %v972 = vld [vmem:[#allocation2 + $0x80] sm:$0xff]
      %v973 = vld [vmem:[#allocation2 + $0x88] sm:$0xff]
      %v974 = vld [vmem:[#allocation2 + $0x90] sm:$0xff]
      %v975 = vld [vmem:[#allocation2 + $0x98] sm:$0xff]
      %v976 = vld [vmem:[#allocation2 + $0xa0] sm:$0xff]
      %v977 = vld [vmem:[#allocation2 + $0xa8] sm:$0xff]
      %v978 = vld [vmem:[#allocation2 + $0xb0] sm:$0xff]
      %v979 = vld [vmem:[#allocation2 + $0xb8] sm:$0xff]
      %v980 = vld [vmem:[#allocation2 + $0xc0] sm:$0xff]
      %v981 = vld [vmem:[#allocation2 + $0xc8] sm:$0xff]
      %v982 = vld [vmem:[#allocation2 + $0xd0] sm:$0xff]
      %v983 = vld [vmem:[#allocation2 + $0xd8] sm:$0xff]
      %v984 = vld [vmem:[#allocation2 + $0xe0] sm:$0xff]
      %v985 = vld [vmem:[#allocation2 + $0xe8] sm:$0xff]
      %v986 = vld [vmem:[#allocation2 + $0xf0] sm:$0xff]
      %v987 = vld [vmem:[#allocation2 + $0xf8] sm:$0xff]
      %v988 = vld [vmem:[#allocation2 + $0x100] sm:$0xff]
      %v989 = vld [vmem:[#allocation2 + $0x108] sm:$0xff]
      %v990 = vld [vmem:[#allocation2 + $0x110] sm:$0xff]
      %v991 = vld [vmem:[#allocation2 + $0x118] sm:$0xff]
      %v992 = vld [vmem:[%s4] sm:$0xf]
      %v993 = vld [vmem:[#allocation2 + $0x1] sm:$0xff]
      %v994 = vld [vmem:[#allocation2 + $0x9] sm:$0xff]
      %v995 = vld [vmem:[#allocation2 + $0x11] sm:$0xff]
      %v996 = vld [vmem:[#allocation2 + $0x19] sm:$0xff]
      %v997 = vld [vmem:[#allocation2 + $0x21] sm:$0xff]
      %v998 = vld [vmem:[#allocation2 + $0x29] sm:$0xff]
      %v999 = vld [vmem:[#allocation2 + $0x31] sm:$0xff]
      %v1000 = vld [vmem:[#allocation2 + $0x39] sm:$0xff]
      %v1001 = vld [vmem:[#allocation2 + $0x41] sm:$0xff]
      %v1002 = vld [vmem:[#allocation2 + $0x49] sm:$0xff]
      %v1003 = vld [vmem:[#allocation2 + $0x51] sm:$0xff]
      %v1004 = vld [vmem:[#allocation2 + $0x59] sm:$0xff]
      %v1005 = vld [vmem:[#allocation2 + $0x61] sm:$0xff]
      %v1006 = vld [vmem:[#allocation2 + $0x69] sm:$0xff]
      %v1007 = vld [vmem:[#allocation2 + $0x71] sm:$0xff]
      %v1008 = vld [vmem:[#allocation2 + $0x79] sm:$0xff]
      %v1009 = vld [vmem:[#allocation2 + $0x81] sm:$0xff]
      %v1010 = vld [vmem:[#allocation2 + $0x89] sm:$0xff]
      %v1011 = vld [vmem:[#allocation2 + $0x91] sm:$0xff]
      %v1012 = vld [vmem:[#allocation2 + $0x99] sm:$0xff]
      %v1013 = vld [vmem:[#allocation2 + $0xa1] sm:$0xff]
      %v1014 = vld [vmem:[#allocation2 + $0xa9] sm:$0xff]
      %v1015 = vld [vmem:[#allocation2 + $0xb1] sm:$0xff]
      %v1016 = vld [vmem:[#allocation2 + $0xb9] sm:$0xff]
      %v1017 = vld [vmem:[#allocation2 + $0xc1] sm:$0xff]
      %v1018 = vld [vmem:[#allocation2 + $0xc9] sm:$0xff]
      %v1019 = vld [vmem:[#allocation2 + $0xd1] sm:$0xff]
      %v1020 = vld [vmem:[#allocation2 + $0xd9] sm:$0xff]
      %v1021 = vld [vmem:[#allocation2 + $0xe1] sm:$0xff]
      %v1022 = vld [vmem:[#allocation2 + $0xe9] sm:$0xff]
      %v1023 = vld [vmem:[#allocation2 + $0xf1] sm:$0xff]
      %v1024 = vld [vmem:[#allocation2 + $0xf9] sm:$0xff]
      %v1025 = vld [vmem:[#allocation2 + $0x101] sm:$0xff]
      %v1026 = vld [vmem:[#allocation2 + $0x109] sm:$0xff]
      %v1027 = vld [vmem:[#allocation2 + $0x111] sm:$0xff]
      %v1028 = vld [vmem:[#allocation2 + $0x119] sm:$0xff]
      %s1029 = scalar_lea.vmem %s4, 4
      %v1030 = vld [vmem:[%s1029] sm:$0xf]
      %v1032 = vsel %vm337, %v993, 0
      %v1035 = vsel %vm337, %v994, 0
      %v1038 = vsel %vm337, %v995, 0
      %v1041 = vsel %vm337, %v996, 0
      %v1044 = vsel %vm337, %v997, 0
      %v1047 = vsel %vm337, %v998, 0
      %v1050 = vsel %vm337, %v999, 0
      %v1053 = vsel %vm337, %v1000, 0
      %v1056 = vsel %vm337, %v1001, 0
      %v1059 = vsel %vm337, %v1002, 0
      %v1062 = vsel %vm337, %v1003, 0
      %v1065 = vsel %vm337, %v1004, 0
      %v1068 = vsel %vm337, %v1005, 0
      %v1071 = vsel %vm337, %v1006, 0
      %v1074 = vsel %vm337, %v1007, 0
      %v1077 = vsel %vm337, %v1008, 0
      %v1080 = vsel %vm337, %v1009, 0
      %v1083 = vsel %vm337, %v1010, 0
      %v1086 = vsel %vm337, %v1011, 0
      %v1089 = vsel %vm337, %v1012, 0
      %v1092 = vsel %vm337, %v1013, 0
      %v1095 = vsel %vm337, %v1014, 0
      %v1098 = vsel %vm337, %v1015, 0
      %v1101 = vsel %vm337, %v1016, 0
      %v1104 = vsel %vm337, %v1017, 0
      %v1107 = vsel %vm337, %v1018, 0
      %v1110 = vsel %vm337, %v1019, 0
      %v1113 = vsel %vm337, %v1020, 0
      %v1116 = vsel %vm337, %v1021, 0
      %v1119 = vsel %vm337, %v1022, 0
      %v1122 = vsel %vm337, %v1023, 0
      %v1125 = vsel %vm337, %v1024, 0
      %v1128 = vsel %vm337, %v1025, 0
      %v1131 = vsel %vm337, %v1026, 0
      %v1134 = vsel %vm337, %v1027, 0
      %v1137 = vsel %vm337, %v1028, 0
      %vm1139 = vcmask 1043456
      %v1141 = vsel %vm1139, %v1030, 0
      %1143 = vmatprep.subr.mxu0 0.0
      %1144 = vmatpush1.msra.mxu0 %v1141
      %1145 = vmatprep.subr.mxu0 0.0
      %1146 = vmatpush1.msra.mxu0 0.0
      %1147 = vmatprep.subr.mxu0 0.0
      %1148 = vmatpush1.msra.mxu0 0.0
      %1149 = vmatprep.subr.mxu0 0.0
      %1150 = vmatpush1.msra.mxu0 0.0
      %1151 = vmatprep.subr.mxu0 0.0
      %1152 = vmatpush1.msra.mxu0 0.0
      %1153 = vmatprep.subr.mxu0 0.0
      %1154 = vmatpush1.msra.mxu0 0.0
      %1155 = vmatprep.subr.mxu0 0.0
      %1156 = vmatpush1.msra.mxu0 0.0
      %1157 = vmatprep.subr.mxu0 0.0
      %1158 = vmatpush1.msra.mxu0 0.0
      %1159 = vmatprep.subr.mxu0 0.0
      %1160 = vmatpush1.msra.mxu0 0.0
      %1161 = vmatprep.subr.mxu0 0.0
      %1162 = vmatpush1.msra.mxu0 0.0
      %1163 = vmatprep.subr.mxu0 0.0
      %1164 = vmatpush1.msra.mxu0 0.0
      %1165 = vmatprep.subr.mxu0 0.0
      %1166 = vmatpush1.msra.mxu0 0.0
      %1167 = vmatprep.subr.mxu0 0.0
      %1168 = vmatpush1.msra.mxu0 0.0
      %1169 = vmatprep.subr.mxu0 0.0
      %1170 = vmatpush1.msra.mxu0 0.0
      %1171 = vmatprep.subr.mxu0 0.0
      %1172 = vmatpush1.msra.mxu0 0.0
      %1173 = vmatprep.subr.mxu0 0.0
      %1174 = vmatpush1.msra.mxu0 0.0
      %1175 = vmatprep.subr.mxu0 0.0
      %1176 = vmatpush1.msra.mxu0 0.0
      %1177 = vmatprep.subr.mxu0 0.0
      %1178 = vmatpush1.msra.mxu0 0.0
      %1179 = vmatprep.subr.mxu0 0.0
      %1180 = vmatpush1.msra.mxu0 0.0
      %1181 = vmatprep.subr.mxu0 0.0
      %1182 = vmatpush1.msra.mxu0 0.0
      %1183 = vmatprep.subr.mxu0 0.0
      %1184 = vmatpush1.msra.mxu0 0.0
      %1185 = vmatprep.subr.mxu0 0.0
      %1186 = vmatpush1.msra.mxu0 0.0
      %1187 = vmatprep.subr.mxu0 0.0
      %1188 = vmatpush1.msra.mxu0 0.0
      %1189 = vmatprep.subr.mxu0 0.0
      %1190 = vmatpush1.msra.mxu0 0.0
      %1191 = vmatprep.subr.mxu0 0.0
      %1192 = vmatpush1.msra.mxu0 0.0
      %1193 = vmatprep.subr.mxu0 0.0
      %1194 = vmatpush1.msra.mxu0 0.0
      %1195 = vmatprep.subr.mxu0 0.0
      %1196 = vmatpush1.msra.mxu0 0.0
      %1197 = vmatprep.subr.mxu0 0.0
      %1198 = vmatpush1.msra.mxu0 0.0
      %1199 = vmatprep.subr.mxu0 0.0
      %1200 = vmatpush1.msra.mxu0 0.0
      %1201 = vmatprep.subr.mxu0 0.0
      %1202 = vmatpush1.msra.mxu0 0.0
      %1203 = vmatprep.subr.mxu0 0.0
      %1204 = vmatpush1.msra.mxu0 0.0
      %1205 = vmatprep.subr.mxu0 0.0
      %1206 = vmatpush1.msra.mxu0 0.0
      %1207 = vmatprep.mubr.f32.mxu0 0.0
      %1208 = vmatmul.mubr.f32.gmra.mrb[0].mxu0 %v1032
      %v1209 = vpop.f32.mrb[0].mxu0
      %v1210 = vadd.f32 0.0, %v1209
      %v1211 = vpop.f32.mrb[0].mxu0
      %1212 = vmatprep.mubr.f32.mxu0 0.0
      %1213 = vmatmul.mubr.f32.gmra.mrb[0].mxu0 %v1035
      %v1214 = vpop.f32.mrb[0].mxu0
      %v1215 = vadd.f32 0.0, %v1214
      %v1216 = vpop.f32.mrb[0].mxu0
      %1217 = vmatprep.mubr.f32.mxu0 0.0
      %1218 = vmatmul.mubr.f32.gmra.mrb[0].mxu0 %v1038
      %v1219 = vpop.f32.mrb[0].mxu0
      %v1220 = vadd.f32 0.0, %v1219
      %v1221 = vpop.f32.mrb[0].mxu0
      %1222 = vmatprep.mubr.f32.mxu0 0.0
      %1223 = vmatmul.mubr.f32.gmra.mrb[0].mxu0 %v1041
      %v1224 = vpop.f32.mrb[0].mxu0
      %v1225 = vadd.f32 0.0, %v1224
      %v1226 = vpop.f32.mrb[0].mxu0
      %1227 = vmatprep.mubr.f32.mxu0 0.0
      %1228 = vmatmul.mubr.f32.gmra.mrb[0].mxu0 %v1044
      %v1229 = vpop.f32.mrb[0].mxu0
      %v1230 = vadd.f32 0.0, %v1229
      %v1231 = vpop.f32.mrb[0].mxu0
      %1232 = vmatprep.mubr.f32.mxu0 0.0
      %1233 = vmatmul.mubr.f32.gmra.mrb[0].mxu0 %v1047
      %v1234 = vpop.f32.mrb[0].mxu0
      %v1235 = vadd.f32 0.0, %v1234
      %v1236 = vpop.f32.mrb[0].mxu0
      %1237 = vmatprep.mubr.f32.mxu0 0.0
      %1238 = vmatmul.mubr.f32.gmra.mrb[0].mxu0 %v1050
      %v1239 = vpop.f32.mrb[0].mxu0
      %v1240 = vadd.f32 0.0, %v1239
      %v1241 = vpop.f32.mrb[0].mxu0
      %1242 = vmatprep.mubr.f32.mxu0 0.0
      %1243 = vmatmul.mubr.f32.gmra.mrb[0].mxu0 %v1053
      %v1244 = vpop.f32.mrb[0].mxu0
      %v1245 = vadd.f32 0.0, %v1244
      %v1246 = vpop.f32.mrb[0].mxu0
      %1247 = vmatprep.mubr.f32.mxu0 0.0
      %1248 = vmatmul.mubr.f32.gmra.mrb[0].mxu0 %v1056
      %v1249 = vpop.f32.mrb[0].mxu0
      %v1250 = vadd.f32 0.0, %v1249
      %v1251 = vpop.f32.mrb[0].mxu0
      %1252 = vmatprep.mubr.f32.mxu0 0.0
      %1253 = vmatmul.mubr.f32.gmra.mrb[0].mxu0 %v1059
      %v1254 = vpop.f32.mrb[0].mxu0
      %v1255 = vadd.f32 0.0, %v1254
      %v1256 = vpop.f32.mrb[0].mxu0
      %1257 = vmatprep.mubr.f32.mxu0 0.0
      %1258 = vmatmul.mubr.f32.gmra.mrb[0].mxu0 %v1062
      %v1259 = vpop.f32.mrb[0].mxu0
      %v1260 = vadd.f32 0.0, %v1259
      %v1261 = vpop.f32.mrb[0].mxu0
      %1262 = vmatprep.mubr.f32.mxu0 0.0
      %1263 = vmatmul.mubr.f32.gmra.mrb[0].mxu0 %v1065
      %v1264 = vpop.f32.mrb[0].mxu0
      %v1265 = vadd.f32 0.0, %v1264
      %v1266 = vpop.f32.mrb[0].mxu0
      %1267 = vmatprep.mubr.f32.mxu0 0.0
      %1268 = vmatmul.mubr.f32.gmra.mrb[0].mxu0 %v1068
      %v1269 = vpop.f32.mrb[0].mxu0
      %v1270 = vadd.f32 0.0, %v1269
      %v1271 = vpop.f32.mrb[0].mxu0
      %1272 = vmatprep.mubr.f32.mxu0 0.0
      %1273 = vmatmul.mubr.f32.gmra.mrb[0].mxu0 %v1071
      %v1274 = vpop.f32.mrb[0].mxu0
      %v1275 = vadd.f32 0.0, %v1274
      %v1276 = vpop.f32.mrb[0].mxu0
      %1277 = vmatprep.mubr.f32.mxu0 0.0
      %1278 = vmatmul.mubr.f32.gmra.mrb[0].mxu0 %v1074
      %v1279 = vpop.f32.mrb[0].mxu0
      %v1280 = vadd.f32 0.0, %v1279
      %v1281 = vpop.f32.mrb[0].mxu0
      %1282 = vmatprep.mubr.f32.mxu0 0.0
      %1283 = vmatmul.mubr.f32.gmra.mrb[0].mxu0 %v1077
      %v1284 = vpop.f32.mrb[0].mxu0
      %v1285 = vadd.f32 0.0, %v1284
      %v1286 = vpop.f32.mrb[0].mxu0
      %1287 = vmatprep.mubr.f32.mxu0 0.0
      %1288 = vmatmul.mubr.f32.gmra.mrb[0].mxu0 %v1080
      %v1289 = vpop.f32.mrb[0].mxu0
      %v1290 = vadd.f32 0.0, %v1289
      %v1291 = vpop.f32.mrb[0].mxu0
      %1292 = vmatprep.mubr.f32.mxu0 0.0
      %1293 = vmatmul.mubr.f32.gmra.mrb[0].mxu0 %v1083
      %v1294 = vpop.f32.mrb[0].mxu0
      %v1295 = vadd.f32 0.0, %v1294
      %v1296 = vpop.f32.mrb[0].mxu0
      %1297 = vmatprep.mubr.f32.mxu0 0.0
      %1298 = vmatmul.mubr.f32.gmra.mrb[0].mxu0 %v1086
      %v1299 = vpop.f32.mrb[0].mxu0
      %v1300 = vadd.f32 0.0, %v1299
      %v1301 = vpop.f32.mrb[0].mxu0
      %1302 = vmatprep.mubr.f32.mxu0 0.0
      %1303 = vmatmul.mubr.f32.gmra.mrb[0].mxu0 %v1089
      %v1304 = vpop.f32.mrb[0].mxu0
      %v1305 = vadd.f32 0.0, %v1304
      %v1306 = vpop.f32.mrb[0].mxu0
      %1307 = vmatprep.mubr.f32.mxu0 0.0
      %1308 = vmatmul.mubr.f32.gmra.mrb[0].mxu0 %v1092
      %v1309 = vpop.f32.mrb[0].mxu0
      %v1310 = vadd.f32 0.0, %v1309
      %v1311 = vpop.f32.mrb[0].mxu0
      %1312 = vmatprep.mubr.f32.mxu0 0.0
      %1313 = vmatmul.mubr.f32.gmra.mrb[0].mxu0 %v1095
      %v1314 = vpop.f32.mrb[0].mxu0
      %v1315 = vadd.f32 0.0, %v1314
      %v1316 = vpop.f32.mrb[0].mxu0
      %1317 = vmatprep.mubr.f32.mxu0 0.0
      %1318 = vmatmul.mubr.f32.gmra.mrb[0].mxu0 %v1098
      %v1319 = vpop.f32.mrb[0].mxu0
      %v1320 = vadd.f32 0.0, %v1319
      %v1321 = vpop.f32.mrb[0].mxu0
      %1322 = vmatprep.mubr.f32.mxu0 0.0
      %1323 = vmatmul.mubr.f32.gmra.mrb[0].mxu0 %v1101
      %v1324 = vpop.f32.mrb[0].mxu0
      %v1325 = vadd.f32 0.0, %v1324
      %v1326 = vpop.f32.mrb[0].mxu0
      %1327 = vmatprep.mubr.f32.mxu0 0.0
      %1328 = vmatmul.mubr.f32.gmra.mrb[0].mxu0 %v1104
      %v1329 = vpop.f32.mrb[0].mxu0
      %v1330 = vadd.f32 0.0, %v1329
      %v1331 = vpop.f32.mrb[0].mxu0
      %1332 = vmatprep.mubr.f32.mxu0 0.0
      %1333 = vmatmul.mubr.f32.gmra.mrb[0].mxu0 %v1107
      %v1334 = vpop.f32.mrb[0].mxu0
      %v1335 = vadd.f32 0.0, %v1334
      %v1336 = vpop.f32.mrb[0].mxu0
      %1337 = vmatprep.mubr.f32.mxu0 0.0
      %1338 = vmatmul.mubr.f32.gmra.mrb[0].mxu0 %v1110
      %v1339 = vpop.f32.mrb[0].mxu0
      %v1340 = vadd.f32 0.0, %v1339
      %v1341 = vpop.f32.mrb[0].mxu0
      %1342 = vmatprep.mubr.f32.mxu0 0.0
      %1343 = vmatmul.mubr.f32.gmra.mrb[0].mxu0 %v1113
      %v1344 = vpop.f32.mrb[0].mxu0
      %v1345 = vadd.f32 0.0, %v1344
      %v1346 = vpop.f32.mrb[0].mxu0
      %1347 = vmatprep.mubr.f32.mxu0 0.0
      %1348 = vmatmul.mubr.f32.gmra.mrb[0].mxu0 %v1116
      %v1349 = vpop.f32.mrb[0].mxu0
      %v1350 = vadd.f32 0.0, %v1349
      %v1351 = vpop.f32.mrb[0].mxu0
      %1352 = vmatprep.mubr.f32.mxu0 0.0
      %1353 = vmatmul.mubr.f32.gmra.mrb[0].mxu0 %v1119
      %v1354 = vpop.f32.mrb[0].mxu0
      %v1355 = vadd.f32 0.0, %v1354
      %v1356 = vpop.f32.mrb[0].mxu0
      %1357 = vmatprep.mubr.f32.mxu0 0.0
      %1358 = vmatmul.mubr.f32.gmra.mrb[0].mxu0 %v1122
      %v1359 = vpop.f32.mrb[0].mxu0
      %v1360 = vadd.f32 0.0, %v1359
      %v1361 = vpop.f32.mrb[0].mxu0
      %1362 = vmatprep.mubr.f32.mxu0 0.0
      %1363 = vmatmul.mubr.f32.gmra.mrb[0].mxu0 %v1125
      %v1364 = vpop.f32.mrb[0].mxu0
      %v1365 = vadd.f32 0.0, %v1364
      %v1366 = vpop.f32.mrb[0].mxu0
      %1367 = vmatprep.mubr.f32.mxu0 0.0
      %1368 = vmatmul.mubr.f32.gmra.mrb[0].mxu0 %v1128
      %v1369 = vpop.f32.mrb[0].mxu0
      %v1370 = vadd.f32 0.0, %v1369
      %v1371 = vpop.f32.mrb[0].mxu0
      %1372 = vmatprep.mubr.f32.mxu0 0.0
      %1373 = vmatmul.mubr.f32.gmra.mrb[0].mxu0 %v1131
      %v1374 = vpop.f32.mrb[0].mxu0
      %v1375 = vadd.f32 0.0, %v1374
      %v1376 = vpop.f32.mrb[0].mxu0
      %1377 = vmatprep.mubr.f32.mxu0 0.0
      %1378 = vmatmul.mubr.f32.gmra.mrb[0].mxu0 %v1134
      %v1379 = vpop.f32.mrb[0].mxu0
      %v1380 = vadd.f32 0.0, %v1379
      %v1381 = vpop.f32.mrb[0].mxu0
      %1382 = vmatprep.mubr.f32.mxu0 0.0
      %1383 = vmatmul.mubr.f32.gmra.mrb[0].mxu0 %v1137
      %v1384 = vpop.f32.mrb[0].mxu0
      %v1385 = vadd.f32 0.0, %v1384
      %v1386 = vpop.f32.mrb[0].mxu0
      %1387 = vdwg.mxu0
      %v1389 = vsel %vm337, %v956, 0
      %v1392 = vsel %vm337, %v957, 0
      %v1395 = vsel %vm337, %v958, 0
      %v1398 = vsel %vm337, %v959, 0
      %v1401 = vsel %vm337, %v960, 0
      %v1404 = vsel %vm337, %v961, 0
      %v1407 = vsel %vm337, %v962, 0
      %v1410 = vsel %vm337, %v963, 0
      %v1413 = vsel %vm337, %v964, 0
      %v1416 = vsel %vm337, %v965, 0
      %v1419 = vsel %vm337, %v966, 0
      %v1422 = vsel %vm337, %v967, 0
      %v1425 = vsel %vm337, %v968, 0
      %v1428 = vsel %vm337, %v969, 0
      %v1431 = vsel %vm337, %v970, 0
      %v1434 = vsel %vm337, %v971, 0
      %v1437 = vsel %vm337, %v972, 0
      %v1440 = vsel %vm337, %v973, 0
      %v1443 = vsel %vm337, %v974, 0
      %v1446 = vsel %vm337, %v975, 0
      %v1449 = vsel %vm337, %v976, 0
      %v1452 = vsel %vm337, %v977, 0
      %v1455 = vsel %vm337, %v978, 0
      %v1458 = vsel %vm337, %v979, 0
      %v1461 = vsel %vm337, %v980, 0
      %v1464 = vsel %vm337, %v981, 0
      %v1467 = vsel %vm337, %v982, 0
      %v1470 = vsel %vm337, %v983, 0
      %v1473 = vsel %vm337, %v984, 0
      %v1476 = vsel %vm337, %v985, 0
      %v1479 = vsel %vm337, %v986, 0
      %v1482 = vsel %vm337, %v987, 0
      %v1485 = vsel %vm337, %v988, 0
      %v1488 = vsel %vm337, %v989, 0
      %v1491 = vsel %vm337, %v990, 0
      %v1494 = vsel %vm337, %v991, 0
      %v1497 = vsel %vm1139, %v992, 0
      %1499 = vmatprep.subr.mxu0 0.0
      %1500 = vmatpush1.msra.mxu0 %v1497
      %1501 = vmatprep.subr.mxu0 0.0
      %1502 = vmatpush1.msra.mxu0 0.0
      %1503 = vmatprep.subr.mxu0 0.0
      %1504 = vmatpush1.msra.mxu0 0.0
      %1505 = vmatprep.subr.mxu0 0.0
      %1506 = vmatpush1.msra.mxu0 0.0
      %1507 = vmatprep.subr.mxu0 0.0
      %1508 = vmatpush1.msra.mxu0 0.0
      %1509 = vmatprep.subr.mxu0 0.0
      %1510 = vmatpush1.msra.mxu0 0.0
      %1511 = vmatprep.subr.mxu0 0.0
      %1512 = vmatpush1.msra.mxu0 0.0
      %1513 = vmatprep.subr.mxu0 0.0
      %1514 = vmatpush1.msra.mxu0 0.0
      %1515 = vmatprep.subr.mxu0 0.0
      %1516 = vmatpush1.msra.mxu0 0.0
      %1517 = vmatprep.subr.mxu0 0.0
      %1518 = vmatpush1.msra.mxu0 0.0
      %1519 = vmatprep.subr.mxu0 0.0
      %1520 = vmatpush1.msra.mxu0 0.0
      %1521 = vmatprep.subr.mxu0 0.0
      %1522 = vmatpush1.msra.mxu0 0.0
      %1523 = vmatprep.subr.mxu0 0.0
      %1524 = vmatpush1.msra.mxu0 0.0
      %1525 = vmatprep.subr.mxu0 0.0
      %1526 = vmatpush1.msra.mxu0 0.0
      %1527 = vmatprep.subr.mxu0 0.0
      %1528 = vmatpush1.msra.mxu0 0.0
      %1529 = vmatprep.subr.mxu0 0.0
      %1530 = vmatpush1.msra.mxu0 0.0
      %1531 = vmatprep.subr.mxu0 0.0
      %1532 = vmatpush1.msra.mxu0 0.0
      %1533 = vmatprep.subr.mxu0 0.0
      %1534 = vmatpush1.msra.mxu0 0.0
      %1535 = vmatprep.subr.mxu0 0.0
      %1536 = vmatpush1.msra.mxu0 0.0
      %1537 = vmatprep.subr.mxu0 0.0
      %1538 = vmatpush1.msra.mxu0 0.0
      %1539 = vmatprep.subr.mxu0 0.0
      %1540 = vmatpush1.msra.mxu0 0.0
      %1541 = vmatprep.subr.mxu0 0.0
      %1542 = vmatpush1.msra.mxu0 0.0
      %1543 = vmatprep.subr.mxu0 0.0
      %1544 = vmatpush1.msra.mxu0 0.0
      %1545 = vmatprep.subr.mxu0 0.0
      %1546 = vmatpush1.msra.mxu0 0.0
      %1547 = vmatprep.subr.mxu0 0.0
      %1548 = vmatpush1.msra.mxu0 0.0
      %1549 = vmatprep.subr.mxu0 0.0
      %1550 = vmatpush1.msra.mxu0 0.0
      %1551 = vmatprep.subr.mxu0 0.0
      %1552 = vmatpush1.msra.mxu0 0.0
      %1553 = vmatprep.subr.mxu0 0.0
      %1554 = vmatpush1.msra.mxu0 0.0
      %1555 = vmatprep.subr.mxu0 0.0
      %1556 = vmatpush1.msra.mxu0 0.0
      %1557 = vmatprep.subr.mxu0 0.0
      %1558 = vmatpush1.msra.mxu0 0.0
      %1559 = vmatprep.subr.mxu0 0.0
      %1560 = vmatpush1.msra.mxu0 0.0
      %1561 = vmatprep.subr.mxu0 0.0
      %1562 = vmatpush1.msra.mxu0 0.0
      %1563 = vmatprep.mubr.f32.mxu0 0.0
      %1564 = vmatmul.mubr.f32.gmra.mrb[0].mxu0 %v1389
      %v1565 = vpop.f32.mrb[0].mxu0
      %v1566 = vadd.f32 %v1210, %v1565
      %v1567 = vpop.f32.mrb[0].mxu0
      %1568 = vmatprep.mubr.f32.mxu0 0.0
      %1569 = vmatmul.mubr.f32.gmra.mrb[0].mxu0 %v1392
      %v1570 = vpop.f32.mrb[0].mxu0
      %v1571 = vadd.f32 %v1215, %v1570
      %v1572 = vpop.f32.mrb[0].mxu0
      %1573 = vmatprep.mubr.f32.mxu0 0.0
      %1574 = vmatmul.mubr.f32.gmra.mrb[0].mxu0 %v1395
      %v1575 = vpop.f32.mrb[0].mxu0
      %v1576 = vadd.f32 %v1220, %v1575
      %v1577 = vpop.f32.mrb[0].mxu0
      %1578 = vmatprep.mubr.f32.mxu0 0.0
      %1579 = vmatmul.mubr.f32.gmra.mrb[0].mxu0 %v1398
      %v1580 = vpop.f32.mrb[0].mxu0
      %v1581 = vadd.f32 %v1225, %v1580
      %v1582 = vpop.f32.mrb[0].mxu0
      %1583 = vmatprep.mubr.f32.mxu0 0.0
      %1584 = vmatmul.mubr.f32.gmra.mrb[0].mxu0 %v1401
      %v1585 = vpop.f32.mrb[0].mxu0
      %v1586 = vadd.f32 %v1230, %v1585
      %v1587 = vpop.f32.mrb[0].mxu0
      %1588 = vmatprep.mubr.f32.mxu0 0.0
      %1589 = vmatmul.mubr.f32.gmra.mrb[0].mxu0 %v1404
      %v1590 = vpop.f32.mrb[0].mxu0
      %v1591 = vadd.f32 %v1235, %v1590
      %v1592 = vpop.f32.mrb[0].mxu0
      %1593 = vmatprep.mubr.f32.mxu0 0.0
      %1594 = vmatmul.mubr.f32.gmra.mrb[0].mxu0 %v1407
      %v1595 = vpop.f32.mrb[0].mxu0
      %v1596 = vadd.f32 %v1240, %v1595
      %v1597 = vpop.f32.mrb[0].mxu0
      %1598 = vmatprep.mubr.f32.mxu0 0.0
      %1599 = vmatmul.mubr.f32.gmra.mrb[0].mxu0 %v1410
      %v1600 = vpop.f32.mrb[0].mxu0
      %v1601 = vadd.f32 %v1245, %v1600
      %v1602 = vpop.f32.mrb[0].mxu0
      %1603 = vmatprep.mubr.f32.mxu0 0.0
      %1604 = vmatmul.mubr.f32.gmra.mrb[0].mxu0 %v1413
      %v1605 = vpop.f32.mrb[0].mxu0
      %v1606 = vadd.f32 %v1250, %v1605
      %v1607 = vpop.f32.mrb[0].mxu0
      %1608 = vmatprep.mubr.f32.mxu0 0.0
      %1609 = vmatmul.mubr.f32.gmra.mrb[0].mxu0 %v1416
      %v1610 = vpop.f32.mrb[0].mxu0
      %v1611 = vadd.f32 %v1255, %v1610
      %v1612 = vpop.f32.mrb[0].mxu0
      %1613 = vmatprep.mubr.f32.mxu0 0.0
      %1614 = vmatmul.mubr.f32.gmra.mrb[0].mxu0 %v1419
      %v1615 = vpop.f32.mrb[0].mxu0
      %v1616 = vadd.f32 %v1260, %v1615
      %v1617 = vpop.f32.mrb[0].mxu0
      %1618 = vmatprep.mubr.f32.mxu0 0.0
      %1619 = vmatmul.mubr.f32.gmra.mrb[0].mxu0 %v1422
      %v1620 = vpop.f32.mrb[0].mxu0
      %v1621 = vadd.f32 %v1265, %v1620
      %v1622 = vpop.f32.mrb[0].mxu0
      %1623 = vmatprep.mubr.f32.mxu0 0.0
      %1624 = vmatmul.mubr.f32.gmra.mrb[0].mxu0 %v1425
      %v1625 = vpop.f32.mrb[0].mxu0
      %v1626 = vadd.f32 %v1270, %v1625
      %v1627 = vpop.f32.mrb[0].mxu0
      %1628 = vmatprep.mubr.f32.mxu0 0.0
      %1629 = vmatmul.mubr.f32.gmra.mrb[0].mxu0 %v1428
      %v1630 = vpop.f32.mrb[0].mxu0
      %v1631 = vadd.f32 %v1275, %v1630
      %v1632 = vpop.f32.mrb[0].mxu0
      %1633 = vmatprep.mubr.f32.mxu0 0.0
      %1634 = vmatmul.mubr.f32.gmra.mrb[0].mxu0 %v1431
      %v1635 = vpop.f32.mrb[0].mxu0
      %v1636 = vadd.f32 %v1280, %v1635
      %v1637 = vpop.f32.mrb[0].mxu0
      %1638 = vmatprep.mubr.f32.mxu0 0.0
      %1639 = vmatmul.mubr.f32.gmra.mrb[0].mxu0 %v1434
      %v1640 = vpop.f32.mrb[0].mxu0
      %v1641 = vadd.f32 %v1285, %v1640
      %v1642 = vpop.f32.mrb[0].mxu0
      %1643 = vmatprep.mubr.f32.mxu0 0.0
      %1644 = vmatmul.mubr.f32.gmra.mrb[0].mxu0 %v1437
      %v1645 = vpop.f32.mrb[0].mxu0
      %v1646 = vadd.f32 %v1290, %v1645
      %v1647 = vpop.f32.mrb[0].mxu0
      %1648 = vmatprep.mubr.f32.mxu0 0.0
      %1649 = vmatmul.mubr.f32.gmra.mrb[0].mxu0 %v1440
      %v1650 = vpop.f32.mrb[0].mxu0
      %v1651 = vadd.f32 %v1295, %v1650
      %v1652 = vpop.f32.mrb[0].mxu0
      %1653 = vmatprep.mubr.f32.mxu0 0.0
      %1654 = vmatmul.mubr.f32.gmra.mrb[0].mxu0 %v1443
      %v1655 = vpop.f32.mrb[0].mxu0
      %v1656 = vadd.f32 %v1300, %v1655
      %v1657 = vpop.f32.mrb[0].mxu0
      %1658 = vmatprep.mubr.f32.mxu0 0.0
      %1659 = vmatmul.mubr.f32.gmra.mrb[0].mxu0 %v1446
      %v1660 = vpop.f32.mrb[0].mxu0
      %v1661 = vadd.f32 %v1305, %v1660
      %v1662 = vpop.f32.mrb[0].mxu0
      %1663 = vmatprep.mubr.f32.mxu0 0.0
      %1664 = vmatmul.mubr.f32.gmra.mrb[0].mxu0 %v1449
      %v1665 = vpop.f32.mrb[0].mxu0
      %v1666 = vadd.f32 %v1310, %v1665
      %v1667 = vpop.f32.mrb[0].mxu0
      %1668 = vmatprep.mubr.f32.mxu0 0.0
      %1669 = vmatmul.mubr.f32.gmra.mrb[0].mxu0 %v1452
      %v1670 = vpop.f32.mrb[0].mxu0
      %v1671 = vadd.f32 %v1315, %v1670
      %v1672 = vpop.f32.mrb[0].mxu0
      %1673 = vmatprep.mubr.f32.mxu0 0.0
      %1674 = vmatmul.mubr.f32.gmra.mrb[0].mxu0 %v1455
      %v1675 = vpop.f32.mrb[0].mxu0
      %v1676 = vadd.f32 %v1320, %v1675
      %v1677 = vpop.f32.mrb[0].mxu0
      %1678 = vmatprep.mubr.f32.mxu0 0.0
      %1679 = vmatmul.mubr.f32.gmra.mrb[0].mxu0 %v1458
      %v1680 = vpop.f32.mrb[0].mxu0
      %v1681 = vadd.f32 %v1325, %v1680
      %v1682 = vpop.f32.mrb[0].mxu0
      %1683 = vmatprep.mubr.f32.mxu0 0.0
      %1684 = vmatmul.mubr.f32.gmra.mrb[0].mxu0 %v1461
      %v1685 = vpop.f32.mrb[0].mxu0
      %v1686 = vadd.f32 %v1330, %v1685
      %v1687 = vpop.f32.mrb[0].mxu0
      %1688 = vmatprep.mubr.f32.mxu0 0.0
      %1689 = vmatmul.mubr.f32.gmra.mrb[0].mxu0 %v1464
      %v1690 = vpop.f32.mrb[0].mxu0
      %v1691 = vadd.f32 %v1335, %v1690
      %v1692 = vpop.f32.mrb[0].mxu0
      %1693 = vmatprep.mubr.f32.mxu0 0.0
      %1694 = vmatmul.mubr.f32.gmra.mrb[0].mxu0 %v1467
      %v1695 = vpop.f32.mrb[0].mxu0
      %v1696 = vadd.f32 %v1340, %v1695
      %v1697 = vpop.f32.mrb[0].mxu0
      %1698 = vmatprep.mubr.f32.mxu0 0.0
      %1699 = vmatmul.mubr.f32.gmra.mrb[0].mxu0 %v1470
      %v1700 = vpop.f32.mrb[0].mxu0
      %v1701 = vadd.f32 %v1345, %v1700
      %v1702 = vpop.f32.mrb[0].mxu0
      %1703 = vmatprep.mubr.f32.mxu0 0.0
      %1704 = vmatmul.mubr.f32.gmra.mrb[0].mxu0 %v1473
      %v1705 = vpop.f32.mrb[0].mxu0
      %v1706 = vadd.f32 %v1350, %v1705
      %v1707 = vpop.f32.mrb[0].mxu0
      %1708 = vmatprep.mubr.f32.mxu0 0.0
      %1709 = vmatmul.mubr.f32.gmra.mrb[0].mxu0 %v1476
      %v1710 = vpop.f32.mrb[0].mxu0
      %v1711 = vadd.f32 %v1355, %v1710
      %v1712 = vpop.f32.mrb[0].mxu0
      %1713 = vmatprep.mubr.f32.mxu0 0.0
      %1714 = vmatmul.mubr.f32.gmra.mrb[0].mxu0 %v1479
      %v1715 = vpop.f32.mrb[0].mxu0
      %v1716 = vadd.f32 %v1360, %v1715
      %v1717 = vpop.f32.mrb[0].mxu0
      %1718 = vmatprep.mubr.f32.mxu0 0.0
      %1719 = vmatmul.mubr.f32.gmra.mrb[0].mxu0 %v1482
      %v1720 = vpop.f32.mrb[0].mxu0
      %v1721 = vadd.f32 %v1365, %v1720
      %v1722 = vpop.f32.mrb[0].mxu0
      %1723 = vmatprep.mubr.f32.mxu0 0.0
      %1724 = vmatmul.mubr.f32.gmra.mrb[0].mxu0 %v1485
      %v1725 = vpop.f32.mrb[0].mxu0
      %v1726 = vadd.f32 %v1370, %v1725
      %v1727 = vpop.f32.mrb[0].mxu0
      %1728 = vmatprep.mubr.f32.mxu0 0.0
      %1729 = vmatmul.mubr.f32.gmra.mrb[0].mxu0 %v1488
      %v1730 = vpop.f32.mrb[0].mxu0
      %v1731 = vadd.f32 %v1375, %v1730
      %v1732 = vpop.f32.mrb[0].mxu0
      %1733 = vmatprep.mubr.f32.mxu0 0.0
      %1734 = vmatmul.mubr.f32.gmra.mrb[0].mxu0 %v1491
      %v1735 = vpop.f32.mrb[0].mxu0
      %v1736 = vadd.f32 %v1380, %v1735
      %v1737 = vpop.f32.mrb[0].mxu0
      %1738 = vmatprep.mubr.f32.mxu0 0.0
      %1739 = vmatmul.mubr.f32.gmra.mrb[0].mxu0 %v1494
      %v1740 = vpop.f32.mrb[0].mxu0
      %v1741 = vadd.f32 %v1385, %v1740
      %v1742 = vpop.f32.mrb[0].mxu0
      %1743 = vdwg.mxu0
      %v1744 = vld [vmem:[#allocation2 + $0x2] sm:$0xff]
      %v1745 = vld [vmem:[#allocation2 + $0xa] sm:$0xff]
      %v1746 = vld [vmem:[#allocation2 + $0x12] sm:$0xff]
      %v1747 = vld [vmem:[#allocation2 + $0x1a] sm:$0xff]
      %v1748 = vld [vmem:[#allocation2 + $0x22] sm:$0xff]
      %v1749 = vld [vmem:[#allocation2 + $0x2a] sm:$0xff]
      %v1750 = vld [vmem:[#allocation2 + $0x32] sm:$0xff]
      %v1751 = vld [vmem:[#allocation2 + $0x3a] sm:$0xff]
      %v1752 = vld [vmem:[#allocation2 + $0x42] sm:$0xff]
      %v1753 = vld [vmem:[#allocation2 + $0x4a] sm:$0xff]
      %v1754 = vld [vmem:[#allocation2 + $0x52] sm:$0xff]
      %v1755 = vld [vmem:[#allocation2 + $0x5a] sm:$0xff]
      %v1756 = vld [vmem:[#allocation2 + $0x62] sm:$0xff]
      %v1757 = vld [vmem:[#allocation2 + $0x6a] sm:$0xff]
      %v1758 = vld [vmem:[#allocation2 + $0x72] sm:$0xff]
      %v1759 = vld [vmem:[#allocation2 + $0x7a] sm:$0xff]
      %v1760 = vld [vmem:[#allocation2 + $0x82] sm:$0xff]
      %v1761 = vld [vmem:[#allocation2 + $0x8a] sm:$0xff]
      %v1762 = vld [vmem:[#allocation2 + $0x92] sm:$0xff]
      %v1763 = vld [vmem:[#allocation2 + $0x9a] sm:$0xff]
      %v1764 = vld [vmem:[#allocation2 + $0xa2] sm:$0xff]
      %v1765 = vld [vmem:[#allocation2 + $0xaa] sm:$0xff]
      %v1766 = vld [vmem:[#allocation2 + $0xb2] sm:$0xff]
      %v1767 = vld [vmem:[#allocation2 + $0xba] sm:$0xff]
      %v1768 = vld [vmem:[#allocation2 + $0xc2] sm:$0xff]
      %v1769 = vld [vmem:[#allocation2 + $0xca] sm:$0xff]
      %v1770 = vld [vmem:[#allocation2 + $0xd2] sm:$0xff]
      %v1771 = vld [vmem:[#allocation2 + $0xda] sm:$0xff]
      %v1772 = vld [vmem:[#allocation2 + $0xe2] sm:$0xff]
      %v1773 = vld [vmem:[#allocation2 + $0xea] sm:$0xff]
      %v1774 = vld [vmem:[#allocation2 + $0xf2] sm:$0xff]
      %v1775 = vld [vmem:[#allocation2 + $0xfa] sm:$0xff]
      %v1776 = vld [vmem:[#allocation2 + $0x102] sm:$0xff]
      %v1777 = vld [vmem:[#allocation2 + $0x10a] sm:$0xff]
      %v1778 = vld [vmem:[#allocation2 + $0x112] sm:$0xff]
      %v1779 = vld [vmem:[#allocation2 + $0x11a] sm:$0xff]
      %s1780 = scalar_lea.vmem %s4, 8
      %v1781 = vld [vmem:[%s1780] sm:$0xf]
      %v1783 = vsel %vm337, %v1744, 0
      %v1786 = vsel %vm337, %v1745, 0
      %v1789 = vsel %vm337, %v1746, 0
      %v1792 = vsel %vm337, %v1747, 0
      %v1795 = vsel %vm337, %v1748, 0
      %v1798 = vsel %vm337, %v1749, 0
      %v1801 = vsel %vm337, %v1750, 0
      %v1804 = vsel %vm337, %v1751, 0
      %v1807 = vsel %vm337, %v1752, 0
      %v1810 = vsel %vm337, %v1753, 0
      %v1813 = vsel %vm337, %v1754, 0
      %v1816 = vsel %vm337, %v1755, 0
      %v1819 = vsel %vm337, %v1756, 0
      %v1822 = vsel %vm337, %v1757, 0
      %v1825 = vsel %vm337, %v1758, 0
      %v1828 = vsel %vm337, %v1759, 0
      %v1831 = vsel %vm337, %v1760, 0
      %v1834 = vsel %vm337, %v1761, 0
      %v1837 = vsel %vm337, %v1762, 0
      %v1840 = vsel %vm337, %v1763, 0
      %v1843 = vsel %vm337, %v1764, 0
      %v1846 = vsel %vm337, %v1765, 0
      %v1849 = vsel %vm337, %v1766, 0
      %v1852 = vsel %vm337, %v1767, 0
      %v1855 = vsel %vm337, %v1768, 0
      %v1858 = vsel %vm337, %v1769, 0
      %v1861 = vsel %vm337, %v1770, 0
      %v1864 = vsel %vm337, %v1771, 0
      %v1867 = vsel %vm337, %v1772, 0
      %v1870 = vsel %vm337, %v1773, 0
      %v1873 = vsel %vm337, %v1774, 0
      %v1876 = vsel %vm337, %v1775, 0
      %v1879 = vsel %vm337, %v1776, 0
      %v1882 = vsel %vm337, %v1777, 0
      %v1885 = vsel %vm337, %v1778, 0
      %v1888 = vsel %vm337, %v1779, 0
      %v1891 = vsel %vm1139, %v1781, 0
      %1893 = vmatprep.subr.mxu0 0.0
      %1894 = vmatpush1.msra.mxu0 %v1891
      %1895 = vmatprep.subr.mxu0 0.0
      %1896 = vmatpush1.msra.mxu0 0.0
      %1897 = vmatprep.subr.mxu0 0.0
      %1898 = vmatpush1.msra.mxu0 0.0
      %1899 = vmatprep.subr.mxu0 0.0
      %1900 = vmatpush1.msra.mxu0 0.0
      %1901 = vmatprep.subr.mxu0 0.0
      %1902 = vmatpush1.msra.mxu0 0.0
      %1903 = vmatprep.subr.mxu0 0.0
      %1904 = vmatpush1.msra.mxu0 0.0
      %1905 = vmatprep.subr.mxu0 0.0
      %1906 = vmatpush1.msra.mxu0 0.0
      %1907 = vmatprep.subr.mxu0 0.0
      %1908 = vmatpush1.msra.mxu0 0.0
      %1909 = vmatprep.subr.mxu0 0.0
      %1910 = vmatpush1.msra.mxu0 0.0
      %1911 = vmatprep.subr.mxu0 0.0
      %1912 = vmatpush1.msra.mxu0 0.0
      %1913 = vmatprep.subr.mxu0 0.0
      %1914 = vmatpush1.msra.mxu0 0.0
      %1915 = vmatprep.subr.mxu0 0.0
      %1916 = vmatpush1.msra.mxu0 0.0
      %1917 = vmatprep.subr.mxu0 0.0
      %1918 = vmatpush1.msra.mxu0 0.0
      %1919 = vmatprep.subr.mxu0 0.0
      %1920 = vmatpush1.msra.mxu0 0.0
      %1921 = vmatprep.subr.mxu0 0.0
      %1922 = vmatpush1.msra.mxu0 0.0
      %1923 = vmatprep.subr.mxu0 0.0
      %1924 = vmatpush1.msra.mxu0 0.0
      %1925 = vmatprep.subr.mxu0 0.0
      %1926 = vmatpush1.msra.mxu0 0.0
      %1927 = vmatprep.subr.mxu0 0.0
      %1928 = vmatpush1.msra.mxu0 0.0
      %1929 = vmatprep.subr.mxu0 0.0
      %1930 = vmatpush1.msra.mxu0 0.0
      %1931 = vmatprep.subr.mxu0 0.0
      %1932 = vmatpush1.msra.mxu0 0.0
      %1933 = vmatprep.subr.mxu0 0.0
      %1934 = vmatpush1.msra.mxu0 0.0
      %1935 = vmatprep.subr.mxu0 0.0
      %1936 = vmatpush1.msra.mxu0 0.0
      %1937 = vmatprep.subr.mxu0 0.0
      %1938 = vmatpush1.msra.mxu0 0.0
      %1939 = vmatprep.subr.mxu0 0.0
      %1940 = vmatpush1.msra.mxu0 0.0
      %1941 = vmatprep.subr.mxu0 0.0
      %1942 = vmatpush1.msra.mxu0 0.0
      %1943 = vmatprep.subr.mxu0 0.0
      %1944 = vmatpush1.msra.mxu0 0.0
      %1945 = vmatprep.subr.mxu0 0.0
      %1946 = vmatpush1.msra.mxu0 0.0
      %1947 = vmatprep.subr.mxu0 0.0
      %1948 = vmatpush1.msra.mxu0 0.0
      %1949 = vmatprep.subr.mxu0 0.0
      %1950 = vmatpush1.msra.mxu0 0.0
      %1951 = vmatprep.subr.mxu0 0.0
      %1952 = vmatpush1.msra.mxu0 0.0
      %1953 = vmatprep.subr.mxu0 0.0
      %1954 = vmatpush1.msra.mxu0 0.0
      %1955 = vmatprep.subr.mxu0 0.0
      %1956 = vmatpush1.msra.mxu0 0.0
      %1957 = vmatprep.mubr.f32.mxu0 0.0
      %1958 = vmatmul.mubr.f32.gmra.mrb[0].mxu0 %v1783
      %v1959 = vpop.f32.mrb[0].mxu0
      %v1960 = vadd.f32 0.0, %v1959
      %v1961 = vpop.f32.mrb[0].mxu0
      %1962 = vmatprep.mubr.f32.mxu0 0.0
      %1963 = vmatmul.mubr.f32.gmra.mrb[0].mxu0 %v1786
      %v1964 = vpop.f32.mrb[0].mxu0
      %v1965 = vadd.f32 0.0, %v1964
      %v1966 = vpop.f32.mrb[0].mxu0
      %1967 = vmatprep.mubr.f32.mxu0 0.0
      %1968 = vmatmul.mubr.f32.gmra.mrb[0].mxu0 %v1789
      %v1969 = vpop.f32.mrb[0].mxu0
      %v1970 = vadd.f32 0.0, %v1969
      %v1971 = vpop.f32.mrb[0].mxu0
      %1972 = vmatprep.mubr.f32.mxu0 0.0
      %1973 = vmatmul.mubr.f32.gmra.mrb[0].mxu0 %v1792
      %v1974 = vpop.f32.mrb[0].mxu0
      %v1975 = vadd.f32 0.0, %v1974
      %v1976 = vpop.f32.mrb[0].mxu0
      %1977 = vmatprep.mubr.f32.mxu0 0.0
      %1978 = vmatmul.mubr.f32.gmra.mrb[0].mxu0 %v1795
      %v1979 = vpop.f32.mrb[0].mxu0
      %v1980 = vadd.f32 0.0, %v1979
      %v1981 = vpop.f32.mrb[0].mxu0
      %1982 = vmatprep.mubr.f32.mxu0 0.0
      %1983 = vmatmul.mubr.f32.gmra.mrb[0].mxu0 %v1798
      %v1984 = vpop.f32.mrb[0].mxu0
      %v1985 = vadd.f32 0.0, %v1984
      %v1986 = vpop.f32.mrb[0].mxu0
      %1987 = vmatprep.mubr.f32.mxu0 0.0
      %1988 = vmatmul.mubr.f32.gmra.mrb[0].mxu0 %v1801
      %v1989 = vpop.f32.mrb[0].mxu0
      %v1990 = vadd.f32 0.0, %v1989
      %v1991 = vpop.f32.mrb[0].mxu0
      %1992 = vmatprep.mubr.f32.mxu0 0.0
      %1993 = vmatmul.mubr.f32.gmra.mrb[0].mxu0 %v1804
      %v1994 = vpop.f32.mrb[0].mxu0
      %v1995 = vadd.f32 0.0, %v1994
      %v1996 = vpop.f32.mrb[0].mxu0
      %1997 = vmatprep.mubr.f32.mxu0 0.0
      %1998 = vmatmul.mubr.f32.gmra.mrb[0].mxu0 %v1807
      %v1999 = vpop.f32.mrb[0].mxu0
      %v2000 = vadd.f32 0.0, %v1999
      %v2001 = vpop.f32.mrb[0].mxu0
      %2002 = vmatprep.mubr.f32.mxu0 0.0
      %2003 = vmatmul.mubr.f32.gmra.mrb[0].mxu0 %v1810
      %v2004 = vpop.f32.mrb[0].mxu0
      %v2005 = vadd.f32 0.0, %v2004
      %v2006 = vpop.f32.mrb[0].mxu0
      %2007 = vmatprep.mubr.f32.mxu0 0.0
      %2008 = vmatmul.mubr.f32.gmra.mrb[0].mxu0 %v1813
      %v2009 = vpop.f32.mrb[0].mxu0
      %v2010 = vadd.f32 0.0, %v2009
      %v2011 = vpop.f32.mrb[0].mxu0
      %2012 = vmatprep.mubr.f32.mxu0 0.0
      %2013 = vmatmul.mubr.f32.gmra.mrb[0].mxu0 %v1816
      %v2014 = vpop.f32.mrb[0].mxu0
      %v2015 = vadd.f32 0.0, %v2014
      %v2016 = vpop.f32.mrb[0].mxu0
      %2017 = vmatprep.mubr.f32.mxu0 0.0
      %2018 = vmatmul.mubr.f32.gmra.mrb[0].mxu0 %v1819
      %v2019 = vpop.f32.mrb[0].mxu0
      %v2020 = vadd.f32 0.0, %v2019
      %v2021 = vpop.f32.mrb[0].mxu0
      %2022 = vmatprep.mubr.f32.mxu0 0.0
      %2023 = vmatmul.mubr.f32.gmra.mrb[0].mxu0 %v1822
      %v2024 = vpop.f32.mrb[0].mxu0
      %v2025 = vadd.f32 0.0, %v2024
      %v2026 = vpop.f32.mrb[0].mxu0
      %2027 = vmatprep.mubr.f32.mxu0 0.0
      %2028 = vmatmul.mubr.f32.gmra.mrb[0].mxu0 %v1825
      %v2029 = vpop.f32.mrb[0].mxu0
      %v2030 = vadd.f32 0.0, %v2029
      %v2031 = vpop.f32.mrb[0].mxu0
      %2032 = vmatprep.mubr.f32.mxu0 0.0
      %2033 = vmatmul.mubr.f32.gmra.mrb[0].mxu0 %v1828
      %v2034 = vpop.f32.mrb[0].mxu0
      %v2035 = vadd.f32 0.0, %v2034
      %v2036 = vpop.f32.mrb[0].mxu0
      %2037 = vmatprep.mubr.f32.mxu0 0.0
      %2038 = vmatmul.mubr.f32.gmra.mrb[0].mxu0 %v1831
      %v2039 = vpop.f32.mrb[0].mxu0
      %v2040 = vadd.f32 0.0, %v2039
      %v2041 = vpop.f32.mrb[0].mxu0
      %2042 = vmatprep.mubr.f32.mxu0 0.0
      %2043 = vmatmul.mubr.f32.gmra.mrb[0].mxu0 %v1834
      %v2044 = vpop.f32.mrb[0].mxu0
      %v2045 = vadd.f32 0.0, %v2044
      %v2046 = vpop.f32.mrb[0].mxu0
      %2047 = vmatprep.mubr.f32.mxu0 0.0
      %2048 = vmatmul.mubr.f32.gmra.mrb[0].mxu0 %v1837
      %v2049 = vpop.f32.mrb[0].mxu0
      %v2050 = vadd.f32 0.0, %v2049
      %v2051 = vpop.f32.mrb[0].mxu0
      %2052 = vmatprep.mubr.f32.mxu0 0.0
      %2053 = vmatmul.mubr.f32.gmra.mrb[0].mxu0 %v1840
      %v2054 = vpop.f32.mrb[0].mxu0
      %v2055 = vadd.f32 0.0, %v2054
      %v2056 = vpop.f32.mrb[0].mxu0
      %2057 = vmatprep.mubr.f32.mxu0 0.0
      %2058 = vmatmul.mubr.f32.gmra.mrb[0].mxu0 %v1843
      %v2059 = vpop.f32.mrb[0].mxu0
      %v2060 = vadd.f32 0.0, %v2059
      %v2061 = vpop.f32.mrb[0].mxu0
      %2062 = vmatprep.mubr.f32.mxu0 0.0
      %2063 = vmatmul.mubr.f32.gmra.mrb[0].mxu0 %v1846
      %v2064 = vpop.f32.mrb[0].mxu0
      %v2065 = vadd.f32 0.0, %v2064
      %v2066 = vpop.f32.mrb[0].mxu0
      %2067 = vmatprep.mubr.f32.mxu0 0.0
      %2068 = vmatmul.mubr.f32.gmra.mrb[0].mxu0 %v1849
      %v2069 = vpop.f32.mrb[0].mxu0
      %v2070 = vadd.f32 0.0, %v2069
      %v2071 = vpop.f32.mrb[0].mxu0
      %2072 = vmatprep.mubr.f32.mxu0 0.0
      %2073 = vmatmul.mubr.f32.gmra.mrb[0].mxu0 %v1852
      %v2074 = vpop.f32.mrb[0].mxu0
      %v2075 = vadd.f32 0.0, %v2074
      %v2076 = vpop.f32.mrb[0].mxu0
      %2077 = vmatprep.mubr.f32.mxu0 0.0
      %2078 = vmatmul.mubr.f32.gmra.mrb[0].mxu0 %v1855
      %v2079 = vpop.f32.mrb[0].mxu0
      %v2080 = vadd.f32 0.0, %v2079
      %v2081 = vpop.f32.mrb[0].mxu0
      %2082 = vmatprep.mubr.f32.mxu0 0.0
      %2083 = vmatmul.mubr.f32.gmra.mrb[0].mxu0 %v1858
      %v2084 = vpop.f32.mrb[0].mxu0
      %v2085 = vadd.f32 0.0, %v2084
      %v2086 = vpop.f32.mrb[0].mxu0
      %2087 = vmatprep.mubr.f32.mxu0 0.0
      %2088 = vmatmul.mubr.f32.gmra.mrb[0].mxu0 %v1861
      %v2089 = vpop.f32.mrb[0].mxu0
      %v2090 = vadd.f32 0.0, %v2089
      %v2091 = vpop.f32.mrb[0].mxu0
      %2092 = vmatprep.mubr.f32.mxu0 0.0
      %2093 = vmatmul.mubr.f32.gmra.mrb[0].mxu0 %v1864
      %v2094 = vpop.f32.mrb[0].mxu0
      %v2095 = vadd.f32 0.0, %v2094
      %v2096 = vpop.f32.mrb[0].mxu0
      %2097 = vmatprep.mubr.f32.mxu0 0.0
      %2098 = vmatmul.mubr.f32.gmra.mrb[0].mxu0 %v1867
      %v2099 = vpop.f32.mrb[0].mxu0
      %v2100 = vadd.f32 0.0, %v2099
      %v2101 = vpop.f32.mrb[0].mxu0
      %2102 = vmatprep.mubr.f32.mxu0 0.0
      %2103 = vmatmul.mubr.f32.gmra.mrb[0].mxu0 %v1870
      %v2104 = vpop.f32.mrb[0].mxu0
      %v2105 = vadd.f32 0.0, %v2104
      %v2106 = vpop.f32.mrb[0].mxu0
      %2107 = vmatprep.mubr.f32.mxu0 0.0
      %2108 = vmatmul.mubr.f32.gmra.mrb[0].mxu0 %v1873
      %v2109 = vpop.f32.mrb[0].mxu0
      %v2110 = vadd.f32 0.0, %v2109
      %v2111 = vpop.f32.mrb[0].mxu0
      %2112 = vmatprep.mubr.f32.mxu0 0.0
      %2113 = vmatmul.mubr.f32.gmra.mrb[0].mxu0 %v1876
      %v2114 = vpop.f32.mrb[0].mxu0
      %v2115 = vadd.f32 0.0, %v2114
      %v2116 = vpop.f32.mrb[0].mxu0
      %2117 = vmatprep.mubr.f32.mxu0 0.0
      %2118 = vmatmul.mubr.f32.gmra.mrb[0].mxu0 %v1879
      %v2119 = vpop.f32.mrb[0].mxu0
      %v2120 = vadd.f32 0.0, %v2119
      %v2121 = vpop.f32.mrb[0].mxu0
      %2122 = vmatprep.mubr.f32.mxu0 0.0
      %2123 = vmatmul.mubr.f32.gmra.mrb[0].mxu0 %v1882
      %v2124 = vpop.f32.mrb[0].mxu0
      %v2125 = vadd.f32 0.0, %v2124
      %v2126 = vpop.f32.mrb[0].mxu0
      %2127 = vmatprep.mubr.f32.mxu0 0.0
      %2128 = vmatmul.mubr.f32.gmra.mrb[0].mxu0 %v1885
      %v2129 = vpop.f32.mrb[0].mxu0
      %v2130 = vadd.f32 0.0, %v2129
      %v2131 = vpop.f32.mrb[0].mxu0
      %2132 = vmatprep.mubr.f32.mxu0 0.0
      %2133 = vmatmul.mubr.f32.gmra.mrb[0].mxu0 %v1888
      %v2134 = vpop.f32.mrb[0].mxu0
      %v2135 = vadd.f32 0.0, %v2134
      %v2136 = vpop.f32.mrb[0].mxu0
      %2137 = vdwg.mxu0
      %v2138 = vadd.f32 %v1566, %v1960
      %v2139 = vadd.f32 %v1571, %v1965
      %v2140 = vadd.f32 %v1576, %v1970
      %v2141 = vadd.f32 %v1581, %v1975
      %v2142 = vadd.f32 %v1586, %v1980
      %v2143 = vadd.f32 %v1591, %v1985
      %v2144 = vadd.f32 %v1596, %v1990
      %v2145 = vadd.f32 %v1601, %v1995
      %v2146 = vadd.f32 %v1606, %v2000
      %v2147 = vadd.f32 %v1611, %v2005
      %v2148 = vadd.f32 %v1616, %v2010
      %v2149 = vadd.f32 %v1621, %v2015
      %v2150 = vadd.f32 %v1626, %v2020
      %v2151 = vadd.f32 %v1631, %v2025
      %v2152 = vadd.f32 %v1636, %v2030
      %v2153 = vadd.f32 %v1641, %v2035
      %v2154 = vadd.f32 %v1646, %v2040
      %v2155 = vadd.f32 %v1651, %v2045
      %v2156 = vadd.f32 %v1656, %v2050
      %v2157 = vadd.f32 %v1661, %v2055
      %v2158 = vadd.f32 %v1666, %v2060
      %v2159 = vadd.f32 %v1671, %v2065
      %v2160 = vadd.f32 %v1676, %v2070
      %v2161 = vadd.f32 %v1681, %v2075
      %v2162 = vadd.f32 %v1686, %v2080
      %v2163 = vadd.f32 %v1691, %v2085
      %v2164 = vadd.f32 %v1696, %v2090
      %v2165 = vadd.f32 %v1701, %v2095
      %v2166 = vadd.f32 %v1706, %v2100
      %v2167 = vadd.f32 %v1711, %v2105
      %v2168 = vadd.f32 %v1716, %v2110
      %v2169 = vadd.f32 %v1721, %v2115
      %v2170 = vadd.f32 %v1726, %v2120
      %v2171 = vadd.f32 %v1731, %v2125
      %v2172 = vadd.f32 %v1736, %v2130
      %v2173 = vadd.f32 %v1741, %v2135
      %v2174 = vld [vmem:[#allocation2 + $0x12] sm:$0xff]
      %v2175 = vld [vmem:[#allocation2 + $0x1a] sm:$0xff]
      %v2176 = vld [vmem:[#allocation2 + $0x22] sm:$0xff]
      %v2177 = vld [vmem:[#allocation2 + $0x2a] sm:$0xff]
      %v2178 = vld [vmem:[#allocation2 + $0x32] sm:$0xff]
      %v2179 = vld [vmem:[#allocation2 + $0x3a] sm:$0xff]
      %v2180 = vld [vmem:[#allocation2 + $0x42] sm:$0xff]
      %v2181 = vld [vmem:[#allocation2 + $0x4a] sm:$0xff]
      %v2182 = vld [vmem:[#allocation2 + $0x52] sm:$0xff]
      %v2183 = vld [vmem:[#allocation2 + $0x5a] sm:$0xff]
      %v2184 = vld [vmem:[#allocation2 + $0x62] sm:$0xff]
      %v2185 = vld [vmem:[#allocation2 + $0x6a] sm:$0xff]
      %v2186 = vld [vmem:[#allocation2 + $0x72] sm:$0xff]
      %v2187 = vld [vmem:[#allocation2 + $0x7a] sm:$0xff]
      %v2188 = vld [vmem:[#allocation2 + $0x82] sm:$0xff]
      %v2189 = vld [vmem:[#allocation2 + $0x8a] sm:$0xff]
      %v2190 = vld [vmem:[#allocation2 + $0x92] sm:$0xff]
      %v2191 = vld [vmem:[#allocation2 + $0x9a] sm:$0xff]
      %v2192 = vld [vmem:[#allocation2 + $0xa2] sm:$0xff]
      %v2193 = vld [vmem:[#allocation2 + $0xaa] sm:$0xff]
      %v2194 = vld [vmem:[#allocation2 + $0xb2] sm:$0xff]
      %v2195 = vld [vmem:[#allocation2 + $0xba] sm:$0xff]
      %v2196 = vld [vmem:[#allocation2 + $0xc2] sm:$0xff]
      %v2197 = vld [vmem:[#allocation2 + $0xca] sm:$0xff]
      %v2198 = vld [vmem:[#allocation2 + $0xd2] sm:$0xff]
      %v2199 = vld [vmem:[#allocation2 + $0xda] sm:$0xff]
      %v2200 = vld [vmem:[#allocation2 + $0xe2] sm:$0xff]
      %v2201 = vld [vmem:[#allocation2 + $0xea] sm:$0xff]
      %v2202 = vld [vmem:[#allocation2 + $0xf2] sm:$0xff]
      %v2203 = vld [vmem:[#allocation2 + $0xfa] sm:$0xff]
      %v2204 = vld [vmem:[#allocation2 + $0x102] sm:$0xff]
      %v2205 = vld [vmem:[#allocation2 + $0x10a] sm:$0xff]
      %v2206 = vld [vmem:[#allocation2 + $0x112] sm:$0xff]
      %v2207 = vld [vmem:[#allocation2 + $0x11a] sm:$0xff]
      %v2208 = vld [vmem:[#allocation2 + $0x122] sm:$0xff]
      %v2209 = vld [vmem:[#allocation2 + $0x12a] sm:$0xff]
      %s2210 = scalar_lea.vmem %s4, 12
      %v2211 = vld [vmem:[%s2210] sm:$0xf]
      %v2213 = vsel %vm337, %v2174, 0
      %v2216 = vsel %vm337, %v2175, 0
      %v2219 = vsel %vm337, %v2176, 0
      %v2222 = vsel %vm337, %v2177, 0
      %v2225 = vsel %vm337, %v2178, 0
      %v2228 = vsel %vm337, %v2179, 0
      %v2231 = vsel %vm337, %v2180, 0
      %v2234 = vsel %vm337, %v2181, 0
      %v2237 = vsel %vm337, %v2182, 0
      %v2240 = vsel %vm337, %v2183, 0
      %v2243 = vsel %vm337, %v2184, 0
      %v2246 = vsel %vm337, %v2185, 0
      %v2249 = vsel %vm337, %v2186, 0
      %v2252 = vsel %vm337, %v2187, 0
      %v2255 = vsel %vm337, %v2188, 0
      %v2258 = vsel %vm337, %v2189, 0
      %v2261 = vsel %vm337, %v2190, 0
      %v2264 = vsel %vm337, %v2191, 0
      %v2267 = vsel %vm337, %v2192, 0
      %v2270 = vsel %vm337, %v2193, 0
      %v2273 = vsel %vm337, %v2194, 0
      %v2276 = vsel %vm337, %v2195, 0
      %v2279 = vsel %vm337, %v2196, 0
      %v2282 = vsel %vm337, %v2197, 0
      %v2285 = vsel %vm337, %v2198, 0
      %v2288 = vsel %vm337, %v2199, 0
      %v2291 = vsel %vm337, %v2200, 0
      %v2294 = vsel %vm337, %v2201, 0
      %v2297 = vsel %vm337, %v2202, 0
      %v2300 = vsel %vm337, %v2203, 0
      %v2303 = vsel %vm337, %v2204, 0
      %v2306 = vsel %vm337, %v2205, 0
      %v2309 = vsel %vm337, %v2206, 0
      %v2312 = vsel %vm337, %v2207, 0
      %v2315 = vsel %vm337, %v2208, 0
      %v2318 = vsel %vm337, %v2209, 0
      %v2321 = vsel %vm1139, %v2211, 0
      %2323 = vmatprep.subr.mxu0 0.0
      %2324 = vmatpush1.msra.mxu0 %v2321
      %2325 = vmatprep.subr.mxu0 0.0
      %2326 = vmatpush1.msra.mxu0 0.0
      %2327 = vmatprep.subr.mxu0 0.0
      %2328 = vmatpush1.msra.mxu0 0.0
      %2329 = vmatprep.subr.mxu0 0.0
      %2330 = vmatpush1.msra.mxu0 0.0
      %2331 = vmatprep.subr.mxu0 0.0
      %2332 = vmatpush1.msra.mxu0 0.0
      %2333 = vmatprep.subr.mxu0 0.0
      %2334 = vmatpush1.msra.mxu0 0.0
      %2335 = vmatprep.subr.mxu0 0.0
      %2336 = vmatpush1.msra.mxu0 0.0
      %2337 = vmatprep.subr.mxu0 0.0
      %2338 = vmatpush1.msra.mxu0 0.0
      %2339 = vmatprep.subr.mxu0 0.0
      %2340 = vmatpush1.msra.mxu0 0.0
      %2341 = vmatprep.subr.mxu0 0.0
      %2342 = vmatpush1.msra.mxu0 0.0
      %2343 = vmatprep.subr.mxu0 0.0
      %2344 = vmatpush1.msra.mxu0 0.0
      %2345 = vmatprep.subr.mxu0 0.0
      %2346 = vmatpush1.msra.mxu0 0.0
      %2347 = vmatprep.subr.mxu0 0.0
      %2348 = vmatpush1.msra.mxu0 0.0
      %2349 = vmatprep.subr.mxu0 0.0
      %2350 = vmatpush1.msra.mxu0 0.0
      %2351 = vmatprep.subr.mxu0 0.0
      %2352 = vmatpush1.msra.mxu0 0.0
      %2353 = vmatprep.subr.mxu0 0.0
      %2354 = vmatpush1.msra.mxu0 0.0
      %2355 = vmatprep.subr.mxu0 0.0
      %2356 = vmatpush1.msra.mxu0 0.0
      %2357 = vmatprep.subr.mxu0 0.0
      %2358 = vmatpush1.msra.mxu0 0.0
      %2359 = vmatprep.subr.mxu0 0.0
      %2360 = vmatpush1.msra.mxu0 0.0
      %2361 = vmatprep.subr.mxu0 0.0
      %2362 = vmatpush1.msra.mxu0 0.0
      %2363 = vmatprep.subr.mxu0 0.0
      %2364 = vmatpush1.msra.mxu0 0.0
      %2365 = vmatprep.subr.mxu0 0.0
      %2366 = vmatpush1.msra.mxu0 0.0
      %2367 = vmatprep.subr.mxu0 0.0
      %2368 = vmatpush1.msra.mxu0 0.0
      %2369 = vmatprep.subr.mxu0 0.0
      %2370 = vmatpush1.msra.mxu0 0.0
      %2371 = vmatprep.subr.mxu0 0.0
      %2372 = vmatpush1.msra.mxu0 0.0
      %2373 = vmatprep.subr.mxu0 0.0
      %2374 = vmatpush1.msra.mxu0 0.0
      %2375 = vmatprep.subr.mxu0 0.0
      %2376 = vmatpush1.msra.mxu0 0.0
      %2377 = vmatprep.subr.mxu0 0.0
      %2378 = vmatpush1.msra.mxu0 0.0
      %2379 = vmatprep.subr.mxu0 0.0
      %2380 = vmatpush1.msra.mxu0 0.0
      %2381 = vmatprep.subr.mxu0 0.0
      %2382 = vmatpush1.msra.mxu0 0.0
      %2383 = vmatprep.subr.mxu0 0.0
      %2384 = vmatpush1.msra.mxu0 0.0
      %2385 = vmatprep.subr.mxu0 0.0
      %2386 = vmatpush1.msra.mxu0 0.0
      %2387 = vmatprep.mubr.f32.mxu0 0.0
      %2388 = vmatmul.mubr.f32.gmra.mrb[0].mxu0 %v2213
      %v2389 = vpop.f32.mrb[0].mxu0
      %v2390 = vadd.f32 0.0, %v2389
      %v2391 = vpop.f32.mrb[0].mxu0
      %2392 = vmatprep.mubr.f32.mxu0 0.0
      %2393 = vmatmul.mubr.f32.gmra.mrb[0].mxu0 %v2216
      %v2394 = vpop.f32.mrb[0].mxu0
      %v2395 = vadd.f32 0.0, %v2394
      %v2396 = vpop.f32.mrb[0].mxu0
      %2397 = vmatprep.mubr.f32.mxu0 0.0
      %2398 = vmatmul.mubr.f32.gmra.mrb[0].mxu0 %v2219
      %v2399 = vpop.f32.mrb[0].mxu0
      %v2400 = vadd.f32 0.0, %v2399
      %v2401 = vpop.f32.mrb[0].mxu0
      %2402 = vmatprep.mubr.f32.mxu0 0.0
      %2403 = vmatmul.mubr.f32.gmra.mrb[0].mxu0 %v2222
      %v2404 = vpop.f32.mrb[0].mxu0
      %v2405 = vadd.f32 0.0, %v2404
      %v2406 = vpop.f32.mrb[0].mxu0
      %2407 = vmatprep.mubr.f32.mxu0 0.0
      %2408 = vmatmul.mubr.f32.gmra.mrb[0].mxu0 %v2225
      %v2409 = vpop.f32.mrb[0].mxu0
      %v2410 = vadd.f32 0.0, %v2409
      %v2411 = vpop.f32.mrb[0].mxu0
      %2412 = vmatprep.mubr.f32.mxu0 0.0
      %2413 = vmatmul.mubr.f32.gmra.mrb[0].mxu0 %v2228
      %v2414 = vpop.f32.mrb[0].mxu0
      %v2415 = vadd.f32 0.0, %v2414
      %v2416 = vpop.f32.mrb[0].mxu0
      %2417 = vmatprep.mubr.f32.mxu0 0.0
      %2418 = vmatmul.mubr.f32.gmra.mrb[0].mxu0 %v2231
      %v2419 = vpop.f32.mrb[0].mxu0
      %v2420 = vadd.f32 0.0, %v2419
      %v2421 = vpop.f32.mrb[0].mxu0
      %2422 = vmatprep.mubr.f32.mxu0 0.0
      %2423 = vmatmul.mubr.f32.gmra.mrb[0].mxu0 %v2234
      %v2424 = vpop.f32.mrb[0].mxu0
      %v2425 = vadd.f32 0.0, %v2424
      %v2426 = vpop.f32.mrb[0].mxu0
      %2427 = vmatprep.mubr.f32.mxu0 0.0
      %2428 = vmatmul.mubr.f32.gmra.mrb[0].mxu0 %v2237
      %v2429 = vpop.f32.mrb[0].mxu0
      %v2430 = vadd.f32 0.0, %v2429
      %v2431 = vpop.f32.mrb[0].mxu0
      %2432 = vmatprep.mubr.f32.mxu0 0.0
      %2433 = vmatmul.mubr.f32.gmra.mrb[0].mxu0 %v2240
      %v2434 = vpop.f32.mrb[0].mxu0
      %v2435 = vadd.f32 0.0, %v2434
      %v2436 = vpop.f32.mrb[0].mxu0
      %2437 = vmatprep.mubr.f32.mxu0 0.0
      %2438 = vmatmul.mubr.f32.gmra.mrb[0].mxu0 %v2243
      %v2439 = vpop.f32.mrb[0].mxu0
      %v2440 = vadd.f32 0.0, %v2439
      %v2441 = vpop.f32.mrb[0].mxu0
      %2442 = vmatprep.mubr.f32.mxu0 0.0
      %2443 = vmatmul.mubr.f32.gmra.mrb[0].mxu0 %v2246
      %v2444 = vpop.f32.mrb[0].mxu0
      %v2445 = vadd.f32 0.0, %v2444
      %v2446 = vpop.f32.mrb[0].mxu0
      %2447 = vmatprep.mubr.f32.mxu0 0.0
      %2448 = vmatmul.mubr.f32.gmra.mrb[0].mxu0 %v2249
      %v2449 = vpop.f32.mrb[0].mxu0
      %v2450 = vadd.f32 0.0, %v2449
      %v2451 = vpop.f32.mrb[0].mxu0
      %2452 = vmatprep.mubr.f32.mxu0 0.0
      %2453 = vmatmul.mubr.f32.gmra.mrb[0].mxu0 %v2252
      %v2454 = vpop.f32.mrb[0].mxu0
      %v2455 = vadd.f32 0.0, %v2454
      %v2456 = vpop.f32.mrb[0].mxu0
      %2457 = vmatprep.mubr.f32.mxu0 0.0
      %2458 = vmatmul.mubr.f32.gmra.mrb[0].mxu0 %v2255
      %v2459 = vpop.f32.mrb[0].mxu0
      %v2460 = vadd.f32 0.0, %v2459
      %v2461 = vpop.f32.mrb[0].mxu0
      %2462 = vmatprep.mubr.f32.mxu0 0.0
      %2463 = vmatmul.mubr.f32.gmra.mrb[0].mxu0 %v2258
      %v2464 = vpop.f32.mrb[0].mxu0
      %v2465 = vadd.f32 0.0, %v2464
      %v2466 = vpop.f32.mrb[0].mxu0
      %2467 = vmatprep.mubr.f32.mxu0 0.0
      %2468 = vmatmul.mubr.f32.gmra.mrb[0].mxu0 %v2261
      %v2469 = vpop.f32.mrb[0].mxu0
      %v2470 = vadd.f32 0.0, %v2469
      %v2471 = vpop.f32.mrb[0].mxu0
      %2472 = vmatprep.mubr.f32.mxu0 0.0
      %2473 = vmatmul.mubr.f32.gmra.mrb[0].mxu0 %v2264
      %v2474 = vpop.f32.mrb[0].mxu0
      %v2475 = vadd.f32 0.0, %v2474
      %v2476 = vpop.f32.mrb[0].mxu0
      %2477 = vmatprep.mubr.f32.mxu0 0.0
      %2478 = vmatmul.mubr.f32.gmra.mrb[0].mxu0 %v2267
      %v2479 = vpop.f32.mrb[0].mxu0
      %v2480 = vadd.f32 0.0, %v2479
      %v2481 = vpop.f32.mrb[0].mxu0
      %2482 = vmatprep.mubr.f32.mxu0 0.0
      %2483 = vmatmul.mubr.f32.gmra.mrb[0].mxu0 %v2270
      %v2484 = vpop.f32.mrb[0].mxu0
      %v2485 = vadd.f32 0.0, %v2484
      %v2486 = vpop.f32.mrb[0].mxu0
      %2487 = vmatprep.mubr.f32.mxu0 0.0
      %2488 = vmatmul.mubr.f32.gmra.mrb[0].mxu0 %v2273
      %v2489 = vpop.f32.mrb[0].mxu0
      %v2490 = vadd.f32 0.0, %v2489
      %v2491 = vpop.f32.mrb[0].mxu0
      %2492 = vmatprep.mubr.f32.mxu0 0.0
      %2493 = vmatmul.mubr.f32.gmra.mrb[0].mxu0 %v2276
      %v2494 = vpop.f32.mrb[0].mxu0
      %v2495 = vadd.f32 0.0, %v2494
      %v2496 = vpop.f32.mrb[0].mxu0
      %2497 = vmatprep.mubr.f32.mxu0 0.0
      %2498 = vmatmul.mubr.f32.gmra.mrb[0].mxu0 %v2279
      %v2499 = vpop.f32.mrb[0].mxu0
      %v2500 = vadd.f32 0.0, %v2499
      %v2501 = vpop.f32.mrb[0].mxu0
      %2502 = vmatprep.mubr.f32.mxu0 0.0
      %2503 = vmatmul.mubr.f32.gmra.mrb[0].mxu0 %v2282
      %v2504 = vpop.f32.mrb[0].mxu0
      %v2505 = vadd.f32 0.0, %v2504
      %v2506 = vpop.f32.mrb[0].mxu0
      %2507 = vmatprep.mubr.f32.mxu0 0.0
      %2508 = vmatmul.mubr.f32.gmra.mrb[0].mxu0 %v2285
      %v2509 = vpop.f32.mrb[0].mxu0
      %v2510 = vadd.f32 0.0, %v2509
      %v2511 = vpop.f32.mrb[0].mxu0
      %2512 = vmatprep.mubr.f32.mxu0 0.0
      %2513 = vmatmul.mubr.f32.gmra.mrb[0].mxu0 %v2288
      %v2514 = vpop.f32.mrb[0].mxu0
      %v2515 = vadd.f32 0.0, %v2514
      %v2516 = vpop.f32.mrb[0].mxu0
      %2517 = vmatprep.mubr.f32.mxu0 0.0
      %2518 = vmatmul.mubr.f32.gmra.mrb[0].mxu0 %v2291
      %v2519 = vpop.f32.mrb[0].mxu0
      %v2520 = vadd.f32 0.0, %v2519
      %v2521 = vpop.f32.mrb[0].mxu0
      %2522 = vmatprep.mubr.f32.mxu0 0.0
      %2523 = vmatmul.mubr.f32.gmra.mrb[0].mxu0 %v2294
      %v2524 = vpop.f32.mrb[0].mxu0
      %v2525 = vadd.f32 0.0, %v2524
      %v2526 = vpop.f32.mrb[0].mxu0
      %2527 = vmatprep.mubr.f32.mxu0 0.0
      %2528 = vmatmul.mubr.f32.gmra.mrb[0].mxu0 %v2297
      %v2529 = vpop.f32.mrb[0].mxu0
      %v2530 = vadd.f32 0.0, %v2529
      %v2531 = vpop.f32.mrb[0].mxu0
      %2532 = vmatprep.mubr.f32.mxu0 0.0
      %2533 = vmatmul.mubr.f32.gmra.mrb[0].mxu0 %v2300
      %v2534 = vpop.f32.mrb[0].mxu0
      %v2535 = vadd.f32 0.0, %v2534
      %v2536 = vpop.f32.mrb[0].mxu0
      %2537 = vmatprep.mubr.f32.mxu0 0.0
      %2538 = vmatmul.mubr.f32.gmra.mrb[0].mxu0 %v2303
      %v2539 = vpop.f32.mrb[0].mxu0
      %v2540 = vadd.f32 0.0, %v2539
      %v2541 = vpop.f32.mrb[0].mxu0
      %2542 = vmatprep.mubr.f32.mxu0 0.0
      %2543 = vmatmul.mubr.f32.gmra.mrb[0].mxu0 %v2306
      %v2544 = vpop.f32.mrb[0].mxu0
      %v2545 = vadd.f32 0.0, %v2544
      %v2546 = vpop.f32.mrb[0].mxu0
      %2547 = vmatprep.mubr.f32.mxu0 0.0
      %2548 = vmatmul.mubr.f32.gmra.mrb[0].mxu0 %v2309
      %v2549 = vpop.f32.mrb[0].mxu0
      %v2550 = vadd.f32 0.0, %v2549
      %v2551 = vpop.f32.mrb[0].mxu0
      %2552 = vmatprep.mubr.f32.mxu0 0.0
      %2553 = vmatmul.mubr.f32.gmra.mrb[0].mxu0 %v2312
      %v2554 = vpop.f32.mrb[0].mxu0
      %v2555 = vadd.f32 0.0, %v2554
      %v2556 = vpop.f32.mrb[0].mxu0
      %2557 = vmatprep.mubr.f32.mxu0 0.0
      %2558 = vmatmul.mubr.f32.gmra.mrb[0].mxu0 %v2315
      %v2559 = vpop.f32.mrb[0].mxu0
      %v2560 = vadd.f32 0.0, %v2559
      %v2561 = vpop.f32.mrb[0].mxu0
      %2562 = vmatprep.mubr.f32.mxu0 0.0
      %2563 = vmatmul.mubr.f32.gmra.mrb[0].mxu0 %v2318
      %v2564 = vpop.f32.mrb[0].mxu0
      %v2565 = vadd.f32 0.0, %v2564
      %v2566 = vpop.f32.mrb[0].mxu0
      %2567 = vdwg.mxu0
      %v2568 = vadd.f32 %v2138, %v2390
      %v2569 = vadd.f32 %v2139, %v2395
      %v2570 = vadd.f32 %v2140, %v2400
      %v2571 = vadd.f32 %v2141, %v2405
      %v2572 = vadd.f32 %v2142, %v2410
      %v2573 = vadd.f32 %v2143, %v2415
      %v2574 = vadd.f32 %v2144, %v2420
      %v2575 = vadd.f32 %v2145, %v2425
      %v2576 = vadd.f32 %v2146, %v2430
      %v2577 = vadd.f32 %v2147, %v2435
      %v2578 = vadd.f32 %v2148, %v2440
      %v2579 = vadd.f32 %v2149, %v2445
      %v2580 = vadd.f32 %v2150, %v2450
      %v2581 = vadd.f32 %v2151, %v2455
      %v2582 = vadd.f32 %v2152, %v2460
      %v2583 = vadd.f32 %v2153, %v2465
      %v2584 = vadd.f32 %v2154, %v2470
      %v2585 = vadd.f32 %v2155, %v2475
      %v2586 = vadd.f32 %v2156, %v2480
      %v2587 = vadd.f32 %v2157, %v2485
      %v2588 = vadd.f32 %v2158, %v2490
      %v2589 = vadd.f32 %v2159, %v2495
      %v2590 = vadd.f32 %v2160, %v2500
      %v2591 = vadd.f32 %v2161, %v2505
      %v2592 = vadd.f32 %v2162, %v2510
      %v2593 = vadd.f32 %v2163, %v2515
      %v2594 = vadd.f32 %v2164, %v2520
      %v2595 = vadd.f32 %v2165, %v2525
      %v2596 = vadd.f32 %v2166, %v2530
      %v2597 = vadd.f32 %v2167, %v2535
      %v2598 = vadd.f32 %v2168, %v2540
      %v2599 = vadd.f32 %v2169, %v2545
      %v2600 = vadd.f32 %v2170, %v2550
      %v2601 = vadd.f32 %v2171, %v2555
      %v2602 = vadd.f32 %v2172, %v2560
      %v2603 = vadd.f32 %v2173, %v2565
      %v2604 = vld [vmem:[#allocation2 + $0x13] sm:$0xff]
      %v2605 = vld [vmem:[#allocation2 + $0x1b] sm:$0xff]
      %v2606 = vld [vmem:[#allocation2 + $0x23] sm:$0xff]
      %v2607 = vld [vmem:[#allocation2 + $0x2b] sm:$0xff]
      %v2608 = vld [vmem:[#allocation2 + $0x33] sm:$0xff]
      %v2609 = vld [vmem:[#allocation2 + $0x3b] sm:$0xff]
      %v2610 = vld [vmem:[#allocation2 + $0x43] sm:$0xff]
      %v2611 = vld [vmem:[#allocation2 + $0x4b] sm:$0xff]
      %v2612 = vld [vmem:[#allocation2 + $0x53] sm:$0xff]
      %v2613 = vld [vmem:[#allocation2 + $0x5b] sm:$0xff]
      %v2614 = vld [vmem:[#allocation2 + $0x63] sm:$0xff]
      %v2615 = vld [vmem:[#allocation2 + $0x6b] sm:$0xff]
      %v2616 = vld [vmem:[#allocation2 + $0x73] sm:$0xff]
      %v2617 = vld [vmem:[#allocation2 + $0x7b] sm:$0xff]
      %v2618 = vld [vmem:[#allocation2 + $0x83] sm:$0xff]
      %v2619 = vld [vmem:[#allocation2 + $0x8b] sm:$0xff]
      %v2620 = vld [vmem:[#allocation2 + $0x93] sm:$0xff]
      %v2621 = vld [vmem:[#allocation2 + $0x9b] sm:$0xff]
      %v2622 = vld [vmem:[#allocation2 + $0xa3] sm:$0xff]
      %v2623 = vld [vmem:[#allocation2 + $0xab] sm:$0xff]
      %v2624 = vld [vmem:[#allocation2 + $0xb3] sm:$0xff]
      %v2625 = vld [vmem:[#allocation2 + $0xbb] sm:$0xff]
      %v2626 = vld [vmem:[#allocation2 + $0xc3] sm:$0xff]
      %v2627 = vld [vmem:[#allocation2 + $0xcb] sm:$0xff]
      %v2628 = vld [vmem:[#allocation2 + $0xd3] sm:$0xff]
      %v2629 = vld [vmem:[#allocation2 + $0xdb] sm:$0xff]
      %v2630 = vld [vmem:[#allocation2 + $0xe3] sm:$0xff]
      %v2631 = vld [vmem:[#allocation2 + $0xeb] sm:$0xff]
      %v2632 = vld [vmem:[#allocation2 + $0xf3] sm:$0xff]
      %v2633 = vld [vmem:[#allocation2 + $0xfb] sm:$0xff]
      %v2634 = vld [vmem:[#allocation2 + $0x103] sm:$0xff]
      %v2635 = vld [vmem:[#allocation2 + $0x10b] sm:$0xff]
      %v2636 = vld [vmem:[#allocation2 + $0x113] sm:$0xff]
      %v2637 = vld [vmem:[#allocation2 + $0x11b] sm:$0xff]
      %v2638 = vld [vmem:[#allocation2 + $0x123] sm:$0xff]
      %v2639 = vld [vmem:[#allocation2 + $0x12b] sm:$0xff]
      %s2640 = scalar_lea.vmem %s4, 16
      %v2641 = vld [vmem:[%s2640] sm:$0xf]
      %v2643 = vsel %vm337, %v2604, 0
      %v2646 = vsel %vm337, %v2605, 0
      %v2649 = vsel %vm337, %v2606, 0
      %v2652 = vsel %vm337, %v2607, 0
      %v2655 = vsel %vm337, %v2608, 0
      %v2658 = vsel %vm337, %v2609, 0
      %v2661 = vsel %vm337, %v2610, 0
      %v2664 = vsel %vm337, %v2611, 0
      %v2667 = vsel %vm337, %v2612, 0
      %v2670 = vsel %vm337, %v2613, 0
      %v2673 = vsel %vm337, %v2614, 0
      %v2676 = vsel %vm337, %v2615, 0
      %v2679 = vsel %vm337, %v2616, 0
      %v2682 = vsel %vm337, %v2617, 0
      %v2685 = vsel %vm337, %v2618, 0
      %v2688 = vsel %vm337, %v2619, 0
      %v2691 = vsel %vm337, %v2620, 0
      %v2694 = vsel %vm337, %v2621, 0
      %v2697 = vsel %vm337, %v2622, 0
      %v2700 = vsel %vm337, %v2623, 0
      %v2703 = vsel %vm337, %v2624, 0
      %v2706 = vsel %vm337, %v2625, 0
      %v2709 = vsel %vm337, %v2626, 0
      %v2712 = vsel %vm337, %v2627, 0
      %v2715 = vsel %vm337, %v2628, 0
      %v2718 = vsel %vm337, %v2629, 0
      %v2721 = vsel %vm337, %v2630, 0
      %v2724 = vsel %vm337, %v2631, 0
      %v2727 = vsel %vm337, %v2632, 0
      %v2730 = vsel %vm337, %v2633, 0
      %v2733 = vsel %vm337, %v2634, 0
      %v2736 = vsel %vm337, %v2635, 0
      %v2739 = vsel %vm337, %v2636, 0
      %v2742 = vsel %vm337, %v2637, 0
      %v2745 = vsel %vm337, %v2638, 0
      %v2748 = vsel %vm337, %v2639, 0
      %v2751 = vsel %vm1139, %v2641, 0
      %2753 = vmatprep.subr.mxu0 0.0
      %2754 = vmatpush1.msra.mxu0 %v2751
      %2755 = vmatprep.subr.mxu0 0.0
      %2756 = vmatpush1.msra.mxu0 0.0
      %2757 = vmatprep.subr.mxu0 0.0
      %2758 = vmatpush1.msra.mxu0 0.0
      %2759 = vmatprep.subr.mxu0 0.0
      %2760 = vmatpush1.msra.mxu0 0.0
      %2761 = vmatprep.subr.mxu0 0.0
      %2762 = vmatpush1.msra.mxu0 0.0
      %2763 = vmatprep.subr.mxu0 0.0
      %2764 = vmatpush1.msra.mxu0 0.0
      %2765 = vmatprep.subr.mxu0 0.0
      %2766 = vmatpush1.msra.mxu0 0.0
      %2767 = vmatprep.subr.mxu0 0.0
      %2768 = vmatpush1.msra.mxu0 0.0
      %2769 = vmatprep.subr.mxu0 0.0
      %2770 = vmatpush1.msra.mxu0 0.0
      %2771 = vmatprep.subr.mxu0 0.0
      %2772 = vmatpush1.msra.mxu0 0.0
      %2773 = vmatprep.subr.mxu0 0.0
      %2774 = vmatpush1.msra.mxu0 0.0
      %2775 = vmatprep.subr.mxu0 0.0
      %2776 = vmatpush1.msra.mxu0 0.0
      %2777 = vmatprep.subr.mxu0 0.0
      %2778 = vmatpush1.msra.mxu0 0.0
      %2779 = vmatprep.subr.mxu0 0.0
      %2780 = vmatpush1.msra.mxu0 0.0
      %2781 = vmatprep.subr.mxu0 0.0
      %2782 = vmatpush1.msra.mxu0 0.0
      %2783 = vmatprep.subr.mxu0 0.0
      %2784 = vmatpush1.msra.mxu0 0.0
      %2785 = vmatprep.subr.mxu0 0.0
      %2786 = vmatpush1.msra.mxu0 0.0
      %2787 = vmatprep.subr.mxu0 0.0
      %2788 = vmatpush1.msra.mxu0 0.0
      %2789 = vmatprep.subr.mxu0 0.0
      %2790 = vmatpush1.msra.mxu0 0.0
      %2791 = vmatprep.subr.mxu0 0.0
      %2792 = vmatpush1.msra.mxu0 0.0
      %2793 = vmatprep.subr.mxu0 0.0
      %2794 = vmatpush1.msra.mxu0 0.0
      %2795 = vmatprep.subr.mxu0 0.0
      %2796 = vmatpush1.msra.mxu0 0.0
      %2797 = vmatprep.subr.mxu0 0.0
      %2798 = vmatpush1.msra.mxu0 0.0
      %2799 = vmatprep.subr.mxu0 0.0
      %2800 = vmatpush1.msra.mxu0 0.0
      %2801 = vmatprep.subr.mxu0 0.0
      %2802 = vmatpush1.msra.mxu0 0.0
      %2803 = vmatprep.subr.mxu0 0.0
      %2804 = vmatpush1.msra.mxu0 0.0
      %2805 = vmatprep.subr.mxu0 0.0
      %2806 = vmatpush1.msra.mxu0 0.0
      %2807 = vmatprep.subr.mxu0 0.0
      %2808 = vmatpush1.msra.mxu0 0.0
      %2809 = vmatprep.subr.mxu0 0.0
      %2810 = vmatpush1.msra.mxu0 0.0
      %2811 = vmatprep.subr.mxu0 0.0
      %2812 = vmatpush1.msra.mxu0 0.0
      %2813 = vmatprep.subr.mxu0 0.0
      %2814 = vmatpush1.msra.mxu0 0.0
      %2815 = vmatprep.subr.mxu0 0.0
      %2816 = vmatpush1.msra.mxu0 0.0
      %2817 = vmatprep.mubr.f32.mxu0 0.0
      %2818 = vmatmul.mubr.f32.gmra.mrb[0].mxu0 %v2643
      %v2819 = vpop.f32.mrb[0].mxu0
      %v2820 = vadd.f32 0.0, %v2819
      %v2821 = vpop.f32.mrb[0].mxu0
      %2822 = vmatprep.mubr.f32.mxu0 0.0
      %2823 = vmatmul.mubr.f32.gmra.mrb[0].mxu0 %v2646
      %v2824 = vpop.f32.mrb[0].mxu0
      %v2825 = vadd.f32 0.0, %v2824
      %v2826 = vpop.f32.mrb[0].mxu0
      %2827 = vmatprep.mubr.f32.mxu0 0.0
      %2828 = vmatmul.mubr.f32.gmra.mrb[0].mxu0 %v2649
      %v2829 = vpop.f32.mrb[0].mxu0
      %v2830 = vadd.f32 0.0, %v2829
      %v2831 = vpop.f32.mrb[0].mxu0
      %2832 = vmatprep.mubr.f32.mxu0 0.0
      %2833 = vmatmul.mubr.f32.gmra.mrb[0].mxu0 %v2652
      %v2834 = vpop.f32.mrb[0].mxu0
      %v2835 = vadd.f32 0.0, %v2834
      %v2836 = vpop.f32.mrb[0].mxu0
      %2837 = vmatprep.mubr.f32.mxu0 0.0
      %2838 = vmatmul.mubr.f32.gmra.mrb[0].mxu0 %v2655
      %v2839 = vpop.f32.mrb[0].mxu0
      %v2840 = vadd.f32 0.0, %v2839
      %v2841 = vpop.f32.mrb[0].mxu0
      %2842 = vmatprep.mubr.f32.mxu0 0.0
      %2843 = vmatmul.mubr.f32.gmra.mrb[0].mxu0 %v2658
      %v2844 = vpop.f32.mrb[0].mxu0
      %v2845 = vadd.f32 0.0, %v2844
      %v2846 = vpop.f32.mrb[0].mxu0
      %2847 = vmatprep.mubr.f32.mxu0 0.0
      %2848 = vmatmul.mubr.f32.gmra.mrb[0].mxu0 %v2661
      %v2849 = vpop.f32.mrb[0].mxu0
      %v2850 = vadd.f32 0.0, %v2849
      %v2851 = vpop.f32.mrb[0].mxu0
      %2852 = vmatprep.mubr.f32.mxu0 0.0
      %2853 = vmatmul.mubr.f32.gmra.mrb[0].mxu0 %v2664
      %v2854 = vpop.f32.mrb[0].mxu0
      %v2855 = vadd.f32 0.0, %v2854
      %v2856 = vpop.f32.mrb[0].mxu0
      %2857 = vmatprep.mubr.f32.mxu0 0.0
      %2858 = vmatmul.mubr.f32.gmra.mrb[0].mxu0 %v2667
      %v2859 = vpop.f32.mrb[0].mxu0
      %v2860 = vadd.f32 0.0, %v2859
      %v2861 = vpop.f32.mrb[0].mxu0
      %2862 = vmatprep.mubr.f32.mxu0 0.0
      %2863 = vmatmul.mubr.f32.gmra.mrb[0].mxu0 %v2670
      %v2864 = vpop.f32.mrb[0].mxu0
      %v2865 = vadd.f32 0.0, %v2864
      %v2866 = vpop.f32.mrb[0].mxu0
      %2867 = vmatprep.mubr.f32.mxu0 0.0
      %2868 = vmatmul.mubr.f32.gmra.mrb[0].mxu0 %v2673
      %v2869 = vpop.f32.mrb[0].mxu0
      %v2870 = vadd.f32 0.0, %v2869
      %v2871 = vpop.f32.mrb[0].mxu0
      %2872 = vmatprep.mubr.f32.mxu0 0.0
      %2873 = vmatmul.mubr.f32.gmra.mrb[0].mxu0 %v2676
      %v2874 = vpop.f32.mrb[0].mxu0
      %v2875 = vadd.f32 0.0, %v2874
      %v2876 = vpop.f32.mrb[0].mxu0
      %2877 = vmatprep.mubr.f32.mxu0 0.0
      %2878 = vmatmul.mubr.f32.gmra.mrb[0].mxu0 %v2679
      %v2879 = vpop.f32.mrb[0].mxu0
      %v2880 = vadd.f32 0.0, %v2879
      %v2881 = vpop.f32.mrb[0].mxu0
      %2882 = vmatprep.mubr.f32.mxu0 0.0
      %2883 = vmatmul.mubr.f32.gmra.mrb[0].mxu0 %v2682
      %v2884 = vpop.f32.mrb[0].mxu0
      %v2885 = vadd.f32 0.0, %v2884
      %v2886 = vpop.f32.mrb[0].mxu0
      %2887 = vmatprep.mubr.f32.mxu0 0.0
      %2888 = vmatmul.mubr.f32.gmra.mrb[0].mxu0 %v2685
      %v2889 = vpop.f32.mrb[0].mxu0
      %v2890 = vadd.f32 0.0, %v2889
      %v2891 = vpop.f32.mrb[0].mxu0
      %2892 = vmatprep.mubr.f32.mxu0 0.0
      %2893 = vmatmul.mubr.f32.gmra.mrb[0].mxu0 %v2688
      %v2894 = vpop.f32.mrb[0].mxu0
      %v2895 = vadd.f32 0.0, %v2894
      %v2896 = vpop.f32.mrb[0].mxu0
      %2897 = vmatprep.mubr.f32.mxu0 0.0
      %2898 = vmatmul.mubr.f32.gmra.mrb[0].mxu0 %v2691
      %v2899 = vpop.f32.mrb[0].mxu0
      %v2900 = vadd.f32 0.0, %v2899
      %v2901 = vpop.f32.mrb[0].mxu0
      %2902 = vmatprep.mubr.f32.mxu0 0.0
      %2903 = vmatmul.mubr.f32.gmra.mrb[0].mxu0 %v2694
      %v2904 = vpop.f32.mrb[0].mxu0
      %v2905 = vadd.f32 0.0, %v2904
      %v2906 = vpop.f32.mrb[0].mxu0
      %2907 = vmatprep.mubr.f32.mxu0 0.0
      %2908 = vmatmul.mubr.f32.gmra.mrb[0].mxu0 %v2697
      %v2909 = vpop.f32.mrb[0].mxu0
      %v2910 = vadd.f32 0.0, %v2909
      %v2911 = vpop.f32.mrb[0].mxu0
      %2912 = vmatprep.mubr.f32.mxu0 0.0
      %2913 = vmatmul.mubr.f32.gmra.mrb[0].mxu0 %v2700
      %v2914 = vpop.f32.mrb[0].mxu0
      %v2915 = vadd.f32 0.0, %v2914
      %v2916 = vpop.f32.mrb[0].mxu0
      %2917 = vmatprep.mubr.f32.mxu0 0.0
      %2918 = vmatmul.mubr.f32.gmra.mrb[0].mxu0 %v2703
      %v2919 = vpop.f32.mrb[0].mxu0
      %v2920 = vadd.f32 0.0, %v2919
      %v2921 = vpop.f32.mrb[0].mxu0
      %2922 = vmatprep.mubr.f32.mxu0 0.0
      %2923 = vmatmul.mubr.f32.gmra.mrb[0].mxu0 %v2706
      %v2924 = vpop.f32.mrb[0].mxu0
      %v2925 = vadd.f32 0.0, %v2924
      %v2926 = vpop.f32.mrb[0].mxu0
      %2927 = vmatprep.mubr.f32.mxu0 0.0
      %2928 = vmatmul.mubr.f32.gmra.mrb[0].mxu0 %v2709
      %v2929 = vpop.f32.mrb[0].mxu0
      %v2930 = vadd.f32 0.0, %v2929
      %v2931 = vpop.f32.mrb[0].mxu0
      %2932 = vmatprep.mubr.f32.mxu0 0.0
      %2933 = vmatmul.mubr.f32.gmra.mrb[0].mxu0 %v2712
      %v2934 = vpop.f32.mrb[0].mxu0
      %v2935 = vadd.f32 0.0, %v2934
      %v2936 = vpop.f32.mrb[0].mxu0
      %2937 = vmatprep.mubr.f32.mxu0 0.0
      %2938 = vmatmul.mubr.f32.gmra.mrb[0].mxu0 %v2715
      %v2939 = vpop.f32.mrb[0].mxu0
      %v2940 = vadd.f32 0.0, %v2939
      %v2941 = vpop.f32.mrb[0].mxu0
      %2942 = vmatprep.mubr.f32.mxu0 0.0
      %2943 = vmatmul.mubr.f32.gmra.mrb[0].mxu0 %v2718
      %v2944 = vpop.f32.mrb[0].mxu0
      %v2945 = vadd.f32 0.0, %v2944
      %v2946 = vpop.f32.mrb[0].mxu0
      %2947 = vmatprep.mubr.f32.mxu0 0.0
      %2948 = vmatmul.mubr.f32.gmra.mrb[0].mxu0 %v2721
      %v2949 = vpop.f32.mrb[0].mxu0
      %v2950 = vadd.f32 0.0, %v2949
      %v2951 = vpop.f32.mrb[0].mxu0
      %2952 = vmatprep.mubr.f32.mxu0 0.0
      %2953 = vmatmul.mubr.f32.gmra.mrb[0].mxu0 %v2724
      %v2954 = vpop.f32.mrb[0].mxu0
      %v2955 = vadd.f32 0.0, %v2954
      %v2956 = vpop.f32.mrb[0].mxu0
      %2957 = vmatprep.mubr.f32.mxu0 0.0
      %2958 = vmatmul.mubr.f32.gmra.mrb[0].mxu0 %v2727
      %v2959 = vpop.f32.mrb[0].mxu0
      %v2960 = vadd.f32 0.0, %v2959
      %v2961 = vpop.f32.mrb[0].mxu0
      %2962 = vmatprep.mubr.f32.mxu0 0.0
      %2963 = vmatmul.mubr.f32.gmra.mrb[0].mxu0 %v2730
      %v2964 = vpop.f32.mrb[0].mxu0
      %v2965 = vadd.f32 0.0, %v2964
      %v2966 = vpop.f32.mrb[0].mxu0
      %2967 = vmatprep.mubr.f32.mxu0 0.0
      %2968 = vmatmul.mubr.f32.gmra.mrb[0].mxu0 %v2733
      %v2969 = vpop.f32.mrb[0].mxu0
      %v2970 = vadd.f32 0.0, %v2969
      %v2971 = vpop.f32.mrb[0].mxu0
      %2972 = vmatprep.mubr.f32.mxu0 0.0
      %2973 = vmatmul.mubr.f32.gmra.mrb[0].mxu0 %v2736
      %v2974 = vpop.f32.mrb[0].mxu0
      %v2975 = vadd.f32 0.0, %v2974
      %v2976 = vpop.f32.mrb[0].mxu0
      %2977 = vmatprep.mubr.f32.mxu0 0.0
      %2978 = vmatmul.mubr.f32.gmra.mrb[0].mxu0 %v2739
      %v2979 = vpop.f32.mrb[0].mxu0
      %v2980 = vadd.f32 0.0, %v2979
      %v2981 = vpop.f32.mrb[0].mxu0
      %2982 = vmatprep.mubr.f32.mxu0 0.0
      %2983 = vmatmul.mubr.f32.gmra.mrb[0].mxu0 %v2742
      %v2984 = vpop.f32.mrb[0].mxu0
      %v2985 = vadd.f32 0.0, %v2984
      %v2986 = vpop.f32.mrb[0].mxu0
      %2987 = vmatprep.mubr.f32.mxu0 0.0
      %2988 = vmatmul.mubr.f32.gmra.mrb[0].mxu0 %v2745
      %v2989 = vpop.f32.mrb[0].mxu0
      %v2990 = vadd.f32 0.0, %v2989
      %v2991 = vpop.f32.mrb[0].mxu0
      %2992 = vmatprep.mubr.f32.mxu0 0.0
      %2993 = vmatmul.mubr.f32.gmra.mrb[0].mxu0 %v2748
      %v2994 = vpop.f32.mrb[0].mxu0
      %v2995 = vadd.f32 0.0, %v2994
      %v2996 = vpop.f32.mrb[0].mxu0
      %2997 = vdwg.mxu0
      %v2998 = vadd.f32 %v2568, %v2820
      %v2999 = vadd.f32 %v2569, %v2825
      %v3000 = vadd.f32 %v2570, %v2830
      %v3001 = vadd.f32 %v2571, %v2835
      %v3002 = vadd.f32 %v2572, %v2840
      %v3003 = vadd.f32 %v2573, %v2845
      %v3004 = vadd.f32 %v2574, %v2850
      %v3005 = vadd.f32 %v2575, %v2855
      %v3006 = vadd.f32 %v2576, %v2860
      %v3007 = vadd.f32 %v2577, %v2865
      %v3008 = vadd.f32 %v2578, %v2870
      %v3009 = vadd.f32 %v2579, %v2875
      %v3010 = vadd.f32 %v2580, %v2880
      %v3011 = vadd.f32 %v2581, %v2885
      %v3012 = vadd.f32 %v2582, %v2890
      %v3013 = vadd.f32 %v2583, %v2895
      %v3014 = vadd.f32 %v2584, %v2900
      %v3015 = vadd.f32 %v2585, %v2905
      %v3016 = vadd.f32 %v2586, %v2910
      %v3017 = vadd.f32 %v2587, %v2915
      %v3018 = vadd.f32 %v2588, %v2920
      %v3019 = vadd.f32 %v2589, %v2925
      %v3020 = vadd.f32 %v2590, %v2930
      %v3021 = vadd.f32 %v2591, %v2935
      %v3022 = vadd.f32 %v2592, %v2940
      %v3023 = vadd.f32 %v2593, %v2945
      %v3024 = vadd.f32 %v2594, %v2950
      %v3025 = vadd.f32 %v2595, %v2955
      %v3026 = vadd.f32 %v2596, %v2960
      %v3027 = vadd.f32 %v2597, %v2965
      %v3028 = vadd.f32 %v2598, %v2970
      %v3029 = vadd.f32 %v2599, %v2975
      %v3030 = vadd.f32 %v2600, %v2980
      %v3031 = vadd.f32 %v2601, %v2985
      %v3032 = vadd.f32 %v2602, %v2990
      %v3033 = vadd.f32 %v2603, %v2995
      %v3034 = vld [vmem:[#allocation2 + $0x14] sm:$0xff]
      %v3035 = vld [vmem:[#allocation2 + $0x1c] sm:$0xff]
      %v3036 = vld [vmem:[#allocation2 + $0x24] sm:$0xff]
      %v3037 = vld [vmem:[#allocation2 + $0x2c] sm:$0xff]
      %v3038 = vld [vmem:[#allocation2 + $0x34] sm:$0xff]
      %v3039 = vld [vmem:[#allocation2 + $0x3c] sm:$0xff]
      %v3040 = vld [vmem:[#allocation2 + $0x44] sm:$0xff]
      %v3041 = vld [vmem:[#allocation2 + $0x4c] sm:$0xff]
      %v3042 = vld [vmem:[#allocation2 + $0x54] sm:$0xff]
      %v3043 = vld [vmem:[#allocation2 + $0x5c] sm:$0xff]
      %v3044 = vld [vmem:[#allocation2 + $0x64] sm:$0xff]
      %v3045 = vld [vmem:[#allocation2 + $0x6c] sm:$0xff]
      %v3046 = vld [vmem:[#allocation2 + $0x74] sm:$0xff]
      %v3047 = vld [vmem:[#allocation2 + $0x7c] sm:$0xff]
      %v3048 = vld [vmem:[#allocation2 + $0x84] sm:$0xff]
      %v3049 = vld [vmem:[#allocation2 + $0x8c] sm:$0xff]
      %v3050 = vld [vmem:[#allocation2 + $0x94] sm:$0xff]
      %v3051 = vld [vmem:[#allocation2 + $0x9c] sm:$0xff]
      %v3052 = vld [vmem:[#allocation2 + $0xa4] sm:$0xff]
      %v3053 = vld [vmem:[#allocation2 + $0xac] sm:$0xff]
      %v3054 = vld [vmem:[#allocation2 + $0xb4] sm:$0xff]
      %v3055 = vld [vmem:[#allocation2 + $0xbc] sm:$0xff]
      %v3056 = vld [vmem:[#allocation2 + $0xc4] sm:$0xff]
      %v3057 = vld [vmem:[#allocation2 + $0xcc] sm:$0xff]
      %v3058 = vld [vmem:[#allocation2 + $0xd4] sm:$0xff]
      %v3059 = vld [vmem:[#allocation2 + $0xdc] sm:$0xff]
      %v3060 = vld [vmem:[#allocation2 + $0xe4] sm:$0xff]
      %v3061 = vld [vmem:[#allocation2 + $0xec] sm:$0xff]
      %v3062 = vld [vmem:[#allocation2 + $0xf4] sm:$0xff]
      %v3063 = vld [vmem:[#allocation2 + $0xfc] sm:$0xff]
      %v3064 = vld [vmem:[#allocation2 + $0x104] sm:$0xff]
      %v3065 = vld [vmem:[#allocation2 + $0x10c] sm:$0xff]
      %v3066 = vld [vmem:[#allocation2 + $0x114] sm:$0xff]
      %v3067 = vld [vmem:[#allocation2 + $0x11c] sm:$0xff]
      %v3068 = vld [vmem:[#allocation2 + $0x124] sm:$0xff]
      %v3069 = vld [vmem:[#allocation2 + $0x12c] sm:$0xff]
      %s3070 = scalar_lea.vmem %s4, 20
      %v3071 = vld [vmem:[%s3070] sm:$0xf]
      %v3073 = vsel %vm337, %v3034, 0
      %v3076 = vsel %vm337, %v3035, 0
      %v3079 = vsel %vm337, %v3036, 0
      %v3082 = vsel %vm337, %v3037, 0
      %v3085 = vsel %vm337, %v3038, 0
      %v3088 = vsel %vm337, %v3039, 0
      %v3091 = vsel %vm337, %v3040, 0
      %v3094 = vsel %vm337, %v3041, 0
      %v3097 = vsel %vm337, %v3042, 0
      %v3100 = vsel %vm337, %v3043, 0
      %v3103 = vsel %vm337, %v3044, 0
      %v3106 = vsel %vm337, %v3045, 0
      %v3109 = vsel %vm337, %v3046, 0
      %v3112 = vsel %vm337, %v3047, 0
      %v3115 = vsel %vm337, %v3048, 0
      %v3118 = vsel %vm337, %v3049, 0
      %v3121 = vsel %vm337, %v3050, 0
      %v3124 = vsel %vm337, %v3051, 0
      %v3127 = vsel %vm337, %v3052, 0
      %v3130 = vsel %vm337, %v3053, 0
      %v3133 = vsel %vm337, %v3054, 0
      %v3136 = vsel %vm337, %v3055, 0
      %v3139 = vsel %vm337, %v3056, 0
      %v3142 = vsel %vm337, %v3057, 0
      %v3145 = vsel %vm337, %v3058, 0
      %v3148 = vsel %vm337, %v3059, 0
      %v3151 = vsel %vm337, %v3060, 0
      %v3154 = vsel %vm337, %v3061, 0
      %v3157 = vsel %vm337, %v3062, 0
      %v3160 = vsel %vm337, %v3063, 0
      %v3163 = vsel %vm337, %v3064, 0
      %v3166 = vsel %vm337, %v3065, 0
      %v3169 = vsel %vm337, %v3066, 0
      %v3172 = vsel %vm337, %v3067, 0
      %v3175 = vsel %vm337, %v3068, 0
      %v3178 = vsel %vm337, %v3069, 0
      %v3181 = vsel %vm1139, %v3071, 0
      %3183 = vmatprep.subr.mxu0 0.0
      %3184 = vmatpush1.msra.mxu0 %v3181
      %3185 = vmatprep.subr.mxu0 0.0
      %3186 = vmatpush1.msra.mxu0 0.0
      %3187 = vmatprep.subr.mxu0 0.0
      %3188 = vmatpush1.msra.mxu0 0.0
      %3189 = vmatprep.subr.mxu0 0.0
      %3190 = vmatpush1.msra.mxu0 0.0
      %3191 = vmatprep.subr.mxu0 0.0
      %3192 = vmatpush1.msra.mxu0 0.0
      %3193 = vmatprep.subr.mxu0 0.0
      %3194 = vmatpush1.msra.mxu0 0.0
      %3195 = vmatprep.subr.mxu0 0.0
      %3196 = vmatpush1.msra.mxu0 0.0
      %3197 = vmatprep.subr.mxu0 0.0
      %3198 = vmatpush1.msra.mxu0 0.0
      %3199 = vmatprep.subr.mxu0 0.0
      %3200 = vmatpush1.msra.mxu0 0.0
      %3201 = vmatprep.subr.mxu0 0.0
      %3202 = vmatpush1.msra.mxu0 0.0
      %3203 = vmatprep.subr.mxu0 0.0
      %3204 = vmatpush1.msra.mxu0 0.0
      %3205 = vmatprep.subr.mxu0 0.0
      %3206 = vmatpush1.msra.mxu0 0.0
      %3207 = vmatprep.subr.mxu0 0.0
      %3208 = vmatpush1.msra.mxu0 0.0
      %3209 = vmatprep.subr.mxu0 0.0
      %3210 = vmatpush1.msra.mxu0 0.0
      %3211 = vmatprep.subr.mxu0 0.0
      %3212 = vmatpush1.msra.mxu0 0.0
      %3213 = vmatprep.subr.mxu0 0.0
      %3214 = vmatpush1.msra.mxu0 0.0
      %3215 = vmatprep.subr.mxu0 0.0
      %3216 = vmatpush1.msra.mxu0 0.0
      %3217 = vmatprep.subr.mxu0 0.0
      %3218 = vmatpush1.msra.mxu0 0.0
      %3219 = vmatprep.subr.mxu0 0.0
      %3220 = vmatpush1.msra.mxu0 0.0
      %3221 = vmatprep.subr.mxu0 0.0
      %3222 = vmatpush1.msra.mxu0 0.0
      %3223 = vmatprep.subr.mxu0 0.0
      %3224 = vmatpush1.msra.mxu0 0.0
      %3225 = vmatprep.subr.mxu0 0.0
      %3226 = vmatpush1.msra.mxu0 0.0
      %3227 = vmatprep.subr.mxu0 0.0
      %3228 = vmatpush1.msra.mxu0 0.0
      %3229 = vmatprep.subr.mxu0 0.0
      %3230 = vmatpush1.msra.mxu0 0.0
      %3231 = vmatprep.subr.mxu0 0.0
      %3232 = vmatpush1.msra.mxu0 0.0
      %3233 = vmatprep.subr.mxu0 0.0
      %3234 = vmatpush1.msra.mxu0 0.0
      %3235 = vmatprep.subr.mxu0 0.0
      %3236 = vmatpush1.msra.mxu0 0.0
      %3237 = vmatprep.subr.mxu0 0.0
      %3238 = vmatpush1.msra.mxu0 0.0
      %3239 = vmatprep.subr.mxu0 0.0
      %3240 = vmatpush1.msra.mxu0 0.0
      %3241 = vmatprep.subr.mxu0 0.0
      %3242 = vmatpush1.msra.mxu0 0.0
      %3243 = vmatprep.subr.mxu0 0.0
      %3244 = vmatpush1.msra.mxu0 0.0
      %3245 = vmatprep.subr.mxu0 0.0
      %3246 = vmatpush1.msra.mxu0 0.0
      %3247 = vmatprep.mubr.f32.mxu0 0.0
      %3248 = vmatmul.mubr.f32.gmra.mrb[0].mxu0 %v3073
      %v3249 = vpop.f32.mrb[0].mxu0
      %v3250 = vadd.f32 0.0, %v3249
      %v3251 = vpop.f32.mrb[0].mxu0
      %3252 = vmatprep.mubr.f32.mxu0 0.0
      %3253 = vmatmul.mubr.f32.gmra.mrb[0].mxu0 %v3076
      %v3254 = vpop.f32.mrb[0].mxu0
      %v3255 = vadd.f32 0.0, %v3254
      %v3256 = vpop.f32.mrb[0].mxu0
      %3257 = vmatprep.mubr.f32.mxu0 0.0
      %3258 = vmatmul.mubr.f32.gmra.mrb[0].mxu0 %v3079
      %v3259 = vpop.f32.mrb[0].mxu0
      %v3260 = vadd.f32 0.0, %v3259
      %v3261 = vpop.f32.mrb[0].mxu0
      %3262 = vmatprep.mubr.f32.mxu0 0.0
      %3263 = vmatmul.mubr.f32.gmra.mrb[0].mxu0 %v3082
      %v3264 = vpop.f32.mrb[0].mxu0
      %v3265 = vadd.f32 0.0, %v3264
      %v3266 = vpop.f32.mrb[0].mxu0
      %3267 = vmatprep.mubr.f32.mxu0 0.0
      %3268 = vmatmul.mubr.f32.gmra.mrb[0].mxu0 %v3085
      %v3269 = vpop.f32.mrb[0].mxu0
      %v3270 = vadd.f32 0.0, %v3269
      %v3271 = vpop.f32.mrb[0].mxu0
      %3272 = vmatprep.mubr.f32.mxu0 0.0
      %3273 = vmatmul.mubr.f32.gmra.mrb[0].mxu0 %v3088
      %v3274 = vpop.f32.mrb[0].mxu0
      %v3275 = vadd.f32 0.0, %v3274
      %v3276 = vpop.f32.mrb[0].mxu0
      %3277 = vmatprep.mubr.f32.mxu0 0.0
      %3278 = vmatmul.mubr.f32.gmra.mrb[0].mxu0 %v3091
      %v3279 = vpop.f32.mrb[0].mxu0
      %v3280 = vadd.f32 0.0, %v3279
      %v3281 = vpop.f32.mrb[0].mxu0
      %3282 = vmatprep.mubr.f32.mxu0 0.0
      %3283 = vmatmul.mubr.f32.gmra.mrb[0].mxu0 %v3094
      %v3284 = vpop.f32.mrb[0].mxu0
      %v3285 = vadd.f32 0.0, %v3284
      %v3286 = vpop.f32.mrb[0].mxu0
      %3287 = vmatprep.mubr.f32.mxu0 0.0
      %3288 = vmatmul.mubr.f32.gmra.mrb[0].mxu0 %v3097
      %v3289 = vpop.f32.mrb[0].mxu0
      %v3290 = vadd.f32 0.0, %v3289
      %v3291 = vpop.f32.mrb[0].mxu0
      %3292 = vmatprep.mubr.f32.mxu0 0.0
      %3293 = vmatmul.mubr.f32.gmra.mrb[0].mxu0 %v3100
      %v3294 = vpop.f32.mrb[0].mxu0
      %v3295 = vadd.f32 0.0, %v3294
      %v3296 = vpop.f32.mrb[0].mxu0
      %3297 = vmatprep.mubr.f32.mxu0 0.0
      %3298 = vmatmul.mubr.f32.gmra.mrb[0].mxu0 %v3103
      %v3299 = vpop.f32.mrb[0].mxu0
      %v3300 = vadd.f32 0.0, %v3299
      %v3301 = vpop.f32.mrb[0].mxu0
      %3302 = vmatprep.mubr.f32.mxu0 0.0
      %3303 = vmatmul.mubr.f32.gmra.mrb[0].mxu0 %v3106
      %v3304 = vpop.f32.mrb[0].mxu0
      %v3305 = vadd.f32 0.0, %v3304
      %v3306 = vpop.f32.mrb[0].mxu0
      %3307 = vmatprep.mubr.f32.mxu0 0.0
      %3308 = vmatmul.mubr.f32.gmra.mrb[0].mxu0 %v3109
      %v3309 = vpop.f32.mrb[0].mxu0
      %v3310 = vadd.f32 0.0, %v3309
      %v3311 = vpop.f32.mrb[0].mxu0
      %3312 = vmatprep.mubr.f32.mxu0 0.0
      %3313 = vmatmul.mubr.f32.gmra.mrb[0].mxu0 %v3112
      %v3314 = vpop.f32.mrb[0].mxu0
      %v3315 = vadd.f32 0.0, %v3314
      %v3316 = vpop.f32.mrb[0].mxu0
      %3317 = vmatprep.mubr.f32.mxu0 0.0
      %3318 = vmatmul.mubr.f32.gmra.mrb[0].mxu0 %v3115
      %v3319 = vpop.f32.mrb[0].mxu0
      %v3320 = vadd.f32 0.0, %v3319
      %v3321 = vpop.f32.mrb[0].mxu0
      %3322 = vmatprep.mubr.f32.mxu0 0.0
      %3323 = vmatmul.mubr.f32.gmra.mrb[0].mxu0 %v3118
      %v3324 = vpop.f32.mrb[0].mxu0
      %v3325 = vadd.f32 0.0, %v3324
      %v3326 = vpop.f32.mrb[0].mxu0
      %3327 = vmatprep.mubr.f32.mxu0 0.0
      %3328 = vmatmul.mubr.f32.gmra.mrb[0].mxu0 %v3121
      %v3329 = vpop.f32.mrb[0].mxu0
      %v3330 = vadd.f32 0.0, %v3329
      %v3331 = vpop.f32.mrb[0].mxu0
      %3332 = vmatprep.mubr.f32.mxu0 0.0
      %3333 = vmatmul.mubr.f32.gmra.mrb[0].mxu0 %v3124
      %v3334 = vpop.f32.mrb[0].mxu0
      %v3335 = vadd.f32 0.0, %v3334
      %v3336 = vpop.f32.mrb[0].mxu0
      %3337 = vmatprep.mubr.f32.mxu0 0.0
      %3338 = vmatmul.mubr.f32.gmra.mrb[0].mxu0 %v3127
      %v3339 = vpop.f32.mrb[0].mxu0
      %v3340 = vadd.f32 0.0, %v3339
      %v3341 = vpop.f32.mrb[0].mxu0
      %3342 = vmatprep.mubr.f32.mxu0 0.0
      %3343 = vmatmul.mubr.f32.gmra.mrb[0].mxu0 %v3130
      %v3344 = vpop.f32.mrb[0].mxu0
      %v3345 = vadd.f32 0.0, %v3344
      %v3346 = vpop.f32.mrb[0].mxu0
      %3347 = vmatprep.mubr.f32.mxu0 0.0
      %3348 = vmatmul.mubr.f32.gmra.mrb[0].mxu0 %v3133
      %v3349 = vpop.f32.mrb[0].mxu0
      %v3350 = vadd.f32 0.0, %v3349
      %v3351 = vpop.f32.mrb[0].mxu0
      %3352 = vmatprep.mubr.f32.mxu0 0.0
      %3353 = vmatmul.mubr.f32.gmra.mrb[0].mxu0 %v3136
      %v3354 = vpop.f32.mrb[0].mxu0
      %v3355 = vadd.f32 0.0, %v3354
      %v3356 = vpop.f32.mrb[0].mxu0
      %3357 = vmatprep.mubr.f32.mxu0 0.0
      %3358 = vmatmul.mubr.f32.gmra.mrb[0].mxu0 %v3139
      %v3359 = vpop.f32.mrb[0].mxu0
      %v3360 = vadd.f32 0.0, %v3359
      %v3361 = vpop.f32.mrb[0].mxu0
      %3362 = vmatprep.mubr.f32.mxu0 0.0
      %3363 = vmatmul.mubr.f32.gmra.mrb[0].mxu0 %v3142
      %v3364 = vpop.f32.mrb[0].mxu0
      %v3365 = vadd.f32 0.0, %v3364
      %v3366 = vpop.f32.mrb[0].mxu0
      %3367 = vmatprep.mubr.f32.mxu0 0.0
      %3368 = vmatmul.mubr.f32.gmra.mrb[0].mxu0 %v3145
      %v3369 = vpop.f32.mrb[0].mxu0
      %v3370 = vadd.f32 0.0, %v3369
      %v3371 = vpop.f32.mrb[0].mxu0
      %3372 = vmatprep.mubr.f32.mxu0 0.0
      %3373 = vmatmul.mubr.f32.gmra.mrb[0].mxu0 %v3148
      %v3374 = vpop.f32.mrb[0].mxu0
      %v3375 = vadd.f32 0.0, %v3374
      %v3376 = vpop.f32.mrb[0].mxu0
      %3377 = vmatprep.mubr.f32.mxu0 0.0
      %3378 = vmatmul.mubr.f32.gmra.mrb[0].mxu0 %v3151
      %v3379 = vpop.f32.mrb[0].mxu0
      %v3380 = vadd.f32 0.0, %v3379
      %v3381 = vpop.f32.mrb[0].mxu0
      %3382 = vmatprep.mubr.f32.mxu0 0.0
      %3383 = vmatmul.mubr.f32.gmra.mrb[0].mxu0 %v3154
      %v3384 = vpop.f32.mrb[0].mxu0
      %v3385 = vadd.f32 0.0, %v3384
      %v3386 = vpop.f32.mrb[0].mxu0
      %3387 = vmatprep.mubr.f32.mxu0 0.0
      %3388 = vmatmul.mubr.f32.gmra.mrb[0].mxu0 %v3157
      %v3389 = vpop.f32.mrb[0].mxu0
      %v3390 = vadd.f32 0.0, %v3389
      %v3391 = vpop.f32.mrb[0].mxu0
      %3392 = vmatprep.mubr.f32.mxu0 0.0
      %3393 = vmatmul.mubr.f32.gmra.mrb[0].mxu0 %v3160
      %v3394 = vpop.f32.mrb[0].mxu0
      %v3395 = vadd.f32 0.0, %v3394
      %v3396 = vpop.f32.mrb[0].mxu0
      %3397 = vmatprep.mubr.f32.mxu0 0.0
      %3398 = vmatmul.mubr.f32.gmra.mrb[0].mxu0 %v3163
      %v3399 = vpop.f32.mrb[0].mxu0
      %v3400 = vadd.f32 0.0, %v3399
      %v3401 = vpop.f32.mrb[0].mxu0
      %3402 = vmatprep.mubr.f32.mxu0 0.0
      %3403 = vmatmul.mubr.f32.gmra.mrb[0].mxu0 %v3166
      %v3404 = vpop.f32.mrb[0].mxu0
      %v3405 = vadd.f32 0.0, %v3404
      %v3406 = vpop.f32.mrb[0].mxu0
      %3407 = vmatprep.mubr.f32.mxu0 0.0
      %3408 = vmatmul.mubr.f32.gmra.mrb[0].mxu0 %v3169
      %v3409 = vpop.f32.mrb[0].mxu0
      %v3410 = vadd.f32 0.0, %v3409
      %v3411 = vpop.f32.mrb[0].mxu0
      %3412 = vmatprep.mubr.f32.mxu0 0.0
      %3413 = vmatmul.mubr.f32.gmra.mrb[0].mxu0 %v3172
      %v3414 = vpop.f32.mrb[0].mxu0
      %v3415 = vadd.f32 0.0, %v3414
      %v3416 = vpop.f32.mrb[0].mxu0
      %3417 = vmatprep.mubr.f32.mxu0 0.0
      %3418 = vmatmul.mubr.f32.gmra.mrb[0].mxu0 %v3175
      %v3419 = vpop.f32.mrb[0].mxu0
      %v3420 = vadd.f32 0.0, %v3419
      %v3421 = vpop.f32.mrb[0].mxu0
      %3422 = vmatprep.mubr.f32.mxu0 0.0
      %3423 = vmatmul.mubr.f32.gmra.mrb[0].mxu0 %v3178
      %v3424 = vpop.f32.mrb[0].mxu0
      %v3425 = vadd.f32 0.0, %v3424
      %v3426 = vpop.f32.mrb[0].mxu0
      %3427 = vdwg.mxu0
      %v3428 = vadd.f32 %v2998, %v3250
      %v3429 = vadd.f32 %v2999, %v3255
      %v3430 = vadd.f32 %v3000, %v3260
      %v3431 = vadd.f32 %v3001, %v3265
      %v3432 = vadd.f32 %v3002, %v3270
      %v3433 = vadd.f32 %v3003, %v3275
      %v3434 = vadd.f32 %v3004, %v3280
      %v3435 = vadd.f32 %v3005, %v3285
      %v3436 = vadd.f32 %v3006, %v3290
      %v3437 = vadd.f32 %v3007, %v3295
      %v3438 = vadd.f32 %v3008, %v3300
      %v3439 = vadd.f32 %v3009, %v3305
      %v3440 = vadd.f32 %v3010, %v3310
      %v3441 = vadd.f32 %v3011, %v3315
      %v3442 = vadd.f32 %v3012, %v3320
      %v3443 = vadd.f32 %v3013, %v3325
      %v3444 = vadd.f32 %v3014, %v3330
      %v3445 = vadd.f32 %v3015, %v3335
      %v3446 = vadd.f32 %v3016, %v3340
      %v3447 = vadd.f32 %v3017, %v3345
      %v3448 = vadd.f32 %v3018, %v3350
      %v3449 = vadd.f32 %v3019, %v3355
      %v3450 = vadd.f32 %v3020, %v3360
      %v3451 = vadd.f32 %v3021, %v3365
      %v3452 = vadd.f32 %v3022, %v3370
      %v3453 = vadd.f32 %v3023, %v3375
      %v3454 = vadd.f32 %v3024, %v3380
      %v3455 = vadd.f32 %v3025, %v3385
      %v3456 = vadd.f32 %v3026, %v3390
      %v3457 = vadd.f32 %v3027, %v3395
      %v3458 = vadd.f32 %v3028, %v3400
      %v3459 = vadd.f32 %v3029, %v3405
      %v3460 = vadd.f32 %v3030, %v3410
      %v3461 = vadd.f32 %v3031, %v3415
      %v3462 = vadd.f32 %v3032, %v3420
      %v3463 = vadd.f32 %v3033, %v3425
      %v3464 = vld [vmem:[#allocation2 + $0x24] sm:$0xff]
      %v3465 = vld [vmem:[#allocation2 + $0x2c] sm:$0xff]
      %v3466 = vld [vmem:[#allocation2 + $0x34] sm:$0xff]
      %v3467 = vld [vmem:[#allocation2 + $0x3c] sm:$0xff]
      %v3468 = vld [vmem:[#allocation2 + $0x44] sm:$0xff]
      %v3469 = vld [vmem:[#allocation2 + $0x4c] sm:$0xff]
      %v3470 = vld [vmem:[#allocation2 + $0x54] sm:$0xff]
      %v3471 = vld [vmem:[#allocation2 + $0x5c] sm:$0xff]
      %v3472 = vld [vmem:[#allocation2 + $0x64] sm:$0xff]
      %v3473 = vld [vmem:[#allocation2 + $0x6c] sm:$0xff]
      %v3474 = vld [vmem:[#allocation2 + $0x74] sm:$0xff]
      %v3475 = vld [vmem:[#allocation2 + $0x7c] sm:$0xff]
      %v3476 = vld [vmem:[#allocation2 + $0x84] sm:$0xff]
      %v3477 = vld [vmem:[#allocation2 + $0x8c] sm:$0xff]
      %v3478 = vld [vmem:[#allocation2 + $0x94] sm:$0xff]
      %v3479 = vld [vmem:[#allocation2 + $0x9c] sm:$0xff]
      %v3480 = vld [vmem:[#allocation2 + $0xa4] sm:$0xff]
      %v3481 = vld [vmem:[#allocation2 + $0xac] sm:$0xff]
      %v3482 = vld [vmem:[#allocation2 + $0xb4] sm:$0xff]
      %v3483 = vld [vmem:[#allocation2 + $0xbc] sm:$0xff]
      %v3484 = vld [vmem:[#allocation2 + $0xc4] sm:$0xff]
      %v3485 = vld [vmem:[#allocation2 + $0xcc] sm:$0xff]
      %v3486 = vld [vmem:[#allocation2 + $0xd4] sm:$0xff]
      %v3487 = vld [vmem:[#allocation2 + $0xdc] sm:$0xff]
      %v3488 = vld [vmem:[#allocation2 + $0xe4] sm:$0xff]
      %v3489 = vld [vmem:[#allocation2 + $0xec] sm:$0xff]
      %v3490 = vld [vmem:[#allocation2 + $0xf4] sm:$0xff]
      %v3491 = vld [vmem:[#allocation2 + $0xfc] sm:$0xff]
      %v3492 = vld [vmem:[#allocation2 + $0x104] sm:$0xff]
      %v3493 = vld [vmem:[#allocation2 + $0x10c] sm:$0xff]
      %v3494 = vld [vmem:[#allocation2 + $0x114] sm:$0xff]
      %v3495 = vld [vmem:[#allocation2 + $0x11c] sm:$0xff]
      %v3496 = vld [vmem:[#allocation2 + $0x124] sm:$0xff]
      %v3497 = vld [vmem:[#allocation2 + $0x12c] sm:$0xff]
      %v3498 = vld [vmem:[#allocation2 + $0x134] sm:$0xff]
      %v3499 = vld [vmem:[#allocation2 + $0x13c] sm:$0xff]
      %s3500 = scalar_lea.vmem %s4, 24
      %v3501 = vld [vmem:[%s3500] sm:$0xf]
      %v3503 = vsel %vm337, %v3464, 0
      %v3506 = vsel %vm337, %v3465, 0
      %v3509 = vsel %vm337, %v3466, 0
      %v3512 = vsel %vm337, %v3467, 0
      %v3515 = vsel %vm337, %v3468, 0
      %v3518 = vsel %vm337, %v3469, 0
      %v3521 = vsel %vm337, %v3470, 0
      %v3524 = vsel %vm337, %v3471, 0
      %v3527 = vsel %vm337, %v3472, 0
      %v3530 = vsel %vm337, %v3473, 0
      %v3533 = vsel %vm337, %v3474, 0
      %v3536 = vsel %vm337, %v3475, 0
      %v3539 = vsel %vm337, %v3476, 0
      %v3542 = vsel %vm337, %v3477, 0
      %v3545 = vsel %vm337, %v3478, 0
      %v3548 = vsel %vm337, %v3479, 0
      %v3551 = vsel %vm337, %v3480, 0
      %v3554 = vsel %vm337, %v3481, 0
      %v3557 = vsel %vm337, %v3482, 0
      %v3560 = vsel %vm337, %v3483, 0
      %v3563 = vsel %vm337, %v3484, 0
      %v3566 = vsel %vm337, %v3485, 0
      %v3569 = vsel %vm337, %v3486, 0
      %v3572 = vsel %vm337, %v3487, 0
      %v3575 = vsel %vm337, %v3488, 0
      %v3578 = vsel %vm337, %v3489, 0
      %v3581 = vsel %vm337, %v3490, 0
      %v3584 = vsel %vm337, %v3491, 0
      %v3587 = vsel %vm337, %v3492, 0
      %v3590 = vsel %vm337, %v3493, 0
      %v3593 = vsel %vm337, %v3494, 0
      %v3596 = vsel %vm337, %v3495, 0
      %v3599 = vsel %vm337, %v3496, 0
      %v3602 = vsel %vm337, %v3497, 0
      %v3605 = vsel %vm337, %v3498, 0
      %v3608 = vsel %vm337, %v3499, 0
      %v3611 = vsel %vm1139, %v3501, 0
      %3613 = vmatprep.subr.mxu0 0.0
      %3614 = vmatpush1.msra.mxu0 %v3611
      %3615 = vmatprep.subr.mxu0 0.0
      %3616 = vmatpush1.msra.mxu0 0.0
      %3617 = vmatprep.subr.mxu0 0.0
      %3618 = vmatpush1.msra.mxu0 0.0
      %3619 = vmatprep.subr.mxu0 0.0
      %3620 = vmatpush1.msra.mxu0 0.0
      %3621 = vmatprep.subr.mxu0 0.0
      %3622 = vmatpush1.msra.mxu0 0.0
      %3623 = vmatprep.subr.mxu0 0.0
      %3624 = vmatpush1.msra.mxu0 0.0
      %3625 = vmatprep.subr.mxu0 0.0
      %3626 = vmatpush1.msra.mxu0 0.0
      %3627 = vmatprep.subr.mxu0 0.0
      %3628 = vmatpush1.msra.mxu0 0.0
      %3629 = vmatprep.subr.mxu0 0.0
      %3630 = vmatpush1.msra.mxu0 0.0
      %3631 = vmatprep.subr.mxu0 0.0
      %3632 = vmatpush1.msra.mxu0 0.0
      %3633 = vmatprep.subr.mxu0 0.0
      %3634 = vmatpush1.msra.mxu0 0.0
      %3635 = vmatprep.subr.mxu0 0.0
      %3636 = vmatpush1.msra.mxu0 0.0
      %3637 = vmatprep.subr.mxu0 0.0
      %3638 = vmatpush1.msra.mxu0 0.0
      %3639 = vmatprep.subr.mxu0 0.0
      %3640 = vmatpush1.msra.mxu0 0.0
      %3641 = vmatprep.subr.mxu0 0.0
      %3642 = vmatpush1.msra.mxu0 0.0
      %3643 = vmatprep.subr.mxu0 0.0
      %3644 = vmatpush1.msra.mxu0 0.0
      %3645 = vmatprep.subr.mxu0 0.0
      %3646 = vmatpush1.msra.mxu0 0.0
      %3647 = vmatprep.subr.mxu0 0.0
      %3648 = vmatpush1.msra.mxu0 0.0
      %3649 = vmatprep.subr.mxu0 0.0
      %3650 = vmatpush1.msra.mxu0 0.0
      %3651 = vmatprep.subr.mxu0 0.0
      %3652 = vmatpush1.msra.mxu0 0.0
      %3653 = vmatprep.subr.mxu0 0.0
      %3654 = vmatpush1.msra.mxu0 0.0
      %3655 = vmatprep.subr.mxu0 0.0
      %3656 = vmatpush1.msra.mxu0 0.0
      %3657 = vmatprep.subr.mxu0 0.0
      %3658 = vmatpush1.msra.mxu0 0.0
      %3659 = vmatprep.subr.mxu0 0.0
      %3660 = vmatpush1.msra.mxu0 0.0
      %3661 = vmatprep.subr.mxu0 0.0
      %3662 = vmatpush1.msra.mxu0 0.0
      %3663 = vmatprep.subr.mxu0 0.0
      %3664 = vmatpush1.msra.mxu0 0.0
      %3665 = vmatprep.subr.mxu0 0.0
      %3666 = vmatpush1.msra.mxu0 0.0
      %3667 = vmatprep.subr.mxu0 0.0
      %3668 = vmatpush1.msra.mxu0 0.0
      %3669 = vmatprep.subr.mxu0 0.0
      %3670 = vmatpush1.msra.mxu0 0.0
      %3671 = vmatprep.subr.mxu0 0.0
      %3672 = vmatpush1.msra.mxu0 0.0
      %3673 = vmatprep.subr.mxu0 0.0
      %3674 = vmatpush1.msra.mxu0 0.0
      %3675 = vmatprep.subr.mxu0 0.0
      %3676 = vmatpush1.msra.mxu0 0.0
      %3677 = vmatprep.mubr.f32.mxu0 0.0
      %3678 = vmatmul.mubr.f32.gmra.mrb[0].mxu0 %v3503
      %v3679 = vpop.f32.mrb[0].mxu0
      %v3680 = vadd.f32 0.0, %v3679
      %v3681 = vpop.f32.mrb[0].mxu0
      %3682 = vmatprep.mubr.f32.mxu0 0.0
      %3683 = vmatmul.mubr.f32.gmra.mrb[0].mxu0 %v3506
      %v3684 = vpop.f32.mrb[0].mxu0
      %v3685 = vadd.f32 0.0, %v3684
      %v3686 = vpop.f32.mrb[0].mxu0
      %3687 = vmatprep.mubr.f32.mxu0 0.0
      %3688 = vmatmul.mubr.f32.gmra.mrb[0].mxu0 %v3509
      %v3689 = vpop.f32.mrb[0].mxu0
      %v3690 = vadd.f32 0.0, %v3689
      %v3691 = vpop.f32.mrb[0].mxu0
      %3692 = vmatprep.mubr.f32.mxu0 0.0
      %3693 = vmatmul.mubr.f32.gmra.mrb[0].mxu0 %v3512
      %v3694 = vpop.f32.mrb[0].mxu0
      %v3695 = vadd.f32 0.0, %v3694
      %v3696 = vpop.f32.mrb[0].mxu0
      %3697 = vmatprep.mubr.f32.mxu0 0.0
      %3698 = vmatmul.mubr.f32.gmra.mrb[0].mxu0 %v3515
      %v3699 = vpop.f32.mrb[0].mxu0
      %v3700 = vadd.f32 0.0, %v3699
      %v3701 = vpop.f32.mrb[0].mxu0
      %3702 = vmatprep.mubr.f32.mxu0 0.0
      %3703 = vmatmul.mubr.f32.gmra.mrb[0].mxu0 %v3518
      %v3704 = vpop.f32.mrb[0].mxu0
      %v3705 = vadd.f32 0.0, %v3704
      %v3706 = vpop.f32.mrb[0].mxu0
      %3707 = vmatprep.mubr.f32.mxu0 0.0
      %3708 = vmatmul.mubr.f32.gmra.mrb[0].mxu0 %v3521
      %v3709 = vpop.f32.mrb[0].mxu0
      %v3710 = vadd.f32 0.0, %v3709
      %v3711 = vpop.f32.mrb[0].mxu0
      %3712 = vmatprep.mubr.f32.mxu0 0.0
      %3713 = vmatmul.mubr.f32.gmra.mrb[0].mxu0 %v3524
      %v3714 = vpop.f32.mrb[0].mxu0
      %v3715 = vadd.f32 0.0, %v3714
      %v3716 = vpop.f32.mrb[0].mxu0
      %3717 = vmatprep.mubr.f32.mxu0 0.0
      %3718 = vmatmul.mubr.f32.gmra.mrb[0].mxu0 %v3527
      %v3719 = vpop.f32.mrb[0].mxu0
      %v3720 = vadd.f32 0.0, %v3719
      %v3721 = vpop.f32.mrb[0].mxu0
      %3722 = vmatprep.mubr.f32.mxu0 0.0
      %3723 = vmatmul.mubr.f32.gmra.mrb[0].mxu0 %v3530
      %v3724 = vpop.f32.mrb[0].mxu0
      %v3725 = vadd.f32 0.0, %v3724
      %v3726 = vpop.f32.mrb[0].mxu0
      %3727 = vmatprep.mubr.f32.mxu0 0.0
      %3728 = vmatmul.mubr.f32.gmra.mrb[0].mxu0 %v3533
      %v3729 = vpop.f32.mrb[0].mxu0
      %v3730 = vadd.f32 0.0, %v3729
      %v3731 = vpop.f32.mrb[0].mxu0
      %3732 = vmatprep.mubr.f32.mxu0 0.0
      %3733 = vmatmul.mubr.f32.gmra.mrb[0].mxu0 %v3536
      %v3734 = vpop.f32.mrb[0].mxu0
      %v3735 = vadd.f32 0.0, %v3734
      %v3736 = vpop.f32.mrb[0].mxu0
      %3737 = vmatprep.mubr.f32.mxu0 0.0
      %3738 = vmatmul.mubr.f32.gmra.mrb[0].mxu0 %v3539
      %v3739 = vpop.f32.mrb[0].mxu0
      %v3740 = vadd.f32 0.0, %v3739
      %v3741 = vpop.f32.mrb[0].mxu0
      %3742 = vmatprep.mubr.f32.mxu0 0.0
      %3743 = vmatmul.mubr.f32.gmra.mrb[0].mxu0 %v3542
      %v3744 = vpop.f32.mrb[0].mxu0
      %v3745 = vadd.f32 0.0, %v3744
      %v3746 = vpop.f32.mrb[0].mxu0
      %3747 = vmatprep.mubr.f32.mxu0 0.0
      %3748 = vmatmul.mubr.f32.gmra.mrb[0].mxu0 %v3545
      %v3749 = vpop.f32.mrb[0].mxu0
      %v3750 = vadd.f32 0.0, %v3749
      %v3751 = vpop.f32.mrb[0].mxu0
      %3752 = vmatprep.mubr.f32.mxu0 0.0
      %3753 = vmatmul.mubr.f32.gmra.mrb[0].mxu0 %v3548
      %v3754 = vpop.f32.mrb[0].mxu0
      %v3755 = vadd.f32 0.0, %v3754
      %v3756 = vpop.f32.mrb[0].mxu0
      %3757 = vmatprep.mubr.f32.mxu0 0.0
      %3758 = vmatmul.mubr.f32.gmra.mrb[0].mxu0 %v3551
      %v3759 = vpop.f32.mrb[0].mxu0
      %v3760 = vadd.f32 0.0, %v3759
      %v3761 = vpop.f32.mrb[0].mxu0
      %3762 = vmatprep.mubr.f32.mxu0 0.0
      %3763 = vmatmul.mubr.f32.gmra.mrb[0].mxu0 %v3554
      %v3764 = vpop.f32.mrb[0].mxu0
      %v3765 = vadd.f32 0.0, %v3764
      %v3766 = vpop.f32.mrb[0].mxu0
      %3767 = vmatprep.mubr.f32.mxu0 0.0
      %3768 = vmatmul.mubr.f32.gmra.mrb[0].mxu0 %v3557
      %v3769 = vpop.f32.mrb[0].mxu0
      %v3770 = vadd.f32 0.0, %v3769
      %v3771 = vpop.f32.mrb[0].mxu0
      %3772 = vmatprep.mubr.f32.mxu0 0.0
      %3773 = vmatmul.mubr.f32.gmra.mrb[0].mxu0 %v3560
      %v3774 = vpop.f32.mrb[0].mxu0
      %v3775 = vadd.f32 0.0, %v3774
      %v3776 = vpop.f32.mrb[0].mxu0
      %3777 = vmatprep.mubr.f32.mxu0 0.0
      %3778 = vmatmul.mubr.f32.gmra.mrb[0].mxu0 %v3563
      %v3779 = vpop.f32.mrb[0].mxu0
      %v3780 = vadd.f32 0.0, %v3779
      %v3781 = vpop.f32.mrb[0].mxu0
      %3782 = vmatprep.mubr.f32.mxu0 0.0
      %3783 = vmatmul.mubr.f32.gmra.mrb[0].mxu0 %v3566
      %v3784 = vpop.f32.mrb[0].mxu0
      %v3785 = vadd.f32 0.0, %v3784
      %v3786 = vpop.f32.mrb[0].mxu0
      %3787 = vmatprep.mubr.f32.mxu0 0.0
      %3788 = vmatmul.mubr.f32.gmra.mrb[0].mxu0 %v3569
      %v3789 = vpop.f32.mrb[0].mxu0
      %v3790 = vadd.f32 0.0, %v3789
      %v3791 = vpop.f32.mrb[0].mxu0
      %3792 = vmatprep.mubr.f32.mxu0 0.0
      %3793 = vmatmul.mubr.f32.gmra.mrb[0].mxu0 %v3572
      %v3794 = vpop.f32.mrb[0].mxu0
      %v3795 = vadd.f32 0.0, %v3794
      %v3796 = vpop.f32.mrb[0].mxu0
      %3797 = vmatprep.mubr.f32.mxu0 0.0
      %3798 = vmatmul.mubr.f32.gmra.mrb[0].mxu0 %v3575
      %v3799 = vpop.f32.mrb[0].mxu0
      %v3800 = vadd.f32 0.0, %v3799
      %v3801 = vpop.f32.mrb[0].mxu0
      %3802 = vmatprep.mubr.f32.mxu0 0.0
      %3803 = vmatmul.mubr.f32.gmra.mrb[0].mxu0 %v3578
      %v3804 = vpop.f32.mrb[0].mxu0
      %v3805 = vadd.f32 0.0, %v3804
      %v3806 = vpop.f32.mrb[0].mxu0
      %3807 = vmatprep.mubr.f32.mxu0 0.0
      %3808 = vmatmul.mubr.f32.gmra.mrb[0].mxu0 %v3581
      %v3809 = vpop.f32.mrb[0].mxu0
      %v3810 = vadd.f32 0.0, %v3809
      %v3811 = vpop.f32.mrb[0].mxu0
      %3812 = vmatprep.mubr.f32.mxu0 0.0
      %3813 = vmatmul.mubr.f32.gmra.mrb[0].mxu0 %v3584
      %v3814 = vpop.f32.mrb[0].mxu0
      %v3815 = vadd.f32 0.0, %v3814
      %v3816 = vpop.f32.mrb[0].mxu0
      %3817 = vmatprep.mubr.f32.mxu0 0.0
      %3818 = vmatmul.mubr.f32.gmra.mrb[0].mxu0 %v3587
      %v3819 = vpop.f32.mrb[0].mxu0
      %v3820 = vadd.f32 0.0, %v3819
      %v3821 = vpop.f32.mrb[0].mxu0
      %3822 = vmatprep.mubr.f32.mxu0 0.0
      %3823 = vmatmul.mubr.f32.gmra.mrb[0].mxu0 %v3590
      %v3824 = vpop.f32.mrb[0].mxu0
      %v3825 = vadd.f32 0.0, %v3824
      %v3826 = vpop.f32.mrb[0].mxu0
      %3827 = vmatprep.mubr.f32.mxu0 0.0
      %3828 = vmatmul.mubr.f32.gmra.mrb[0].mxu0 %v3593
      %v3829 = vpop.f32.mrb[0].mxu0
      %v3830 = vadd.f32 0.0, %v3829
      %v3831 = vpop.f32.mrb[0].mxu0
      %3832 = vmatprep.mubr.f32.mxu0 0.0
      %3833 = vmatmul.mubr.f32.gmra.mrb[0].mxu0 %v3596
      %v3834 = vpop.f32.mrb[0].mxu0
      %v3835 = vadd.f32 0.0, %v3834
      %v3836 = vpop.f32.mrb[0].mxu0
      %3837 = vmatprep.mubr.f32.mxu0 0.0
      %3838 = vmatmul.mubr.f32.gmra.mrb[0].mxu0 %v3599
      %v3839 = vpop.f32.mrb[0].mxu0
      %v3840 = vadd.f32 0.0, %v3839
      %v3841 = vpop.f32.mrb[0].mxu0
      %3842 = vmatprep.mubr.f32.mxu0 0.0
      %3843 = vmatmul.mubr.f32.gmra.mrb[0].mxu0 %v3602
      %v3844 = vpop.f32.mrb[0].mxu0
      %v3845 = vadd.f32 0.0, %v3844
      %v3846 = vpop.f32.mrb[0].mxu0
      %3847 = vmatprep.mubr.f32.mxu0 0.0
      %3848 = vmatmul.mubr.f32.gmra.mrb[0].mxu0 %v3605
      %v3849 = vpop.f32.mrb[0].mxu0
      %v3850 = vadd.f32 0.0, %v3849
      %v3851 = vpop.f32.mrb[0].mxu0
      %3852 = vmatprep.mubr.f32.mxu0 0.0
      %3853 = vmatmul.mubr.f32.gmra.mrb[0].mxu0 %v3608
      %v3854 = vpop.f32.mrb[0].mxu0
      %v3855 = vadd.f32 0.0, %v3854
      %v3856 = vpop.f32.mrb[0].mxu0
      %3857 = vdwg.mxu0
      %v3858 = vadd.f32 %v3428, %v3680
      %v3859 = vadd.f32 %v3429, %v3685
      %v3860 = vadd.f32 %v3430, %v3690
      %v3861 = vadd.f32 %v3431, %v3695
      %v3862 = vadd.f32 %v3432, %v3700
      %v3863 = vadd.f32 %v3433, %v3705
      %v3864 = vadd.f32 %v3434, %v3710
      %v3865 = vadd.f32 %v3435, %v3715
      %v3866 = vadd.f32 %v3436, %v3720
      %v3867 = vadd.f32 %v3437, %v3725
      %v3868 = vadd.f32 %v3438, %v3730
      %v3869 = vadd.f32 %v3439, %v3735
      %v3870 = vadd.f32 %v3440, %v3740
      %v3871 = vadd.f32 %v3441, %v3745
      %v3872 = vadd.f32 %v3442, %v3750
      %v3873 = vadd.f32 %v3443, %v3755
      %v3874 = vadd.f32 %v3444, %v3760
      %v3875 = vadd.f32 %v3445, %v3765
      %v3876 = vadd.f32 %v3446, %v3770
      %v3877 = vadd.f32 %v3447, %v3775
      %v3878 = vadd.f32 %v3448, %v3780
      %v3879 = vadd.f32 %v3449, %v3785
      %v3880 = vadd.f32 %v3450, %v3790
      %v3881 = vadd.f32 %v3451, %v3795
      %v3882 = vadd.f32 %v3452, %v3800
      %v3883 = vadd.f32 %v3453, %v3805
      %v3884 = vadd.f32 %v3454, %v3810
      %v3885 = vadd.f32 %v3455, %v3815
      %v3886 = vadd.f32 %v3456, %v3820
      %v3887 = vadd.f32 %v3457, %v3825
      %v3888 = vadd.f32 %v3458, %v3830
      %v3889 = vadd.f32 %v3459, %v3835
      %v3890 = vadd.f32 %v3460, %v3840
      %v3891 = vadd.f32 %v3461, %v3845
      %v3892 = vadd.f32 %v3462, %v3850
      %v3893 = vadd.f32 %v3463, %v3855
      %v3894 = vld [vmem:[#allocation2 + $0x25] sm:$0xff]
      %v3895 = vld [vmem:[#allocation2 + $0x2d] sm:$0xff]
      %v3896 = vld [vmem:[#allocation2 + $0x35] sm:$0xff]
      %v3897 = vld [vmem:[#allocation2 + $0x3d] sm:$0xff]
      %v3898 = vld [vmem:[#allocation2 + $0x45] sm:$0xff]
      %v3899 = vld [vmem:[#allocation2 + $0x4d] sm:$0xff]
      %v3900 = vld [vmem:[#allocation2 + $0x55] sm:$0xff]
      %v3901 = vld [vmem:[#allocation2 + $0x5d] sm:$0xff]
      %v3902 = vld [vmem:[#allocation2 + $0x65] sm:$0xff]
      %v3903 = vld [vmem:[#allocation2 + $0x6d] sm:$0xff]
      %v3904 = vld [vmem:[#allocation2 + $0x75] sm:$0xff]
      %v3905 = vld [vmem:[#allocation2 + $0x7d] sm:$0xff]
      %v3906 = vld [vmem:[#allocation2 + $0x85] sm:$0xff]
      %v3907 = vld [vmem:[#allocation2 + $0x8d] sm:$0xff]
      %v3908 = vld [vmem:[#allocation2 + $0x95] sm:$0xff]
      %v3909 = vld [vmem:[#allocation2 + $0x9d] sm:$0xff]
      %v3910 = vld [vmem:[#allocation2 + $0xa5] sm:$0xff]
      %v3911 = vld [vmem:[#allocation2 + $0xad] sm:$0xff]
      %v3912 = vld [vmem:[#allocation2 + $0xb5] sm:$0xff]
      %v3913 = vld [vmem:[#allocation2 + $0xbd] sm:$0xff]
      %v3914 = vld [vmem:[#allocation2 + $0xc5] sm:$0xff]
      %v3915 = vld [vmem:[#allocation2 + $0xcd] sm:$0xff]
      %v3916 = vld [vmem:[#allocation2 + $0xd5] sm:$0xff]
      %v3917 = vld [vmem:[#allocation2 + $0xdd] sm:$0xff]
      %v3918 = vld [vmem:[#allocation2 + $0xe5] sm:$0xff]
      %v3919 = vld [vmem:[#allocation2 + $0xed] sm:$0xff]
      %v3920 = vld [vmem:[#allocation2 + $0xf5] sm:$0xff]
      %v3921 = vld [vmem:[#allocation2 + $0xfd] sm:$0xff]
      %v3922 = vld [vmem:[#allocation2 + $0x105] sm:$0xff]
      %v3923 = vld [vmem:[#allocation2 + $0x10d] sm:$0xff]
      %v3924 = vld [vmem:[#allocation2 + $0x115] sm:$0xff]
      %v3925 = vld [vmem:[#allocation2 + $0x11d] sm:$0xff]
      %v3926 = vld [vmem:[#allocation2 + $0x125] sm:$0xff]
      %v3927 = vld [vmem:[#allocation2 + $0x12d] sm:$0xff]
      %v3928 = vld [vmem:[#allocation2 + $0x135] sm:$0xff]
      %v3929 = vld [vmem:[#allocation2 + $0x13d] sm:$0xff]
      %s3930 = scalar_lea.vmem %s4, 28
      %v3931 = vld [vmem:[%s3930] sm:$0xf]
      %v3933 = vsel %vm337, %v3894, 0
      %v3936 = vsel %vm337, %v3895, 0
      %v3939 = vsel %vm337, %v3896, 0
      %v3942 = vsel %vm337, %v3897, 0
      %v3945 = vsel %vm337, %v3898, 0
      %v3948 = vsel %vm337, %v3899, 0
      %v3951 = vsel %vm337, %v3900, 0
      %v3954 = vsel %vm337, %v3901, 0
      %v3957 = vsel %vm337, %v3902, 0
      %v3960 = vsel %vm337, %v3903, 0
      %v3963 = vsel %vm337, %v3904, 0
      %v3966 = vsel %vm337, %v3905, 0
      %v3969 = vsel %vm337, %v3906, 0
      %v3972 = vsel %vm337, %v3907, 0
      %v3975 = vsel %vm337, %v3908, 0
      %v3978 = vsel %vm337, %v3909, 0
      %v3981 = vsel %vm337, %v3910, 0
      %v3984 = vsel %vm337, %v3911, 0
      %v3987 = vsel %vm337, %v3912, 0
      %v3990 = vsel %vm337, %v3913, 0
      %v3993 = vsel %vm337, %v3914, 0
      %v3996 = vsel %vm337, %v3915, 0
      %v3999 = vsel %vm337, %v3916, 0
      %v4002 = vsel %vm337, %v3917, 0
      %v4005 = vsel %vm337, %v3918, 0
      %v4008 = vsel %vm337, %v3919, 0
      %v4011 = vsel %vm337, %v3920, 0
      %v4014 = vsel %vm337, %v3921, 0
      %v4017 = vsel %vm337, %v3922, 0
      %v4020 = vsel %vm337, %v3923, 0
      %v4023 = vsel %vm337, %v3924, 0
      %v4026 = vsel %vm337, %v3925, 0
      %v4029 = vsel %vm337, %v3926, 0
      %v4032 = vsel %vm337, %v3927, 0
      %v4035 = vsel %vm337, %v3928, 0
      %v4038 = vsel %vm337, %v3929, 0
      %v4041 = vsel %vm1139, %v3931, 0
      %4043 = vmatprep.subr.mxu0 0.0
      %4044 = vmatpush1.msra.mxu0 %v4041
      %4045 = vmatprep.subr.mxu0 0.0
      %4046 = vmatpush1.msra.mxu0 0.0
      %4047 = vmatprep.subr.mxu0 0.0
      %4048 = vmatpush1.msra.mxu0 0.0
      %4049 = vmatprep.subr.mxu0 0.0
      %4050 = vmatpush1.msra.mxu0 0.0
      %4051 = vmatprep.subr.mxu0 0.0
      %4052 = vmatpush1.msra.mxu0 0.0
      %4053 = vmatprep.subr.mxu0 0.0
      %4054 = vmatpush1.msra.mxu0 0.0
      %4055 = vmatprep.subr.mxu0 0.0
      %4056 = vmatpush1.msra.mxu0 0.0
      %4057 = vmatprep.subr.mxu0 0.0
      %4058 = vmatpush1.msra.mxu0 0.0
      %4059 = vmatprep.subr.mxu0 0.0
      %4060 = vmatpush1.msra.mxu0 0.0
      %4061 = vmatprep.subr.mxu0 0.0
      %4062 = vmatpush1.msra.mxu0 0.0
      %4063 = vmatprep.subr.mxu0 0.0
      %4064 = vmatpush1.msra.mxu0 0.0
      %4065 = vmatprep.subr.mxu0 0.0
      %4066 = vmatpush1.msra.mxu0 0.0
      %4067 = vmatprep.subr.mxu0 0.0
      %4068 = vmatpush1.msra.mxu0 0.0
      %4069 = vmatprep.subr.mxu0 0.0
      %4070 = vmatpush1.msra.mxu0 0.0
      %4071 = vmatprep.subr.mxu0 0.0
      %4072 = vmatpush1.msra.mxu0 0.0
      %4073 = vmatprep.subr.mxu0 0.0
      %4074 = vmatpush1.msra.mxu0 0.0
      %4075 = vmatprep.subr.mxu0 0.0
      %4076 = vmatpush1.msra.mxu0 0.0
      %4077 = vmatprep.subr.mxu0 0.0
      %4078 = vmatpush1.msra.mxu0 0.0
      %4079 = vmatprep.subr.mxu0 0.0
      %4080 = vmatpush1.msra.mxu0 0.0
      %4081 = vmatprep.subr.mxu0 0.0
      %4082 = vmatpush1.msra.mxu0 0.0
      %4083 = vmatprep.subr.mxu0 0.0
      %4084 = vmatpush1.msra.mxu0 0.0
      %4085 = vmatprep.subr.mxu0 0.0
      %4086 = vmatpush1.msra.mxu0 0.0
      %4087 = vmatprep.subr.mxu0 0.0
      %4088 = vmatpush1.msra.mxu0 0.0
      %4089 = vmatprep.subr.mxu0 0.0
      %4090 = vmatpush1.msra.mxu0 0.0
      %4091 = vmatprep.subr.mxu0 0.0
      %4092 = vmatpush1.msra.mxu0 0.0
      %4093 = vmatprep.subr.mxu0 0.0
      %4094 = vmatpush1.msra.mxu0 0.0
      %4095 = vmatprep.subr.mxu0 0.0
      %4096 = vmatpush1.msra.mxu0 0.0
      %4097 = vmatprep.subr.mxu0 0.0
      %4098 = vmatpush1.msra.mxu0 0.0
      %4099 = vmatprep.subr.mxu0 0.0
      %4100 = vmatpush1.msra.mxu0 0.0
      %4101 = vmatprep.subr.mxu0 0.0
      %4102 = vmatpush1.msra.mxu0 0.0
      %4103 = vmatprep.subr.mxu0 0.0
      %4104 = vmatpush1.msra.mxu0 0.0
      %4105 = vmatprep.subr.mxu0 0.0
      %4106 = vmatpush1.msra.mxu0 0.0
      %4107 = vmatprep.mubr.f32.mxu0 0.0
      %4108 = vmatmul.mubr.f32.gmra.mrb[0].mxu0 %v3933
      %v4109 = vpop.f32.mrb[0].mxu0
      %v4110 = vadd.f32 0.0, %v4109
      %v4111 = vpop.f32.mrb[0].mxu0
      %4112 = vmatprep.mubr.f32.mxu0 0.0
      %4113 = vmatmul.mubr.f32.gmra.mrb[0].mxu0 %v3936
      %v4114 = vpop.f32.mrb[0].mxu0
      %v4115 = vadd.f32 0.0, %v4114
      %v4116 = vpop.f32.mrb[0].mxu0
      %4117 = vmatprep.mubr.f32.mxu0 0.0
      %4118 = vmatmul.mubr.f32.gmra.mrb[0].mxu0 %v3939
      %v4119 = vpop.f32.mrb[0].mxu0
      %v4120 = vadd.f32 0.0, %v4119
      %v4121 = vpop.f32.mrb[0].mxu0
      %4122 = vmatprep.mubr.f32.mxu0 0.0
      %4123 = vmatmul.mubr.f32.gmra.mrb[0].mxu0 %v3942
      %v4124 = vpop.f32.mrb[0].mxu0
      %v4125 = vadd.f32 0.0, %v4124
      %v4126 = vpop.f32.mrb[0].mxu0
      %4127 = vmatprep.mubr.f32.mxu0 0.0
      %4128 = vmatmul.mubr.f32.gmra.mrb[0].mxu0 %v3945
      %v4129 = vpop.f32.mrb[0].mxu0
      %v4130 = vadd.f32 0.0, %v4129
      %v4131 = vpop.f32.mrb[0].mxu0
      %4132 = vmatprep.mubr.f32.mxu0 0.0
      %4133 = vmatmul.mubr.f32.gmra.mrb[0].mxu0 %v3948
      %v4134 = vpop.f32.mrb[0].mxu0
      %v4135 = vadd.f32 0.0, %v4134
      %v4136 = vpop.f32.mrb[0].mxu0
      %4137 = vmatprep.mubr.f32.mxu0 0.0
      %4138 = vmatmul.mubr.f32.gmra.mrb[0].mxu0 %v3951
      %v4139 = vpop.f32.mrb[0].mxu0
      %v4140 = vadd.f32 0.0, %v4139
      %v4141 = vpop.f32.mrb[0].mxu0
      %4142 = vmatprep.mubr.f32.mxu0 0.0
      %4143 = vmatmul.mubr.f32.gmra.mrb[0].mxu0 %v3954
      %v4144 = vpop.f32.mrb[0].mxu0
      %v4145 = vadd.f32 0.0, %v4144
      %v4146 = vpop.f32.mrb[0].mxu0
      %4147 = vmatprep.mubr.f32.mxu0 0.0
      %4148 = vmatmul.mubr.f32.gmra.mrb[0].mxu0 %v3957
      %v4149 = vpop.f32.mrb[0].mxu0
      %v4150 = vadd.f32 0.0, %v4149
      %v4151 = vpop.f32.mrb[0].mxu0
      %4152 = vmatprep.mubr.f32.mxu0 0.0
      %4153 = vmatmul.mubr.f32.gmra.mrb[0].mxu0 %v3960
      %v4154 = vpop.f32.mrb[0].mxu0
      %v4155 = vadd.f32 0.0, %v4154
      %v4156 = vpop.f32.mrb[0].mxu0
      %4157 = vmatprep.mubr.f32.mxu0 0.0
      %4158 = vmatmul.mubr.f32.gmra.mrb[0].mxu0 %v3963
      %v4159 = vpop.f32.mrb[0].mxu0
      %v4160 = vadd.f32 0.0, %v4159
      %v4161 = vpop.f32.mrb[0].mxu0
      %4162 = vmatprep.mubr.f32.mxu0 0.0
      %4163 = vmatmul.mubr.f32.gmra.mrb[0].mxu0 %v3966
      %v4164 = vpop.f32.mrb[0].mxu0
      %v4165 = vadd.f32 0.0, %v4164
      %v4166 = vpop.f32.mrb[0].mxu0
      %4167 = vmatprep.mubr.f32.mxu0 0.0
      %4168 = vmatmul.mubr.f32.gmra.mrb[0].mxu0 %v3969
      %v4169 = vpop.f32.mrb[0].mxu0
      %v4170 = vadd.f32 0.0, %v4169
      %v4171 = vpop.f32.mrb[0].mxu0
      %4172 = vmatprep.mubr.f32.mxu0 0.0
      %4173 = vmatmul.mubr.f32.gmra.mrb[0].mxu0 %v3972
      %v4174 = vpop.f32.mrb[0].mxu0
      %v4175 = vadd.f32 0.0, %v4174
      %v4176 = vpop.f32.mrb[0].mxu0
      %4177 = vmatprep.mubr.f32.mxu0 0.0
      %4178 = vmatmul.mubr.f32.gmra.mrb[0].mxu0 %v3975
      %v4179 = vpop.f32.mrb[0].mxu0
      %v4180 = vadd.f32 0.0, %v4179
      %v4181 = vpop.f32.mrb[0].mxu0
      %4182 = vmatprep.mubr.f32.mxu0 0.0
      %4183 = vmatmul.mubr.f32.gmra.mrb[0].mxu0 %v3978
      %v4184 = vpop.f32.mrb[0].mxu0
      %v4185 = vadd.f32 0.0, %v4184
      %v4186 = vpop.f32.mrb[0].mxu0
      %4187 = vmatprep.mubr.f32.mxu0 0.0
      %4188 = vmatmul.mubr.f32.gmra.mrb[0].mxu0 %v3981
      %v4189 = vpop.f32.mrb[0].mxu0
      %v4190 = vadd.f32 0.0, %v4189
      %v4191 = vpop.f32.mrb[0].mxu0
      %4192 = vmatprep.mubr.f32.mxu0 0.0
      %4193 = vmatmul.mubr.f32.gmra.mrb[0].mxu0 %v3984
      %v4194 = vpop.f32.mrb[0].mxu0
      %v4195 = vadd.f32 0.0, %v4194
      %v4196 = vpop.f32.mrb[0].mxu0
      %4197 = vmatprep.mubr.f32.mxu0 0.0
      %4198 = vmatmul.mubr.f32.gmra.mrb[0].mxu0 %v3987
      %v4199 = vpop.f32.mrb[0].mxu0
      %v4200 = vadd.f32 0.0, %v4199
      %v4201 = vpop.f32.mrb[0].mxu0
      %4202 = vmatprep.mubr.f32.mxu0 0.0
      %4203 = vmatmul.mubr.f32.gmra.mrb[0].mxu0 %v3990
      %v4204 = vpop.f32.mrb[0].mxu0
      %v4205 = vadd.f32 0.0, %v4204
      %v4206 = vpop.f32.mrb[0].mxu0
      %4207 = vmatprep.mubr.f32.mxu0 0.0
      %4208 = vmatmul.mubr.f32.gmra.mrb[0].mxu0 %v3993
      %v4209 = vpop.f32.mrb[0].mxu0
      %v4210 = vadd.f32 0.0, %v4209
      %v4211 = vpop.f32.mrb[0].mxu0
      %4212 = vmatprep.mubr.f32.mxu0 0.0
      %4213 = vmatmul.mubr.f32.gmra.mrb[0].mxu0 %v3996
      %v4214 = vpop.f32.mrb[0].mxu0
      %v4215 = vadd.f32 0.0, %v4214
      %v4216 = vpop.f32.mrb[0].mxu0
      %4217 = vmatprep.mubr.f32.mxu0 0.0
      %4218 = vmatmul.mubr.f32.gmra.mrb[0].mxu0 %v3999
      %v4219 = vpop.f32.mrb[0].mxu0
      %v4220 = vadd.f32 0.0, %v4219
      %v4221 = vpop.f32.mrb[0].mxu0
      %4222 = vmatprep.mubr.f32.mxu0 0.0
      %4223 = vmatmul.mubr.f32.gmra.mrb[0].mxu0 %v4002
      %v4224 = vpop.f32.mrb[0].mxu0
      %v4225 = vadd.f32 0.0, %v4224
      %v4226 = vpop.f32.mrb[0].mxu0
      %4227 = vmatprep.mubr.f32.mxu0 0.0
      %4228 = vmatmul.mubr.f32.gmra.mrb[0].mxu0 %v4005
      %v4229 = vpop.f32.mrb[0].mxu0
      %v4230 = vadd.f32 0.0, %v4229
      %v4231 = vpop.f32.mrb[0].mxu0
      %4232 = vmatprep.mubr.f32.mxu0 0.0
      %4233 = vmatmul.mubr.f32.gmra.mrb[0].mxu0 %v4008
      %v4234 = vpop.f32.mrb[0].mxu0
      %v4235 = vadd.f32 0.0, %v4234
      %v4236 = vpop.f32.mrb[0].mxu0
      %4237 = vmatprep.mubr.f32.mxu0 0.0
      %4238 = vmatmul.mubr.f32.gmra.mrb[0].mxu0 %v4011
      %v4239 = vpop.f32.mrb[0].mxu0
      %v4240 = vadd.f32 0.0, %v4239
      %v4241 = vpop.f32.mrb[0].mxu0
      %4242 = vmatprep.mubr.f32.mxu0 0.0
      %4243 = vmatmul.mubr.f32.gmra.mrb[0].mxu0 %v4014
      %v4244 = vpop.f32.mrb[0].mxu0
      %v4245 = vadd.f32 0.0, %v4244
      %v4246 = vpop.f32.mrb[0].mxu0
      %4247 = vmatprep.mubr.f32.mxu0 0.0
      %4248 = vmatmul.mubr.f32.gmra.mrb[0].mxu0 %v4017
      %v4249 = vpop.f32.mrb[0].mxu0
      %v4250 = vadd.f32 0.0, %v4249
      %v4251 = vpop.f32.mrb[0].mxu0
      %4252 = vmatprep.mubr.f32.mxu0 0.0
      %4253 = vmatmul.mubr.f32.gmra.mrb[0].mxu0 %v4020
      %v4254 = vpop.f32.mrb[0].mxu0
      %v4255 = vadd.f32 0.0, %v4254
      %v4256 = vpop.f32.mrb[0].mxu0
      %4257 = vmatprep.mubr.f32.mxu0 0.0
      %4258 = vmatmul.mubr.f32.gmra.mrb[0].mxu0 %v4023
      %v4259 = vpop.f32.mrb[0].mxu0
      %v4260 = vadd.f32 0.0, %v4259
      %v4261 = vpop.f32.mrb[0].mxu0
      %4262 = vmatprep.mubr.f32.mxu0 0.0
      %4263 = vmatmul.mubr.f32.gmra.mrb[0].mxu0 %v4026
      %v4264 = vpop.f32.mrb[0].mxu0
      %v4265 = vadd.f32 0.0, %v4264
      %v4266 = vpop.f32.mrb[0].mxu0
      %4267 = vmatprep.mubr.f32.mxu0 0.0
      %4268 = vmatmul.mubr.f32.gmra.mrb[0].mxu0 %v4029
      %v4269 = vpop.f32.mrb[0].mxu0
      %v4270 = vadd.f32 0.0, %v4269
      %v4271 = vpop.f32.mrb[0].mxu0
      %4272 = vmatprep.mubr.f32.mxu0 0.0
      %4273 = vmatmul.mubr.f32.gmra.mrb[0].mxu0 %v4032
      %v4274 = vpop.f32.mrb[0].mxu0
      %v4275 = vadd.f32 0.0, %v4274
      %v4276 = vpop.f32.mrb[0].mxu0
      %4277 = vmatprep.mubr.f32.mxu0 0.0
      %4278 = vmatmul.mubr.f32.gmra.mrb[0].mxu0 %v4035
      %v4279 = vpop.f32.mrb[0].mxu0
      %v4280 = vadd.f32 0.0, %v4279
      %v4281 = vpop.f32.mrb[0].mxu0
      %4282 = vmatprep.mubr.f32.mxu0 0.0
      %4283 = vmatmul.mubr.f32.gmra.mrb[0].mxu0 %v4038
      %v4284 = vpop.f32.mrb[0].mxu0
      %v4285 = vadd.f32 0.0, %v4284
      %v4286 = vpop.f32.mrb[0].mxu0
      %4287 = vdwg.mxu0
      %v4288 = vadd.f32 %v3858, %v4110
      %v4289 = vadd.f32 %v3859, %v4115
      %v4290 = vadd.f32 %v3860, %v4120
      %v4291 = vadd.f32 %v3861, %v4125
      %v4292 = vadd.f32 %v3862, %v4130
      %v4293 = vadd.f32 %v3863, %v4135
      %v4294 = vadd.f32 %v3864, %v4140
      %v4295 = vadd.f32 %v3865, %v4145
      %v4296 = vadd.f32 %v3866, %v4150
      %v4297 = vadd.f32 %v3867, %v4155
      %v4298 = vadd.f32 %v3868, %v4160
      %v4299 = vadd.f32 %v3869, %v4165
      %v4300 = vadd.f32 %v3870, %v4170
      %v4301 = vadd.f32 %v3871, %v4175
      %v4302 = vadd.f32 %v3872, %v4180
      %v4303 = vadd.f32 %v3873, %v4185
      %v4304 = vadd.f32 %v3874, %v4190
      %v4305 = vadd.f32 %v3875, %v4195
      %v4306 = vadd.f32 %v3876, %v4200
      %v4307 = vadd.f32 %v3877, %v4205
      %v4308 = vadd.f32 %v3878, %v4210
      %v4309 = vadd.f32 %v3879, %v4215
      %v4310 = vadd.f32 %v3880, %v4220
      %v4311 = vadd.f32 %v3881, %v4225
      %v4312 = vadd.f32 %v3882, %v4230
      %v4313 = vadd.f32 %v3883, %v4235
      %v4314 = vadd.f32 %v3884, %v4240
      %v4315 = vadd.f32 %v3885, %v4245
      %v4316 = vadd.f32 %v3886, %v4250
      %v4317 = vadd.f32 %v3887, %v4255
      %v4318 = vadd.f32 %v3888, %v4260
      %v4319 = vadd.f32 %v3889, %v4265
      %v4320 = vadd.f32 %v3890, %v4270
      %v4321 = vadd.f32 %v3891, %v4275
      %v4322 = vadd.f32 %v3892, %v4280
      %v4323 = vadd.f32 %v3893, %v4285
      %v4324 = vld [vmem:[#allocation2 + $0x26] sm:$0xff]
      %v4325 = vld [vmem:[#allocation2 + $0x2e] sm:$0xff]
      %v4326 = vld [vmem:[#allocation2 + $0x36] sm:$0xff]
      %v4327 = vld [vmem:[#allocation2 + $0x3e] sm:$0xff]
      %v4328 = vld [vmem:[#allocation2 + $0x46] sm:$0xff]
      %v4329 = vld [vmem:[#allocation2 + $0x4e] sm:$0xff]
      %v4330 = vld [vmem:[#allocation2 + $0x56] sm:$0xff]
      %v4331 = vld [vmem:[#allocation2 + $0x5e] sm:$0xff]
      %v4332 = vld [vmem:[#allocation2 + $0x66] sm:$0xff]
      %v4333 = vld [vmem:[#allocation2 + $0x6e] sm:$0xff]
      %v4334 = vld [vmem:[#allocation2 + $0x76] sm:$0xff]
      %v4335 = vld [vmem:[#allocation2 + $0x7e] sm:$0xff]
      %v4336 = vld [vmem:[#allocation2 + $0x86] sm:$0xff]
      %v4337 = vld [vmem:[#allocation2 + $0x8e] sm:$0xff]
      %v4338 = vld [vmem:[#allocation2 + $0x96] sm:$0xff]
      %v4339 = vld [vmem:[#allocation2 + $0x9e] sm:$0xff]
      %v4340 = vld [vmem:[#allocation2 + $0xa6] sm:$0xff]
      %v4341 = vld [vmem:[#allocation2 + $0xae] sm:$0xff]
      %v4342 = vld [vmem:[#allocation2 + $0xb6] sm:$0xff]
      %v4343 = vld [vmem:[#allocation2 + $0xbe] sm:$0xff]
      %v4344 = vld [vmem:[#allocation2 + $0xc6] sm:$0xff]
      %v4345 = vld [vmem:[#allocation2 + $0xce] sm:$0xff]
      %v4346 = vld [vmem:[#allocation2 + $0xd6] sm:$0xff]
      %v4347 = vld [vmem:[#allocation2 + $0xde] sm:$0xff]
      %v4348 = vld [vmem:[#allocation2 + $0xe6] sm:$0xff]
      %v4349 = vld [vmem:[#allocation2 + $0xee] sm:$0xff]
      %v4350 = vld [vmem:[#allocation2 + $0xf6] sm:$0xff]
      %v4351 = vld [vmem:[#allocation2 + $0xfe] sm:$0xff]
      %v4352 = vld [vmem:[#allocation2 + $0x106] sm:$0xff]
      %v4353 = vld [vmem:[#allocation2 + $0x10e] sm:$0xff]
      %v4354 = vld [vmem:[#allocation2 + $0x116] sm:$0xff]
      %v4355 = vld [vmem:[#allocation2 + $0x11e] sm:$0xff]
      %v4356 = vld [vmem:[#allocation2 + $0x126] sm:$0xff]
      %v4357 = vld [vmem:[#allocation2 + $0x12e] sm:$0xff]
      %v4358 = vld [vmem:[#allocation2 + $0x136] sm:$0xff]
      %v4359 = vld [vmem:[#allocation2 + $0x13e] sm:$0xff]
      %s4360 = scalar_lea.vmem %s4, 32
      %v4361 = vld [vmem:[%s4360] sm:$0xf]
      %v4363 = vsel %vm337, %v4324, 0
      %v4366 = vsel %vm337, %v4325, 0
      %v4369 = vsel %vm337, %v4326, 0
      %v4372 = vsel %vm337, %v4327, 0
      %v4375 = vsel %vm337, %v4328, 0
      %v4378 = vsel %vm337, %v4329, 0
      %v4381 = vsel %vm337, %v4330, 0
      %v4384 = vsel %vm337, %v4331, 0
      %v4387 = vsel %vm337, %v4332, 0
      %v4390 = vsel %vm337, %v4333, 0
      %v4393 = vsel %vm337, %v4334, 0
      %v4396 = vsel %vm337, %v4335, 0
      %v4399 = vsel %vm337, %v4336, 0
      %v4402 = vsel %vm337, %v4337, 0
      %v4405 = vsel %vm337, %v4338, 0
      %v4408 = vsel %vm337, %v4339, 0
      %v4411 = vsel %vm337, %v4340, 0
      %v4414 = vsel %vm337, %v4341, 0
      %v4417 = vsel %vm337, %v4342, 0
      %v4420 = vsel %vm337, %v4343, 0
      %v4423 = vsel %vm337, %v4344, 0
      %v4426 = vsel %vm337, %v4345, 0
      %v4429 = vsel %vm337, %v4346, 0
      %v4432 = vsel %vm337, %v4347, 0
      %v4435 = vsel %vm337, %v4348, 0
      %v4438 = vsel %vm337, %v4349, 0
      %v4441 = vsel %vm337, %v4350, 0
      %v4444 = vsel %vm337, %v4351, 0
      %v4447 = vsel %vm337, %v4352, 0
      %v4450 = vsel %vm337, %v4353, 0
      %v4453 = vsel %vm337, %v4354, 0
      %v4456 = vsel %vm337, %v4355, 0
      %v4459 = vsel %vm337, %v4356, 0
      %v4462 = vsel %vm337, %v4357, 0
      %v4465 = vsel %vm337, %v4358, 0
      %v4468 = vsel %vm337, %v4359, 0
      %v4471 = vsel %vm1139, %v4361, 0
      %4473 = vmatprep.subr.mxu0 0.0
      %4474 = vmatpush1.msra.mxu0 %v4471
      %4475 = vmatprep.subr.mxu0 0.0
      %4476 = vmatpush1.msra.mxu0 0.0
      %4477 = vmatprep.subr.mxu0 0.0
      %4478 = vmatpush1.msra.mxu0 0.0
      %4479 = vmatprep.subr.mxu0 0.0
      %4480 = vmatpush1.msra.mxu0 0.0
      %4481 = vmatprep.subr.mxu0 0.0
      %4482 = vmatpush1.msra.mxu0 0.0
      %4483 = vmatprep.subr.mxu0 0.0
      %4484 = vmatpush1.msra.mxu0 0.0
      %4485 = vmatprep.subr.mxu0 0.0
      %4486 = vmatpush1.msra.mxu0 0.0
      %4487 = vmatprep.subr.mxu0 0.0
      %4488 = vmatpush1.msra.mxu0 0.0
      %4489 = vmatprep.subr.mxu0 0.0
      %4490 = vmatpush1.msra.mxu0 0.0
      %4491 = vmatprep.subr.mxu0 0.0
      %4492 = vmatpush1.msra.mxu0 0.0
      %4493 = vmatprep.subr.mxu0 0.0
      %4494 = vmatpush1.msra.mxu0 0.0
      %4495 = vmatprep.subr.mxu0 0.0
      %4496 = vmatpush1.msra.mxu0 0.0
      %4497 = vmatprep.subr.mxu0 0.0
      %4498 = vmatpush1.msra.mxu0 0.0
      %4499 = vmatprep.subr.mxu0 0.0
      %4500 = vmatpush1.msra.mxu0 0.0
      %4501 = vmatprep.subr.mxu0 0.0
      %4502 = vmatpush1.msra.mxu0 0.0
      %4503 = vmatprep.subr.mxu0 0.0
      %4504 = vmatpush1.msra.mxu0 0.0
      %4505 = vmatprep.subr.mxu0 0.0
      %4506 = vmatpush1.msra.mxu0 0.0
      %4507 = vmatprep.subr.mxu0 0.0
      %4508 = vmatpush1.msra.mxu0 0.0
      %4509 = vmatprep.subr.mxu0 0.0
      %4510 = vmatpush1.msra.mxu0 0.0
      %4511 = vmatprep.subr.mxu0 0.0
      %4512 = vmatpush1.msra.mxu0 0.0
      %4513 = vmatprep.subr.mxu0 0.0
      %4514 = vmatpush1.msra.mxu0 0.0
      %4515 = vmatprep.subr.mxu0 0.0
      %4516 = vmatpush1.msra.mxu0 0.0
      %4517 = vmatprep.subr.mxu0 0.0
      %4518 = vmatpush1.msra.mxu0 0.0
      %4519 = vmatprep.subr.mxu0 0.0
      %4520 = vmatpush1.msra.mxu0 0.0
      %4521 = vmatprep.subr.mxu0 0.0
      %4522 = vmatpush1.msra.mxu0 0.0
      %4523 = vmatprep.subr.mxu0 0.0
      %4524 = vmatpush1.msra.mxu0 0.0
      %4525 = vmatprep.subr.mxu0 0.0
      %4526 = vmatpush1.msra.mxu0 0.0
      %4527 = vmatprep.subr.mxu0 0.0
      %4528 = vmatpush1.msra.mxu0 0.0
      %4529 = vmatprep.subr.mxu0 0.0
      %4530 = vmatpush1.msra.mxu0 0.0
      %4531 = vmatprep.subr.mxu0 0.0
      %4532 = vmatpush1.msra.mxu0 0.0
      %4533 = vmatprep.subr.mxu0 0.0
      %4534 = vmatpush1.msra.mxu0 0.0
      %4535 = vmatprep.subr.mxu0 0.0
      %4536 = vmatpush1.msra.mxu0 0.0
      %4537 = vmatprep.mubr.f32.mxu0 0.0
      %4538 = vmatmul.mubr.f32.gmra.mrb[0].mxu0 %v4363
      %v4539 = vpop.f32.mrb[0].mxu0
      %v4540 = vadd.f32 0.0, %v4539
      %v4541 = vpop.f32.mrb[0].mxu0
      %4542 = vmatprep.mubr.f32.mxu0 0.0
      %4543 = vmatmul.mubr.f32.gmra.mrb[0].mxu0 %v4366
      %v4544 = vpop.f32.mrb[0].mxu0
      %v4545 = vadd.f32 0.0, %v4544
      %v4546 = vpop.f32.mrb[0].mxu0
      %4547 = vmatprep.mubr.f32.mxu0 0.0
      %4548 = vmatmul.mubr.f32.gmra.mrb[0].mxu0 %v4369
      %v4549 = vpop.f32.mrb[0].mxu0
      %v4550 = vadd.f32 0.0, %v4549
      %v4551 = vpop.f32.mrb[0].mxu0
      %4552 = vmatprep.mubr.f32.mxu0 0.0
      %4553 = vmatmul.mubr.f32.gmra.mrb[0].mxu0 %v4372
      %v4554 = vpop.f32.mrb[0].mxu0
      %v4555 = vadd.f32 0.0, %v4554
      %v4556 = vpop.f32.mrb[0].mxu0
      %4557 = vmatprep.mubr.f32.mxu0 0.0
      %4558 = vmatmul.mubr.f32.gmra.mrb[0].mxu0 %v4375
      %v4559 = vpop.f32.mrb[0].mxu0
      %v4560 = vadd.f32 0.0, %v4559
      %v4561 = vpop.f32.mrb[0].mxu0
      %4562 = vmatprep.mubr.f32.mxu0 0.0
      %4563 = vmatmul.mubr.f32.gmra.mrb[0].mxu0 %v4378
      %v4564 = vpop.f32.mrb[0].mxu0
      %v4565 = vadd.f32 0.0, %v4564
      %v4566 = vpop.f32.mrb[0].mxu0
      %4567 = vmatprep.mubr.f32.mxu0 0.0
      %4568 = vmatmul.mubr.f32.gmra.mrb[0].mxu0 %v4381
      %v4569 = vpop.f32.mrb[0].mxu0
      %v4570 = vadd.f32 0.0, %v4569
      %v4571 = vpop.f32.mrb[0].mxu0
      %4572 = vmatprep.mubr.f32.mxu0 0.0
      %4573 = vmatmul.mubr.f32.gmra.mrb[0].mxu0 %v4384
      %v4574 = vpop.f32.mrb[0].mxu0
      %v4575 = vadd.f32 0.0, %v4574
      %v4576 = vpop.f32.mrb[0].mxu0
      %4577 = vmatprep.mubr.f32.mxu0 0.0
      %4578 = vmatmul.mubr.f32.gmra.mrb[0].mxu0 %v4387
      %v4579 = vpop.f32.mrb[0].mxu0
      %v4580 = vadd.f32 0.0, %v4579
      %v4581 = vpop.f32.mrb[0].mxu0
      %4582 = vmatprep.mubr.f32.mxu0 0.0
      %4583 = vmatmul.mubr.f32.gmra.mrb[0].mxu0 %v4390
      %v4584 = vpop.f32.mrb[0].mxu0
      %v4585 = vadd.f32 0.0, %v4584
      %v4586 = vpop.f32.mrb[0].mxu0
      %4587 = vmatprep.mubr.f32.mxu0 0.0
      %4588 = vmatmul.mubr.f32.gmra.mrb[0].mxu0 %v4393
      %v4589 = vpop.f32.mrb[0].mxu0
      %v4590 = vadd.f32 0.0, %v4589
      %v4591 = vpop.f32.mrb[0].mxu0
      %4592 = vmatprep.mubr.f32.mxu0 0.0
      %4593 = vmatmul.mubr.f32.gmra.mrb[0].mxu0 %v4396
      %v4594 = vpop.f32.mrb[0].mxu0
      %v4595 = vadd.f32 0.0, %v4594
      %v4596 = vpop.f32.mrb[0].mxu0
      %4597 = vmatprep.mubr.f32.mxu0 0.0
      %4598 = vmatmul.mubr.f32.gmra.mrb[0].mxu0 %v4399
      %v4599 = vpop.f32.mrb[0].mxu0
      %v4600 = vadd.f32 0.0, %v4599
      %v4601 = vpop.f32.mrb[0].mxu0
      %4602 = vmatprep.mubr.f32.mxu0 0.0
      %4603 = vmatmul.mubr.f32.gmra.mrb[0].mxu0 %v4402
      %v4604 = vpop.f32.mrb[0].mxu0
      %v4605 = vadd.f32 0.0, %v4604
      %v4606 = vpop.f32.mrb[0].mxu0
      %4607 = vmatprep.mubr.f32.mxu0 0.0
      %4608 = vmatmul.mubr.f32.gmra.mrb[0].mxu0 %v4405
      %v4609 = vpop.f32.mrb[0].mxu0
      %v4610 = vadd.f32 0.0, %v4609
      %v4611 = vpop.f32.mrb[0].mxu0
      %4612 = vmatprep.mubr.f32.mxu0 0.0
      %4613 = vmatmul.mubr.f32.gmra.mrb[0].mxu0 %v4408
      %v4614 = vpop.f32.mrb[0].mxu0
      %v4615 = vadd.f32 0.0, %v4614
      %v4616 = vpop.f32.mrb[0].mxu0
      %4617 = vmatprep.mubr.f32.mxu0 0.0
      %4618 = vmatmul.mubr.f32.gmra.mrb[0].mxu0 %v4411
      %v4619 = vpop.f32.mrb[0].mxu0
      %v4620 = vadd.f32 0.0, %v4619
      %v4621 = vpop.f32.mrb[0].mxu0
      %4622 = vmatprep.mubr.f32.mxu0 0.0
      %4623 = vmatmul.mubr.f32.gmra.mrb[0].mxu0 %v4414
      %v4624 = vpop.f32.mrb[0].mxu0
      %v4625 = vadd.f32 0.0, %v4624
      %v4626 = vpop.f32.mrb[0].mxu0
      %4627 = vmatprep.mubr.f32.mxu0 0.0
      %4628 = vmatmul.mubr.f32.gmra.mrb[0].mxu0 %v4417
      %v4629 = vpop.f32.mrb[0].mxu0
      %v4630 = vadd.f32 0.0, %v4629
      %v4631 = vpop.f32.mrb[0].mxu0
      %4632 = vmatprep.mubr.f32.mxu0 0.0
      %4633 = vmatmul.mubr.f32.gmra.mrb[0].mxu0 %v4420
      %v4634 = vpop.f32.mrb[0].mxu0
      %v4635 = vadd.f32 0.0, %v4634
      %v4636 = vpop.f32.mrb[0].mxu0
      %4637 = vmatprep.mubr.f32.mxu0 0.0
      %4638 = vmatmul.mubr.f32.gmra.mrb[0].mxu0 %v4423
      %v4639 = vpop.f32.mrb[0].mxu0
      %v4640 = vadd.f32 0.0, %v4639
      %v4641 = vpop.f32.mrb[0].mxu0
      %4642 = vmatprep.mubr.f32.mxu0 0.0
      %4643 = vmatmul.mubr.f32.gmra.mrb[0].mxu0 %v4426
      %v4644 = vpop.f32.mrb[0].mxu0
      %v4645 = vadd.f32 0.0, %v4644
      %v4646 = vpop.f32.mrb[0].mxu0
      %4647 = vmatprep.mubr.f32.mxu0 0.0
      %4648 = vmatmul.mubr.f32.gmra.mrb[0].mxu0 %v4429
      %v4649 = vpop.f32.mrb[0].mxu0
      %v4650 = vadd.f32 0.0, %v4649
      %v4651 = vpop.f32.mrb[0].mxu0
      %4652 = vmatprep.mubr.f32.mxu0 0.0
      %4653 = vmatmul.mubr.f32.gmra.mrb[0].mxu0 %v4432
      %v4654 = vpop.f32.mrb[0].mxu0
      %v4655 = vadd.f32 0.0, %v4654
      %v4656 = vpop.f32.mrb[0].mxu0
      %4657 = vmatprep.mubr.f32.mxu0 0.0
      %4658 = vmatmul.mubr.f32.gmra.mrb[0].mxu0 %v4435
      %v4659 = vpop.f32.mrb[0].mxu0
      %v4660 = vadd.f32 0.0, %v4659
      %v4661 = vpop.f32.mrb[0].mxu0
      %4662 = vmatprep.mubr.f32.mxu0 0.0
      %4663 = vmatmul.mubr.f32.gmra.mrb[0].mxu0 %v4438
      %v4664 = vpop.f32.mrb[0].mxu0
      %v4665 = vadd.f32 0.0, %v4664
      %v4666 = vpop.f32.mrb[0].mxu0
      %4667 = vmatprep.mubr.f32.mxu0 0.0
      %4668 = vmatmul.mubr.f32.gmra.mrb[0].mxu0 %v4441
      %v4669 = vpop.f32.mrb[0].mxu0
      %v4670 = vadd.f32 0.0, %v4669
      %v4671 = vpop.f32.mrb[0].mxu0
      %4672 = vmatprep.mubr.f32.mxu0 0.0
      %4673 = vmatmul.mubr.f32.gmra.mrb[0].mxu0 %v4444
      %v4674 = vpop.f32.mrb[0].mxu0
      %v4675 = vadd.f32 0.0, %v4674
      %v4676 = vpop.f32.mrb[0].mxu0
      %4677 = vmatprep.mubr.f32.mxu0 0.0
      %4678 = vmatmul.mubr.f32.gmra.mrb[0].mxu0 %v4447
      %v4679 = vpop.f32.mrb[0].mxu0
      %v4680 = vadd.f32 0.0, %v4679
      %v4681 = vpop.f32.mrb[0].mxu0
      %4682 = vmatprep.mubr.f32.mxu0 0.0
      %4683 = vmatmul.mubr.f32.gmra.mrb[0].mxu0 %v4450
      %v4684 = vpop.f32.mrb[0].mxu0
      %v4685 = vadd.f32 0.0, %v4684
      %v4686 = vpop.f32.mrb[0].mxu0
      %4687 = vmatprep.mubr.f32.mxu0 0.0
      %4688 = vmatmul.mubr.f32.gmra.mrb[0].mxu0 %v4453
      %v4689 = vpop.f32.mrb[0].mxu0
      %v4690 = vadd.f32 0.0, %v4689
      %v4691 = vpop.f32.mrb[0].mxu0
      %4692 = vmatprep.mubr.f32.mxu0 0.0
      %4693 = vmatmul.mubr.f32.gmra.mrb[0].mxu0 %v4456
      %v4694 = vpop.f32.mrb[0].mxu0
      %v4695 = vadd.f32 0.0, %v4694
      %v4696 = vpop.f32.mrb[0].mxu0
      %4697 = vmatprep.mubr.f32.mxu0 0.0
      %4698 = vmatmul.mubr.f32.gmra.mrb[0].mxu0 %v4459
      %v4699 = vpop.f32.mrb[0].mxu0
      %v4700 = vadd.f32 0.0, %v4699
      %v4701 = vpop.f32.mrb[0].mxu0
      %4702 = vmatprep.mubr.f32.mxu0 0.0
      %4703 = vmatmul.mubr.f32.gmra.mrb[0].mxu0 %v4462
      %v4704 = vpop.f32.mrb[0].mxu0
      %v4705 = vadd.f32 0.0, %v4704
      %v4706 = vpop.f32.mrb[0].mxu0
      %4707 = vmatprep.mubr.f32.mxu0 0.0
      %4708 = vmatmul.mubr.f32.gmra.mrb[0].mxu0 %v4465
      %v4709 = vpop.f32.mrb[0].mxu0
      %v4710 = vadd.f32 0.0, %v4709
      %v4711 = vpop.f32.mrb[0].mxu0
      %4712 = vmatprep.mubr.f32.mxu0 0.0
      %4713 = vmatmul.mubr.f32.gmra.mrb[0].mxu0 %v4468
      %v4714 = vpop.f32.mrb[0].mxu0
      %v4715 = vadd.f32 0.0, %v4714
      %v4716 = vpop.f32.mrb[0].mxu0
      %4717 = vdwg.mxu0
      %v4718 = vadd.f32 %v4288, %v4540
      %v4719 = vadd.f32 %v4289, %v4545
      %v4720 = vadd.f32 %v4290, %v4550
      %v4721 = vadd.f32 %v4291, %v4555
      %v4722 = vadd.f32 %v4292, %v4560
      %v4723 = vadd.f32 %v4293, %v4565
      %v4724 = vadd.f32 %v4294, %v4570
      %v4725 = vadd.f32 %v4295, %v4575
      %v4726 = vadd.f32 %v4296, %v4580
      %v4727 = vadd.f32 %v4297, %v4585
      %v4728 = vadd.f32 %v4298, %v4590
      %v4729 = vadd.f32 %v4299, %v4595
      %v4730 = vadd.f32 %v4300, %v4600
      %v4731 = vadd.f32 %v4301, %v4605
      %v4732 = vadd.f32 %v4302, %v4610
      %v4733 = vadd.f32 %v4303, %v4615
      %v4734 = vadd.f32 %v4304, %v4620
      %v4735 = vadd.f32 %v4305, %v4625
      %v4736 = vadd.f32 %v4306, %v4630
      %v4737 = vadd.f32 %v4307, %v4635
      %v4738 = vadd.f32 %v4308, %v4640
      %v4739 = vadd.f32 %v4309, %v4645
      %v4740 = vadd.f32 %v4310, %v4650
      %v4741 = vadd.f32 %v4311, %v4655
      %v4742 = vadd.f32 %v4312, %v4660
      %v4743 = vadd.f32 %v4313, %v4665
      %v4744 = vadd.f32 %v4314, %v4670
      %v4745 = vadd.f32 %v4315, %v4675
      %v4746 = vadd.f32 %v4316, %v4680
      %v4747 = vadd.f32 %v4317, %v4685
      %v4748 = vadd.f32 %v4318, %v4690
      %v4749 = vadd.f32 %v4319, %v4695
      %v4750 = vadd.f32 %v4320, %v4700
      %v4751 = vadd.f32 %v4321, %v4705
      %v4752 = vadd.f32 %v4322, %v4710
      %v4753 = vadd.f32 %v4323, %v4715
      %v4754 = vld [vmem:[%s5] sm:$0x1]
      %v4756 = vlaneseq
      %v4757 = vshrl.u32 %v4756, 7
      %v4758 = vsub.s32 0, %v4757
      %v4759 = vrot.slane %v4754, %v4758
      %v4761 = vadd.f32 %v4718, %v4759
      %v4762 = vadd.f32 %v4719, %v4759
      %4763 = vst.msk [vmem:[%s265] sm:$0xff] %vm337, %v4761
      %4764 = vst.msk [vmem:[%s265 + $0x8] sm:$0xff] %vm337, %v4762
      %v4765 = vadd.f32 %v4720, %v4759
      %v4766 = vadd.f32 %v4721, %v4759
      %v4767 = vadd.f32 %v4722, %v4759
      %vm4768 = vcmask 31746
      %4769 = vst.msk [vmem:[%s265 + $0xe] sm:$0xfc] %vm4768, %v4765
      %4770 = vst.msk [vmem:[%s265 + $0x16] sm:$0xff] %vm337, %v4766
      %vm4771 = vcmask 25600
      %4772 = vst.msk [vmem:[%s265 + $0x1e] sm:$0x3] %vm4771, %v4767
      %v4773 = vadd.f32 %v4723, %v4759
      %v4774 = vadd.f32 %v4724, %v4759
      %vm4775 = vcmask 31748
      %4776 = vst.msk [vmem:[%s265 + $0x1c] sm:$0xf0] %vm4775, %v4767
      %4777 = vst.msk [vmem:[%s265 + $0x24] sm:$0xff] %vm337, %v4773
      %vm4778 = vcmask 27648
      %4779 = vst.msk [vmem:[%s265 + $0x2c] sm:$0xf] %vm4778, %v4774
      %v4780 = vadd.f32 %v4725, %v4759
      %v4781 = vadd.f32 %v4726, %v4759
      %vm4782 = vcmask 31750
      %4783 = vst.msk [vmem:[%s265 + $0x2a] sm:$0xc0] %vm4782, %v4774
      %4784 = vst.msk [vmem:[%s265 + $0x32] sm:$0xff] %vm337, %v4780
      %4785 = vst.msk [vmem:[%s265 + $0x3a] sm:$0x3f] %vm922, %v4781
      %v4786 = vadd.f32 %v4727, %v4759
      %v4787 = vadd.f32 %v4728, %v4759
      %4788 = vst.msk [vmem:[%s265 + $0x40] sm:$0xff] %vm337, %v4786
      %4789 = vst.msk [vmem:[%s265 + $0x48] sm:$0xff] %vm337, %v4787
      %v4790 = vadd.f32 %v4729, %v4759
      %v4791 = vadd.f32 %v4730, %v4759
      %v4792 = vadd.f32 %v4731, %v4759
      %4793 = vst.msk [vmem:[%s265 + $0x4e] sm:$0xfc] %vm4768, %v4790
      %4794 = vst.msk [vmem:[%s265 + $0x56] sm:$0xff] %vm337, %v4791
      %4795 = vst.msk [vmem:[%s265 + $0x5e] sm:$0x3] %vm4771, %v4792
      %v4796 = vadd.f32 %v4732, %v4759
      %v4797 = vadd.f32 %v4733, %v4759
      %4798 = vst.msk [vmem:[%s265 + $0x5c] sm:$0xf0] %vm4775, %v4792
      %4799 = vst.msk [vmem:[%s265 + $0x64] sm:$0xff] %vm337, %v4796
      %4800 = vst.msk [vmem:[%s265 + $0x6c] sm:$0xf] %vm4778, %v4797
      %v4801 = vadd.f32 %v4734, %v4759
      %v4802 = vadd.f32 %v4735, %v4759
      %4803 = vst.msk [vmem:[%s265 + $0x6a] sm:$0xc0] %vm4782, %v4797
      %4804 = vst.msk [vmem:[%s265 + $0x72] sm:$0xff] %vm337, %v4801
      %4805 = vst.msk [vmem:[%s265 + $0x7a] sm:$0x3f] %vm922, %v4802
      %v4806 = vadd.f32 %v4736, %v4759
      %v4807 = vadd.f32 %v4737, %v4759
      %4808 = vst.msk [vmem:[%s265 + $0x80] sm:$0xff] %vm337, %v4806
      %4809 = vst.msk [vmem:[%s265 + $0x88] sm:$0xff] %vm337, %v4807
      %v4810 = vadd.f32 %v4738, %v4759
      %v4811 = vadd.f32 %v4739, %v4759
      %v4812 = vadd.f32 %v4740, %v4759
      %4813 = vst.msk [vmem:[%s265 + $0x8e] sm:$0xfc] %vm4768, %v4810
      %4814 = vst.msk [vmem:[%s265 + $0x96] sm:$0xff] %vm337, %v4811
      %4815 = vst.msk [vmem:[%s265 + $0x9e] sm:$0x3] %vm4771, %v4812
      %v4816 = vadd.f32 %v4741, %v4759
      %v4817 = vadd.f32 %v4742, %v4759
      %4818 = vst.msk [vmem:[%s265 + $0x9c] sm:$0xf0] %vm4775, %v4812
      %4819 = vst.msk [vmem:[%s265 + $0xa4] sm:$0xff] %vm337, %v4816
      %4820 = vst.msk [vmem:[%s265 + $0xac] sm:$0xf] %vm4778, %v4817
      %v4821 = vadd.f32 %v4743, %v4759
      %v4822 = vadd.f32 %v4744, %v4759
      %4823 = vst.msk [vmem:[%s265 + $0xaa] sm:$0xc0] %vm4782, %v4817
      %4824 = vst.msk [vmem:[%s265 + $0xb2] sm:$0xff] %vm337, %v4821
      %4825 = vst.msk [vmem:[%s265 + $0xba] sm:$0x3f] %vm922, %v4822
      %v4826 = vadd.f32 %v4745, %v4759
      %v4827 = vadd.f32 %v4746, %v4759
      %4828 = vst.msk [vmem:[%s265 + $0xc0] sm:$0xff] %vm337, %v4826
      %4829 = vst.msk [vmem:[%s265 + $0xc8] sm:$0xff] %vm337, %v4827
      %v4830 = vadd.f32 %v4747, %v4759
      %v4831 = vadd.f32 %v4748, %v4759
      %v4832 = vadd.f32 %v4749, %v4759
      %4833 = vst.msk [vmem:[%s265 + $0xce] sm:$0xfc] %vm4768, %v4830
      %4834 = vst.msk [vmem:[%s265 + $0xd6] sm:$0xff] %vm337, %v4831
      %4835 = vst.msk [vmem:[%s265 + $0xde] sm:$0x3] %vm4771, %v4832
      %v4836 = vadd.f32 %v4750, %v4759
      %v4837 = vadd.f32 %v4751, %v4759
      %4838 = vst.msk [vmem:[%s265 + $0xdc] sm:$0xf0] %vm4775, %v4832
      %4839 = vst.msk [vmem:[%s265 + $0xe4] sm:$0xff] %vm337, %v4836
      %4840 = vst.msk [vmem:[%s265 + $0xec] sm:$0xf] %vm4778, %v4837
      %v4841 = vadd.f32 %v4752, %v4759
      %v4842 = vadd.f32 %v4753, %v4759
      %4843 = vst.msk [vmem:[%s265 + $0xea] sm:$0xc0] %vm4782, %v4837
      %4844 = vst.msk [vmem:[%s265 + $0xf2] sm:$0xff] %vm337, %v4841
      %4845 = vst.msk [vmem:[%s265 + $0xfa] sm:$0x3f] %vm922, %v4842
      %p4846 = scmp.lt.s32.totalorder %s17, 1
      %s4847 = scalar_select %p4846, %s17, 1
      %s4848 = smul.addr %s4847, 32
      %s4849 = smul.addr %s4848, 8
      %s4850 = scalar_lea.vmem %s6, %s4849
      // Predicated region
      $region45: #{rtr_forward.3} parent=43 // pred_check
        %p4851 = pneg %p171
      $region46: #{rtr_forward.3} parent=43 // pred_check_branch
        %4853 = sbr.rel (%p4851) target = $region48
      $region47: #{rtr_forward.3} parent=43 // pred_region
        _
      $region48: #{rtr_forward.3} parent=43 // pred_fallthru
        _
    $region44: #{rtr_forward.3} parent=5 // pred_fallthru
      _
    %p4854 = scmp.le.s32.totalorder 2, %s12
    // Predicated region
    $region49: #{rtr_forward.3} parent=5 // pred_check
      %p4855 = pneg %p4854
    $region50: #{rtr_forward.3} parent=5 // pred_check_branch
      %4857 = sbr.rel (%p4855) target = $region52
    $region51: #{rtr_forward.3} parent=5 // pred_region
      %s4858 = ssub.s32 %s12, 2
      // Predicated region
      $region53: #{rtr_forward.3} parent=51 // pred_check
        %p4859 = pneg %p177
      $region54: #{rtr_forward.3} parent=51 // pred_check_branch
        %4861 = sbr.rel (%p4859) target = $region56
      $region55: #{rtr_forward.3} parent=51 // pred_region
        %p4862 = scmp.lt.s32.totalorder %s18, 1
        %s4863 = scalar_select %p4862, %s18, 1
        %s4864 = smul.addr %s4863, 32
        %s4865 = smul.addr %s4864, 8
        %s4866 = scalar_lea.vmem %s6, %s4865
      $region56: #{rtr_forward.3} parent=51 // pred_fallthru
        _
    $region52: #{rtr_forward.3} parent=5 // pred_fallthru
      _
  $region6: #{rtr_forward.3} parent=0 // loop_footer
    %s16 = sadd.s32 1, %s12
  $region7: #{rtr_forward.3} parent=0 // loop_footer_branch
    %11 = sbr.rel target = $region3
  $region8: #{rtr_forward.3} parent=0 // loop_exit
    _

// kernel: rtr_forward.2
$region0: #{rtr_forward.2}
  #allocation0 [shape = 'u32[]', space=smem, size = 0x4, offset = 0x4, fixed_abs, tag = 'smem constant byte address 0x4 - core index']
  #allocation1 [shape = 'u32[144,128]{1,0:T(1,128)}', space=vmem, size = 0x12000, scoped, tag = 'internal scratch']
  #allocation2 [shape = 'f32[342,4]{1,0:T(8,128)}', space=vmem, size = 0x2b000, scoped, tag = 'scratch operand']
  %s0 = inlined_call_operand.vmem [shape: f32[2,256,4], index: 0, kind: input, shape index: {}]
  %s1 = inlined_call_operand.vmem [shape: f32[4,4], index: 1, kind: input, shape index: {}]
  %s2 = inlined_call_operand.vmem [shape: f32[1,4], index: 2, kind: input, shape index: {}]
  %s3 = inlined_call_operand.vmem [shape: f32[1,4], index: 3, kind: input, shape index: {}]
  %s4 = inlined_call_operand.vmem [shape: f32[3,3,4,4], index: 4, kind: input, shape index: {}]
  %s5 = inlined_call_operand.vmem [shape: f32[1,4], index: 5, kind: input, shape index: {}]
  %s6 = inlined_call_operand.vmem [shape: f32[2,256,4], index: 6, kind: output, shape index: {}]
  %s7 = sld [smem:[#allocation0]]
  $region57: #{rtr_forward.2} parent=0
    _
  %s9 = ssub.s32 1, %s7
  %s10 = scalar_select 0, %s9, %s7
  loop: start=0, step=1, limit=4
  $region2: #{rtr_forward.2} parent=0 // loop_pre_header
    _
  $region3: #{rtr_forward.2} parent=0 // loop_header
    %s12 = sphi 0, %s16
    %p13 = scmp.ge.s32.totalorder %s12, 4
    %s22 = sphi 0, %s24
    %s25 = sphi 0, %s22
    %s26 = sphi 0, %s25
    %s42 = sphi 0, %s26
    %s46 = sphi 0, %s46
    %s48 = sphi 0, %s46
    %s49 = sphi 0, %s48
    %s63 = sphi 0, %s49
    %s67 = sphi 0, %s67
    %s69 = sphi 0, %s67
    %s70 = sphi 0, %s69
    %s84 = sphi 0, %s70
    %s88 = sphi 0, %s88
    %s90 = sphi 0, %s88
    %s91 = sphi 0, %s90
    %s105 = sphi 0, %s91
    %s109 = sphi 0, %s109
    %s111 = sphi 0, %s109
    %s112 = sphi 0, %s111
    %s126 = sphi 0, %s112
    %s130 = sphi 0, %s130
    %s132 = sphi 0, %s130
    %s133 = sphi 0, %s132
    %s147 = sphi 0, %s133
    %s153 = sphi 0, %s155
    %s156 = sphi 0, %s153
    %s157 = sphi 0, %s156
    %s173 = sphi 0, %s157
  $region4: #{rtr_forward.2} parent=0 // loop_header_branch
    %15 = sbr.rel (%p13) target = $region8
  $region5: #{rtr_forward.2} parent=0 // loop_body
    %s17 = ssub.s32 %s12, 1
    %s18 = ssub.s32 %s12, 2
    %s19 = sadd.s32 %s12, 1
    %s20 = ssub.s32 %s12, %s19
    %p21 = scmp.eq.s32.totalorder %s20, 0
    %s23 = sadd.s32 %s22, 1
    %s24 = scalar_select %p21, %s22, %s23
    %p27 = pneg %p21
    %p28 = scmp.eq.s32.totalorder %s12, 1
    %p29 = por %p27, %p28
    %p30 = scmp.ne.s32.totalorder %s22, %s25
    %p31 = scmp.eq.s32.totalorder %s12, 0
    %p32 = por %p30, %p31
    %p33 = scmp.ne.s32.totalorder %s22, %s25
    %p34 = scmp.eq.s32.totalorder %s17, 1
    %p35 = por %p33, %p34
    %p36 = scmp.ne.s32.totalorder %s25, %s26
    %p37 = scmp.eq.s32.totalorder %s17, 0
    %p38 = por %p36, %p37
    %p39 = scmp.ne.s32.totalorder %s25, %s26
    %p40 = scmp.eq.s32.totalorder %s18, 1
    %p41 = por %p39, %p40
    %p43 = scmp.ne.s32.totalorder %s26, %s42
    %p44 = scmp.eq.s32.totalorder %s18, 0
    %p45 = por %p43, %p44
    %s47 = sadd.s32 %s46, 1
    %p50 = scmp.eq.s32.totalorder %s12, 1
    %p51 = scmp.ne.s32.totalorder %s46, %s48
    %p52 = scmp.eq.s32.totalorder %s12, 0
    %p53 = por %p51, %p52
    %p54 = scmp.ne.s32.totalorder %s46, %s48
    %p55 = scmp.eq.s32.totalorder %s17, 1
    %p56 = por %p54, %p55
    %p57 = scmp.ne.s32.totalorder %s48, %s49
    %p58 = scmp.eq.s32.totalorder %s17, 0
    %p59 = por %p57, %p58
    %p60 = scmp.ne.s32.totalorder %s48, %s49
    %p61 = scmp.eq.s32.totalorder %s18, 1
    %p62 = por %p60, %p61
    %p64 = scmp.ne.s32.totalorder %s49, %s63
    %p65 = scmp.eq.s32.totalorder %s18, 0
    %p66 = por %p64, %p65
    %s68 = sadd.s32 %s67, 1
    %p71 = scmp.eq.s32.totalorder %s12, 1
    %p72 = scmp.ne.s32.totalorder %s67, %s69
    %p73 = scmp.eq.s32.totalorder %s12, 0
    %p74 = por %p72, %p73
    %p75 = scmp.ne.s32.totalorder %s67, %s69
    %p76 = scmp.eq.s32.totalorder %s17, 1
    %p77 = por %p75, %p76
    %p78 = scmp.ne.s32.totalorder %s69, %s70
    %p79 = scmp.eq.s32.totalorder %s17, 0
    %p80 = por %p78, %p79
    %p81 = scmp.ne.s32.totalorder %s69, %s70
    %p82 = scmp.eq.s32.totalorder %s18, 1
    %p83 = por %p81, %p82
    %p85 = scmp.ne.s32.totalorder %s70, %s84
    %p86 = scmp.eq.s32.totalorder %s18, 0
    %p87 = por %p85, %p86
    %s89 = sadd.s32 %s88, 1
    %p92 = scmp.eq.s32.totalorder %s12, 1
    %p93 = scmp.ne.s32.totalorder %s88, %s90
    %p94 = scmp.eq.s32.totalorder %s12, 0
    %p95 = por %p93, %p94
    %p96 = scmp.ne.s32.totalorder %s88, %s90
    %p97 = scmp.eq.s32.totalorder %s17, 1
    %p98 = por %p96, %p97
    %p99 = scmp.ne.s32.totalorder %s90, %s91
    %p100 = scmp.eq.s32.totalorder %s17, 0
    %p101 = por %p99, %p100
    %p102 = scmp.ne.s32.totalorder %s90, %s91
    %p103 = scmp.eq.s32.totalorder %s18, 1
    %p104 = por %p102, %p103
    %p106 = scmp.ne.s32.totalorder %s91, %s105
    %p107 = scmp.eq.s32.totalorder %s18, 0
    %p108 = por %p106, %p107
    %s110 = sadd.s32 %s109, 1
    %p113 = scmp.eq.s32.totalorder %s12, 1
    %p114 = scmp.ne.s32.totalorder %s109, %s111
    %p115 = scmp.eq.s32.totalorder %s12, 0
    %p116 = por %p114, %p115
    %p117 = scmp.ne.s32.totalorder %s109, %s111
    %p118 = scmp.eq.s32.totalorder %s17, 1
    %p119 = por %p117, %p118
    %p120 = scmp.ne.s32.totalorder %s111, %s112
    %p121 = scmp.eq.s32.totalorder %s17, 0
    %p122 = por %p120, %p121
    %p123 = scmp.ne.s32.totalorder %s111, %s112
    %p124 = scmp.eq.s32.totalorder %s18, 1
    %p125 = por %p123, %p124
    %p127 = scmp.ne.s32.totalorder %s112, %s126
    %p128 = scmp.eq.s32.totalorder %s18, 0
    %p129 = por %p127, %p128
    %s131 = sadd.s32 %s130, 1
    %p134 = scmp.eq.s32.totalorder %s12, 1
    %p135 = scmp.ne.s32.totalorder %s130, %s132
    %p136 = scmp.eq.s32.totalorder %s12, 0
    %p137 = por %p135, %p136
    %p138 = scmp.ne.s32.totalorder %s130, %s132
    %p139 = scmp.eq.s32.totalorder %s17, 1
    %p140 = por %p138, %p139
    %p141 = scmp.ne.s32.totalorder %s132, %s133
    %p142 = scmp.eq.s32.totalorder %s17, 0
    %p143 = por %p141, %p142
    %p144 = scmp.ne.s32.totalorder %s132, %s133
    %p145 = scmp.eq.s32.totalorder %s18, 1
    %p146 = por %p144, %p145
    %p148 = scmp.ne.s32.totalorder %s133, %s147
    %p149 = scmp.eq.s32.totalorder %s18, 0
    %p150 = por %p148, %p149
    %s151 = ssub.s32 %s12, %s19
    %p152 = scmp.eq.s32.totalorder %s151, 0
    %s154 = sadd.s32 %s153, 1
    %s155 = scalar_select %p152, %s153, %s154
    %p158 = pneg %p152
    %p159 = scmp.eq.s32.totalorder %s12, 1
    %p160 = por %p158, %p159
    %p161 = scmp.ne.s32.totalorder %s153, %s156
    %p162 = scmp.eq.s32.totalorder %s12, 0
    %p163 = por %p161, %p162
    %p164 = scmp.ne.s32.totalorder %s153, %s156
    %p165 = scmp.eq.s32.totalorder %s17, 1
    %p166 = por %p164, %p165
    %p167 = scmp.ne.s32.totalorder %s156, %s157
    %p168 = scmp.eq.s32.totalorder %s17, 0
    %p169 = por %p167, %p168
    %p170 = scmp.ne.s32.totalorder %s156, %s157
    %p171 = scmp.eq.s32.totalorder %s18, 1
    %p172 = por %p170, %p171
    %p174 = scmp.ne.s32.totalorder %s157, %s173
    %p175 = scmp.eq.s32.totalorder %s18, 0
    %p176 = por %p174, %p175
    %p177 = scmp.le.s32.totalorder 1, %s12
    %p178 = scmp.lt.s32.totalorder %s12, 3
    %p179 = pnand %p177, %p178
    %p180 = pneg %p179
    // Predicated region
    $region9: #{rtr_forward.2} parent=5 // pred_check
      _
    $region10: #{rtr_forward.2} parent=5 // pred_check_branch
      %182 = sbr.rel (%p179) target = $region12
    $region11: #{rtr_forward.2} parent=5 // pred_region
      %s183 = ssub.s32 %s12, 1
      // Predicated region
      $region13: #{rtr_forward.2} parent=11 // pred_check
        %p184 = pneg %p59
      $region14: #{rtr_forward.2} parent=11 // pred_check_branch
        %186 = sbr.rel (%p184) target = $region16
      $region15: #{rtr_forward.2} parent=11 // pred_region
        _
      $region16: #{rtr_forward.2} parent=11 // pred_fallthru
        _
      // Predicated region
      $region17: #{rtr_forward.2} parent=11 // pred_check
        %p187 = pneg %p80
      $region18: #{rtr_forward.2} parent=11 // pred_check_branch
        %189 = sbr.rel (%p187) target = $region20
      $region19: #{rtr_forward.2} parent=11 // pred_region
        _
      $region20: #{rtr_forward.2} parent=11 // pred_fallthru
        _
      // Predicated region
      $region21: #{rtr_forward.2} parent=11 // pred_check
        %p190 = pneg %p101
      $region22: #{rtr_forward.2} parent=11 // pred_check_branch
        %192 = sbr.rel (%p190) target = $region24
      $region23: #{rtr_forward.2} parent=11 // pred_region
        _
      $region24: #{rtr_forward.2} parent=11 // pred_fallthru
        _
      // Predicated region
      $region25: #{rtr_forward.2} parent=11 // pred_check
        %p193 = pneg %p122
      $region26: #{rtr_forward.2} parent=11 // pred_check_branch
        %195 = sbr.rel (%p193) target = $region28
      $region27: #{rtr_forward.2} parent=11 // pred_region
        _
      $region28: #{rtr_forward.2} parent=11 // pred_fallthru
        _
      // Predicated region
      $region29: #{rtr_forward.2} parent=11 // pred_check
        %p196 = pneg %p143
      $region30: #{rtr_forward.2} parent=11 // pred_check_branch
        %198 = sbr.rel (%p196) target = $region32
      $region31: #{rtr_forward.2} parent=11 // pred_region
        _
      $region32: #{rtr_forward.2} parent=11 // pred_fallthru
        _
    $region12: #{rtr_forward.2} parent=5 // pred_fallthru
      _
    %p199 = scmp.lt.s32.totalorder %s12, 2
    // Predicated region
    $region33: #{rtr_forward.2} parent=5 // pred_check
      %p200 = pneg %p199
    $region34: #{rtr_forward.2} parent=5 // pred_check_branch
      %202 = sbr.rel (%p200) target = $region36
    $region35: #{rtr_forward.2} parent=5 // pred_region
      // Predicated region
      $region37: #{rtr_forward.2} parent=35 // pred_check
        %p203 = pneg %p32
      $region38: #{rtr_forward.2} parent=35 // pred_check_branch
        %205 = sbr.rel (%p203) target = $region40
      $region39: #{rtr_forward.2} parent=35 // pred_region
        %p206 = scmp.lt.s32.totalorder %s12, 1
        %s207 = scalar_select %p206, %s12, 1
        %s208 = smul.addr %s207, 32
        %s209 = smul.addr %s208, 8
        %s210 = scalar_lea.vmem %s0, %s209
      $region40: #{rtr_forward.2} parent=35 // pred_fallthru
        _
    $region36: #{rtr_forward.2} parent=5 // pred_fallthru
      _
    %p211 = scmp.le.s32.totalorder 1, %s12
    %p212 = scmp.lt.s32.totalorder %s12, 3
    %p213 = pnand %p211, %p212
    %p214 = pneg %p213
    // Predicated region
    $region41: #{rtr_forward.2} parent=5 // pred_check
      _
    $region42: #{rtr_forward.2} parent=5 // pred_check_branch
      %216 = sbr.rel (%p213) target = $region44
    $region43: #{rtr_forward.2} parent=5 // pred_region
      %s217 = ssub.s32 %s12, 1
      %p218 = scmp.lt.s32.totalorder %s17, 1
      %s219 = scalar_select %p218, %s17, 1
      %s220 = smul.addr %s219, 32
      %s221 = smul.addr %s220, 8
      %s222 = scalar_lea.vmem %s0, %s221
      %p223 = pneg %p38
      %p224 = pneg %p35
      %p225 = pneg %p59
      %p226 = pneg %p56
      %p227 = pneg %p80
      %p228 = pneg %p77
      %p229 = pneg %p101
      %p230 = pneg %p98
      %p231 = pneg %p122
      %p232 = pneg %p119
      %p233 = pneg %p143
      %p234 = pneg %p140
      %p235 = pneg %p169
      %p236 = pneg %p166
      %p237 = scmp.lt.s32.totalorder %s17, 1
      %s238 = scalar_select %p237, %s17, 1
      %s239 = smul.addr %s238, 32
      %s240 = smul.addr %s239, 8
      %s241 = scalar_lea.vmem %s6, %s240
      %p242 = scmp.lt.s32.totalorder %s17, 1
      %s243 = scalar_select %p242, %s17, 1
      %s244 = smul.addr %s243, 32
      %s245 = smul.addr %s244, 8
      %s246 = scalar_lea.vmem %s0, %s245
      %p247 = scmp.lt.s32.totalorder %s17, 1
      %s248 = scalar_select %p247, %s17, 1
      %s249 = smul.addr %s248, 32
      %s250 = smul.addr %s249, 8
      %s251 = scalar_lea.vmem %s6, %s250
      %v252 = vld [vmem:[%s246] sm:$0xff]
      %v253 = vld [vmem:[%s246 + $0x8] sm:$0xff]
      %v254 = vld [vmem:[%s246 + $0x10] sm:$0xff]
      %v255 = vld [vmem:[%s246 + $0x18] sm:$0xff]
      %v256 = vld [vmem:[%s246 + $0x20] sm:$0xff]
      %v257 = vld [vmem:[%s246 + $0x28] sm:$0xff]
      %v258 = vld [vmem:[%s246 + $0x30] sm:$0xff]
      %v259 = vld [vmem:[%s246 + $0x38] sm:$0xff]
      %v260 = vld [vmem:[%s246 + $0x40] sm:$0xff]
      %v261 = vld [vmem:[%s246 + $0x48] sm:$0xff]
      %v262 = vld [vmem:[%s246 + $0x50] sm:$0xff]
      %v263 = vld [vmem:[%s246 + $0x58] sm:$0xff]
      %v264 = vld [vmem:[%s246 + $0x60] sm:$0xff]
      %v265 = vld [vmem:[%s246 + $0x68] sm:$0xff]
      %v266 = vld [vmem:[%s246 + $0x70] sm:$0xff]
      %v267 = vld [vmem:[%s246 + $0x78] sm:$0xff]
      %v268 = vld [vmem:[%s246 + $0x80] sm:$0xff]
      %v269 = vld [vmem:[%s246 + $0x88] sm:$0xff]
      %v270 = vld [vmem:[%s246 + $0x90] sm:$0xff]
      %v271 = vld [vmem:[%s246 + $0x98] sm:$0xff]
      %v272 = vld [vmem:[%s246 + $0xa0] sm:$0xff]
      %v273 = vld [vmem:[%s246 + $0xa8] sm:$0xff]
      %v274 = vld [vmem:[%s246 + $0xb0] sm:$0xff]
      %v275 = vld [vmem:[%s246 + $0xb8] sm:$0xff]
      %v276 = vld [vmem:[%s246 + $0xc0] sm:$0xff]
      %v277 = vld [vmem:[%s246 + $0xc8] sm:$0xff]
      %v278 = vld [vmem:[%s246 + $0xd0] sm:$0xff]
      %v279 = vld [vmem:[%s246 + $0xd8] sm:$0xff]
      %v280 = vld [vmem:[%s246 + $0xe0] sm:$0xff]
      %v281 = vld [vmem:[%s246 + $0xe8] sm:$0xff]
      %v282 = vld [vmem:[%s246 + $0xf0] sm:$0xff]
      %v283 = vld [vmem:[%s246 + $0xf8] sm:$0xff]
      %vm284 = vcmask 31744
      %v285 = vsel %vm284, %v252, 0.0
      %v286 = vsel %vm284, %v253, 0.0
      %v287 = vadd.f32 %v285, %v286
      %v288 = vsel %vm284, %v254, 0.0
      %v289 = vadd.f32 %v287, %v288
      %v290 = vsel %vm284, %v255, 0.0
      %v291 = vadd.f32 %v289, %v290
      %v292 = vsel %vm284, %v256, 0.0
      %v293 = vadd.f32 %v291, %v292
      %v294 = vsel %vm284, %v257, 0.0
      %v295 = vadd.f32 %v293, %v294
      %v296 = vsel %vm284, %v258, 0.0
      %v297 = vadd.f32 %v295, %v296
      %v298 = vsel %vm284, %v259, 0.0
      %v299 = vadd.f32 %v297, %v298
      %v300 = vsel %vm284, %v260, 0.0
      %v301 = vadd.f32 %v299, %v300
      %v302 = vsel %vm284, %v261, 0.0
      %v303 = vadd.f32 %v301, %v302
      %v304 = vsel %vm284, %v262, 0.0
      %v305 = vadd.f32 %v303, %v304
      %v306 = vsel %vm284, %v263, 0.0
      %v307 = vadd.f32 %v305, %v306
      %v308 = vsel %vm284, %v264, 0.0
      %v309 = vadd.f32 %v307, %v308
      %v310 = vsel %vm284, %v265, 0.0
      %v311 = vadd.f32 %v309, %v310
      %v312 = vsel %vm284, %v266, 0.0
      %v313 = vadd.f32 %v311, %v312
      %v314 = vsel %vm284, %v267, 0.0
      %v315 = vadd.f32 %v313, %v314
      %v316 = vsel %vm284, %v268, 0.0
      %v317 = vadd.f32 %v315, %v316
      %v318 = vsel %vm284, %v269, 0.0
      %v319 = vadd.f32 %v317, %v318
      %v320 = vsel %vm284, %v270, 0.0
      %v321 = vadd.f32 %v319, %v320
      %v322 = vsel %vm284, %v271, 0.0
      %v323 = vadd.f32 %v321, %v322
      %v324 = vsel %vm284, %v272, 0.0
      %v325 = vadd.f32 %v323, %v324
      %v326 = vsel %vm284, %v273, 0.0
      %v327 = vadd.f32 %v325, %v326
      %v328 = vsel %vm284, %v274, 0.0
      %v329 = vadd.f32 %v327, %v328
      %v330 = vsel %vm284, %v275, 0.0
      %v331 = vadd.f32 %v329, %v330
      %v332 = vsel %vm284, %v276, 0.0
      %v333 = vadd.f32 %v331, %v332
      %v334 = vsel %vm284, %v277, 0.0
      %v335 = vadd.f32 %v333, %v334
      %v336 = vsel %vm284, %v278, 0.0
      %v337 = vadd.f32 %v335, %v336
      %v338 = vsel %vm284, %v279, 0.0
      %v339 = vadd.f32 %v337, %v338
      %v340 = vsel %vm284, %v280, 0.0
      %v341 = vadd.f32 %v339, %v340
      %v342 = vsel %vm284, %v281, 0.0
      %v343 = vadd.f32 %v341, %v342
      %v344 = vsel %vm284, %v282, 0.0
      %v345 = vadd.f32 %v343, %v344
      %v346 = vsel %vm284, %v283, 0.0
      %v347 = vadd.f32 %v345, %v346
      %v348 = vrot.slane %v347, 4
      %v349 = vadd.f32 %v347, %v348
      %v350 = vrot.slane %v349, 2
      %v351 = vadd.f32 %v349, %v350
      %v352 = vrot.slane %v351, 1
      %v353 = vadd.f32 %v351, %v352
      %v354 = vmul.f32 %v252, %v252
      %v355 = vmul.f32 %v253, %v253
      %v356 = vmul.f32 %v254, %v254
      %v357 = vmul.f32 %v255, %v255
      %v358 = vmul.f32 %v256, %v256
      %v359 = vmul.f32 %v257, %v257
      %v360 = vmul.f32 %v258, %v258
      %v361 = vmul.f32 %v259, %v259
      %v362 = vmul.f32 %v260, %v260
      %v363 = vmul.f32 %v261, %v261
      %v364 = vmul.f32 %v262, %v262
      %v365 = vmul.f32 %v263, %v263
      %v366 = vmul.f32 %v264, %v264
      %v367 = vmul.f32 %v265, %v265
      %v368 = vmul.f32 %v266, %v266
      %v369 = vmul.f32 %v267, %v267
      %v370 = vmul.f32 %v268, %v268
      %v371 = vmul.f32 %v269, %v269
      %v372 = vmul.f32 %v270, %v270
      %v373 = vmul.f32 %v271, %v271
      %v374 = vmul.f32 %v272, %v272
      %v375 = vmul.f32 %v273, %v273
      %v376 = vmul.f32 %v274, %v274
      %v377 = vmul.f32 %v275, %v275
      %v378 = vmul.f32 %v276, %v276
      %v379 = vmul.f32 %v277, %v277
      %v380 = vmul.f32 %v278, %v278
      %v381 = vmul.f32 %v279, %v279
      %v382 = vmul.f32 %v280, %v280
      %v383 = vmul.f32 %v281, %v281
      %v384 = vmul.f32 %v282, %v282
      %v385 = vmul.f32 %v283, %v283
      %v386 = vsel %vm284, %v354, 0.0
      %v387 = vsel %vm284, %v355, 0.0
      %v388 = vadd.f32 %v386, %v387
      %v389 = vsel %vm284, %v356, 0.0
      %v390 = vadd.f32 %v388, %v389
      %v391 = vsel %vm284, %v357, 0.0
      %v392 = vadd.f32 %v390, %v391
      %v393 = vsel %vm284, %v358, 0.0
      %v394 = vadd.f32 %v392, %v393
      %v395 = vsel %vm284, %v359, 0.0
      %v396 = vadd.f32 %v394, %v395
      %v397 = vsel %vm284, %v360, 0.0
      %v398 = vadd.f32 %v396, %v397
      %v399 = vsel %vm284, %v361, 0.0
      %v400 = vadd.f32 %v398, %v399
      %v401 = vsel %vm284, %v362, 0.0
      %v402 = vadd.f32 %v400, %v401
      %v403 = vsel %vm284, %v363, 0.0
      %v404 = vadd.f32 %v402, %v403
      %v405 = vsel %vm284, %v364, 0.0
      %v406 = vadd.f32 %v404, %v405
      %v407 = vsel %vm284, %v365, 0.0
      %v408 = vadd.f32 %v406, %v407
      %v409 = vsel %vm284, %v366, 0.0
      %v410 = vadd.f32 %v408, %v409
      %v411 = vsel %vm284, %v367, 0.0
      %v412 = vadd.f32 %v410, %v411
      %v413 = vsel %vm284, %v368, 0.0
      %v414 = vadd.f32 %v412, %v413
      %v415 = vsel %vm284, %v369, 0.0
      %v416 = vadd.f32 %v414, %v415
      %v417 = vsel %vm284, %v370, 0.0
      %v418 = vadd.f32 %v416, %v417
      %v419 = vsel %vm284, %v371, 0.0
      %v420 = vadd.f32 %v418, %v419
      %v421 = vsel %vm284, %v372, 0.0
      %v422 = vadd.f32 %v420, %v421
      %v423 = vsel %vm284, %v373, 0.0
      %v424 = vadd.f32 %v422, %v423
      %v425 = vsel %vm284, %v374, 0.0
      %v426 = vadd.f32 %v424, %v425
      %v427 = vsel %vm284, %v375, 0.0
      %v428 = vadd.f32 %v426, %v427
      %v429 = vsel %vm284, %v376, 0.0
      %v430 = vadd.f32 %v428, %v429
      %v431 = vsel %vm284, %v377, 0.0
      %v432 = vadd.f32 %v430, %v431
      %v433 = vsel %vm284, %v378, 0.0
      %v434 = vadd.f32 %v432, %v433
      %v435 = vsel %vm284, %v379, 0.0
      %v436 = vadd.f32 %v434, %v435
      %v437 = vsel %vm284, %v380, 0.0
      %v438 = vadd.f32 %v436, %v437
      %v439 = vsel %vm284, %v381, 0.0
      %v440 = vadd.f32 %v438, %v439
      %v441 = vsel %vm284, %v382, 0.0
      %v442 = vadd.f32 %v440, %v441
      %v443 = vsel %vm284, %v383, 0.0
      %v444 = vadd.f32 %v442, %v443
      %v445 = vsel %vm284, %v384, 0.0
      %v446 = vadd.f32 %v444, %v445
      %v447 = vsel %vm284, %v385, 0.0
      %v448 = vadd.f32 %v446, %v447
      %v449 = vrot.slane %v448, 4
      %v450 = vadd.f32 %v448, %v449
      %v451 = vrot.slane %v450, 2
      %v452 = vadd.f32 %v450, %v451
      %v453 = vrot.slane %v452, 1
      %v454 = vadd.f32 %v452, %v453
      %v455 = vld [vmem:[%s1] sm:$0xf]
      %v457 = vsel %vm284, %v353, 0
      %vm459 = vcmask 1043456
      %v461 = vsel %vm459, %v455, 0
      %463 = vmatprep.subr.mxu0 0.0
      %464 = vmatpush1.msra.mxu0 %v461
      %465 = vmatprep.subr.mxu0 0.0
      %466 = vmatpush1.msra.mxu0 0.0
      %467 = vmatprep.subr.mxu0 0.0
      %468 = vmatpush1.msra.mxu0 0.0
      %469 = vmatprep.subr.mxu0 0.0
      %470 = vmatpush1.msra.mxu0 0.0
      %471 = vmatprep.subr.mxu0 0.0
      %472 = vmatpush1.msra.mxu0 0.0
      %473 = vmatprep.subr.mxu0 0.0
      %474 = vmatpush1.msra.mxu0 0.0
      %475 = vmatprep.subr.mxu0 0.0
      %476 = vmatpush1.msra.mxu0 0.0
      %477 = vmatprep.subr.mxu0 0.0
      %478 = vmatpush1.msra.mxu0 0.0
      %479 = vmatprep.subr.mxu0 0.0
      %480 = vmatpush1.msra.mxu0 0.0
      %481 = vmatprep.subr.mxu0 0.0
      %482 = vmatpush1.msra.mxu0 0.0
      %483 = vmatprep.subr.mxu0 0.0
      %484 = vmatpush1.msra.mxu0 0.0
      %485 = vmatprep.subr.mxu0 0.0
      %486 = vmatpush1.msra.mxu0 0.0
      %487 = vmatprep.subr.mxu0 0.0
      %488 = vmatpush1.msra.mxu0 0.0
      %489 = vmatprep.subr.mxu0 0.0
      %490 = vmatpush1.msra.mxu0 0.0
      %491 = vmatprep.subr.mxu0 0.0
      %492 = vmatpush1.msra.mxu0 0.0
      %493 = vmatprep.subr.mxu0 0.0
      %494 = vmatpush1.msra.mxu0 0.0
      %495 = vmatprep.subr.mxu0 0.0
      %496 = vmatpush1.msra.mxu0 0.0
      %497 = vmatprep.subr.mxu0 0.0
      %498 = vmatpush1.msra.mxu0 0.0
      %499 = vmatprep.subr.mxu0 0.0
      %500 = vmatpush1.msra.mxu0 0.0
      %501 = vmatprep.subr.mxu0 0.0
      %502 = vmatpush1.msra.mxu0 0.0
      %503 = vmatprep.subr.mxu0 0.0
      %504 = vmatpush1.msra.mxu0 0.0
      %505 = vmatprep.subr.mxu0 0.0
      %506 = vmatpush1.msra.mxu0 0.0
      %507 = vmatprep.subr.mxu0 0.0
      %508 = vmatpush1.msra.mxu0 0.0
      %509 = vmatprep.subr.mxu0 0.0
      %510 = vmatpush1.msra.mxu0 0.0
      %511 = vmatprep.subr.mxu0 0.0
      %512 = vmatpush1.msra.mxu0 0.0
      %513 = vmatprep.subr.mxu0 0.0
      %514 = vmatpush1.msra.mxu0 0.0
      %515 = vmatprep.subr.mxu0 0.0
      %516 = vmatpush1.msra.mxu0 0.0
      %517 = vmatprep.subr.mxu0 0.0
      %518 = vmatpush1.msra.mxu0 0.0
      %519 = vmatprep.subr.mxu0 0.0
      %520 = vmatpush1.msra.mxu0 0.0
      %521 = vmatprep.subr.mxu0 0.0
      %522 = vmatpush1.msra.mxu0 0.0
      %523 = vmatprep.subr.mxu0 0.0
      %524 = vmatpush1.msra.mxu0 0.0
      %525 = vmatprep.subr.mxu0 0.0
      %526 = vmatpush1.msra.mxu0 0.0
      %527 = vmatprep.mubr.f32.mxu0 0.0
      %528 = vmatmul.mubr.f32.gmra.mrb[0].mxu0 %v457
      %v529 = vpop.f32.mrb[0].mxu0
      %v530 = vadd.f32 0.0, %v529
      %v531 = vpop.f32.mrb[0].mxu0
      %532 = vdwg.mxu0
      %v534 = vsel %vm284, %v454, 0
      %536 = vmatprep.subr.mxu0 0.0
      %537 = vmatpush1.msra.mxu0 %v461
      %538 = vmatprep.subr.mxu0 0.0
      %539 = vmatpush1.msra.mxu0 0.0
      %540 = vmatprep.subr.mxu0 0.0
      %541 = vmatpush1.msra.mxu0 0.0
      %542 = vmatprep.subr.mxu0 0.0
      %543 = vmatpush1.msra.mxu0 0.0
      %544 = vmatprep.subr.mxu0 0.0
      %545 = vmatpush1.msra.mxu0 0.0
      %546 = vmatprep.subr.mxu0 0.0
      %547 = vmatpush1.msra.mxu0 0.0
      %548 = vmatprep.subr.mxu0 0.0
      %549 = vmatpush1.msra.mxu0 0.0
      %550 = vmatprep.subr.mxu0 0.0
      %551 = vmatpush1.msra.mxu0 0.0
      %552 = vmatprep.subr.mxu0 0.0
      %553 = vmatpush1.msra.mxu0 0.0
      %554 = vmatprep.subr.mxu0 0.0
      %555 = vmatpush1.msra.mxu0 0.0
      %556 = vmatprep.subr.mxu0 0.0
      %557 = vmatpush1.msra.mxu0 0.0
      %558 = vmatprep.subr.mxu0 0.0
      %559 = vmatpush1.msra.mxu0 0.0
      %560 = vmatprep.subr.mxu0 0.0
      %561 = vmatpush1.msra.mxu0 0.0
      %562 = vmatprep.subr.mxu0 0.0
      %563 = vmatpush1.msra.mxu0 0.0
      %564 = vmatprep.subr.mxu0 0.0
      %565 = vmatpush1.msra.mxu0 0.0
      %566 = vmatprep.subr.mxu0 0.0
      %567 = vmatpush1.msra.mxu0 0.0
      %568 = vmatprep.subr.mxu0 0.0
      %569 = vmatpush1.msra.mxu0 0.0
      %570 = vmatprep.subr.mxu0 0.0
      %571 = vmatpush1.msra.mxu0 0.0
      %572 = vmatprep.subr.mxu0 0.0
      %573 = vmatpush1.msra.mxu0 0.0
      %574 = vmatprep.subr.mxu0 0.0
      %575 = vmatpush1.msra.mxu0 0.0
      %576 = vmatprep.subr.mxu0 0.0
      %577 = vmatpush1.msra.mxu0 0.0
      %578 = vmatprep.subr.mxu0 0.0
      %579 = vmatpush1.msra.mxu0 0.0
      %580 = vmatprep.subr.mxu0 0.0
      %581 = vmatpush1.msra.mxu0 0.0
      %582 = vmatprep.subr.mxu0 0.0
      %583 = vmatpush1.msra.mxu0 0.0
      %584 = vmatprep.subr.mxu0 0.0
      %585 = vmatpush1.msra.mxu0 0.0
      %586 = vmatprep.subr.mxu0 0.0
      %587 = vmatpush1.msra.mxu0 0.0
      %588 = vmatprep.subr.mxu0 0.0
      %589 = vmatpush1.msra.mxu0 0.0
      %590 = vmatprep.subr.mxu0 0.0
      %591 = vmatpush1.msra.mxu0 0.0
      %592 = vmatprep.subr.mxu0 0.0
      %593 = vmatpush1.msra.mxu0 0.0
      %594 = vmatprep.subr.mxu0 0.0
      %595 = vmatpush1.msra.mxu0 0.0
      %596 = vmatprep.subr.mxu0 0.0
      %597 = vmatpush1.msra.mxu0 0.0
      %598 = vmatprep.subr.mxu0 0.0
      %599 = vmatpush1.msra.mxu0 0.0
      %600 = vmatprep.mubr.f32.mxu0 0.0
      %601 = vmatmul.mubr.f32.gmra.mrb[0].mxu0 %v534
      %v602 = vpop.f32.mrb[0].mxu0
      %v603 = vadd.f32 0.0, %v602
      %v604 = vpop.f32.mrb[0].mxu0
      %605 = vdwg.mxu0
      %v606 = vmul.f32 %v530, 0.001953125
      %v607 = vmul.f32 %v603, 0.001953125
      %v608 = vmul.f32 %v606, %v606
      %v609 = vsub.f32 %v607, %v608
      %v610 = vlaneseq
      %v611 = vshrl.u32 %v610, 7
      %v612 = vsub.s32 0, %v611
      %v613 = vrot.slane %v606, %v612
      %v614 = vsub.f32 %v252, %v613
      %v615 = vsub.f32 %v253, %v613
      %v616 = vsub.f32 %v254, %v613
      %v617 = vsub.f32 %v255, %v613
      %v618 = vsub.f32 %v256, %v613
      %v619 = vsub.f32 %v257, %v613
      %v620 = vsub.f32 %v258, %v613
      %v621 = vsub.f32 %v259, %v613
      %v622 = vsub.f32 %v260, %v613
      %v623 = vsub.f32 %v261, %v613
      %v624 = vsub.f32 %v262, %v613
      %v625 = vsub.f32 %v263, %v613
      %v626 = vsub.f32 %v264, %v613
      %v627 = vsub.f32 %v265, %v613
      %v628 = vsub.f32 %v266, %v613
      %v629 = vsub.f32 %v267, %v613
      %v630 = vsub.f32 %v268, %v613
      %v631 = vsub.f32 %v269, %v613
      %v632 = vsub.f32 %v270, %v613
      %v633 = vsub.f32 %v271, %v613
      %v634 = vsub.f32 %v272, %v613
      %v635 = vsub.f32 %v273, %v613
      %v636 = vsub.f32 %v274, %v613
      %v637 = vsub.f32 %v275, %v613
      %v638 = vsub.f32 %v276, %v613
      %v639 = vsub.f32 %v277, %v613
      %v640 = vsub.f32 %v278, %v613
      %v641 = vsub.f32 %v279, %v613
      %v642 = vsub.f32 %v280, %v613
      %v643 = vsub.f32 %v281, %v613
      %v644 = vsub.f32 %v282, %v613
      %v645 = vsub.f32 %v283, %v613
      %v646 = vadd.f32 %v609, 1e-05
      %v647 = vrsqrt.pop %v646
      %v648 = vlaneseq
      %v649 = vshrl.u32 %v648, 7
      %v650 = vsub.s32 0, %v649
      %v651 = vrot.slane %v647, %v650
      %v652 = vmul.f32 %v614, %v651
      %v653 = vmul.f32 %v615, %v651
      %v654 = vmul.f32 %v616, %v651
      %v655 = vmul.f32 %v617, %v651
      %v656 = vmul.f32 %v618, %v651
      %v657 = vmul.f32 %v619, %v651
      %v658 = vmul.f32 %v620, %v651
      %v659 = vmul.f32 %v621, %v651
      %v660 = vmul.f32 %v622, %v651
      %v661 = vmul.f32 %v623, %v651
      %v662 = vmul.f32 %v624, %v651
      %v663 = vmul.f32 %v625, %v651
      %v664 = vmul.f32 %v626, %v651
      %v665 = vmul.f32 %v627, %v651
      %v666 = vmul.f32 %v628, %v651
      %v667 = vmul.f32 %v629, %v651
      %v668 = vmul.f32 %v630, %v651
      %v669 = vmul.f32 %v631, %v651
      %v670 = vmul.f32 %v632, %v651
      %v671 = vmul.f32 %v633, %v651
      %v672 = vmul.f32 %v634, %v651
      %v673 = vmul.f32 %v635, %v651
      %v674 = vmul.f32 %v636, %v651
      %v675 = vmul.f32 %v637, %v651
      %v676 = vmul.f32 %v638, %v651
      %v677 = vmul.f32 %v639, %v651
      %v678 = vmul.f32 %v640, %v651
      %v679 = vmul.f32 %v641, %v651
      %v680 = vmul.f32 %v642, %v651
      %v681 = vmul.f32 %v643, %v651
      %v682 = vmul.f32 %v644, %v651
      %v683 = vmul.f32 %v645, %v651
      %v684 = vld [vmem:[%s2] sm:$0x1]
      %v686 = vlaneseq
      %v687 = vshrl.u32 %v686, 7
      %v688 = vsub.s32 0, %v687
      %v689 = vrot.slane %v684, %v688
      %v691 = vmul.f32 %v652, %v689
      %v692 = vmul.f32 %v653, %v689
      %v693 = vmul.f32 %v654, %v689
      %v694 = vmul.f32 %v655, %v689
      %v695 = vmul.f32 %v656, %v689
      %v696 = vmul.f32 %v657, %v689
      %v697 = vmul.f32 %v658, %v689
      %v698 = vmul.f32 %v659, %v689
      %v699 = vmul.f32 %v660, %v689
      %v700 = vmul.f32 %v661, %v689
      %v701 = vmul.f32 %v662, %v689
      %v702 = vmul.f32 %v663, %v689
      %v703 = vmul.f32 %v664, %v689
      %v704 = vmul.f32 %v665, %v689
      %v705 = vmul.f32 %v666, %v689
      %v706 = vmul.f32 %v667, %v689
      %v707 = vmul.f32 %v668, %v689
      %v708 = vmul.f32 %v669, %v689
      %v709 = vmul.f32 %v670, %v689
      %v710 = vmul.f32 %v671, %v689
      %v711 = vmul.f32 %v672, %v689
      %v712 = vmul.f32 %v673, %v689
      %v713 = vmul.f32 %v674, %v689
      %v714 = vmul.f32 %v675, %v689
      %v715 = vmul.f32 %v676, %v689
      %v716 = vmul.f32 %v677, %v689
      %v717 = vmul.f32 %v678, %v689
      %v718 = vmul.f32 %v679, %v689
      %v719 = vmul.f32 %v680, %v689
      %v720 = vmul.f32 %v681, %v689
      %v721 = vmul.f32 %v682, %v689
      %v722 = vmul.f32 %v683, %v689
      %v723 = vld [vmem:[%s3] sm:$0x1]
      %v725 = vlaneseq
      %v726 = vshrl.u32 %v725, 7
      %v727 = vsub.s32 0, %v726
      %v728 = vrot.slane %v723, %v727
      %v730 = vadd.f32 %v691, %v728
      %v731 = vadd.f32 %v692, %v728
      %v732 = vadd.f32 %v693, %v728
      %v733 = vadd.f32 %v694, %v728
      %v734 = vadd.f32 %v695, %v728
      %v735 = vadd.f32 %v696, %v728
      %v736 = vadd.f32 %v697, %v728
      %v737 = vadd.f32 %v698, %v728
      %v738 = vadd.f32 %v699, %v728
      %v739 = vadd.f32 %v700, %v728
      %v740 = vadd.f32 %v701, %v728
      %v741 = vadd.f32 %v702, %v728
      %v742 = vadd.f32 %v703, %v728
      %v743 = vadd.f32 %v704, %v728
      %v744 = vadd.f32 %v705, %v728
      %v745 = vadd.f32 %v706, %v728
      %v746 = vadd.f32 %v707, %v728
      %v747 = vadd.f32 %v708, %v728
      %v748 = vadd.f32 %v709, %v728
      %v749 = vadd.f32 %v710, %v728
      %v750 = vadd.f32 %v711, %v728
      %v751 = vadd.f32 %v712, %v728
      %v752 = vadd.f32 %v713, %v728
      %v753 = vadd.f32 %v714, %v728
      %v754 = vadd.f32 %v715, %v728
      %v755 = vadd.f32 %v716, %v728
      %v756 = vadd.f32 %v717, %v728
      %v757 = vadd.f32 %v718, %v728
      %v758 = vadd.f32 %v719, %v728
      %v759 = vadd.f32 %v720, %v728
      %v760 = vadd.f32 %v721, %v728
      %v761 = vadd.f32 %v722, %v728
      %v762 = vsub.f32 0.0, %v730
      %v763 = vsub.f32 0.0, %v731
      %v764 = vsub.f32 0.0, %v732
      %v765 = vsub.f32 0.0, %v733
      %v766 = vsub.f32 0.0, %v734
      %v767 = vsub.f32 0.0, %v735
      %v768 = vsub.f32 0.0, %v736
      %v769 = vsub.f32 0.0, %v737
      %v770 = vsub.f32 0.0, %v738
      %v771 = vsub.f32 0.0, %v739
      %v772 = vsub.f32 0.0, %v740
      %v773 = vsub.f32 0.0, %v741
      %v774 = vsub.f32 0.0, %v742
      %v775 = vsub.f32 0.0, %v743
      %v776 = vsub.f32 0.0, %v744
      %v777 = vsub.f32 0.0, %v745
      %v778 = vsub.f32 0.0, %v746
      %v779 = vsub.f32 0.0, %v747
      %v780 = vsub.f32 0.0, %v748
      %v781 = vsub.f32 0.0, %v749
      %v782 = vsub.f32 0.0, %v750
      %v783 = vsub.f32 0.0, %v751
      %v784 = vsub.f32 0.0, %v752
      %v785 = vsub.f32 0.0, %v753
      %v786 = vsub.f32 0.0, %v754
      %v787 = vsub.f32 0.0, %v755
      %v788 = vsub.f32 0.0, %v756
      %v789 = vsub.f32 0.0, %v757
      %v790 = vsub.f32 0.0, %v758
      %v791 = vsub.f32 0.0, %v759
      %v792 = vsub.f32 0.0, %v760
      %v793 = vsub.f32 0.0, %v761
      %v794 = vmul.f32 %v762, 1.442695
      %v795 = vpow.pop %v794
      %v796 = vmul.f32 %v763, 1.442695
      %v797 = vpow.pop %v796
      %v798 = vmul.f32 %v764, 1.442695
      %v799 = vpow.pop %v798
      %v800 = vmul.f32 %v765, 1.442695
      %v801 = vpow.pop %v800
      %v802 = vmul.f32 %v766, 1.442695
      %v803 = vpow.pop %v802
      %v804 = vmul.f32 %v767, 1.442695
      %v805 = vpow.pop %v804
      %v806 = vmul.f32 %v768, 1.442695
      %v807 = vpow.pop %v806
      %v808 = vmul.f32 %v769, 1.442695
      %v809 = vpow.pop %v808
      %v810 = vmul.f32 %v770, 1.442695
      %v811 = vpow.pop %v810
      %v812 = vmul.f32 %v771, 1.442695
      %v813 = vpow.pop %v812
      %v814 = vmul.f32 %v772, 1.442695
      %v815 = vpow.pop %v814
      %v816 = vmul.f32 %v773, 1.442695
      %v817 = vpow.pop %v816
      %v818 = vmul.f32 %v774, 1.442695
      %v819 = vpow.pop %v818
      %v820 = vmul.f32 %v775, 1.442695
      %v821 = vpow.pop %v820
      %v822 = vmul.f32 %v776, 1.442695
      %v823 = vpow.pop %v822
      %v824 = vmul.f32 %v777, 1.442695
      %v825 = vpow.pop %v824
      %v826 = vmul.f32 %v778, 1.442695
      %v827 = vpow.pop %v826
      %v828 = vmul.f32 %v779, 1.442695
      %v829 = vpow.pop %v828
      %v830 = vmul.f32 %v780, 1.442695
      %v831 = vpow.pop %v830
      %v832 = vmul.f32 %v781, 1.442695
      %v833 = vpow.pop %v832
      %v834 = vmul.f32 %v782, 1.442695
      %v835 = vpow.pop %v834
      %v836 = vmul.f32 %v783, 1.442695
      %v837 = vpow.pop %v836
      %v838 = vmul.f32 %v784, 1.442695
      %v839 = vpow.pop %v838
      %v840 = vmul.f32 %v785, 1.442695
      %v841 = vpow.pop %v840
      %v842 = vmul.f32 %v786, 1.442695
      %v843 = vpow.pop %v842
      %v844 = vmul.f32 %v787, 1.442695
      %v845 = vpow.pop %v844
      %v846 = vmul.f32 %v788, 1.442695
      %v847 = vpow.pop %v846
      %v848 = vmul.f32 %v789, 1.442695
      %v849 = vpow.pop %v848
      %v850 = vmul.f32 %v790, 1.442695
      %v851 = vpow.pop %v850
      %v852 = vmul.f32 %v791, 1.442695
      %v853 = vpow.pop %v852
      %v854 = vmul.f32 %v792, 1.442695
      %v855 = vpow.pop %v854
      %v856 = vmul.f32 %v793, 1.442695
      %v857 = vpow.pop %v856
      %v858 = vadd.f32 %v795, 1.0
      %v859 = vadd.f32 %v797, 1.0
      %v860 = vadd.f32 %v799, 1.0
      %v861 = vadd.f32 %v801, 1.0
      %v862 = vadd.f32 %v803, 1.0
      %v863 = vadd.f32 %v805, 1.0
      %v864 = vadd.f32 %v807, 1.0
      %v865 = vadd.f32 %v809, 1.0
      %v866 = vadd.f32 %v811, 1.0
      %v867 = vadd.f32 %v813, 1.0
      %v868 = vadd.f32 %v815, 1.0
      %v869 = vadd.f32 %v817, 1.0
      %v870 = vadd.f32 %v819, 1.0
      %v871 = vadd.f32 %v821, 1.0
      %v872 = vadd.f32 %v823, 1.0
      %v873 = vadd.f32 %v825, 1.0
      %v874 = vadd.f32 %v827, 1.0
      %v875 = vadd.f32 %v829, 1.0
      %v876 = vadd.f32 %v831, 1.0
      %v877 = vadd.f32 %v833, 1.0
      %v878 = vadd.f32 %v835, 1.0
      %v879 = vadd.f32 %v837, 1.0
      %v880 = vadd.f32 %v839, 1.0
      %v881 = vadd.f32 %v841, 1.0
      %v882 = vadd.f32 %v843, 1.0
      %v883 = vadd.f32 %v845, 1.0
      %v884 = vadd.f32 %v847, 1.0
      %v885 = vadd.f32 %v849, 1.0
      %v886 = vadd.f32 %v851, 1.0
      %v887 = vadd.f32 %v853, 1.0
      %v888 = vadd.f32 %v855, 1.0
      %v889 = vadd.f32 %v857, 1.0
      %v890 = vrcp.pop %v858
      %v891 = vmul.f32 1.0, %v890
      %v892 = vrcp.pop %v859
      %v893 = vmul.f32 1.0, %v892
      %v894 = vrcp.pop %v860
      %v895 = vmul.f32 1.0, %v894
      %v896 = vrcp.pop %v861
      %v897 = vmul.f32 1.0, %v896
      %v898 = vrcp.pop %v862
      %v899 = vmul.f32 1.0, %v898
      %v900 = vrcp.pop %v863
      %v901 = vmul.f32 1.0, %v900
      %v902 = vrcp.pop %v864
      %v903 = vmul.f32 1.0, %v902
      %v904 = vrcp.pop %v865
      %v905 = vmul.f32 1.0, %v904
      %v906 = vrcp.pop %v866
      %v907 = vmul.f32 1.0, %v906
      %v908 = vrcp.pop %v867
      %v909 = vmul.f32 1.0, %v908
      %v910 = vrcp.pop %v868
      %v911 = vmul.f32 1.0, %v910
      %v912 = vrcp.pop %v869
      %v913 = vmul.f32 1.0, %v912
      %v914 = vrcp.pop %v870
      %v915 = vmul.f32 1.0, %v914
      %v916 = vrcp.pop %v871
      %v917 = vmul.f32 1.0, %v916
      %v918 = vrcp.pop %v872
      %v919 = vmul.f32 1.0, %v918
      %v920 = vrcp.pop %v873
      %v921 = vmul.f32 1.0, %v920
      %v922 = vrcp.pop %v874
      %v923 = vmul.f32 1.0, %v922
      %v924 = vrcp.pop %v875
      %v925 = vmul.f32 1.0, %v924
      %v926 = vrcp.pop %v876
      %v927 = vmul.f32 1.0, %v926
      %v928 = vrcp.pop %v877
      %v929 = vmul.f32 1.0, %v928
      %v930 = vrcp.pop %v878
      %v931 = vmul.f32 1.0, %v930
      %v932 = vrcp.pop %v879
      %v933 = vmul.f32 1.0, %v932
      %v934 = vrcp.pop %v880
      %v935 = vmul.f32 1.0, %v934
      %v936 = vrcp.pop %v881
      %v937 = vmul.f32 1.0, %v936
      %v938 = vrcp.pop %v882
      %v939 = vmul.f32 1.0, %v938
      %v940 = vrcp.pop %v883
      %v941 = vmul.f32 1.0, %v940
      %v942 = vrcp.pop %v884
      %v943 = vmul.f32 1.0, %v942
      %v944 = vrcp.pop %v885
      %v945 = vmul.f32 1.0, %v944
      %v946 = vrcp.pop %v886
      %v947 = vmul.f32 1.0, %v946
      %v948 = vrcp.pop %v887
      %v949 = vmul.f32 1.0, %v948
      %v950 = vrcp.pop %v888
      %v951 = vmul.f32 1.0, %v950
      %v952 = vrcp.pop %v889
      %v953 = vmul.f32 1.0, %v952
      %v954 = vmul.f32 %v730, %v891
      %v955 = vmul.f32 %v731, %v893
      %v956 = vmul.f32 %v732, %v895
      %v957 = vmul.f32 %v733, %v897
      %v958 = vmul.f32 %v734, %v899
      %v959 = vmul.f32 %v735, %v901
      %v960 = vmul.f32 %v736, %v903
      %v961 = vmul.f32 %v737, %v905
      %v962 = vmul.f32 %v738, %v907
      %v963 = vmul.f32 %v739, %v909
      %v964 = vmul.f32 %v740, %v911
      %v965 = vmul.f32 %v741, %v913
      %v966 = vmul.f32 %v742, %v915
      %v967 = vmul.f32 %v743, %v917
      %v968 = vmul.f32 %v744, %v919
      %v969 = vmul.f32 %v745, %v921
      %v970 = vmul.f32 %v746, %v923
      %v971 = vmul.f32 %v747, %v925
      %v972 = vmul.f32 %v748, %v927
      %v973 = vmul.f32 %v749, %v929
      %v974 = vmul.f32 %v750, %v931
      %v975 = vmul.f32 %v751, %v933
      %v976 = vmul.f32 %v752, %v935
      %v977 = vmul.f32 %v753, %v937
      %v978 = vmul.f32 %v754, %v939
      %v979 = vmul.f32 %v755, %v941
      %v980 = vmul.f32 %v756, %v943
      %v981 = vmul.f32 %v757, %v945
      %v982 = vmul.f32 %v758, %v947
      %v983 = vmul.f32 %v759, %v949
      %v984 = vmul.f32 %v760, %v951
      %v985 = vmul.f32 %v761, %v953
      %986 = vst.msk [vmem:[#allocation2] sm:$0xff] %vm284, 0.0
      %987 = vst.msk [vmem:[#allocation2 + $0x8] sm:$0xff] %vm284, 0.0
      %988 = vst.msk [vmem:[#allocation2 + $0x10] sm:$0xff] %vm284, 0.0
      %989 = vst.msk [vmem:[#allocation2 + $0x18] sm:$0xff] %vm284, 0.0
      %990 = vst.msk [vmem:[#allocation2 + $0x20] sm:$0xff] %vm284, 0.0
      %991 = vst.msk [vmem:[#allocation2 + $0x28] sm:$0xff] %vm284, 0.0
      %992 = vst.msk [vmem:[#allocation2 + $0x30] sm:$0xff] %vm284, 0.0
      %993 = vst.msk [vmem:[#allocation2 + $0x38] sm:$0xff] %vm284, 0.0
      %994 = vst.msk [vmem:[#allocation2 + $0x40] sm:$0xff] %vm284, 0.0
      %995 = vst.msk [vmem:[#allocation2 + $0x48] sm:$0xff] %vm284, 0.0
      %996 = vst.msk [vmem:[#allocation2 + $0x50] sm:$0xff] %vm284, 0.0
      %997 = vst.msk [vmem:[#allocation2 + $0x58] sm:$0xff] %vm284, 0.0
      %998 = vst.msk [vmem:[#allocation2 + $0x60] sm:$0xff] %vm284, 0.0
      %999 = vst.msk [vmem:[#allocation2 + $0x68] sm:$0xff] %vm284, 0.0
      %1000 = vst.msk [vmem:[#allocation2 + $0x70] sm:$0xff] %vm284, 0.0
      %1001 = vst.msk [vmem:[#allocation2 + $0x78] sm:$0xff] %vm284, 0.0
      %1002 = vst.msk [vmem:[#allocation2 + $0x80] sm:$0xff] %vm284, 0.0
      %1003 = vst.msk [vmem:[#allocation2 + $0x88] sm:$0xff] %vm284, 0.0
      %1004 = vst.msk [vmem:[#allocation2 + $0x90] sm:$0xff] %vm284, 0.0
      %1005 = vst.msk [vmem:[#allocation2 + $0x98] sm:$0xff] %vm284, 0.0
      %1006 = vst.msk [vmem:[#allocation2 + $0xa0] sm:$0xff] %vm284, 0.0
      %1007 = vst.msk [vmem:[#allocation2 + $0xa8] sm:$0xff] %vm284, 0.0
      %1008 = vst.msk [vmem:[#allocation2 + $0xb0] sm:$0xff] %vm284, 0.0
      %1009 = vst.msk [vmem:[#allocation2 + $0xb8] sm:$0xff] %vm284, 0.0
      %1010 = vst.msk [vmem:[#allocation2 + $0xc0] sm:$0xff] %vm284, 0.0
      %1011 = vst.msk [vmem:[#allocation2 + $0xc8] sm:$0xff] %vm284, 0.0
      %1012 = vst.msk [vmem:[#allocation2 + $0xd0] sm:$0xff] %vm284, 0.0
      %1013 = vst.msk [vmem:[#allocation2 + $0xd8] sm:$0xff] %vm284, 0.0
      %1014 = vst.msk [vmem:[#allocation2 + $0xe0] sm:$0xff] %vm284, 0.0
      %1015 = vst.msk [vmem:[#allocation2 + $0xe8] sm:$0xff] %vm284, 0.0
      %1016 = vst.msk [vmem:[#allocation2 + $0xf0] sm:$0xff] %vm284, 0.0
      %1017 = vst.msk [vmem:[#allocation2 + $0xf8] sm:$0xff] %vm284, 0.0
      %1018 = vst.msk [vmem:[#allocation2 + $0x100] sm:$0xff] %vm284, 0.0
      %1019 = vst.msk [vmem:[#allocation2 + $0x108] sm:$0xff] %vm284, 0.0
      %1020 = vst.msk [vmem:[#allocation2 + $0x110] sm:$0xff] %vm284, 0.0
      %1021 = vst.msk [vmem:[#allocation2 + $0x118] sm:$0xff] %vm284, 0.0
      %1022 = vst.msk [vmem:[#allocation2 + $0x120] sm:$0xff] %vm284, 0.0
      %1023 = vst.msk [vmem:[#allocation2 + $0x128] sm:$0xff] %vm284, 0.0
      %1024 = vst.msk [vmem:[#allocation2 + $0x130] sm:$0xff] %vm284, 0.0
      %1025 = vst.msk [vmem:[#allocation2 + $0x138] sm:$0xff] %vm284, 0.0
      %1026 = vst.msk [vmem:[#allocation2 + $0x140] sm:$0xff] %vm284, 0.0
      %1027 = vst.msk [vmem:[#allocation2 + $0x148] sm:$0xff] %vm284, 0.0
      %vm1028 = vcmask 29696
      %1029 = vst.msk [vmem:[#allocation2 + $0x150] sm:$0x3f] %vm1028, 0.0
      %1030 = vst.msk [vmem:[#allocation2 + $0x13] sm:$0xff] %vm284, %v954
      %1031 = vst.msk [vmem:[#allocation2 + $0x1b] sm:$0xff] %vm284, %v955
      %1032 = vst.msk [vmem:[#allocation2 + $0x25] sm:$0xff] %vm284, %v956
      %1033 = vst.msk [vmem:[#allocation2 + $0x2d] sm:$0xff] %vm284, %v957
      %1034 = vst.msk [vmem:[#allocation2 + $0x37] sm:$0xff] %vm284, %v958
      %1035 = vst.msk [vmem:[#allocation2 + $0x3f] sm:$0xff] %vm284, %v959
      %1036 = vst.msk [vmem:[#allocation2 + $0x49] sm:$0xff] %vm284, %v960
      %1037 = vst.msk [vmem:[#allocation2 + $0x51] sm:$0xff] %vm284, %v961
      %1038 = vst.msk [vmem:[#allocation2 + $0x5b] sm:$0xff] %vm284, %v962
      %1039 = vst.msk [vmem:[#allocation2 + $0x63] sm:$0xff] %vm284, %v963
      %1040 = vst.msk [vmem:[#allocation2 + $0x6d] sm:$0xff] %vm284, %v964
      %1041 = vst.msk [vmem:[#allocation2 + $0x75] sm:$0xff] %vm284, %v965
      %1042 = vst.msk [vmem:[#allocation2 + $0x7f] sm:$0xff] %vm284, %v966
      %1043 = vst.msk [vmem:[#allocation2 + $0x87] sm:$0xff] %vm284, %v967
      %1044 = vst.msk [vmem:[#allocation2 + $0x91] sm:$0xff] %vm284, %v968
      %1045 = vst.msk [vmem:[#allocation2 + $0x99] sm:$0xff] %vm284, %v969
      %1046 = vst.msk [vmem:[#allocation2 + $0xa3] sm:$0xff] %vm284, %v970
      %1047 = vst.msk [vmem:[#allocation2 + $0xab] sm:$0xff] %vm284, %v971
      %1048 = vst.msk [vmem:[#allocation2 + $0xb5] sm:$0xff] %vm284, %v972
      %1049 = vst.msk [vmem:[#allocation2 + $0xbd] sm:$0xff] %vm284, %v973
      %1050 = vst.msk [vmem:[#allocation2 + $0xc7] sm:$0xff] %vm284, %v974
      %1051 = vst.msk [vmem:[#allocation2 + $0xcf] sm:$0xff] %vm284, %v975
      %1052 = vst.msk [vmem:[#allocation2 + $0xd9] sm:$0xff] %vm284, %v976
      %1053 = vst.msk [vmem:[#allocation2 + $0xe1] sm:$0xff] %vm284, %v977
      %1054 = vst.msk [vmem:[#allocation2 + $0xeb] sm:$0xff] %vm284, %v978
      %1055 = vst.msk [vmem:[#allocation2 + $0xf3] sm:$0xff] %vm284, %v979
      %1056 = vst.msk [vmem:[#allocation2 + $0xfd] sm:$0xff] %vm284, %v980
      %1057 = vst.msk [vmem:[#allocation2 + $0x105] sm:$0xff] %vm284, %v981
      %1058 = vst.msk [vmem:[#allocation2 + $0x10f] sm:$0xff] %vm284, %v982
      %1059 = vst.msk [vmem:[#allocation2 + $0x117] sm:$0xff] %vm284, %v983
      %1060 = vst.msk [vmem:[#allocation2 + $0x121] sm:$0xff] %vm284, %v984
      %1061 = vst.msk [vmem:[#allocation2 + $0x129] sm:$0xff] %vm284, %v985
      %v1062 = vld [vmem:[#allocation2] sm:$0xff]
      %v1063 = vld [vmem:[#allocation2 + $0x8] sm:$0xff]
      %v1064 = vld [vmem:[#allocation2 + $0x10] sm:$0xff]
      %v1065 = vld [vmem:[#allocation2 + $0x18] sm:$0xff]
      %v1066 = vld [vmem:[#allocation2 + $0x20] sm:$0xff]
      %v1067 = vld [vmem:[#allocation2 + $0x28] sm:$0xff]
      %v1068 = vld [vmem:[#allocation2 + $0x30] sm:$0xff]
      %v1069 = vld [vmem:[#allocation2 + $0x38] sm:$0xff]
      %v1070 = vld [vmem:[#allocation2 + $0x40] sm:$0xff]
      %v1071 = vld [vmem:[#allocation2 + $0x48] sm:$0xff]
      %v1072 = vld [vmem:[#allocation2 + $0x50] sm:$0xff]
      %v1073 = vld [vmem:[#allocation2 + $0x58] sm:$0xff]
      %v1074 = vld [vmem:[#allocation2 + $0x60] sm:$0xff]
      %v1075 = vld [vmem:[#allocation2 + $0x68] sm:$0xff]
      %v1076 = vld [vmem:[#allocation2 + $0x70] sm:$0xff]
      %v1077 = vld [vmem:[#allocation2 + $0x78] sm:$0xff]
      %v1078 = vld [vmem:[#allocation2 + $0x80] sm:$0xff]
      %v1079 = vld [vmem:[#allocation2 + $0x88] sm:$0xff]
      %v1080 = vld [vmem:[#allocation2 + $0x90] sm:$0xff]
      %v1081 = vld [vmem:[#allocation2 + $0x98] sm:$0xff]
      %v1082 = vld [vmem:[#allocation2 + $0xa0] sm:$0xff]
      %v1083 = vld [vmem:[#allocation2 + $0xa8] sm:$0xff]
      %v1084 = vld [vmem:[#allocation2 + $0xb0] sm:$0xff]
      %v1085 = vld [vmem:[#allocation2 + $0xb8] sm:$0xff]
      %v1086 = vld [vmem:[#allocation2 + $0xc0] sm:$0xff]
      %v1087 = vld [vmem:[#allocation2 + $0xc8] sm:$0xff]
      %v1088 = vld [vmem:[#allocation2 + $0xd0] sm:$0xff]
      %v1089 = vld [vmem:[#allocation2 + $0xd8] sm:$0xff]
      %v1090 = vld [vmem:[#allocation2 + $0xe0] sm:$0xff]
      %v1091 = vld [vmem:[#allocation2 + $0xe8] sm:$0xff]
      %v1092 = vld [vmem:[#allocation2 + $0xf0] sm:$0xff]
      %v1093 = vld [vmem:[#allocation2 + $0xf8] sm:$0xff]
      %v1094 = vld [vmem:[#allocation2 + $0x100] sm:$0xff]
      %v1095 = vld [vmem:[#allocation2 + $0x108] sm:$0xff]
      %v1096 = vld [vmem:[#allocation2 + $0x110] sm:$0xff]
      %v1097 = vld [vmem:[#allocation2 + $0x118] sm:$0xff]
      %v1098 = vld [vmem:[%s4] sm:$0xf]
      %v1099 = vld [vmem:[#allocation2 + $0x1] sm:$0xff]
      %v1100 = vld [vmem:[#allocation2 + $0x9] sm:$0xff]
      %v1101 = vld [vmem:[#allocation2 + $0x11] sm:$0xff]
      %v1102 = vld [vmem:[#allocation2 + $0x19] sm:$0xff]
      %v1103 = vld [vmem:[#allocation2 + $0x21] sm:$0xff]
      %v1104 = vld [vmem:[#allocation2 + $0x29] sm:$0xff]
      %v1105 = vld [vmem:[#allocation2 + $0x31] sm:$0xff]
      %v1106 = vld [vmem:[#allocation2 + $0x39] sm:$0xff]
      %v1107 = vld [vmem:[#allocation2 + $0x41] sm:$0xff]
      %v1108 = vld [vmem:[#allocation2 + $0x49] sm:$0xff]
      %v1109 = vld [vmem:[#allocation2 + $0x51] sm:$0xff]
      %v1110 = vld [vmem:[#allocation2 + $0x59] sm:$0xff]
      %v1111 = vld [vmem:[#allocation2 + $0x61] sm:$0xff]
      %v1112 = vld [vmem:[#allocation2 + $0x69] sm:$0xff]
      %v1113 = vld [vmem:[#allocation2 + $0x71] sm:$0xff]
      %v1114 = vld [vmem:[#allocation2 + $0x79] sm:$0xff]
      %v1115 = vld [vmem:[#allocation2 + $0x81] sm:$0xff]
      %v1116 = vld [vmem:[#allocation2 + $0x89] sm:$0xff]
      %v1117 = vld [vmem:[#allocation2 + $0x91] sm:$0xff]
      %v1118 = vld [vmem:[#allocation2 + $0x99] sm:$0xff]
      %v1119 = vld [vmem:[#allocation2 + $0xa1] sm:$0xff]
      %v1120 = vld [vmem:[#allocation2 + $0xa9] sm:$0xff]
      %v1121 = vld [vmem:[#allocation2 + $0xb1] sm:$0xff]
      %v1122 = vld [vmem:[#allocation2 + $0xb9] sm:$0xff]
      %v1123 = vld [vmem:[#allocation2 + $0xc1] sm:$0xff]
      %v1124 = vld [vmem:[#allocation2 + $0xc9] sm:$0xff]
      %v1125 = vld [vmem:[#allocation2 + $0xd1] sm:$0xff]
      %v1126 = vld [vmem:[#allocation2 + $0xd9] sm:$0xff]
      %v1127 = vld [vmem:[#allocation2 + $0xe1] sm:$0xff]
      %v1128 = vld [vmem:[#allocation2 + $0xe9] sm:$0xff]
      %v1129 = vld [vmem:[#allocation2 + $0xf1] sm:$0xff]
      %v1130 = vld [vmem:[#allocation2 + $0xf9] sm:$0xff]
      %v1131 = vld [vmem:[#allocation2 + $0x101] sm:$0xff]
      %v1132 = vld [vmem:[#allocation2 + $0x109] sm:$0xff]
      %v1133 = vld [vmem:[#allocation2 + $0x111] sm:$0xff]
      %v1134 = vld [vmem:[#allocation2 + $0x119] sm:$0xff]
      %s1135 = scalar_lea.vmem %s4, 4
      %v1136 = vld [vmem:[%s1135] sm:$0xf]
      %v1138 = vsel %vm284, %v1099, 0
      %v1141 = vsel %vm284, %v1100, 0
      %v1144 = vsel %vm284, %v1101, 0
      %v1147 = vsel %vm284, %v1102, 0
      %v1150 = vsel %vm284, %v1103, 0
      %v1153 = vsel %vm284, %v1104, 0
      %v1156 = vsel %vm284, %v1105, 0
      %v1159 = vsel %vm284, %v1106, 0
      %v1162 = vsel %vm284, %v1107, 0
      %v1165 = vsel %vm284, %v1108, 0
      %v1168 = vsel %vm284, %v1109, 0
      %v1171 = vsel %vm284, %v1110, 0
      %v1174 = vsel %vm284, %v1111, 0
      %v1177 = vsel %vm284, %v1112, 0
      %v1180 = vsel %vm284, %v1113, 0
      %v1183 = vsel %vm284, %v1114, 0
      %v1186 = vsel %vm284, %v1115, 0
      %v1189 = vsel %vm284, %v1116, 0
      %v1192 = vsel %vm284, %v1117, 0
      %v1195 = vsel %vm284, %v1118, 0
      %v1198 = vsel %vm284, %v1119, 0
      %v1201 = vsel %vm284, %v1120, 0
      %v1204 = vsel %vm284, %v1121, 0
      %v1207 = vsel %vm284, %v1122, 0
      %v1210 = vsel %vm284, %v1123, 0
      %v1213 = vsel %vm284, %v1124, 0
      %v1216 = vsel %vm284, %v1125, 0
      %v1219 = vsel %vm284, %v1126, 0
      %v1222 = vsel %vm284, %v1127, 0
      %v1225 = vsel %vm284, %v1128, 0
      %v1228 = vsel %vm284, %v1129, 0
      %v1231 = vsel %vm284, %v1130, 0
      %v1234 = vsel %vm284, %v1131, 0
      %v1237 = vsel %vm284, %v1132, 0
      %v1240 = vsel %vm284, %v1133, 0
      %v1243 = vsel %vm284, %v1134, 0
      %v1246 = vsel %vm459, %v1136, 0
      %1248 = vmatprep.subr.mxu0 0.0
      %1249 = vmatpush1.msra.mxu0 %v1246
      %1250 = vmatprep.subr.mxu0 0.0
      %1251 = vmatpush1.msra.mxu0 0.0
      %1252 = vmatprep.subr.mxu0 0.0
      %1253 = vmatpush1.msra.mxu0 0.0
      %1254 = vmatprep.subr.mxu0 0.0
      %1255 = vmatpush1.msra.mxu0 0.0
      %1256 = vmatprep.subr.mxu0 0.0
      %1257 = vmatpush1.msra.mxu0 0.0
      %1258 = vmatprep.subr.mxu0 0.0
      %1259 = vmatpush1.msra.mxu0 0.0
      %1260 = vmatprep.subr.mxu0 0.0
      %1261 = vmatpush1.msra.mxu0 0.0
      %1262 = vmatprep.subr.mxu0 0.0
      %1263 = vmatpush1.msra.mxu0 0.0
      %1264 = vmatprep.subr.mxu0 0.0
      %1265 = vmatpush1.msra.mxu0 0.0
      %1266 = vmatprep.subr.mxu0 0.0
      %1267 = vmatpush1.msra.mxu0 0.0
      %1268 = vmatprep.subr.mxu0 0.0
      %1269 = vmatpush1.msra.mxu0 0.0
      %1270 = vmatprep.subr.mxu0 0.0
      %1271 = vmatpush1.msra.mxu0 0.0
      %1272 = vmatprep.subr.mxu0 0.0
      %1273 = vmatpush1.msra.mxu0 0.0
      %1274 = vmatprep.subr.mxu0 0.0
      %1275 = vmatpush1.msra.mxu0 0.0
      %1276 = vmatprep.subr.mxu0 0.0
      %1277 = vmatpush1.msra.mxu0 0.0
      %1278 = vmatprep.subr.mxu0 0.0
      %1279 = vmatpush1.msra.mxu0 0.0
      %1280 = vmatprep.subr.mxu0 0.0
      %1281 = vmatpush1.msra.mxu0 0.0
      %1282 = vmatprep.subr.mxu0 0.0
      %1283 = vmatpush1.msra.mxu0 0.0
      %1284 = vmatprep.subr.mxu0 0.0
      %1285 = vmatpush1.msra.mxu0 0.0
      %1286 = vmatprep.subr.mxu0 0.0
      %1287 = vmatpush1.msra.mxu0 0.0
      %1288 = vmatprep.subr.mxu0 0.0
      %1289 = vmatpush1.msra.mxu0 0.0
      %1290 = vmatprep.subr.mxu0 0.0
      %1291 = vmatpush1.msra.mxu0 0.0
      %1292 = vmatprep.subr.mxu0 0.0
      %1293 = vmatpush1.msra.mxu0 0.0
      %1294 = vmatprep.subr.mxu0 0.0
      %1295 = vmatpush1.msra.mxu0 0.0
      %1296 = vmatprep.subr.mxu0 0.0
      %1297 = vmatpush1.msra.mxu0 0.0
      %1298 = vmatprep.subr.mxu0 0.0
      %1299 = vmatpush1.msra.mxu0 0.0
      %1300 = vmatprep.subr.mxu0 0.0
      %1301 = vmatpush1.msra.mxu0 0.0
      %1302 = vmatprep.subr.mxu0 0.0
      %1303 = vmatpush1.msra.mxu0 0.0
      %1304 = vmatprep.subr.mxu0 0.0
      %1305 = vmatpush1.msra.mxu0 0.0
      %1306 = vmatprep.subr.mxu0 0.0
      %1307 = vmatpush1.msra.mxu0 0.0
      %1308 = vmatprep.subr.mxu0 0.0
      %1309 = vmatpush1.msra.mxu0 0.0
      %1310 = vmatprep.subr.mxu0 0.0
      %1311 = vmatpush1.msra.mxu0 0.0
      %1312 = vmatprep.mubr.f32.mxu0 0.0
      %1313 = vmatmul.mubr.f32.gmra.mrb[0].mxu0 %v1138
      %v1314 = vpop.f32.mrb[0].mxu0
      %v1315 = vadd.f32 0.0, %v1314
      %v1316 = vpop.f32.mrb[0].mxu0
      %1317 = vmatprep.mubr.f32.mxu0 0.0
      %1318 = vmatmul.mubr.f32.gmra.mrb[0].mxu0 %v1141
      %v1319 = vpop.f32.mrb[0].mxu0
      %v1320 = vadd.f32 0.0, %v1319
      %v1321 = vpop.f32.mrb[0].mxu0
      %1322 = vmatprep.mubr.f32.mxu0 0.0
      %1323 = vmatmul.mubr.f32.gmra.mrb[0].mxu0 %v1144
      %v1324 = vpop.f32.mrb[0].mxu0
      %v1325 = vadd.f32 0.0, %v1324
      %v1326 = vpop.f32.mrb[0].mxu0
      %1327 = vmatprep.mubr.f32.mxu0 0.0
      %1328 = vmatmul.mubr.f32.gmra.mrb[0].mxu0 %v1147
      %v1329 = vpop.f32.mrb[0].mxu0
      %v1330 = vadd.f32 0.0, %v1329
      %v1331 = vpop.f32.mrb[0].mxu0
      %1332 = vmatprep.mubr.f32.mxu0 0.0
      %1333 = vmatmul.mubr.f32.gmra.mrb[0].mxu0 %v1150
      %v1334 = vpop.f32.mrb[0].mxu0
      %v1335 = vadd.f32 0.0, %v1334
      %v1336 = vpop.f32.mrb[0].mxu0
      %1337 = vmatprep.mubr.f32.mxu0 0.0
      %1338 = vmatmul.mubr.f32.gmra.mrb[0].mxu0 %v1153
      %v1339 = vpop.f32.mrb[0].mxu0
      %v1340 = vadd.f32 0.0, %v1339
      %v1341 = vpop.f32.mrb[0].mxu0
      %1342 = vmatprep.mubr.f32.mxu0 0.0
      %1343 = vmatmul.mubr.f32.gmra.mrb[0].mxu0 %v1156
      %v1344 = vpop.f32.mrb[0].mxu0
      %v1345 = vadd.f32 0.0, %v1344
      %v1346 = vpop.f32.mrb[0].mxu0
      %1347 = vmatprep.mubr.f32.mxu0 0.0
      %1348 = vmatmul.mubr.f32.gmra.mrb[0].mxu0 %v1159
      %v1349 = vpop.f32.mrb[0].mxu0
      %v1350 = vadd.f32 0.0, %v1349
      %v1351 = vpop.f32.mrb[0].mxu0
      %1352 = vmatprep.mubr.f32.mxu0 0.0
      %1353 = vmatmul.mubr.f32.gmra.mrb[0].mxu0 %v1162
      %v1354 = vpop.f32.mrb[0].mxu0
      %v1355 = vadd.f32 0.0, %v1354
      %v1356 = vpop.f32.mrb[0].mxu0
      %1357 = vmatprep.mubr.f32.mxu0 0.0
      %1358 = vmatmul.mubr.f32.gmra.mrb[0].mxu0 %v1165
      %v1359 = vpop.f32.mrb[0].mxu0
      %v1360 = vadd.f32 0.0, %v1359
      %v1361 = vpop.f32.mrb[0].mxu0
      %1362 = vmatprep.mubr.f32.mxu0 0.0
      %1363 = vmatmul.mubr.f32.gmra.mrb[0].mxu0 %v1168
      %v1364 = vpop.f32.mrb[0].mxu0
      %v1365 = vadd.f32 0.0, %v1364
      %v1366 = vpop.f32.mrb[0].mxu0
      %1367 = vmatprep.mubr.f32.mxu0 0.0
      %1368 = vmatmul.mubr.f32.gmra.mrb[0].mxu0 %v1171
      %v1369 = vpop.f32.mrb[0].mxu0
      %v1370 = vadd.f32 0.0, %v1369
      %v1371 = vpop.f32.mrb[0].mxu0
      %1372 = vmatprep.mubr.f32.mxu0 0.0
      %1373 = vmatmul.mubr.f32.gmra.mrb[0].mxu0 %v1174
      %v1374 = vpop.f32.mrb[0].mxu0
      %v1375 = vadd.f32 0.0, %v1374
      %v1376 = vpop.f32.mrb[0].mxu0
      %1377 = vmatprep.mubr.f32.mxu0 0.0
      %1378 = vmatmul.mubr.f32.gmra.mrb[0].mxu0 %v1177
      %v1379 = vpop.f32.mrb[0].mxu0
      %v1380 = vadd.f32 0.0, %v1379
      %v1381 = vpop.f32.mrb[0].mxu0
      %1382 = vmatprep.mubr.f32.mxu0 0.0
      %1383 = vmatmul.mubr.f32.gmra.mrb[0].mxu0 %v1180
      %v1384 = vpop.f32.mrb[0].mxu0
      %v1385 = vadd.f32 0.0, %v1384
      %v1386 = vpop.f32.mrb[0].mxu0
      %1387 = vmatprep.mubr.f32.mxu0 0.0
      %1388 = vmatmul.mubr.f32.gmra.mrb[0].mxu0 %v1183
      %v1389 = vpop.f32.mrb[0].mxu0
      %v1390 = vadd.f32 0.0, %v1389
      %v1391 = vpop.f32.mrb[0].mxu0
      %1392 = vmatprep.mubr.f32.mxu0 0.0
      %1393 = vmatmul.mubr.f32.gmra.mrb[0].mxu0 %v1186
      %v1394 = vpop.f32.mrb[0].mxu0
      %v1395 = vadd.f32 0.0, %v1394
      %v1396 = vpop.f32.mrb[0].mxu0
      %1397 = vmatprep.mubr.f32.mxu0 0.0
      %1398 = vmatmul.mubr.f32.gmra.mrb[0].mxu0 %v1189
      %v1399 = vpop.f32.mrb[0].mxu0
      %v1400 = vadd.f32 0.0, %v1399
      %v1401 = vpop.f32.mrb[0].mxu0
      %1402 = vmatprep.mubr.f32.mxu0 0.0
      %1403 = vmatmul.mubr.f32.gmra.mrb[0].mxu0 %v1192
      %v1404 = vpop.f32.mrb[0].mxu0
      %v1405 = vadd.f32 0.0, %v1404
      %v1406 = vpop.f32.mrb[0].mxu0
      %1407 = vmatprep.mubr.f32.mxu0 0.0
      %1408 = vmatmul.mubr.f32.gmra.mrb[0].mxu0 %v1195
      %v1409 = vpop.f32.mrb[0].mxu0
      %v1410 = vadd.f32 0.0, %v1409
      %v1411 = vpop.f32.mrb[0].mxu0
      %1412 = vmatprep.mubr.f32.mxu0 0.0
      %1413 = vmatmul.mubr.f32.gmra.mrb[0].mxu0 %v1198
      %v1414 = vpop.f32.mrb[0].mxu0
      %v1415 = vadd.f32 0.0, %v1414
      %v1416 = vpop.f32.mrb[0].mxu0
      %1417 = vmatprep.mubr.f32.mxu0 0.0
      %1418 = vmatmul.mubr.f32.gmra.mrb[0].mxu0 %v1201
      %v1419 = vpop.f32.mrb[0].mxu0
      %v1420 = vadd.f32 0.0, %v1419
      %v1421 = vpop.f32.mrb[0].mxu0
      %1422 = vmatprep.mubr.f32.mxu0 0.0
      %1423 = vmatmul.mubr.f32.gmra.mrb[0].mxu0 %v1204
      %v1424 = vpop.f32.mrb[0].mxu0
      %v1425 = vadd.f32 0.0, %v1424
      %v1426 = vpop.f32.mrb[0].mxu0
      %1427 = vmatprep.mubr.f32.mxu0 0.0
      %1428 = vmatmul.mubr.f32.gmra.mrb[0].mxu0 %v1207
      %v1429 = vpop.f32.mrb[0].mxu0
      %v1430 = vadd.f32 0.0, %v1429
      %v1431 = vpop.f32.mrb[0].mxu0
      %1432 = vmatprep.mubr.f32.mxu0 0.0
      %1433 = vmatmul.mubr.f32.gmra.mrb[0].mxu0 %v1210
      %v1434 = vpop.f32.mrb[0].mxu0
      %v1435 = vadd.f32 0.0, %v1434
      %v1436 = vpop.f32.mrb[0].mxu0
      %1437 = vmatprep.mubr.f32.mxu0 0.0
      %1438 = vmatmul.mubr.f32.gmra.mrb[0].mxu0 %v1213
      %v1439 = vpop.f32.mrb[0].mxu0
      %v1440 = vadd.f32 0.0, %v1439
      %v1441 = vpop.f32.mrb[0].mxu0
      %1442 = vmatprep.mubr.f32.mxu0 0.0
      %1443 = vmatmul.mubr.f32.gmra.mrb[0].mxu0 %v1216
      %v1444 = vpop.f32.mrb[0].mxu0
      %v1445 = vadd.f32 0.0, %v1444
      %v1446 = vpop.f32.mrb[0].mxu0
      %1447 = vmatprep.mubr.f32.mxu0 0.0
      %1448 = vmatmul.mubr.f32.gmra.mrb[0].mxu0 %v1219
      %v1449 = vpop.f32.mrb[0].mxu0
      %v1450 = vadd.f32 0.0, %v1449
      %v1451 = vpop.f32.mrb[0].mxu0
      %1452 = vmatprep.mubr.f32.mxu0 0.0
      %1453 = vmatmul.mubr.f32.gmra.mrb[0].mxu0 %v1222
      %v1454 = vpop.f32.mrb[0].mxu0
      %v1455 = vadd.f32 0.0, %v1454
      %v1456 = vpop.f32.mrb[0].mxu0
      %1457 = vmatprep.mubr.f32.mxu0 0.0
      %1458 = vmatmul.mubr.f32.gmra.mrb[0].mxu0 %v1225
      %v1459 = vpop.f32.mrb[0].mxu0
      %v1460 = vadd.f32 0.0, %v1459
      %v1461 = vpop.f32.mrb[0].mxu0
      %1462 = vmatprep.mubr.f32.mxu0 0.0
      %1463 = vmatmul.mubr.f32.gmra.mrb[0].mxu0 %v1228
      %v1464 = vpop.f32.mrb[0].mxu0
      %v1465 = vadd.f32 0.0, %v1464
      %v1466 = vpop.f32.mrb[0].mxu0
      %1467 = vmatprep.mubr.f32.mxu0 0.0
      %1468 = vmatmul.mubr.f32.gmra.mrb[0].mxu0 %v1231
      %v1469 = vpop.f32.mrb[0].mxu0
      %v1470 = vadd.f32 0.0, %v1469
      %v1471 = vpop.f32.mrb[0].mxu0
      %1472 = vmatprep.mubr.f32.mxu0 0.0
      %1473 = vmatmul.mubr.f32.gmra.mrb[0].mxu0 %v1234
      %v1474 = vpop.f32.mrb[0].mxu0
      %v1475 = vadd.f32 0.0, %v1474
      %v1476 = vpop.f32.mrb[0].mxu0
      %1477 = vmatprep.mubr.f32.mxu0 0.0
      %1478 = vmatmul.mubr.f32.gmra.mrb[0].mxu0 %v1237
      %v1479 = vpop.f32.mrb[0].mxu0
      %v1480 = vadd.f32 0.0, %v1479
      %v1481 = vpop.f32.mrb[0].mxu0
      %1482 = vmatprep.mubr.f32.mxu0 0.0
      %1483 = vmatmul.mubr.f32.gmra.mrb[0].mxu0 %v1240
      %v1484 = vpop.f32.mrb[0].mxu0
      %v1485 = vadd.f32 0.0, %v1484
      %v1486 = vpop.f32.mrb[0].mxu0
      %1487 = vmatprep.mubr.f32.mxu0 0.0
      %1488 = vmatmul.mubr.f32.gmra.mrb[0].mxu0 %v1243
      %v1489 = vpop.f32.mrb[0].mxu0
      %v1490 = vadd.f32 0.0, %v1489
      %v1491 = vpop.f32.mrb[0].mxu0
      %1492 = vdwg.mxu0
      %v1494 = vsel %vm284, %v1062, 0
      %v1497 = vsel %vm284, %v1063, 0
      %v1500 = vsel %vm284, %v1064, 0
      %v1503 = vsel %vm284, %v1065, 0
      %v1506 = vsel %vm284, %v1066, 0
      %v1509 = vsel %vm284, %v1067, 0
      %v1512 = vsel %vm284, %v1068, 0
      %v1515 = vsel %vm284, %v1069, 0
      %v1518 = vsel %vm284, %v1070, 0
      %v1521 = vsel %vm284, %v1071, 0
      %v1524 = vsel %vm284, %v1072, 0
      %v1527 = vsel %vm284, %v1073, 0
      %v1530 = vsel %vm284, %v1074, 0
      %v1533 = vsel %vm284, %v1075, 0
      %v1536 = vsel %vm284, %v1076, 0
      %v1539 = vsel %vm284, %v1077, 0
      %v1542 = vsel %vm284, %v1078, 0
      %v1545 = vsel %vm284, %v1079, 0
      %v1548 = vsel %vm284, %v1080, 0
      %v1551 = vsel %vm284, %v1081, 0
      %v1554 = vsel %vm284, %v1082, 0
      %v1557 = vsel %vm284, %v1083, 0
      %v1560 = vsel %vm284, %v1084, 0
      %v1563 = vsel %vm284, %v1085, 0
      %v1566 = vsel %vm284, %v1086, 0
      %v1569 = vsel %vm284, %v1087, 0
      %v1572 = vsel %vm284, %v1088, 0
      %v1575 = vsel %vm284, %v1089, 0
      %v1578 = vsel %vm284, %v1090, 0
      %v1581 = vsel %vm284, %v1091, 0
      %v1584 = vsel %vm284, %v1092, 0
      %v1587 = vsel %vm284, %v1093, 0
      %v1590 = vsel %vm284, %v1094, 0
      %v1593 = vsel %vm284, %v1095, 0
      %v1596 = vsel %vm284, %v1096, 0
      %v1599 = vsel %vm284, %v1097, 0
      %v1602 = vsel %vm459, %v1098, 0
      %1604 = vmatprep.subr.mxu0 0.0
      %1605 = vmatpush1.msra.mxu0 %v1602
      %1606 = vmatprep.subr.mxu0 0.0
      %1607 = vmatpush1.msra.mxu0 0.0
      %1608 = vmatprep.subr.mxu0 0.0
      %1609 = vmatpush1.msra.mxu0 0.0
      %1610 = vmatprep.subr.mxu0 0.0
      %1611 = vmatpush1.msra.mxu0 0.0
      %1612 = vmatprep.subr.mxu0 0.0
      %1613 = vmatpush1.msra.mxu0 0.0
      %1614 = vmatprep.subr.mxu0 0.0
      %1615 = vmatpush1.msra.mxu0 0.0
      %1616 = vmatprep.subr.mxu0 0.0
      %1617 = vmatpush1.msra.mxu0 0.0
      %1618 = vmatprep.subr.mxu0 0.0
      %1619 = vmatpush1.msra.mxu0 0.0
      %1620 = vmatprep.subr.mxu0 0.0
      %1621 = vmatpush1.msra.mxu0 0.0
      %1622 = vmatprep.subr.mxu0 0.0
      %1623 = vmatpush1.msra.mxu0 0.0
      %1624 = vmatprep.subr.mxu0 0.0
      %1625 = vmatpush1.msra.mxu0 0.0
      %1626 = vmatprep.subr.mxu0 0.0
      %1627 = vmatpush1.msra.mxu0 0.0
      %1628 = vmatprep.subr.mxu0 0.0
      %1629 = vmatpush1.msra.mxu0 0.0
      %1630 = vmatprep.subr.mxu0 0.0
      %1631 = vmatpush1.msra.mxu0 0.0
      %1632 = vmatprep.subr.mxu0 0.0
      %1633 = vmatpush1.msra.mxu0 0.0
      %1634 = vmatprep.subr.mxu0 0.0
      %1635 = vmatpush1.msra.mxu0 0.0
      %1636 = vmatprep.subr.mxu0 0.0
      %1637 = vmatpush1.msra.mxu0 0.0
      %1638 = vmatprep.subr.mxu0 0.0
      %1639 = vmatpush1.msra.mxu0 0.0
      %1640 = vmatprep.subr.mxu0 0.0
      %1641 = vmatpush1.msra.mxu0 0.0
      %1642 = vmatprep.subr.mxu0 0.0
      %1643 = vmatpush1.msra.mxu0 0.0
      %1644 = vmatprep.subr.mxu0 0.0
      %1645 = vmatpush1.msra.mxu0 0.0
      %1646 = vmatprep.subr.mxu0 0.0
      %1647 = vmatpush1.msra.mxu0 0.0
      %1648 = vmatprep.subr.mxu0 0.0
      %1649 = vmatpush1.msra.mxu0 0.0
      %1650 = vmatprep.subr.mxu0 0.0
      %1651 = vmatpush1.msra.mxu0 0.0
      %1652 = vmatprep.subr.mxu0 0.0
      %1653 = vmatpush1.msra.mxu0 0.0
      %1654 = vmatprep.subr.mxu0 0.0
      %1655 = vmatpush1.msra.mxu0 0.0
      %1656 = vmatprep.subr.mxu0 0.0
      %1657 = vmatpush1.msra.mxu0 0.0
      %1658 = vmatprep.subr.mxu0 0.0
      %1659 = vmatpush1.msra.mxu0 0.0
      %1660 = vmatprep.subr.mxu0 0.0
      %1661 = vmatpush1.msra.mxu0 0.0
      %1662 = vmatprep.subr.mxu0 0.0
      %1663 = vmatpush1.msra.mxu0 0.0
      %1664 = vmatprep.subr.mxu0 0.0
      %1665 = vmatpush1.msra.mxu0 0.0
      %1666 = vmatprep.subr.mxu0 0.0
      %1667 = vmatpush1.msra.mxu0 0.0
      %1668 = vmatprep.mubr.f32.mxu0 0.0
      %1669 = vmatmul.mubr.f32.gmra.mrb[0].mxu0 %v1494
      %v1670 = vpop.f32.mrb[0].mxu0
      %v1671 = vadd.f32 %v1315, %v1670
      %v1672 = vpop.f32.mrb[0].mxu0
      %1673 = vmatprep.mubr.f32.mxu0 0.0
      %1674 = vmatmul.mubr.f32.gmra.mrb[0].mxu0 %v1497
      %v1675 = vpop.f32.mrb[0].mxu0
      %v1676 = vadd.f32 %v1320, %v1675
      %v1677 = vpop.f32.mrb[0].mxu0
      %1678 = vmatprep.mubr.f32.mxu0 0.0
      %1679 = vmatmul.mubr.f32.gmra.mrb[0].mxu0 %v1500
      %v1680 = vpop.f32.mrb[0].mxu0
      %v1681 = vadd.f32 %v1325, %v1680
      %v1682 = vpop.f32.mrb[0].mxu0
      %1683 = vmatprep.mubr.f32.mxu0 0.0
      %1684 = vmatmul.mubr.f32.gmra.mrb[0].mxu0 %v1503
      %v1685 = vpop.f32.mrb[0].mxu0
      %v1686 = vadd.f32 %v1330, %v1685
      %v1687 = vpop.f32.mrb[0].mxu0
      %1688 = vmatprep.mubr.f32.mxu0 0.0
      %1689 = vmatmul.mubr.f32.gmra.mrb[0].mxu0 %v1506
      %v1690 = vpop.f32.mrb[0].mxu0
      %v1691 = vadd.f32 %v1335, %v1690
      %v1692 = vpop.f32.mrb[0].mxu0
      %1693 = vmatprep.mubr.f32.mxu0 0.0
      %1694 = vmatmul.mubr.f32.gmra.mrb[0].mxu0 %v1509
      %v1695 = vpop.f32.mrb[0].mxu0
      %v1696 = vadd.f32 %v1340, %v1695
      %v1697 = vpop.f32.mrb[0].mxu0
      %1698 = vmatprep.mubr.f32.mxu0 0.0
      %1699 = vmatmul.mubr.f32.gmra.mrb[0].mxu0 %v1512
      %v1700 = vpop.f32.mrb[0].mxu0
      %v1701 = vadd.f32 %v1345, %v1700
      %v1702 = vpop.f32.mrb[0].mxu0
      %1703 = vmatprep.mubr.f32.mxu0 0.0
      %1704 = vmatmul.mubr.f32.gmra.mrb[0].mxu0 %v1515
      %v1705 = vpop.f32.mrb[0].mxu0
      %v1706 = vadd.f32 %v1350, %v1705
      %v1707 = vpop.f32.mrb[0].mxu0
      %1708 = vmatprep.mubr.f32.mxu0 0.0
      %1709 = vmatmul.mubr.f32.gmra.mrb[0].mxu0 %v1518
      %v1710 = vpop.f32.mrb[0].mxu0
      %v1711 = vadd.f32 %v1355, %v1710
      %v1712 = vpop.f32.mrb[0].mxu0
      %1713 = vmatprep.mubr.f32.mxu0 0.0
      %1714 = vmatmul.mubr.f32.gmra.mrb[0].mxu0 %v1521
      %v1715 = vpop.f32.mrb[0].mxu0
      %v1716 = vadd.f32 %v1360, %v1715
      %v1717 = vpop.f32.mrb[0].mxu0
      %1718 = vmatprep.mubr.f32.mxu0 0.0
      %1719 = vmatmul.mubr.f32.gmra.mrb[0].mxu0 %v1524
      %v1720 = vpop.f32.mrb[0].mxu0
      %v1721 = vadd.f32 %v1365, %v1720
      %v1722 = vpop.f32.mrb[0].mxu0
      %1723 = vmatprep.mubr.f32.mxu0 0.0
      %1724 = vmatmul.mubr.f32.gmra.mrb[0].mxu0 %v1527
      %v1725 = vpop.f32.mrb[0].mxu0
      %v1726 = vadd.f32 %v1370, %v1725
      %v1727 = vpop.f32.mrb[0].mxu0
      %1728 = vmatprep.mubr.f32.mxu0 0.0
      %1729 = vmatmul.mubr.f32.gmra.mrb[0].mxu0 %v1530
      %v1730 = vpop.f32.mrb[0].mxu0
      %v1731 = vadd.f32 %v1375, %v1730
      %v1732 = vpop.f32.mrb[0].mxu0
      %1733 = vmatprep.mubr.f32.mxu0 0.0
      %1734 = vmatmul.mubr.f32.gmra.mrb[0].mxu0 %v1533
      %v1735 = vpop.f32.mrb[0].mxu0
      %v1736 = vadd.f32 %v1380, %v1735
      %v1737 = vpop.f32.mrb[0].mxu0
      %1738 = vmatprep.mubr.f32.mxu0 0.0
      %1739 = vmatmul.mubr.f32.gmra.mrb[0].mxu0 %v1536
      %v1740 = vpop.f32.mrb[0].mxu0
      %v1741 = vadd.f32 %v1385, %v1740
      %v1742 = vpop.f32.mrb[0].mxu0
      %1743 = vmatprep.mubr.f32.mxu0 0.0
      %1744 = vmatmul.mubr.f32.gmra.mrb[0].mxu0 %v1539
      %v1745 = vpop.f32.mrb[0].mxu0
      %v1746 = vadd.f32 %v1390, %v1745
      %v1747 = vpop.f32.mrb[0].mxu0
      %1748 = vmatprep.mubr.f32.mxu0 0.0
      %1749 = vmatmul.mubr.f32.gmra.mrb[0].mxu0 %v1542
      %v1750 = vpop.f32.mrb[0].mxu0
      %v1751 = vadd.f32 %v1395, %v1750
      %v1752 = vpop.f32.mrb[0].mxu0
      %1753 = vmatprep.mubr.f32.mxu0 0.0
      %1754 = vmatmul.mubr.f32.gmra.mrb[0].mxu0 %v1545
      %v1755 = vpop.f32.mrb[0].mxu0
      %v1756 = vadd.f32 %v1400, %v1755
      %v1757 = vpop.f32.mrb[0].mxu0
      %1758 = vmatprep.mubr.f32.mxu0 0.0
      %1759 = vmatmul.mubr.f32.gmra.mrb[0].mxu0 %v1548
      %v1760 = vpop.f32.mrb[0].mxu0
      %v1761 = vadd.f32 %v1405, %v1760
      %v1762 = vpop.f32.mrb[0].mxu0
      %1763 = vmatprep.mubr.f32.mxu0 0.0
      %1764 = vmatmul.mubr.f32.gmra.mrb[0].mxu0 %v1551
      %v1765 = vpop.f32.mrb[0].mxu0
      %v1766 = vadd.f32 %v1410, %v1765
      %v1767 = vpop.f32.mrb[0].mxu0
      %1768 = vmatprep.mubr.f32.mxu0 0.0
      %1769 = vmatmul.mubr.f32.gmra.mrb[0].mxu0 %v1554
      %v1770 = vpop.f32.mrb[0].mxu0
      %v1771 = vadd.f32 %v1415, %v1770
      %v1772 = vpop.f32.mrb[0].mxu0
      %1773 = vmatprep.mubr.f32.mxu0 0.0
      %1774 = vmatmul.mubr.f32.gmra.mrb[0].mxu0 %v1557
      %v1775 = vpop.f32.mrb[0].mxu0
      %v1776 = vadd.f32 %v1420, %v1775
      %v1777 = vpop.f32.mrb[0].mxu0
      %1778 = vmatprep.mubr.f32.mxu0 0.0
      %1779 = vmatmul.mubr.f32.gmra.mrb[0].mxu0 %v1560
      %v1780 = vpop.f32.mrb[0].mxu0
      %v1781 = vadd.f32 %v1425, %v1780
      %v1782 = vpop.f32.mrb[0].mxu0
      %1783 = vmatprep.mubr.f32.mxu0 0.0
      %1784 = vmatmul.mubr.f32.gmra.mrb[0].mxu0 %v1563
      %v1785 = vpop.f32.mrb[0].mxu0
      %v1786 = vadd.f32 %v1430, %v1785
      %v1787 = vpop.f32.mrb[0].mxu0
      %1788 = vmatprep.mubr.f32.mxu0 0.0
      %1789 = vmatmul.mubr.f32.gmra.mrb[0].mxu0 %v1566
      %v1790 = vpop.f32.mrb[0].mxu0
      %v1791 = vadd.f32 %v1435, %v1790
      %v1792 = vpop.f32.mrb[0].mxu0
      %1793 = vmatprep.mubr.f32.mxu0 0.0
      %1794 = vmatmul.mubr.f32.gmra.mrb[0].mxu0 %v1569
      %v1795 = vpop.f32.mrb[0].mxu0
      %v1796 = vadd.f32 %v1440, %v1795
      %v1797 = vpop.f32.mrb[0].mxu0
      %1798 = vmatprep.mubr.f32.mxu0 0.0
      %1799 = vmatmul.mubr.f32.gmra.mrb[0].mxu0 %v1572
      %v1800 = vpop.f32.mrb[0].mxu0
      %v1801 = vadd.f32 %v1445, %v1800
      %v1802 = vpop.f32.mrb[0].mxu0
      %1803 = vmatprep.mubr.f32.mxu0 0.0
      %1804 = vmatmul.mubr.f32.gmra.mrb[0].mxu0 %v1575
      %v1805 = vpop.f32.mrb[0].mxu0
      %v1806 = vadd.f32 %v1450, %v1805
      %v1807 = vpop.f32.mrb[0].mxu0
      %1808 = vmatprep.mubr.f32.mxu0 0.0
      %1809 = vmatmul.mubr.f32.gmra.mrb[0].mxu0 %v1578
      %v1810 = vpop.f32.mrb[0].mxu0
      %v1811 = vadd.f32 %v1455, %v1810
      %v1812 = vpop.f32.mrb[0].mxu0
      %1813 = vmatprep.mubr.f32.mxu0 0.0
      %1814 = vmatmul.mubr.f32.gmra.mrb[0].mxu0 %v1581
      %v1815 = vpop.f32.mrb[0].mxu0
      %v1816 = vadd.f32 %v1460, %v1815
      %v1817 = vpop.f32.mrb[0].mxu0
      %1818 = vmatprep.mubr.f32.mxu0 0.0
      %1819 = vmatmul.mubr.f32.gmra.mrb[0].mxu0 %v1584
      %v1820 = vpop.f32.mrb[0].mxu0
      %v1821 = vadd.f32 %v1465, %v1820
      %v1822 = vpop.f32.mrb[0].mxu0
      %1823 = vmatprep.mubr.f32.mxu0 0.0
      %1824 = vmatmul.mubr.f32.gmra.mrb[0].mxu0 %v1587
      %v1825 = vpop.f32.mrb[0].mxu0
      %v1826 = vadd.f32 %v1470, %v1825
      %v1827 = vpop.f32.mrb[0].mxu0
      %1828 = vmatprep.mubr.f32.mxu0 0.0
      %1829 = vmatmul.mubr.f32.gmra.mrb[0].mxu0 %v1590
      %v1830 = vpop.f32.mrb[0].mxu0
      %v1831 = vadd.f32 %v1475, %v1830
      %v1832 = vpop.f32.mrb[0].mxu0
      %1833 = vmatprep.mubr.f32.mxu0 0.0
      %1834 = vmatmul.mubr.f32.gmra.mrb[0].mxu0 %v1593
      %v1835 = vpop.f32.mrb[0].mxu0
      %v1836 = vadd.f32 %v1480, %v1835
      %v1837 = vpop.f32.mrb[0].mxu0
      %1838 = vmatprep.mubr.f32.mxu0 0.0
      %1839 = vmatmul.mubr.f32.gmra.mrb[0].mxu0 %v1596
      %v1840 = vpop.f32.mrb[0].mxu0
      %v1841 = vadd.f32 %v1485, %v1840
      %v1842 = vpop.f32.mrb[0].mxu0
      %1843 = vmatprep.mubr.f32.mxu0 0.0
      %1844 = vmatmul.mubr.f32.gmra.mrb[0].mxu0 %v1599
      %v1845 = vpop.f32.mrb[0].mxu0
      %v1846 = vadd.f32 %v1490, %v1845
      %v1847 = vpop.f32.mrb[0].mxu0
      %1848 = vdwg.mxu0
      %v1849 = vld [vmem:[#allocation2 + $0x2] sm:$0xff]
      %v1850 = vld [vmem:[#allocation2 + $0xa] sm:$0xff]
      %v1851 = vld [vmem:[#allocation2 + $0x12] sm:$0xff]
      %v1852 = vld [vmem:[#allocation2 + $0x1a] sm:$0xff]
      %v1853 = vld [vmem:[#allocation2 + $0x22] sm:$0xff]
      %v1854 = vld [vmem:[#allocation2 + $0x2a] sm:$0xff]
      %v1855 = vld [vmem:[#allocation2 + $0x32] sm:$0xff]
      %v1856 = vld [vmem:[#allocation2 + $0x3a] sm:$0xff]
      %v1857 = vld [vmem:[#allocation2 + $0x42] sm:$0xff]
      %v1858 = vld [vmem:[#allocation2 + $0x4a] sm:$0xff]
      %v1859 = vld [vmem:[#allocation2 + $0x52] sm:$0xff]
      %v1860 = vld [vmem:[#allocation2 + $0x5a] sm:$0xff]
      %v1861 = vld [vmem:[#allocation2 + $0x62] sm:$0xff]
      %v1862 = vld [vmem:[#allocation2 + $0x6a] sm:$0xff]
      %v1863 = vld [vmem:[#allocation2 + $0x72] sm:$0xff]
      %v1864 = vld [vmem:[#allocation2 + $0x7a] sm:$0xff]
      %v1865 = vld [vmem:[#allocation2 + $0x82] sm:$0xff]
      %v1866 = vld [vmem:[#allocation2 + $0x8a] sm:$0xff]
      %v1867 = vld [vmem:[#allocation2 + $0x92] sm:$0xff]
      %v1868 = vld [vmem:[#allocation2 + $0x9a] sm:$0xff]
      %v1869 = vld [vmem:[#allocation2 + $0xa2] sm:$0xff]
      %v1870 = vld [vmem:[#allocation2 + $0xaa] sm:$0xff]
      %v1871 = vld [vmem:[#allocation2 + $0xb2] sm:$0xff]
      %v1872 = vld [vmem:[#allocation2 + $0xba] sm:$0xff]
      %v1873 = vld [vmem:[#allocation2 + $0xc2] sm:$0xff]
      %v1874 = vld [vmem:[#allocation2 + $0xca] sm:$0xff]
      %v1875 = vld [vmem:[#allocation2 + $0xd2] sm:$0xff]
      %v1876 = vld [vmem:[#allocation2 + $0xda] sm:$0xff]
      %v1877 = vld [vmem:[#allocation2 + $0xe2] sm:$0xff]
      %v1878 = vld [vmem:[#allocation2 + $0xea] sm:$0xff]
      %v1879 = vld [vmem:[#allocation2 + $0xf2] sm:$0xff]
      %v1880 = vld [vmem:[#allocation2 + $0xfa] sm:$0xff]
      %v1881 = vld [vmem:[#allocation2 + $0x102] sm:$0xff]
      %v1882 = vld [vmem:[#allocation2 + $0x10a] sm:$0xff]
      %v1883 = vld [vmem:[#allocation2 + $0x112] sm:$0xff]
      %v1884 = vld [vmem:[#allocation2 + $0x11a] sm:$0xff]
      %s1885 = scalar_lea.vmem %s4, 8
      %v1886 = vld [vmem:[%s1885] sm:$0xf]
      %v1888 = vsel %vm284, %v1849, 0
      %v1891 = vsel %vm284, %v1850, 0
      %v1894 = vsel %vm284, %v1851, 0
      %v1897 = vsel %vm284, %v1852, 0
      %v1900 = vsel %vm284, %v1853, 0
      %v1903 = vsel %vm284, %v1854, 0
      %v1906 = vsel %vm284, %v1855, 0
      %v1909 = vsel %vm284, %v1856, 0
      %v1912 = vsel %vm284, %v1857, 0
      %v1915 = vsel %vm284, %v1858, 0
      %v1918 = vsel %vm284, %v1859, 0
      %v1921 = vsel %vm284, %v1860, 0
      %v1924 = vsel %vm284, %v1861, 0
      %v1927 = vsel %vm284, %v1862, 0
      %v1930 = vsel %vm284, %v1863, 0
      %v1933 = vsel %vm284, %v1864, 0
      %v1936 = vsel %vm284, %v1865, 0
      %v1939 = vsel %vm284, %v1866, 0
      %v1942 = vsel %vm284, %v1867, 0
      %v1945 = vsel %vm284, %v1868, 0
      %v1948 = vsel %vm284, %v1869, 0
      %v1951 = vsel %vm284, %v1870, 0
      %v1954 = vsel %vm284, %v1871, 0
      %v1957 = vsel %vm284, %v1872, 0
      %v1960 = vsel %vm284, %v1873, 0
      %v1963 = vsel %vm284, %v1874, 0
      %v1966 = vsel %vm284, %v1875, 0
      %v1969 = vsel %vm284, %v1876, 0
      %v1972 = vsel %vm284, %v1877, 0
      %v1975 = vsel %vm284, %v1878, 0
      %v1978 = vsel %vm284, %v1879, 0
      %v1981 = vsel %vm284, %v1880, 0
      %v1984 = vsel %vm284, %v1881, 0
      %v1987 = vsel %vm284, %v1882, 0
      %v1990 = vsel %vm284, %v1883, 0
      %v1993 = vsel %vm284, %v1884, 0
      %v1996 = vsel %vm459, %v1886, 0
      %1998 = vmatprep.subr.mxu0 0.0
      %1999 = vmatpush1.msra.mxu0 %v1996
      %2000 = vmatprep.subr.mxu0 0.0
      %2001 = vmatpush1.msra.mxu0 0.0
      %2002 = vmatprep.subr.mxu0 0.0
      %2003 = vmatpush1.msra.mxu0 0.0
      %2004 = vmatprep.subr.mxu0 0.0
      %2005 = vmatpush1.msra.mxu0 0.0
      %2006 = vmatprep.subr.mxu0 0.0
      %2007 = vmatpush1.msra.mxu0 0.0
      %2008 = vmatprep.subr.mxu0 0.0
      %2009 = vmatpush1.msra.mxu0 0.0
      %2010 = vmatprep.subr.mxu0 0.0
      %2011 = vmatpush1.msra.mxu0 0.0
      %2012 = vmatprep.subr.mxu0 0.0
      %2013 = vmatpush1.msra.mxu0 0.0
      %2014 = vmatprep.subr.mxu0 0.0
      %2015 = vmatpush1.msra.mxu0 0.0
      %2016 = vmatprep.subr.mxu0 0.0
      %2017 = vmatpush1.msra.mxu0 0.0
      %2018 = vmatprep.subr.mxu0 0.0
      %2019 = vmatpush1.msra.mxu0 0.0
      %2020 = vmatprep.subr.mxu0 0.0
      %2021 = vmatpush1.msra.mxu0 0.0
      %2022 = vmatprep.subr.mxu0 0.0
      %2023 = vmatpush1.msra.mxu0 0.0
      %2024 = vmatprep.subr.mxu0 0.0
      %2025 = vmatpush1.msra.mxu0 0.0
      %2026 = vmatprep.subr.mxu0 0.0
      %2027 = vmatpush1.msra.mxu0 0.0
      %2028 = vmatprep.subr.mxu0 0.0
      %2029 = vmatpush1.msra.mxu0 0.0
      %2030 = vmatprep.subr.mxu0 0.0
      %2031 = vmatpush1.msra.mxu0 0.0
      %2032 = vmatprep.subr.mxu0 0.0
      %2033 = vmatpush1.msra.mxu0 0.0
      %2034 = vmatprep.subr.mxu0 0.0
      %2035 = vmatpush1.msra.mxu0 0.0
      %2036 = vmatprep.subr.mxu0 0.0
      %2037 = vmatpush1.msra.mxu0 0.0
      %2038 = vmatprep.subr.mxu0 0.0
      %2039 = vmatpush1.msra.mxu0 0.0
      %2040 = vmatprep.subr.mxu0 0.0
      %2041 = vmatpush1.msra.mxu0 0.0
      %2042 = vmatprep.subr.mxu0 0.0
      %2043 = vmatpush1.msra.mxu0 0.0
      %2044 = vmatprep.subr.mxu0 0.0
      %2045 = vmatpush1.msra.mxu0 0.0
      %2046 = vmatprep.subr.mxu0 0.0
      %2047 = vmatpush1.msra.mxu0 0.0
      %2048 = vmatprep.subr.mxu0 0.0
      %2049 = vmatpush1.msra.mxu0 0.0
      %2050 = vmatprep.subr.mxu0 0.0
      %2051 = vmatpush1.msra.mxu0 0.0
      %2052 = vmatprep.subr.mxu0 0.0
      %2053 = vmatpush1.msra.mxu0 0.0
      %2054 = vmatprep.subr.mxu0 0.0
      %2055 = vmatpush1.msra.mxu0 0.0
      %2056 = vmatprep.subr.mxu0 0.0
      %2057 = vmatpush1.msra.mxu0 0.0
      %2058 = vmatprep.subr.mxu0 0.0
      %2059 = vmatpush1.msra.mxu0 0.0
      %2060 = vmatprep.subr.mxu0 0.0
      %2061 = vmatpush1.msra.mxu0 0.0
      %2062 = vmatprep.mubr.f32.mxu0 0.0
      %2063 = vmatmul.mubr.f32.gmra.mrb[0].mxu0 %v1888
      %v2064 = vpop.f32.mrb[0].mxu0
      %v2065 = vadd.f32 0.0, %v2064
      %v2066 = vpop.f32.mrb[0].mxu0
      %2067 = vmatprep.mubr.f32.mxu0 0.0
      %2068 = vmatmul.mubr.f32.gmra.mrb[0].mxu0 %v1891
      %v2069 = vpop.f32.mrb[0].mxu0
      %v2070 = vadd.f32 0.0, %v2069
      %v2071 = vpop.f32.mrb[0].mxu0
      %2072 = vmatprep.mubr.f32.mxu0 0.0
      %2073 = vmatmul.mubr.f32.gmra.mrb[0].mxu0 %v1894
      %v2074 = vpop.f32.mrb[0].mxu0
      %v2075 = vadd.f32 0.0, %v2074
      %v2076 = vpop.f32.mrb[0].mxu0
      %2077 = vmatprep.mubr.f32.mxu0 0.0
      %2078 = vmatmul.mubr.f32.gmra.mrb[0].mxu0 %v1897
      %v2079 = vpop.f32.mrb[0].mxu0
      %v2080 = vadd.f32 0.0, %v2079
      %v2081 = vpop.f32.mrb[0].mxu0
      %2082 = vmatprep.mubr.f32.mxu0 0.0
      %2083 = vmatmul.mubr.f32.gmra.mrb[0].mxu0 %v1900
      %v2084 = vpop.f32.mrb[0].mxu0
      %v2085 = vadd.f32 0.0, %v2084
      %v2086 = vpop.f32.mrb[0].mxu0
      %2087 = vmatprep.mubr.f32.mxu0 0.0
      %2088 = vmatmul.mubr.f32.gmra.mrb[0].mxu0 %v1903
      %v2089 = vpop.f32.mrb[0].mxu0
      %v2090 = vadd.f32 0.0, %v2089
      %v2091 = vpop.f32.mrb[0].mxu0
      %2092 = vmatprep.mubr.f32.mxu0 0.0
      %2093 = vmatmul.mubr.f32.gmra.mrb[0].mxu0 %v1906
      %v2094 = vpop.f32.mrb[0].mxu0
      %v2095 = vadd.f32 0.0, %v2094
      %v2096 = vpop.f32.mrb[0].mxu0
      %2097 = vmatprep.mubr.f32.mxu0 0.0
      %2098 = vmatmul.mubr.f32.gmra.mrb[0].mxu0 %v1909
      %v2099 = vpop.f32.mrb[0].mxu0
      %v2100 = vadd.f32 0.0, %v2099
      %v2101 = vpop.f32.mrb[0].mxu0
      %2102 = vmatprep.mubr.f32.mxu0 0.0
      %2103 = vmatmul.mubr.f32.gmra.mrb[0].mxu0 %v1912
      %v2104 = vpop.f32.mrb[0].mxu0
      %v2105 = vadd.f32 0.0, %v2104
      %v2106 = vpop.f32.mrb[0].mxu0
      %2107 = vmatprep.mubr.f32.mxu0 0.0
      %2108 = vmatmul.mubr.f32.gmra.mrb[0].mxu0 %v1915
      %v2109 = vpop.f32.mrb[0].mxu0
      %v2110 = vadd.f32 0.0, %v2109
      %v2111 = vpop.f32.mrb[0].mxu0
      %2112 = vmatprep.mubr.f32.mxu0 0.0
      %2113 = vmatmul.mubr.f32.gmra.mrb[0].mxu0 %v1918
      %v2114 = vpop.f32.mrb[0].mxu0
      %v2115 = vadd.f32 0.0, %v2114
      %v2116 = vpop.f32.mrb[0].mxu0
      %2117 = vmatprep.mubr.f32.mxu0 0.0
      %2118 = vmatmul.mubr.f32.gmra.mrb[0].mxu0 %v1921
      %v2119 = vpop.f32.mrb[0].mxu0
      %v2120 = vadd.f32 0.0, %v2119
      %v2121 = vpop.f32.mrb[0].mxu0
      %2122 = vmatprep.mubr.f32.mxu0 0.0
      %2123 = vmatmul.mubr.f32.gmra.mrb[0].mxu0 %v1924
      %v2124 = vpop.f32.mrb[0].mxu0
      %v2125 = vadd.f32 0.0, %v2124
      %v2126 = vpop.f32.mrb[0].mxu0
      %2127 = vmatprep.mubr.f32.mxu0 0.0
      %2128 = vmatmul.mubr.f32.gmra.mrb[0].mxu0 %v1927
      %v2129 = vpop.f32.mrb[0].mxu0
      %v2130 = vadd.f32 0.0, %v2129
      %v2131 = vpop.f32.mrb[0].mxu0
      %2132 = vmatprep.mubr.f32.mxu0 0.0
      %2133 = vmatmul.mubr.f32.gmra.mrb[0].mxu0 %v1930
      %v2134 = vpop.f32.mrb[0].mxu0
      %v2135 = vadd.f32 0.0, %v2134
      %v2136 = vpop.f32.mrb[0].mxu0
      %2137 = vmatprep.mubr.f32.mxu0 0.0
      %2138 = vmatmul.mubr.f32.gmra.mrb[0].mxu0 %v1933
      %v2139 = vpop.f32.mrb[0].mxu0
      %v2140 = vadd.f32 0.0, %v2139
      %v2141 = vpop.f32.mrb[0].mxu0
      %2142 = vmatprep.mubr.f32.mxu0 0.0
      %2143 = vmatmul.mubr.f32.gmra.mrb[0].mxu0 %v1936
      %v2144 = vpop.f32.mrb[0].mxu0
      %v2145 = vadd.f32 0.0, %v2144
      %v2146 = vpop.f32.mrb[0].mxu0
      %2147 = vmatprep.mubr.f32.mxu0 0.0
      %2148 = vmatmul.mubr.f32.gmra.mrb[0].mxu0 %v1939
      %v2149 = vpop.f32.mrb[0].mxu0
      %v2150 = vadd.f32 0.0, %v2149
      %v2151 = vpop.f32.mrb[0].mxu0
      %2152 = vmatprep.mubr.f32.mxu0 0.0
      %2153 = vmatmul.mubr.f32.gmra.mrb[0].mxu0 %v1942
      %v2154 = vpop.f32.mrb[0].mxu0
      %v2155 = vadd.f32 0.0, %v2154
      %v2156 = vpop.f32.mrb[0].mxu0
      %2157 = vmatprep.mubr.f32.mxu0 0.0
      %2158 = vmatmul.mubr.f32.gmra.mrb[0].mxu0 %v1945
      %v2159 = vpop.f32.mrb[0].mxu0
      %v2160 = vadd.f32 0.0, %v2159
      %v2161 = vpop.f32.mrb[0].mxu0
      %2162 = vmatprep.mubr.f32.mxu0 0.0
      %2163 = vmatmul.mubr.f32.gmra.mrb[0].mxu0 %v1948
      %v2164 = vpop.f32.mrb[0].mxu0
      %v2165 = vadd.f32 0.0, %v2164
      %v2166 = vpop.f32.mrb[0].mxu0
      %2167 = vmatprep.mubr.f32.mxu0 0.0
      %2168 = vmatmul.mubr.f32.gmra.mrb[0].mxu0 %v1951
      %v2169 = vpop.f32.mrb[0].mxu0
      %v2170 = vadd.f32 0.0, %v2169
      %v2171 = vpop.f32.mrb[0].mxu0
      %2172 = vmatprep.mubr.f32.mxu0 0.0
      %2173 = vmatmul.mubr.f32.gmra.mrb[0].mxu0 %v1954
      %v2174 = vpop.f32.mrb[0].mxu0
      %v2175 = vadd.f32 0.0, %v2174
      %v2176 = vpop.f32.mrb[0].mxu0
      %2177 = vmatprep.mubr.f32.mxu0 0.0
      %2178 = vmatmul.mubr.f32.gmra.mrb[0].mxu0 %v1957
      %v2179 = vpop.f32.mrb[0].mxu0
      %v2180 = vadd.f32 0.0, %v2179
      %v2181 = vpop.f32.mrb[0].mxu0
      %2182 = vmatprep.mubr.f32.mxu0 0.0
      %2183 = vmatmul.mubr.f32.gmra.mrb[0].mxu0 %v1960
      %v2184 = vpop.f32.mrb[0].mxu0
      %v2185 = vadd.f32 0.0, %v2184
      %v2186 = vpop.f32.mrb[0].mxu0
      %2187 = vmatprep.mubr.f32.mxu0 0.0
      %2188 = vmatmul.mubr.f32.gmra.mrb[0].mxu0 %v1963
      %v2189 = vpop.f32.mrb[0].mxu0
      %v2190 = vadd.f32 0.0, %v2189
      %v2191 = vpop.f32.mrb[0].mxu0
      %2192 = vmatprep.mubr.f32.mxu0 0.0
      %2193 = vmatmul.mubr.f32.gmra.mrb[0].mxu0 %v1966
      %v2194 = vpop.f32.mrb[0].mxu0
      %v2195 = vadd.f32 0.0, %v2194
      %v2196 = vpop.f32.mrb[0].mxu0
      %2197 = vmatprep.mubr.f32.mxu0 0.0
      %2198 = vmatmul.mubr.f32.gmra.mrb[0].mxu0 %v1969
      %v2199 = vpop.f32.mrb[0].mxu0
      %v2200 = vadd.f32 0.0, %v2199
      %v2201 = vpop.f32.mrb[0].mxu0
      %2202 = vmatprep.mubr.f32.mxu0 0.0
      %2203 = vmatmul.mubr.f32.gmra.mrb[0].mxu0 %v1972
      %v2204 = vpop.f32.mrb[0].mxu0
      %v2205 = vadd.f32 0.0, %v2204
      %v2206 = vpop.f32.mrb[0].mxu0
      %2207 = vmatprep.mubr.f32.mxu0 0.0
      %2208 = vmatmul.mubr.f32.gmra.mrb[0].mxu0 %v1975
      %v2209 = vpop.f32.mrb[0].mxu0
      %v2210 = vadd.f32 0.0, %v2209
      %v2211 = vpop.f32.mrb[0].mxu0
      %2212 = vmatprep.mubr.f32.mxu0 0.0
      %2213 = vmatmul.mubr.f32.gmra.mrb[0].mxu0 %v1978
      %v2214 = vpop.f32.mrb[0].mxu0
      %v2215 = vadd.f32 0.0, %v2214
      %v2216 = vpop.f32.mrb[0].mxu0
      %2217 = vmatprep.mubr.f32.mxu0 0.0
      %2218 = vmatmul.mubr.f32.gmra.mrb[0].mxu0 %v1981
      %v2219 = vpop.f32.mrb[0].mxu0
      %v2220 = vadd.f32 0.0, %v2219
      %v2221 = vpop.f32.mrb[0].mxu0
      %2222 = vmatprep.mubr.f32.mxu0 0.0
      %2223 = vmatmul.mubr.f32.gmra.mrb[0].mxu0 %v1984
      %v2224 = vpop.f32.mrb[0].mxu0
      %v2225 = vadd.f32 0.0, %v2224
      %v2226 = vpop.f32.mrb[0].mxu0
      %2227 = vmatprep.mubr.f32.mxu0 0.0
      %2228 = vmatmul.mubr.f32.gmra.mrb[0].mxu0 %v1987
      %v2229 = vpop.f32.mrb[0].mxu0
      %v2230 = vadd.f32 0.0, %v2229
      %v2231 = vpop.f32.mrb[0].mxu0
      %2232 = vmatprep.mubr.f32.mxu0 0.0
      %2233 = vmatmul.mubr.f32.gmra.mrb[0].mxu0 %v1990
      %v2234 = vpop.f32.mrb[0].mxu0
      %v2235 = vadd.f32 0.0, %v2234
      %v2236 = vpop.f32.mrb[0].mxu0
      %2237 = vmatprep.mubr.f32.mxu0 0.0
      %2238 = vmatmul.mubr.f32.gmra.mrb[0].mxu0 %v1993
      %v2239 = vpop.f32.mrb[0].mxu0
      %v2240 = vadd.f32 0.0, %v2239
      %v2241 = vpop.f32.mrb[0].mxu0
      %2242 = vdwg.mxu0
      %v2243 = vadd.f32 %v1671, %v2065
      %v2244 = vadd.f32 %v1676, %v2070
      %v2245 = vadd.f32 %v1681, %v2075
      %v2246 = vadd.f32 %v1686, %v2080
      %v2247 = vadd.f32 %v1691, %v2085
      %v2248 = vadd.f32 %v1696, %v2090
      %v2249 = vadd.f32 %v1701, %v2095
      %v2250 = vadd.f32 %v1706, %v2100
      %v2251 = vadd.f32 %v1711, %v2105
      %v2252 = vadd.f32 %v1716, %v2110
      %v2253 = vadd.f32 %v1721, %v2115
      %v2254 = vadd.f32 %v1726, %v2120
      %v2255 = vadd.f32 %v1731, %v2125
      %v2256 = vadd.f32 %v1736, %v2130
      %v2257 = vadd.f32 %v1741, %v2135
      %v2258 = vadd.f32 %v1746, %v2140
      %v2259 = vadd.f32 %v1751, %v2145
      %v2260 = vadd.f32 %v1756, %v2150
      %v2261 = vadd.f32 %v1761, %v2155
      %v2262 = vadd.f32 %v1766, %v2160
      %v2263 = vadd.f32 %v1771, %v2165
      %v2264 = vadd.f32 %v1776, %v2170
      %v2265 = vadd.f32 %v1781, %v2175
      %v2266 = vadd.f32 %v1786, %v2180
      %v2267 = vadd.f32 %v1791, %v2185
      %v2268 = vadd.f32 %v1796, %v2190
      %v2269 = vadd.f32 %v1801, %v2195
      %v2270 = vadd.f32 %v1806, %v2200
      %v2271 = vadd.f32 %v1811, %v2205
      %v2272 = vadd.f32 %v1816, %v2210
      %v2273 = vadd.f32 %v1821, %v2215
      %v2274 = vadd.f32 %v1826, %v2220
      %v2275 = vadd.f32 %v1831, %v2225
      %v2276 = vadd.f32 %v1836, %v2230
      %v2277 = vadd.f32 %v1841, %v2235
      %v2278 = vadd.f32 %v1846, %v2240
      %v2279 = vld [vmem:[#allocation2 + $0x12] sm:$0xff]
      %v2280 = vld [vmem:[#allocation2 + $0x1a] sm:$0xff]
      %v2281 = vld [vmem:[#allocation2 + $0x22] sm:$0xff]
      %v2282 = vld [vmem:[#allocation2 + $0x2a] sm:$0xff]
      %v2283 = vld [vmem:[#allocation2 + $0x32] sm:$0xff]
      %v2284 = vld [vmem:[#allocation2 + $0x3a] sm:$0xff]
      %v2285 = vld [vmem:[#allocation2 + $0x42] sm:$0xff]
      %v2286 = vld [vmem:[#allocation2 + $0x4a] sm:$0xff]
      %v2287 = vld [vmem:[#allocation2 + $0x52] sm:$0xff]
      %v2288 = vld [vmem:[#allocation2 + $0x5a] sm:$0xff]
      %v2289 = vld [vmem:[#allocation2 + $0x62] sm:$0xff]
      %v2290 = vld [vmem:[#allocation2 + $0x6a] sm:$0xff]
      %v2291 = vld [vmem:[#allocation2 + $0x72] sm:$0xff]
      %v2292 = vld [vmem:[#allocation2 + $0x7a] sm:$0xff]
      %v2293 = vld [vmem:[#allocation2 + $0x82] sm:$0xff]
      %v2294 = vld [vmem:[#allocation2 + $0x8a] sm:$0xff]
      %v2295 = vld [vmem:[#allocation2 + $0x92] sm:$0xff]
      %v2296 = vld [vmem:[#allocation2 + $0x9a] sm:$0xff]
      %v2297 = vld [vmem:[#allocation2 + $0xa2] sm:$0xff]
      %v2298 = vld [vmem:[#allocation2 + $0xaa] sm:$0xff]
      %v2299 = vld [vmem:[#allocation2 + $0xb2] sm:$0xff]
      %v2300 = vld [vmem:[#allocation2 + $0xba] sm:$0xff]
      %v2301 = vld [vmem:[#allocation2 + $0xc2] sm:$0xff]
      %v2302 = vld [vmem:[#allocation2 + $0xca] sm:$0xff]
      %v2303 = vld [vmem:[#allocation2 + $0xd2] sm:$0xff]
      %v2304 = vld [vmem:[#allocation2 + $0xda] sm:$0xff]
      %v2305 = vld [vmem:[#allocation2 + $0xe2] sm:$0xff]
      %v2306 = vld [vmem:[#allocation2 + $0xea] sm:$0xff]
      %v2307 = vld [vmem:[#allocation2 + $0xf2] sm:$0xff]
      %v2308 = vld [vmem:[#allocation2 + $0xfa] sm:$0xff]
      %v2309 = vld [vmem:[#allocation2 + $0x102] sm:$0xff]
      %v2310 = vld [vmem:[#allocation2 + $0x10a] sm:$0xff]
      %v2311 = vld [vmem:[#allocation2 + $0x112] sm:$0xff]
      %v2312 = vld [vmem:[#allocation2 + $0x11a] sm:$0xff]
      %v2313 = vld [vmem:[#allocation2 + $0x122] sm:$0xff]
      %v2314 = vld [vmem:[#allocation2 + $0x12a] sm:$0xff]
      %s2315 = scalar_lea.vmem %s4, 12
      %v2316 = vld [vmem:[%s2315] sm:$0xf]
      %v2318 = vsel %vm284, %v2279, 0
      %v2321 = vsel %vm284, %v2280, 0
      %v2324 = vsel %vm284, %v2281, 0
      %v2327 = vsel %vm284, %v2282, 0
      %v2330 = vsel %vm284, %v2283, 0
      %v2333 = vsel %vm284, %v2284, 0
      %v2336 = vsel %vm284, %v2285, 0
      %v2339 = vsel %vm284, %v2286, 0
      %v2342 = vsel %vm284, %v2287, 0
      %v2345 = vsel %vm284, %v2288, 0
      %v2348 = vsel %vm284, %v2289, 0
      %v2351 = vsel %vm284, %v2290, 0
      %v2354 = vsel %vm284, %v2291, 0
      %v2357 = vsel %vm284, %v2292, 0
      %v2360 = vsel %vm284, %v2293, 0
      %v2363 = vsel %vm284, %v2294, 0
      %v2366 = vsel %vm284, %v2295, 0
      %v2369 = vsel %vm284, %v2296, 0
      %v2372 = vsel %vm284, %v2297, 0
      %v2375 = vsel %vm284, %v2298, 0
      %v2378 = vsel %vm284, %v2299, 0
      %v2381 = vsel %vm284, %v2300, 0
      %v2384 = vsel %vm284, %v2301, 0
      %v2387 = vsel %vm284, %v2302, 0
      %v2390 = vsel %vm284, %v2303, 0
      %v2393 = vsel %vm284, %v2304, 0
      %v2396 = vsel %vm284, %v2305, 0
      %v2399 = vsel %vm284, %v2306, 0
      %v2402 = vsel %vm284, %v2307, 0
      %v2405 = vsel %vm284, %v2308, 0
      %v2408 = vsel %vm284, %v2309, 0
      %v2411 = vsel %vm284, %v2310, 0
      %v2414 = vsel %vm284, %v2311, 0
      %v2417 = vsel %vm284, %v2312, 0
      %v2420 = vsel %vm284, %v2313, 0
      %v2423 = vsel %vm284, %v2314, 0
      %v2426 = vsel %vm459, %v2316, 0
      %2428 = vmatprep.subr.mxu0 0.0
      %2429 = vmatpush1.msra.mxu0 %v2426
      %2430 = vmatprep.subr.mxu0 0.0
      %2431 = vmatpush1.msra.mxu0 0.0
      %2432 = vmatprep.subr.mxu0 0.0
      %2433 = vmatpush1.msra.mxu0 0.0
      %2434 = vmatprep.subr.mxu0 0.0
      %2435 = vmatpush1.msra.mxu0 0.0
      %2436 = vmatprep.subr.mxu0 0.0
      %2437 = vmatpush1.msra.mxu0 0.0
      %2438 = vmatprep.subr.mxu0 0.0
      %2439 = vmatpush1.msra.mxu0 0.0
      %2440 = vmatprep.subr.mxu0 0.0
      %2441 = vmatpush1.msra.mxu0 0.0
      %2442 = vmatprep.subr.mxu0 0.0
      %2443 = vmatpush1.msra.mxu0 0.0
      %2444 = vmatprep.subr.mxu0 0.0
      %2445 = vmatpush1.msra.mxu0 0.0
      %2446 = vmatprep.subr.mxu0 0.0
      %2447 = vmatpush1.msra.mxu0 0.0
      %2448 = vmatprep.subr.mxu0 0.0
      %2449 = vmatpush1.msra.mxu0 0.0
      %2450 = vmatprep.subr.mxu0 0.0
      %2451 = vmatpush1.msra.mxu0 0.0
      %2452 = vmatprep.subr.mxu0 0.0
      %2453 = vmatpush1.msra.mxu0 0.0
      %2454 = vmatprep.subr.mxu0 0.0
      %2455 = vmatpush1.msra.mxu0 0.0
      %2456 = vmatprep.subr.mxu0 0.0
      %2457 = vmatpush1.msra.mxu0 0.0
      %2458 = vmatprep.subr.mxu0 0.0
      %2459 = vmatpush1.msra.mxu0 0.0
      %2460 = vmatprep.subr.mxu0 0.0
      %2461 = vmatpush1.msra.mxu0 0.0
      %2462 = vmatprep.subr.mxu0 0.0
      %2463 = vmatpush1.msra.mxu0 0.0
      %2464 = vmatprep.subr.mxu0 0.0
      %2465 = vmatpush1.msra.mxu0 0.0
      %2466 = vmatprep.subr.mxu0 0.0
      %2467 = vmatpush1.msra.mxu0 0.0
      %2468 = vmatprep.subr.mxu0 0.0
      %2469 = vmatpush1.msra.mxu0 0.0
      %2470 = vmatprep.subr.mxu0 0.0
      %2471 = vmatpush1.msra.mxu0 0.0
      %2472 = vmatprep.subr.mxu0 0.0
      %2473 = vmatpush1.msra.mxu0 0.0
      %2474 = vmatprep.subr.mxu0 0.0
      %2475 = vmatpush1.msra.mxu0 0.0
      %2476 = vmatprep.subr.mxu0 0.0
      %2477 = vmatpush1.msra.mxu0 0.0
      %2478 = vmatprep.subr.mxu0 0.0
      %2479 = vmatpush1.msra.mxu0 0.0
      %2480 = vmatprep.subr.mxu0 0.0
      %2481 = vmatpush1.msra.mxu0 0.0
      %2482 = vmatprep.subr.mxu0 0.0
      %2483 = vmatpush1.msra.mxu0 0.0
      %2484 = vmatprep.subr.mxu0 0.0
      %2485 = vmatpush1.msra.mxu0 0.0
      %2486 = vmatprep.subr.mxu0 0.0
      %2487 = vmatpush1.msra.mxu0 0.0
      %2488 = vmatprep.subr.mxu0 0.0
      %2489 = vmatpush1.msra.mxu0 0.0
      %2490 = vmatprep.subr.mxu0 0.0
      %2491 = vmatpush1.msra.mxu0 0.0
      %2492 = vmatprep.mubr.f32.mxu0 0.0
      %2493 = vmatmul.mubr.f32.gmra.mrb[0].mxu0 %v2318
      %v2494 = vpop.f32.mrb[0].mxu0
      %v2495 = vadd.f32 0.0, %v2494
      %v2496 = vpop.f32.mrb[0].mxu0
      %2497 = vmatprep.mubr.f32.mxu0 0.0
      %2498 = vmatmul.mubr.f32.gmra.mrb[0].mxu0 %v2321
      %v2499 = vpop.f32.mrb[0].mxu0
      %v2500 = vadd.f32 0.0, %v2499
      %v2501 = vpop.f32.mrb[0].mxu0
      %2502 = vmatprep.mubr.f32.mxu0 0.0
      %2503 = vmatmul.mubr.f32.gmra.mrb[0].mxu0 %v2324
      %v2504 = vpop.f32.mrb[0].mxu0
      %v2505 = vadd.f32 0.0, %v2504
      %v2506 = vpop.f32.mrb[0].mxu0
      %2507 = vmatprep.mubr.f32.mxu0 0.0
      %2508 = vmatmul.mubr.f32.gmra.mrb[0].mxu0 %v2327
      %v2509 = vpop.f32.mrb[0].mxu0
      %v2510 = vadd.f32 0.0, %v2509
      %v2511 = vpop.f32.mrb[0].mxu0
      %2512 = vmatprep.mubr.f32.mxu0 0.0
      %2513 = vmatmul.mubr.f32.gmra.mrb[0].mxu0 %v2330
      %v2514 = vpop.f32.mrb[0].mxu0
      %v2515 = vadd.f32 0.0, %v2514
      %v2516 = vpop.f32.mrb[0].mxu0
      %2517 = vmatprep.mubr.f32.mxu0 0.0
      %2518 = vmatmul.mubr.f32.gmra.mrb[0].mxu0 %v2333
      %v2519 = vpop.f32.mrb[0].mxu0
      %v2520 = vadd.f32 0.0, %v2519
      %v2521 = vpop.f32.mrb[0].mxu0
      %2522 = vmatprep.mubr.f32.mxu0 0.0
      %2523 = vmatmul.mubr.f32.gmra.mrb[0].mxu0 %v2336
      %v2524 = vpop.f32.mrb[0].mxu0
      %v2525 = vadd.f32 0.0, %v2524
      %v2526 = vpop.f32.mrb[0].mxu0
      %2527 = vmatprep.mubr.f32.mxu0 0.0
      %2528 = vmatmul.mubr.f32.gmra.mrb[0].mxu0 %v2339
      %v2529 = vpop.f32.mrb[0].mxu0
      %v2530 = vadd.f32 0.0, %v2529
      %v2531 = vpop.f32.mrb[0].mxu0
      %2532 = vmatprep.mubr.f32.mxu0 0.0
      %2533 = vmatmul.mubr.f32.gmra.mrb[0].mxu0 %v2342
      %v2534 = vpop.f32.mrb[0].mxu0
      %v2535 = vadd.f32 0.0, %v2534
      %v2536 = vpop.f32.mrb[0].mxu0
      %2537 = vmatprep.mubr.f32.mxu0 0.0
      %2538 = vmatmul.mubr.f32.gmra.mrb[0].mxu0 %v2345
      %v2539 = vpop.f32.mrb[0].mxu0
      %v2540 = vadd.f32 0.0, %v2539
      %v2541 = vpop.f32.mrb[0].mxu0
      %2542 = vmatprep.mubr.f32.mxu0 0.0
      %2543 = vmatmul.mubr.f32.gmra.mrb[0].mxu0 %v2348
      %v2544 = vpop.f32.mrb[0].mxu0
      %v2545 = vadd.f32 0.0, %v2544
      %v2546 = vpop.f32.mrb[0].mxu0
      %2547 = vmatprep.mubr.f32.mxu0 0.0
      %2548 = vmatmul.mubr.f32.gmra.mrb[0].mxu0 %v2351
      %v2549 = vpop.f32.mrb[0].mxu0
      %v2550 = vadd.f32 0.0, %v2549
      %v2551 = vpop.f32.mrb[0].mxu0
      %2552 = vmatprep.mubr.f32.mxu0 0.0
      %2553 = vmatmul.mubr.f32.gmra.mrb[0].mxu0 %v2354
      %v2554 = vpop.f32.mrb[0].mxu0
      %v2555 = vadd.f32 0.0, %v2554
      %v2556 = vpop.f32.mrb[0].mxu0
      %2557 = vmatprep.mubr.f32.mxu0 0.0
      %2558 = vmatmul.mubr.f32.gmra.mrb[0].mxu0 %v2357
      %v2559 = vpop.f32.mrb[0].mxu0
      %v2560 = vadd.f32 0.0, %v2559
      %v2561 = vpop.f32.mrb[0].mxu0
      %2562 = vmatprep.mubr.f32.mxu0 0.0
      %2563 = vmatmul.mubr.f32.gmra.mrb[0].mxu0 %v2360
      %v2564 = vpop.f32.mrb[0].mxu0
      %v2565 = vadd.f32 0.0, %v2564
      %v2566 = vpop.f32.mrb[0].mxu0
      %2567 = vmatprep.mubr.f32.mxu0 0.0
      %2568 = vmatmul.mubr.f32.gmra.mrb[0].mxu0 %v2363
      %v2569 = vpop.f32.mrb[0].mxu0
      %v2570 = vadd.f32 0.0, %v2569
      %v2571 = vpop.f32.mrb[0].mxu0
      %2572 = vmatprep.mubr.f32.mxu0 0.0
      %2573 = vmatmul.mubr.f32.gmra.mrb[0].mxu0 %v2366
      %v2574 = vpop.f32.mrb[0].mxu0
      %v2575 = vadd.f32 0.0, %v2574
      %v2576 = vpop.f32.mrb[0].mxu0
      %2577 = vmatprep.mubr.f32.mxu0 0.0
      %2578 = vmatmul.mubr.f32.gmra.mrb[0].mxu0 %v2369
      %v2579 = vpop.f32.mrb[0].mxu0
      %v2580 = vadd.f32 0.0, %v2579
      %v2581 = vpop.f32.mrb[0].mxu0
      %2582 = vmatprep.mubr.f32.mxu0 0.0
      %2583 = vmatmul.mubr.f32.gmra.mrb[0].mxu0 %v2372
      %v2584 = vpop.f32.mrb[0].mxu0
      %v2585 = vadd.f32 0.0, %v2584
      %v2586 = vpop.f32.mrb[0].mxu0
      %2587 = vmatprep.mubr.f32.mxu0 0.0
      %2588 = vmatmul.mubr.f32.gmra.mrb[0].mxu0 %v2375
      %v2589 = vpop.f32.mrb[0].mxu0
      %v2590 = vadd.f32 0.0, %v2589
      %v2591 = vpop.f32.mrb[0].mxu0
      %2592 = vmatprep.mubr.f32.mxu0 0.0
      %2593 = vmatmul.mubr.f32.gmra.mrb[0].mxu0 %v2378
      %v2594 = vpop.f32.mrb[0].mxu0
      %v2595 = vadd.f32 0.0, %v2594
      %v2596 = vpop.f32.mrb[0].mxu0
      %2597 = vmatprep.mubr.f32.mxu0 0.0
      %2598 = vmatmul.mubr.f32.gmra.mrb[0].mxu0 %v2381
      %v2599 = vpop.f32.mrb[0].mxu0
      %v2600 = vadd.f32 0.0, %v2599
      %v2601 = vpop.f32.mrb[0].mxu0
      %2602 = vmatprep.mubr.f32.mxu0 0.0
      %2603 = vmatmul.mubr.f32.gmra.mrb[0].mxu0 %v2384
      %v2604 = vpop.f32.mrb[0].mxu0
      %v2605 = vadd.f32 0.0, %v2604
      %v2606 = vpop.f32.mrb[0].mxu0
      %2607 = vmatprep.mubr.f32.mxu0 0.0
      %2608 = vmatmul.mubr.f32.gmra.mrb[0].mxu0 %v2387
      %v2609 = vpop.f32.mrb[0].mxu0
      %v2610 = vadd.f32 0.0, %v2609
      %v2611 = vpop.f32.mrb[0].mxu0
      %2612 = vmatprep.mubr.f32.mxu0 0.0
      %2613 = vmatmul.mubr.f32.gmra.mrb[0].mxu0 %v2390
      %v2614 = vpop.f32.mrb[0].mxu0
      %v2615 = vadd.f32 0.0, %v2614
      %v2616 = vpop.f32.mrb[0].mxu0
      %2617 = vmatprep.mubr.f32.mxu0 0.0
      %2618 = vmatmul.mubr.f32.gmra.mrb[0].mxu0 %v2393
      %v2619 = vpop.f32.mrb[0].mxu0
      %v2620 = vadd.f32 0.0, %v2619
      %v2621 = vpop.f32.mrb[0].mxu0
      %2622 = vmatprep.mubr.f32.mxu0 0.0
      %2623 = vmatmul.mubr.f32.gmra.mrb[0].mxu0 %v2396
      %v2624 = vpop.f32.mrb[0].mxu0
      %v2625 = vadd.f32 0.0, %v2624
      %v2626 = vpop.f32.mrb[0].mxu0
      %2627 = vmatprep.mubr.f32.mxu0 0.0
      %2628 = vmatmul.mubr.f32.gmra.mrb[0].mxu0 %v2399
      %v2629 = vpop.f32.mrb[0].mxu0
      %v2630 = vadd.f32 0.0, %v2629
      %v2631 = vpop.f32.mrb[0].mxu0
      %2632 = vmatprep.mubr.f32.mxu0 0.0
      %2633 = vmatmul.mubr.f32.gmra.mrb[0].mxu0 %v2402
      %v2634 = vpop.f32.mrb[0].mxu0
      %v2635 = vadd.f32 0.0, %v2634
      %v2636 = vpop.f32.mrb[0].mxu0
      %2637 = vmatprep.mubr.f32.mxu0 0.0
      %2638 = vmatmul.mubr.f32.gmra.mrb[0].mxu0 %v2405
      %v2639 = vpop.f32.mrb[0].mxu0
      %v2640 = vadd.f32 0.0, %v2639
      %v2641 = vpop.f32.mrb[0].mxu0
      %2642 = vmatprep.mubr.f32.mxu0 0.0
      %2643 = vmatmul.mubr.f32.gmra.mrb[0].mxu0 %v2408
      %v2644 = vpop.f32.mrb[0].mxu0
      %v2645 = vadd.f32 0.0, %v2644
      %v2646 = vpop.f32.mrb[0].mxu0
      %2647 = vmatprep.mubr.f32.mxu0 0.0
      %2648 = vmatmul.mubr.f32.gmra.mrb[0].mxu0 %v2411
      %v2649 = vpop.f32.mrb[0].mxu0
      %v2650 = vadd.f32 0.0, %v2649
      %v2651 = vpop.f32.mrb[0].mxu0
      %2652 = vmatprep.mubr.f32.mxu0 0.0
      %2653 = vmatmul.mubr.f32.gmra.mrb[0].mxu0 %v2414
      %v2654 = vpop.f32.mrb[0].mxu0
      %v2655 = vadd.f32 0.0, %v2654
      %v2656 = vpop.f32.mrb[0].mxu0
      %2657 = vmatprep.mubr.f32.mxu0 0.0
      %2658 = vmatmul.mubr.f32.gmra.mrb[0].mxu0 %v2417
      %v2659 = vpop.f32.mrb[0].mxu0
      %v2660 = vadd.f32 0.0, %v2659
      %v2661 = vpop.f32.mrb[0].mxu0
      %2662 = vmatprep.mubr.f32.mxu0 0.0
      %2663 = vmatmul.mubr.f32.gmra.mrb[0].mxu0 %v2420
      %v2664 = vpop.f32.mrb[0].mxu0
      %v2665 = vadd.f32 0.0, %v2664
      %v2666 = vpop.f32.mrb[0].mxu0
      %2667 = vmatprep.mubr.f32.mxu0 0.0
      %2668 = vmatmul.mubr.f32.gmra.mrb[0].mxu0 %v2423
      %v2669 = vpop.f32.mrb[0].mxu0
      %v2670 = vadd.f32 0.0, %v2669
      %v2671 = vpop.f32.mrb[0].mxu0
      %2672 = vdwg.mxu0
      %v2673 = vadd.f32 %v2243, %v2495
      %v2674 = vadd.f32 %v2244, %v2500
      %v2675 = vadd.f32 %v2245, %v2505
      %v2676 = vadd.f32 %v2246, %v2510
      %v2677 = vadd.f32 %v2247, %v2515
      %v2678 = vadd.f32 %v2248, %v2520
      %v2679 = vadd.f32 %v2249, %v2525
      %v2680 = vadd.f32 %v2250, %v2530
      %v2681 = vadd.f32 %v2251, %v2535
      %v2682 = vadd.f32 %v2252, %v2540
      %v2683 = vadd.f32 %v2253, %v2545
      %v2684 = vadd.f32 %v2254, %v2550
      %v2685 = vadd.f32 %v2255, %v2555
      %v2686 = vadd.f32 %v2256, %v2560
      %v2687 = vadd.f32 %v2257, %v2565
      %v2688 = vadd.f32 %v2258, %v2570
      %v2689 = vadd.f32 %v2259, %v2575
      %v2690 = vadd.f32 %v2260, %v2580
      %v2691 = vadd.f32 %v2261, %v2585
      %v2692 = vadd.f32 %v2262, %v2590
      %v2693 = vadd.f32 %v2263, %v2595
      %v2694 = vadd.f32 %v2264, %v2600
      %v2695 = vadd.f32 %v2265, %v2605
      %v2696 = vadd.f32 %v2266, %v2610
      %v2697 = vadd.f32 %v2267, %v2615
      %v2698 = vadd.f32 %v2268, %v2620
      %v2699 = vadd.f32 %v2269, %v2625
      %v2700 = vadd.f32 %v2270, %v2630
      %v2701 = vadd.f32 %v2271, %v2635
      %v2702 = vadd.f32 %v2272, %v2640
      %v2703 = vadd.f32 %v2273, %v2645
      %v2704 = vadd.f32 %v2274, %v2650
      %v2705 = vadd.f32 %v2275, %v2655
      %v2706 = vadd.f32 %v2276, %v2660
      %v2707 = vadd.f32 %v2277, %v2665
      %v2708 = vadd.f32 %v2278, %v2670
      %v2709 = vld [vmem:[#allocation2 + $0x13] sm:$0xff]
      %v2710 = vld [vmem:[#allocation2 + $0x1b] sm:$0xff]
      %v2711 = vld [vmem:[#allocation2 + $0x23] sm:$0xff]
      %v2712 = vld [vmem:[#allocation2 + $0x2b] sm:$0xff]
      %v2713 = vld [vmem:[#allocation2 + $0x33] sm:$0xff]
      %v2714 = vld [vmem:[#allocation2 + $0x3b] sm:$0xff]
      %v2715 = vld [vmem:[#allocation2 + $0x43] sm:$0xff]
      %v2716 = vld [vmem:[#allocation2 + $0x4b] sm:$0xff]
      %v2717 = vld [vmem:[#allocation2 + $0x53] sm:$0xff]
      %v2718 = vld [vmem:[#allocation2 + $0x5b] sm:$0xff]
      %v2719 = vld [vmem:[#allocation2 + $0x63] sm:$0xff]
      %v2720 = vld [vmem:[#allocation2 + $0x6b] sm:$0xff]
      %v2721 = vld [vmem:[#allocation2 + $0x73] sm:$0xff]
      %v2722 = vld [vmem:[#allocation2 + $0x7b] sm:$0xff]
      %v2723 = vld [vmem:[#allocation2 + $0x83] sm:$0xff]
      %v2724 = vld [vmem:[#allocation2 + $0x8b] sm:$0xff]
      %v2725 = vld [vmem:[#allocation2 + $0x93] sm:$0xff]
      %v2726 = vld [vmem:[#allocation2 + $0x9b] sm:$0xff]
      %v2727 = vld [vmem:[#allocation2 + $0xa3] sm:$0xff]
      %v2728 = vld [vmem:[#allocation2 + $0xab] sm:$0xff]
      %v2729 = vld [vmem:[#allocation2 + $0xb3] sm:$0xff]
      %v2730 = vld [vmem:[#allocation2 + $0xbb] sm:$0xff]
      %v2731 = vld [vmem:[#allocation2 + $0xc3] sm:$0xff]
      %v2732 = vld [vmem:[#allocation2 + $0xcb] sm:$0xff]
      %v2733 = vld [vmem:[#allocation2 + $0xd3] sm:$0xff]
      %v2734 = vld [vmem:[#allocation2 + $0xdb] sm:$0xff]
      %v2735 = vld [vmem:[#allocation2 + $0xe3] sm:$0xff]
      %v2736 = vld [vmem:[#allocation2 + $0xeb] sm:$0xff]
      %v2737 = vld [vmem:[#allocation2 + $0xf3] sm:$0xff]
      %v2738 = vld [vmem:[#allocation2 + $0xfb] sm:$0xff]
      %v2739 = vld [vmem:[#allocation2 + $0x103] sm:$0xff]
      %v2740 = vld [vmem:[#allocation2 + $0x10b] sm:$0xff]
      %v2741 = vld [vmem:[#allocation2 + $0x113] sm:$0xff]
      %v2742 = vld [vmem:[#allocation2 + $0x11b] sm:$0xff]
      %v2743 = vld [vmem:[#allocation2 + $0x123] sm:$0xff]
      %v2744 = vld [vmem:[#allocation2 + $0x12b] sm:$0xff]
      %s2745 = scalar_lea.vmem %s4, 16
      %v2746 = vld [vmem:[%s2745] sm:$0xf]
      %v2748 = vsel %vm284, %v2709, 0
      %v2751 = vsel %vm284, %v2710, 0
      %v2754 = vsel %vm284, %v2711, 0
      %v2757 = vsel %vm284, %v2712, 0
      %v2760 = vsel %vm284, %v2713, 0
      %v2763 = vsel %vm284, %v2714, 0
      %v2766 = vsel %vm284, %v2715, 0
      %v2769 = vsel %vm284, %v2716, 0
      %v2772 = vsel %vm284, %v2717, 0
      %v2775 = vsel %vm284, %v2718, 0
      %v2778 = vsel %vm284, %v2719, 0
      %v2781 = vsel %vm284, %v2720, 0
      %v2784 = vsel %vm284, %v2721, 0
      %v2787 = vsel %vm284, %v2722, 0
      %v2790 = vsel %vm284, %v2723, 0
      %v2793 = vsel %vm284, %v2724, 0
      %v2796 = vsel %vm284, %v2725, 0
      %v2799 = vsel %vm284, %v2726, 0
      %v2802 = vsel %vm284, %v2727, 0
      %v2805 = vsel %vm284, %v2728, 0
      %v2808 = vsel %vm284, %v2729, 0
      %v2811 = vsel %vm284, %v2730, 0
      %v2814 = vsel %vm284, %v2731, 0
      %v2817 = vsel %vm284, %v2732, 0
      %v2820 = vsel %vm284, %v2733, 0
      %v2823 = vsel %vm284, %v2734, 0
      %v2826 = vsel %vm284, %v2735, 0
      %v2829 = vsel %vm284, %v2736, 0
      %v2832 = vsel %vm284, %v2737, 0
      %v2835 = vsel %vm284, %v2738, 0
      %v2838 = vsel %vm284, %v2739, 0
      %v2841 = vsel %vm284, %v2740, 0
      %v2844 = vsel %vm284, %v2741, 0
      %v2847 = vsel %vm284, %v2742, 0
      %v2850 = vsel %vm284, %v2743, 0
      %v2853 = vsel %vm284, %v2744, 0
      %v2856 = vsel %vm459, %v2746, 0
      %2858 = vmatprep.subr.mxu0 0.0
      %2859 = vmatpush1.msra.mxu0 %v2856
      %2860 = vmatprep.subr.mxu0 0.0
      %2861 = vmatpush1.msra.mxu0 0.0
      %2862 = vmatprep.subr.mxu0 0.0
      %2863 = vmatpush1.msra.mxu0 0.0
      %2864 = vmatprep.subr.mxu0 0.0
      %2865 = vmatpush1.msra.mxu0 0.0
      %2866 = vmatprep.subr.mxu0 0.0
      %2867 = vmatpush1.msra.mxu0 0.0
      %2868 = vmatprep.subr.mxu0 0.0
      %2869 = vmatpush1.msra.mxu0 0.0
      %2870 = vmatprep.subr.mxu0 0.0
      %2871 = vmatpush1.msra.mxu0 0.0
      %2872 = vmatprep.subr.mxu0 0.0
      %2873 = vmatpush1.msra.mxu0 0.0
      %2874 = vmatprep.subr.mxu0 0.0
      %2875 = vmatpush1.msra.mxu0 0.0
      %2876 = vmatprep.subr.mxu0 0.0
      %2877 = vmatpush1.msra.mxu0 0.0
      %2878 = vmatprep.subr.mxu0 0.0
      %2879 = vmatpush1.msra.mxu0 0.0
      %2880 = vmatprep.subr.mxu0 0.0
      %2881 = vmatpush1.msra.mxu0 0.0
      %2882 = vmatprep.subr.mxu0 0.0
      %2883 = vmatpush1.msra.mxu0 0.0
      %2884 = vmatprep.subr.mxu0 0.0
      %2885 = vmatpush1.msra.mxu0 0.0
      %2886 = vmatprep.subr.mxu0 0.0
      %2887 = vmatpush1.msra.mxu0 0.0
      %2888 = vmatprep.subr.mxu0 0.0
      %2889 = vmatpush1.msra.mxu0 0.0
      %2890 = vmatprep.subr.mxu0 0.0
      %2891 = vmatpush1.msra.mxu0 0.0
      %2892 = vmatprep.subr.mxu0 0.0
      %2893 = vmatpush1.msra.mxu0 0.0
      %2894 = vmatprep.subr.mxu0 0.0
      %2895 = vmatpush1.msra.mxu0 0.0
      %2896 = vmatprep.subr.mxu0 0.0
      %2897 = vmatpush1.msra.mxu0 0.0
      %2898 = vmatprep.subr.mxu0 0.0
      %2899 = vmatpush1.msra.mxu0 0.0
      %2900 = vmatprep.subr.mxu0 0.0
      %2901 = vmatpush1.msra.mxu0 0.0
      %2902 = vmatprep.subr.mxu0 0.0
      %2903 = vmatpush1.msra.mxu0 0.0
      %2904 = vmatprep.subr.mxu0 0.0
      %2905 = vmatpush1.msra.mxu0 0.0
      %2906 = vmatprep.subr.mxu0 0.0
      %2907 = vmatpush1.msra.mxu0 0.0
      %2908 = vmatprep.subr.mxu0 0.0
      %2909 = vmatpush1.msra.mxu0 0.0
      %2910 = vmatprep.subr.mxu0 0.0
      %2911 = vmatpush1.msra.mxu0 0.0
      %2912 = vmatprep.subr.mxu0 0.0
      %2913 = vmatpush1.msra.mxu0 0.0
      %2914 = vmatprep.subr.mxu0 0.0
      %2915 = vmatpush1.msra.mxu0 0.0
      %2916 = vmatprep.subr.mxu0 0.0
      %2917 = vmatpush1.msra.mxu0 0.0
      %2918 = vmatprep.subr.mxu0 0.0
      %2919 = vmatpush1.msra.mxu0 0.0
      %2920 = vmatprep.subr.mxu0 0.0
      %2921 = vmatpush1.msra.mxu0 0.0
      %2922 = vmatprep.mubr.f32.mxu0 0.0
      %2923 = vmatmul.mubr.f32.gmra.mrb[0].mxu0 %v2748
      %v2924 = vpop.f32.mrb[0].mxu0
      %v2925 = vadd.f32 0.0, %v2924
      %v2926 = vpop.f32.mrb[0].mxu0
      %2927 = vmatprep.mubr.f32.mxu0 0.0
      %2928 = vmatmul.mubr.f32.gmra.mrb[0].mxu0 %v2751
      %v2929 = vpop.f32.mrb[0].mxu0
      %v2930 = vadd.f32 0.0, %v2929
      %v2931 = vpop.f32.mrb[0].mxu0
      %2932 = vmatprep.mubr.f32.mxu0 0.0
      %2933 = vmatmul.mubr.f32.gmra.mrb[0].mxu0 %v2754
      %v2934 = vpop.f32.mrb[0].mxu0
      %v2935 = vadd.f32 0.0, %v2934
      %v2936 = vpop.f32.mrb[0].mxu0
      %2937 = vmatprep.mubr.f32.mxu0 0.0
      %2938 = vmatmul.mubr.f32.gmra.mrb[0].mxu0 %v2757
      %v2939 = vpop.f32.mrb[0].mxu0
      %v2940 = vadd.f32 0.0, %v2939
      %v2941 = vpop.f32.mrb[0].mxu0
      %2942 = vmatprep.mubr.f32.mxu0 0.0
      %2943 = vmatmul.mubr.f32.gmra.mrb[0].mxu0 %v2760
      %v2944 = vpop.f32.mrb[0].mxu0
      %v2945 = vadd.f32 0.0, %v2944
      %v2946 = vpop.f32.mrb[0].mxu0
      %2947 = vmatprep.mubr.f32.mxu0 0.0
      %2948 = vmatmul.mubr.f32.gmra.mrb[0].mxu0 %v2763
      %v2949 = vpop.f32.mrb[0].mxu0
      %v2950 = vadd.f32 0.0, %v2949
      %v2951 = vpop.f32.mrb[0].mxu0
      %2952 = vmatprep.mubr.f32.mxu0 0.0
      %2953 = vmatmul.mubr.f32.gmra.mrb[0].mxu0 %v2766
      %v2954 = vpop.f32.mrb[0].mxu0
      %v2955 = vadd.f32 0.0, %v2954
      %v2956 = vpop.f32.mrb[0].mxu0
      %2957 = vmatprep.mubr.f32.mxu0 0.0
      %2958 = vmatmul.mubr.f32.gmra.mrb[0].mxu0 %v2769
      %v2959 = vpop.f32.mrb[0].mxu0
      %v2960 = vadd.f32 0.0, %v2959
      %v2961 = vpop.f32.mrb[0].mxu0
      %2962 = vmatprep.mubr.f32.mxu0 0.0
      %2963 = vmatmul.mubr.f32.gmra.mrb[0].mxu0 %v2772
      %v2964 = vpop.f32.mrb[0].mxu0
      %v2965 = vadd.f32 0.0, %v2964
      %v2966 = vpop.f32.mrb[0].mxu0
      %2967 = vmatprep.mubr.f32.mxu0 0.0
      %2968 = vmatmul.mubr.f32.gmra.mrb[0].mxu0 %v2775
      %v2969 = vpop.f32.mrb[0].mxu0
      %v2970 = vadd.f32 0.0, %v2969
      %v2971 = vpop.f32.mrb[0].mxu0
      %2972 = vmatprep.mubr.f32.mxu0 0.0
      %2973 = vmatmul.mubr.f32.gmra.mrb[0].mxu0 %v2778
      %v2974 = vpop.f32.mrb[0].mxu0
      %v2975 = vadd.f32 0.0, %v2974
      %v2976 = vpop.f32.mrb[0].mxu0
      %2977 = vmatprep.mubr.f32.mxu0 0.0
      %2978 = vmatmul.mubr.f32.gmra.mrb[0].mxu0 %v2781
      %v2979 = vpop.f32.mrb[0].mxu0
      %v2980 = vadd.f32 0.0, %v2979
      %v2981 = vpop.f32.mrb[0].mxu0
      %2982 = vmatprep.mubr.f32.mxu0 0.0
      %2983 = vmatmul.mubr.f32.gmra.mrb[0].mxu0 %v2784
      %v2984 = vpop.f32.mrb[0].mxu0
      %v2985 = vadd.f32 0.0, %v2984
      %v2986 = vpop.f32.mrb[0].mxu0
      %2987 = vmatprep.mubr.f32.mxu0 0.0
      %2988 = vmatmul.mubr.f32.gmra.mrb[0].mxu0 %v2787
      %v2989 = vpop.f32.mrb[0].mxu0
      %v2990 = vadd.f32 0.0, %v2989
      %v2991 = vpop.f32.mrb[0].mxu0
      %2992 = vmatprep.mubr.f32.mxu0 0.0
      %2993 = vmatmul.mubr.f32.gmra.mrb[0].mxu0 %v2790
      %v2994 = vpop.f32.mrb[0].mxu0
      %v2995 = vadd.f32 0.0, %v2994
      %v2996 = vpop.f32.mrb[0].mxu0
      %2997 = vmatprep.mubr.f32.mxu0 0.0
      %2998 = vmatmul.mubr.f32.gmra.mrb[0].mxu0 %v2793
      %v2999 = vpop.f32.mrb[0].mxu0
      %v3000 = vadd.f32 0.0, %v2999
      %v3001 = vpop.f32.mrb[0].mxu0
      %3002 = vmatprep.mubr.f32.mxu0 0.0
      %3003 = vmatmul.mubr.f32.gmra.mrb[0].mxu0 %v2796
      %v3004 = vpop.f32.mrb[0].mxu0
      %v3005 = vadd.f32 0.0, %v3004
      %v3006 = vpop.f32.mrb[0].mxu0
      %3007 = vmatprep.mubr.f32.mxu0 0.0
      %3008 = vmatmul.mubr.f32.gmra.mrb[0].mxu0 %v2799
      %v3009 = vpop.f32.mrb[0].mxu0
      %v3010 = vadd.f32 0.0, %v3009
      %v3011 = vpop.f32.mrb[0].mxu0
      %3012 = vmatprep.mubr.f32.mxu0 0.0
      %3013 = vmatmul.mubr.f32.gmra.mrb[0].mxu0 %v2802
      %v3014 = vpop.f32.mrb[0].mxu0
      %v3015 = vadd.f32 0.0, %v3014
      %v3016 = vpop.f32.mrb[0].mxu0
      %3017 = vmatprep.mubr.f32.mxu0 0.0
      %3018 = vmatmul.mubr.f32.gmra.mrb[0].mxu0 %v2805
      %v3019 = vpop.f32.mrb[0].mxu0
      %v3020 = vadd.f32 0.0, %v3019
      %v3021 = vpop.f32.mrb[0].mxu0
      %3022 = vmatprep.mubr.f32.mxu0 0.0
      %3023 = vmatmul.mubr.f32.gmra.mrb[0].mxu0 %v2808
      %v3024 = vpop.f32.mrb[0].mxu0
      %v3025 = vadd.f32 0.0, %v3024
      %v3026 = vpop.f32.mrb[0].mxu0
      %3027 = vmatprep.mubr.f32.mxu0 0.0
      %3028 = vmatmul.mubr.f32.gmra.mrb[0].mxu0 %v2811
      %v3029 = vpop.f32.mrb[0].mxu0
      %v3030 = vadd.f32 0.0, %v3029
      %v3031 = vpop.f32.mrb[0].mxu0
      %3032 = vmatprep.mubr.f32.mxu0 0.0
      %3033 = vmatmul.mubr.f32.gmra.mrb[0].mxu0 %v2814
      %v3034 = vpop.f32.mrb[0].mxu0
      %v3035 = vadd.f32 0.0, %v3034
      %v3036 = vpop.f32.mrb[0].mxu0
      %3037 = vmatprep.mubr.f32.mxu0 0.0
      %3038 = vmatmul.mubr.f32.gmra.mrb[0].mxu0 %v2817
      %v3039 = vpop.f32.mrb[0].mxu0
      %v3040 = vadd.f32 0.0, %v3039
      %v3041 = vpop.f32.mrb[0].mxu0
      %3042 = vmatprep.mubr.f32.mxu0 0.0
      %3043 = vmatmul.mubr.f32.gmra.mrb[0].mxu0 %v2820
      %v3044 = vpop.f32.mrb[0].mxu0
      %v3045 = vadd.f32 0.0, %v3044
      %v3046 = vpop.f32.mrb[0].mxu0
      %3047 = vmatprep.mubr.f32.mxu0 0.0
      %3048 = vmatmul.mubr.f32.gmra.mrb[0].mxu0 %v2823
      %v3049 = vpop.f32.mrb[0].mxu0
      %v3050 = vadd.f32 0.0, %v3049
      %v3051 = vpop.f32.mrb[0].mxu0
      %3052 = vmatprep.mubr.f32.mxu0 0.0
      %3053 = vmatmul.mubr.f32.gmra.mrb[0].mxu0 %v2826
      %v3054 = vpop.f32.mrb[0].mxu0
      %v3055 = vadd.f32 0.0, %v3054
      %v3056 = vpop.f32.mrb[0].mxu0
      %3057 = vmatprep.mubr.f32.mxu0 0.0
      %3058 = vmatmul.mubr.f32.gmra.mrb[0].mxu0 %v2829
      %v3059 = vpop.f32.mrb[0].mxu0
      %v3060 = vadd.f32 0.0, %v3059
      %v3061 = vpop.f32.mrb[0].mxu0
      %3062 = vmatprep.mubr.f32.mxu0 0.0
      %3063 = vmatmul.mubr.f32.gmra.mrb[0].mxu0 %v2832
      %v3064 = vpop.f32.mrb[0].mxu0
      %v3065 = vadd.f32 0.0, %v3064
      %v3066 = vpop.f32.mrb[0].mxu0
      %3067 = vmatprep.mubr.f32.mxu0 0.0
      %3068 = vmatmul.mubr.f32.gmra.mrb[0].mxu0 %v2835
      %v3069 = vpop.f32.mrb[0].mxu0
      %v3070 = vadd.f32 0.0, %v3069
      %v3071 = vpop.f32.mrb[0].mxu0
      %3072 = vmatprep.mubr.f32.mxu0 0.0
      %3073 = vmatmul.mubr.f32.gmra.mrb[0].mxu0 %v2838
      %v3074 = vpop.f32.mrb[0].mxu0
      %v3075 = vadd.f32 0.0, %v3074
      %v3076 = vpop.f32.mrb[0].mxu0
      %3077 = vmatprep.mubr.f32.mxu0 0.0
      %3078 = vmatmul.mubr.f32.gmra.mrb[0].mxu0 %v2841
      %v3079 = vpop.f32.mrb[0].mxu0
      %v3080 = vadd.f32 0.0, %v3079
      %v3081 = vpop.f32.mrb[0].mxu0
      %3082 = vmatprep.mubr.f32.mxu0 0.0
      %3083 = vmatmul.mubr.f32.gmra.mrb[0].mxu0 %v2844
      %v3084 = vpop.f32.mrb[0].mxu0
      %v3085 = vadd.f32 0.0, %v3084
      %v3086 = vpop.f32.mrb[0].mxu0
      %3087 = vmatprep.mubr.f32.mxu0 0.0
      %3088 = vmatmul.mubr.f32.gmra.mrb[0].mxu0 %v2847
      %v3089 = vpop.f32.mrb[0].mxu0
      %v3090 = vadd.f32 0.0, %v3089
      %v3091 = vpop.f32.mrb[0].mxu0
      %3092 = vmatprep.mubr.f32.mxu0 0.0
      %3093 = vmatmul.mubr.f32.gmra.mrb[0].mxu0 %v2850
      %v3094 = vpop.f32.mrb[0].mxu0
      %v3095 = vadd.f32 0.0, %v3094
      %v3096 = vpop.f32.mrb[0].mxu0
      %3097 = vmatprep.mubr.f32.mxu0 0.0
      %3098 = vmatmul.mubr.f32.gmra.mrb[0].mxu0 %v2853
      %v3099 = vpop.f32.mrb[0].mxu0
      %v3100 = vadd.f32 0.0, %v3099
      %v3101 = vpop.f32.mrb[0].mxu0
      %3102 = vdwg.mxu0
      %v3103 = vadd.f32 %v2673, %v2925
      %v3104 = vadd.f32 %v2674, %v2930
      %v3105 = vadd.f32 %v2675, %v2935
      %v3106 = vadd.f32 %v2676, %v2940
      %v3107 = vadd.f32 %v2677, %v2945
      %v3108 = vadd.f32 %v2678, %v2950
      %v3109 = vadd.f32 %v2679, %v2955
      %v3110 = vadd.f32 %v2680, %v2960
      %v3111 = vadd.f32 %v2681, %v2965
      %v3112 = vadd.f32 %v2682, %v2970
      %v3113 = vadd.f32 %v2683, %v2975
      %v3114 = vadd.f32 %v2684, %v2980
      %v3115 = vadd.f32 %v2685, %v2985
      %v3116 = vadd.f32 %v2686, %v2990
      %v3117 = vadd.f32 %v2687, %v2995
      %v3118 = vadd.f32 %v2688, %v3000
      %v3119 = vadd.f32 %v2689, %v3005
      %v3120 = vadd.f32 %v2690, %v3010
      %v3121 = vadd.f32 %v2691, %v3015
      %v3122 = vadd.f32 %v2692, %v3020
      %v3123 = vadd.f32 %v2693, %v3025
      %v3124 = vadd.f32 %v2694, %v3030
      %v3125 = vadd.f32 %v2695, %v3035
      %v3126 = vadd.f32 %v2696, %v3040
      %v3127 = vadd.f32 %v2697, %v3045
      %v3128 = vadd.f32 %v2698, %v3050
      %v3129 = vadd.f32 %v2699, %v3055
      %v3130 = vadd.f32 %v2700, %v3060
      %v3131 = vadd.f32 %v2701, %v3065
      %v3132 = vadd.f32 %v2702, %v3070
      %v3133 = vadd.f32 %v2703, %v3075
      %v3134 = vadd.f32 %v2704, %v3080
      %v3135 = vadd.f32 %v2705, %v3085
      %v3136 = vadd.f32 %v2706, %v3090
      %v3137 = vadd.f32 %v2707, %v3095
      %v3138 = vadd.f32 %v2708, %v3100
      %v3139 = vld [vmem:[#allocation2 + $0x14] sm:$0xff]
      %v3140 = vld [vmem:[#allocation2 + $0x1c] sm:$0xff]
      %v3141 = vld [vmem:[#allocation2 + $0x24] sm:$0xff]
      %v3142 = vld [vmem:[#allocation2 + $0x2c] sm:$0xff]
      %v3143 = vld [vmem:[#allocation2 + $0x34] sm:$0xff]
      %v3144 = vld [vmem:[#allocation2 + $0x3c] sm:$0xff]
      %v3145 = vld [vmem:[#allocation2 + $0x44] sm:$0xff]
      %v3146 = vld [vmem:[#allocation2 + $0x4c] sm:$0xff]
      %v3147 = vld [vmem:[#allocation2 + $0x54] sm:$0xff]
      %v3148 = vld [vmem:[#allocation2 + $0x5c] sm:$0xff]
      %v3149 = vld [vmem:[#allocation2 + $0x64] sm:$0xff]
      %v3150 = vld [vmem:[#allocation2 + $0x6c] sm:$0xff]
      %v3151 = vld [vmem:[#allocation2 + $0x74] sm:$0xff]
      %v3152 = vld [vmem:[#allocation2 + $0x7c] sm:$0xff]
      %v3153 = vld [vmem:[#allocation2 + $0x84] sm:$0xff]
      %v3154 = vld [vmem:[#allocation2 + $0x8c] sm:$0xff]
      %v3155 = vld [vmem:[#allocation2 + $0x94] sm:$0xff]
      %v3156 = vld [vmem:[#allocation2 + $0x9c] sm:$0xff]
      %v3157 = vld [vmem:[#allocation2 + $0xa4] sm:$0xff]
      %v3158 = vld [vmem:[#allocation2 + $0xac] sm:$0xff]
      %v3159 = vld [vmem:[#allocation2 + $0xb4] sm:$0xff]
      %v3160 = vld [vmem:[#allocation2 + $0xbc] sm:$0xff]
      %v3161 = vld [vmem:[#allocation2 + $0xc4] sm:$0xff]
      %v3162 = vld [vmem:[#allocation2 + $0xcc] sm:$0xff]
      %v3163 = vld [vmem:[#allocation2 + $0xd4] sm:$0xff]
      %v3164 = vld [vmem:[#allocation2 + $0xdc] sm:$0xff]
      %v3165 = vld [vmem:[#allocation2 + $0xe4] sm:$0xff]
      %v3166 = vld [vmem:[#allocation2 + $0xec] sm:$0xff]
      %v3167 = vld [vmem:[#allocation2 + $0xf4] sm:$0xff]
      %v3168 = vld [vmem:[#allocation2 + $0xfc] sm:$0xff]
      %v3169 = vld [vmem:[#allocation2 + $0x104] sm:$0xff]
      %v3170 = vld [vmem:[#allocation2 + $0x10c] sm:$0xff]
      %v3171 = vld [vmem:[#allocation2 + $0x114] sm:$0xff]
      %v3172 = vld [vmem:[#allocation2 + $0x11c] sm:$0xff]
      %v3173 = vld [vmem:[#allocation2 + $0x124] sm:$0xff]
      %v3174 = vld [vmem:[#allocation2 + $0x12c] sm:$0xff]
      %s3175 = scalar_lea.vmem %s4, 20
      %v3176 = vld [vmem:[%s3175] sm:$0xf]
      %v3178 = vsel %vm284, %v3139, 0
      %v3181 = vsel %vm284, %v3140, 0
      %v3184 = vsel %vm284, %v3141, 0
      %v3187 = vsel %vm284, %v3142, 0
      %v3190 = vsel %vm284, %v3143, 0
      %v3193 = vsel %vm284, %v3144, 0
      %v3196 = vsel %vm284, %v3145, 0
      %v3199 = vsel %vm284, %v3146, 0
      %v3202 = vsel %vm284, %v3147, 0
      %v3205 = vsel %vm284, %v3148, 0
      %v3208 = vsel %vm284, %v3149, 0
      %v3211 = vsel %vm284, %v3150, 0
      %v3214 = vsel %vm284, %v3151, 0
      %v3217 = vsel %vm284, %v3152, 0
      %v3220 = vsel %vm284, %v3153, 0
      %v3223 = vsel %vm284, %v3154, 0
      %v3226 = vsel %vm284, %v3155, 0
      %v3229 = vsel %vm284, %v3156, 0
      %v3232 = vsel %vm284, %v3157, 0
      %v3235 = vsel %vm284, %v3158, 0
      %v3238 = vsel %vm284, %v3159, 0
      %v3241 = vsel %vm284, %v3160, 0
      %v3244 = vsel %vm284, %v3161, 0
      %v3247 = vsel %vm284, %v3162, 0
      %v3250 = vsel %vm284, %v3163, 0
      %v3253 = vsel %vm284, %v3164, 0
      %v3256 = vsel %vm284, %v3165, 0
      %v3259 = vsel %vm284, %v3166, 0
      %v3262 = vsel %vm284, %v3167, 0
      %v3265 = vsel %vm284, %v3168, 0
      %v3268 = vsel %vm284, %v3169, 0
      %v3271 = vsel %vm284, %v3170, 0
      %v3274 = vsel %vm284, %v3171, 0
      %v3277 = vsel %vm284, %v3172, 0
      %v3280 = vsel %vm284, %v3173, 0
      %v3283 = vsel %vm284, %v3174, 0
      %v3286 = vsel %vm459, %v3176, 0
      %3288 = vmatprep.subr.mxu0 0.0
      %3289 = vmatpush1.msra.mxu0 %v3286
      %3290 = vmatprep.subr.mxu0 0.0
      %3291 = vmatpush1.msra.mxu0 0.0
      %3292 = vmatprep.subr.mxu0 0.0
      %3293 = vmatpush1.msra.mxu0 0.0
      %3294 = vmatprep.subr.mxu0 0.0
      %3295 = vmatpush1.msra.mxu0 0.0
      %3296 = vmatprep.subr.mxu0 0.0
      %3297 = vmatpush1.msra.mxu0 0.0
      %3298 = vmatprep.subr.mxu0 0.0
      %3299 = vmatpush1.msra.mxu0 0.0
      %3300 = vmatprep.subr.mxu0 0.0
      %3301 = vmatpush1.msra.mxu0 0.0
      %3302 = vmatprep.subr.mxu0 0.0
      %3303 = vmatpush1.msra.mxu0 0.0
      %3304 = vmatprep.subr.mxu0 0.0
      %3305 = vmatpush1.msra.mxu0 0.0
      %3306 = vmatprep.subr.mxu0 0.0
      %3307 = vmatpush1.msra.mxu0 0.0
      %3308 = vmatprep.subr.mxu0 0.0
      %3309 = vmatpush1.msra.mxu0 0.0
      %3310 = vmatprep.subr.mxu0 0.0
      %3311 = vmatpush1.msra.mxu0 0.0
      %3312 = vmatprep.subr.mxu0 0.0
      %3313 = vmatpush1.msra.mxu0 0.0
      %3314 = vmatprep.subr.mxu0 0.0
      %3315 = vmatpush1.msra.mxu0 0.0
      %3316 = vmatprep.subr.mxu0 0.0
      %3317 = vmatpush1.msra.mxu0 0.0
      %3318 = vmatprep.subr.mxu0 0.0
      %3319 = vmatpush1.msra.mxu0 0.0
      %3320 = vmatprep.subr.mxu0 0.0
      %3321 = vmatpush1.msra.mxu0 0.0
      %3322 = vmatprep.subr.mxu0 0.0
      %3323 = vmatpush1.msra.mxu0 0.0
      %3324 = vmatprep.subr.mxu0 0.0
      %3325 = vmatpush1.msra.mxu0 0.0
      %3326 = vmatprep.subr.mxu0 0.0
      %3327 = vmatpush1.msra.mxu0 0.0
      %3328 = vmatprep.subr.mxu0 0.0
      %3329 = vmatpush1.msra.mxu0 0.0
      %3330 = vmatprep.subr.mxu0 0.0
      %3331 = vmatpush1.msra.mxu0 0.0
      %3332 = vmatprep.subr.mxu0 0.0
      %3333 = vmatpush1.msra.mxu0 0.0
      %3334 = vmatprep.subr.mxu0 0.0
      %3335 = vmatpush1.msra.mxu0 0.0
      %3336 = vmatprep.subr.mxu0 0.0
      %3337 = vmatpush1.msra.mxu0 0.0
      %3338 = vmatprep.subr.mxu0 0.0
      %3339 = vmatpush1.msra.mxu0 0.0
      %3340 = vmatprep.subr.mxu0 0.0
      %3341 = vmatpush1.msra.mxu0 0.0
      %3342 = vmatprep.subr.mxu0 0.0
      %3343 = vmatpush1.msra.mxu0 0.0
      %3344 = vmatprep.subr.mxu0 0.0
      %3345 = vmatpush1.msra.mxu0 0.0
      %3346 = vmatprep.subr.mxu0 0.0
      %3347 = vmatpush1.msra.mxu0 0.0
      %3348 = vmatprep.subr.mxu0 0.0
      %3349 = vmatpush1.msra.mxu0 0.0
      %3350 = vmatprep.subr.mxu0 0.0
      %3351 = vmatpush1.msra.mxu0 0.0
      %3352 = vmatprep.mubr.f32.mxu0 0.0
      %3353 = vmatmul.mubr.f32.gmra.mrb[0].mxu0 %v3178
      %v3354 = vpop.f32.mrb[0].mxu0
      %v3355 = vadd.f32 0.0, %v3354
      %v3356 = vpop.f32.mrb[0].mxu0
      %3357 = vmatprep.mubr.f32.mxu0 0.0
      %3358 = vmatmul.mubr.f32.gmra.mrb[0].mxu0 %v3181
      %v3359 = vpop.f32.mrb[0].mxu0
      %v3360 = vadd.f32 0.0, %v3359
      %v3361 = vpop.f32.mrb[0].mxu0
      %3362 = vmatprep.mubr.f32.mxu0 0.0
      %3363 = vmatmul.mubr.f32.gmra.mrb[0].mxu0 %v3184
      %v3364 = vpop.f32.mrb[0].mxu0
      %v3365 = vadd.f32 0.0, %v3364
      %v3366 = vpop.f32.mrb[0].mxu0
      %3367 = vmatprep.mubr.f32.mxu0 0.0
      %3368 = vmatmul.mubr.f32.gmra.mrb[0].mxu0 %v3187
      %v3369 = vpop.f32.mrb[0].mxu0
      %v3370 = vadd.f32 0.0, %v3369
      %v3371 = vpop.f32.mrb[0].mxu0
      %3372 = vmatprep.mubr.f32.mxu0 0.0
      %3373 = vmatmul.mubr.f32.gmra.mrb[0].mxu0 %v3190
      %v3374 = vpop.f32.mrb[0].mxu0
      %v3375 = vadd.f32 0.0, %v3374
      %v3376 = vpop.f32.mrb[0].mxu0
      %3377 = vmatprep.mubr.f32.mxu0 0.0
      %3378 = vmatmul.mubr.f32.gmra.mrb[0].mxu0 %v3193
      %v3379 = vpop.f32.mrb[0].mxu0
      %v3380 = vadd.f32 0.0, %v3379
      %v3381 = vpop.f32.mrb[0].mxu0
      %3382 = vmatprep.mubr.f32.mxu0 0.0
      %3383 = vmatmul.mubr.f32.gmra.mrb[0].mxu0 %v3196
      %v3384 = vpop.f32.mrb[0].mxu0
      %v3385 = vadd.f32 0.0, %v3384
      %v3386 = vpop.f32.mrb[0].mxu0
      %3387 = vmatprep.mubr.f32.mxu0 0.0
      %3388 = vmatmul.mubr.f32.gmra.mrb[0].mxu0 %v3199
      %v3389 = vpop.f32.mrb[0].mxu0
      %v3390 = vadd.f32 0.0, %v3389
      %v3391 = vpop.f32.mrb[0].mxu0
      %3392 = vmatprep.mubr.f32.mxu0 0.0
      %3393 = vmatmul.mubr.f32.gmra.mrb[0].mxu0 %v3202
      %v3394 = vpop.f32.mrb[0].mxu0
      %v3395 = vadd.f32 0.0, %v3394
      %v3396 = vpop.f32.mrb[0].mxu0
      %3397 = vmatprep.mubr.f32.mxu0 0.0
      %3398 = vmatmul.mubr.f32.gmra.mrb[0].mxu0 %v3205
      %v3399 = vpop.f32.mrb[0].mxu0
      %v3400 = vadd.f32 0.0, %v3399
      %v3401 = vpop.f32.mrb[0].mxu0
      %3402 = vmatprep.mubr.f32.mxu0 0.0
      %3403 = vmatmul.mubr.f32.gmra.mrb[0].mxu0 %v3208
      %v3404 = vpop.f32.mrb[0].mxu0
      %v3405 = vadd.f32 0.0, %v3404
      %v3406 = vpop.f32.mrb[0].mxu0
      %3407 = vmatprep.mubr.f32.mxu0 0.0
      %3408 = vmatmul.mubr.f32.gmra.mrb[0].mxu0 %v3211
      %v3409 = vpop.f32.mrb[0].mxu0
      %v3410 = vadd.f32 0.0, %v3409
      %v3411 = vpop.f32.mrb[0].mxu0
      %3412 = vmatprep.mubr.f32.mxu0 0.0
      %3413 = vmatmul.mubr.f32.gmra.mrb[0].mxu0 %v3214
      %v3414 = vpop.f32.mrb[0].mxu0
      %v3415 = vadd.f32 0.0, %v3414
      %v3416 = vpop.f32.mrb[0].mxu0
      %3417 = vmatprep.mubr.f32.mxu0 0.0
      %3418 = vmatmul.mubr.f32.gmra.mrb[0].mxu0 %v3217
      %v3419 = vpop.f32.mrb[0].mxu0
      %v3420 = vadd.f32 0.0, %v3419
      %v3421 = vpop.f32.mrb[0].mxu0
      %3422 = vmatprep.mubr.f32.mxu0 0.0
      %3423 = vmatmul.mubr.f32.gmra.mrb[0].mxu0 %v3220
      %v3424 = vpop.f32.mrb[0].mxu0
      %v3425 = vadd.f32 0.0, %v3424
      %v3426 = vpop.f32.mrb[0].mxu0
      %3427 = vmatprep.mubr.f32.mxu0 0.0
      %3428 = vmatmul.mubr.f32.gmra.mrb[0].mxu0 %v3223
      %v3429 = vpop.f32.mrb[0].mxu0
      %v3430 = vadd.f32 0.0, %v3429
      %v3431 = vpop.f32.mrb[0].mxu0
      %3432 = vmatprep.mubr.f32.mxu0 0.0
      %3433 = vmatmul.mubr.f32.gmra.mrb[0].mxu0 %v3226
      %v3434 = vpop.f32.mrb[0].mxu0
      %v3435 = vadd.f32 0.0, %v3434
      %v3436 = vpop.f32.mrb[0].mxu0
      %3437 = vmatprep.mubr.f32.mxu0 0.0
      %3438 = vmatmul.mubr.f32.gmra.mrb[0].mxu0 %v3229
      %v3439 = vpop.f32.mrb[0].mxu0
      %v3440 = vadd.f32 0.0, %v3439
      %v3441 = vpop.f32.mrb[0].mxu0
      %3442 = vmatprep.mubr.f32.mxu0 0.0
      %3443 = vmatmul.mubr.f32.gmra.mrb[0].mxu0 %v3232
      %v3444 = vpop.f32.mrb[0].mxu0
      %v3445 = vadd.f32 0.0, %v3444
      %v3446 = vpop.f32.mrb[0].mxu0
      %3447 = vmatprep.mubr.f32.mxu0 0.0
      %3448 = vmatmul.mubr.f32.gmra.mrb[0].mxu0 %v3235
      %v3449 = vpop.f32.mrb[0].mxu0
      %v3450 = vadd.f32 0.0, %v3449
      %v3451 = vpop.f32.mrb[0].mxu0
      %3452 = vmatprep.mubr.f32.mxu0 0.0
      %3453 = vmatmul.mubr.f32.gmra.mrb[0].mxu0 %v3238
      %v3454 = vpop.f32.mrb[0].mxu0
      %v3455 = vadd.f32 0.0, %v3454
      %v3456 = vpop.f32.mrb[0].mxu0
      %3457 = vmatprep.mubr.f32.mxu0 0.0
      %3458 = vmatmul.mubr.f32.gmra.mrb[0].mxu0 %v3241
      %v3459 = vpop.f32.mrb[0].mxu0
      %v3460 = vadd.f32 0.0, %v3459
      %v3461 = vpop.f32.mrb[0].mxu0
      %3462 = vmatprep.mubr.f32.mxu0 0.0
      %3463 = vmatmul.mubr.f32.gmra.mrb[0].mxu0 %v3244
      %v3464 = vpop.f32.mrb[0].mxu0
      %v3465 = vadd.f32 0.0, %v3464
      %v3466 = vpop.f32.mrb[0].mxu0
      %3467 = vmatprep.mubr.f32.mxu0 0.0
      %3468 = vmatmul.mubr.f32.gmra.mrb[0].mxu0 %v3247
      %v3469 = vpop.f32.mrb[0].mxu0
      %v3470 = vadd.f32 0.0, %v3469
      %v3471 = vpop.f32.mrb[0].mxu0
      %3472 = vmatprep.mubr.f32.mxu0 0.0
      %3473 = vmatmul.mubr.f32.gmra.mrb[0].mxu0 %v3250
      %v3474 = vpop.f32.mrb[0].mxu0
      %v3475 = vadd.f32 0.0, %v3474
      %v3476 = vpop.f32.mrb[0].mxu0
      %3477 = vmatprep.mubr.f32.mxu0 0.0
      %3478 = vmatmul.mubr.f32.gmra.mrb[0].mxu0 %v3253
      %v3479 = vpop.f32.mrb[0].mxu0
      %v3480 = vadd.f32 0.0, %v3479
      %v3481 = vpop.f32.mrb[0].mxu0
      %3482 = vmatprep.mubr.f32.mxu0 0.0
      %3483 = vmatmul.mubr.f32.gmra.mrb[0].mxu0 %v3256
      %v3484 = vpop.f32.mrb[0].mxu0
      %v3485 = vadd.f32 0.0, %v3484
      %v3486 = vpop.f32.mrb[0].mxu0
      %3487 = vmatprep.mubr.f32.mxu0 0.0
      %3488 = vmatmul.mubr.f32.gmra.mrb[0].mxu0 %v3259
      %v3489 = vpop.f32.mrb[0].mxu0
      %v3490 = vadd.f32 0.0, %v3489
      %v3491 = vpop.f32.mrb[0].mxu0
      %3492 = vmatprep.mubr.f32.mxu0 0.0
      %3493 = vmatmul.mubr.f32.gmra.mrb[0].mxu0 %v3262
      %v3494 = vpop.f32.mrb[0].mxu0
      %v3495 = vadd.f32 0.0, %v3494
      %v3496 = vpop.f32.mrb[0].mxu0
      %3497 = vmatprep.mubr.f32.mxu0 0.0
      %3498 = vmatmul.mubr.f32.gmra.mrb[0].mxu0 %v3265
      %v3499 = vpop.f32.mrb[0].mxu0
      %v3500 = vadd.f32 0.0, %v3499
      %v3501 = vpop.f32.mrb[0].mxu0
      %3502 = vmatprep.mubr.f32.mxu0 0.0
      %3503 = vmatmul.mubr.f32.gmra.mrb[0].mxu0 %v3268
      %v3504 = vpop.f32.mrb[0].mxu0
      %v3505 = vadd.f32 0.0, %v3504
      %v3506 = vpop.f32.mrb[0].mxu0
      %3507 = vmatprep.mubr.f32.mxu0 0.0
      %3508 = vmatmul.mubr.f32.gmra.mrb[0].mxu0 %v3271
      %v3509 = vpop.f32.mrb[0].mxu0
      %v3510 = vadd.f32 0.0, %v3509
      %v3511 = vpop.f32.mrb[0].mxu0
      %3512 = vmatprep.mubr.f32.mxu0 0.0
      %3513 = vmatmul.mubr.f32.gmra.mrb[0].mxu0 %v3274
      %v3514 = vpop.f32.mrb[0].mxu0
      %v3515 = vadd.f32 0.0, %v3514
      %v3516 = vpop.f32.mrb[0].mxu0
      %3517 = vmatprep.mubr.f32.mxu0 0.0
      %3518 = vmatmul.mubr.f32.gmra.mrb[0].mxu0 %v3277
      %v3519 = vpop.f32.mrb[0].mxu0
      %v3520 = vadd.f32 0.0, %v3519
      %v3521 = vpop.f32.mrb[0].mxu0
      %3522 = vmatprep.mubr.f32.mxu0 0.0
      %3523 = vmatmul.mubr.f32.gmra.mrb[0].mxu0 %v3280
      %v3524 = vpop.f32.mrb[0].mxu0
      %v3525 = vadd.f32 0.0, %v3524
      %v3526 = vpop.f32.mrb[0].mxu0
      %3527 = vmatprep.mubr.f32.mxu0 0.0
      %3528 = vmatmul.mubr.f32.gmra.mrb[0].mxu0 %v3283
      %v3529 = vpop.f32.mrb[0].mxu0
      %v3530 = vadd.f32 0.0, %v3529
      %v3531 = vpop.f32.mrb[0].mxu0
      %3532 = vdwg.mxu0
      %v3533 = vadd.f32 %v3103, %v3355
      %v3534 = vadd.f32 %v3104, %v3360
      %v3535 = vadd.f32 %v3105, %v3365
      %v3536 = vadd.f32 %v3106, %v3370
      %v3537 = vadd.f32 %v3107, %v3375
      %v3538 = vadd.f32 %v3108, %v3380
      %v3539 = vadd.f32 %v3109, %v3385
      %v3540 = vadd.f32 %v3110, %v3390
      %v3541 = vadd.f32 %v3111, %v3395
      %v3542 = vadd.f32 %v3112, %v3400
      %v3543 = vadd.f32 %v3113, %v3405
      %v3544 = vadd.f32 %v3114, %v3410
      %v3545 = vadd.f32 %v3115, %v3415
      %v3546 = vadd.f32 %v3116, %v3420
      %v3547 = vadd.f32 %v3117, %v3425
      %v3548 = vadd.f32 %v3118, %v3430
      %v3549 = vadd.f32 %v3119, %v3435
      %v3550 = vadd.f32 %v3120, %v3440
      %v3551 = vadd.f32 %v3121, %v3445
      %v3552 = vadd.f32 %v3122, %v3450
      %v3553 = vadd.f32 %v3123, %v3455
      %v3554 = vadd.f32 %v3124, %v3460
      %v3555 = vadd.f32 %v3125, %v3465
      %v3556 = vadd.f32 %v3126, %v3470
      %v3557 = vadd.f32 %v3127, %v3475
      %v3558 = vadd.f32 %v3128, %v3480
      %v3559 = vadd.f32 %v3129, %v3485
      %v3560 = vadd.f32 %v3130, %v3490
      %v3561 = vadd.f32 %v3131, %v3495
      %v3562 = vadd.f32 %v3132, %v3500
      %v3563 = vadd.f32 %v3133, %v3505
      %v3564 = vadd.f32 %v3134, %v3510
      %v3565 = vadd.f32 %v3135, %v3515
      %v3566 = vadd.f32 %v3136, %v3520
      %v3567 = vadd.f32 %v3137, %v3525
      %v3568 = vadd.f32 %v3138, %v3530
      %v3569 = vld [vmem:[#allocation2 + $0x24] sm:$0xff]
      %v3570 = vld [vmem:[#allocation2 + $0x2c] sm:$0xff]
      %v3571 = vld [vmem:[#allocation2 + $0x34] sm:$0xff]
      %v3572 = vld [vmem:[#allocation2 + $0x3c] sm:$0xff]
      %v3573 = vld [vmem:[#allocation2 + $0x44] sm:$0xff]
      %v3574 = vld [vmem:[#allocation2 + $0x4c] sm:$0xff]
      %v3575 = vld [vmem:[#allocation2 + $0x54] sm:$0xff]
      %v3576 = vld [vmem:[#allocation2 + $0x5c] sm:$0xff]
      %v3577 = vld [vmem:[#allocation2 + $0x64] sm:$0xff]
      %v3578 = vld [vmem:[#allocation2 + $0x6c] sm:$0xff]
      %v3579 = vld [vmem:[#allocation2 + $0x74] sm:$0xff]
      %v3580 = vld [vmem:[#allocation2 + $0x7c] sm:$0xff]
      %v3581 = vld [vmem:[#allocation2 + $0x84] sm:$0xff]
      %v3582 = vld [vmem:[#allocation2 + $0x8c] sm:$0xff]
      %v3583 = vld [vmem:[#allocation2 + $0x94] sm:$0xff]
      %v3584 = vld [vmem:[#allocation2 + $0x9c] sm:$0xff]
      %v3585 = vld [vmem:[#allocation2 + $0xa4] sm:$0xff]
      %v3586 = vld [vmem:[#allocation2 + $0xac] sm:$0xff]
      %v3587 = vld [vmem:[#allocation2 + $0xb4] sm:$0xff]
      %v3588 = vld [vmem:[#allocation2 + $0xbc] sm:$0xff]
      %v3589 = vld [vmem:[#allocation2 + $0xc4] sm:$0xff]
      %v3590 = vld [vmem:[#allocation2 + $0xcc] sm:$0xff]
      %v3591 = vld [vmem:[#allocation2 + $0xd4] sm:$0xff]
      %v3592 = vld [vmem:[#allocation2 + $0xdc] sm:$0xff]
      %v3593 = vld [vmem:[#allocation2 + $0xe4] sm:$0xff]
      %v3594 = vld [vmem:[#allocation2 + $0xec] sm:$0xff]
      %v3595 = vld [vmem:[#allocation2 + $0xf4] sm:$0xff]
      %v3596 = vld [vmem:[#allocation2 + $0xfc] sm:$0xff]
      %v3597 = vld [vmem:[#allocation2 + $0x104] sm:$0xff]
      %v3598 = vld [vmem:[#allocation2 + $0x10c] sm:$0xff]
      %v3599 = vld [vmem:[#allocation2 + $0x114] sm:$0xff]
      %v3600 = vld [vmem:[#allocation2 + $0x11c] sm:$0xff]
      %v3601 = vld [vmem:[#allocation2 + $0x124] sm:$0xff]
      %v3602 = vld [vmem:[#allocation2 + $0x12c] sm:$0xff]
      %v3603 = vld [vmem:[#allocation2 + $0x134] sm:$0xff]
      %v3604 = vld [vmem:[#allocation2 + $0x13c] sm:$0xff]
      %s3605 = scalar_lea.vmem %s4, 24
      %v3606 = vld [vmem:[%s3605] sm:$0xf]
      %v3608 = vsel %vm284, %v3569, 0
      %v3611 = vsel %vm284, %v3570, 0
      %v3614 = vsel %vm284, %v3571, 0
      %v3617 = vsel %vm284, %v3572, 0
      %v3620 = vsel %vm284, %v3573, 0
      %v3623 = vsel %vm284, %v3574, 0
      %v3626 = vsel %vm284, %v3575, 0
      %v3629 = vsel %vm284, %v3576, 0
      %v3632 = vsel %vm284, %v3577, 0
      %v3635 = vsel %vm284, %v3578, 0
      %v3638 = vsel %vm284, %v3579, 0
      %v3641 = vsel %vm284, %v3580, 0
      %v3644 = vsel %vm284, %v3581, 0
      %v3647 = vsel %vm284, %v3582, 0
      %v3650 = vsel %vm284, %v3583, 0
      %v3653 = vsel %vm284, %v3584, 0
      %v3656 = vsel %vm284, %v3585, 0
      %v3659 = vsel %vm284, %v3586, 0
      %v3662 = vsel %vm284, %v3587, 0
      %v3665 = vsel %vm284, %v3588, 0
      %v3668 = vsel %vm284, %v3589, 0
      %v3671 = vsel %vm284, %v3590, 0
      %v3674 = vsel %vm284, %v3591, 0
      %v3677 = vsel %vm284, %v3592, 0
      %v3680 = vsel %vm284, %v3593, 0
      %v3683 = vsel %vm284, %v3594, 0
      %v3686 = vsel %vm284, %v3595, 0
      %v3689 = vsel %vm284, %v3596, 0
      %v3692 = vsel %vm284, %v3597, 0
      %v3695 = vsel %vm284, %v3598, 0
      %v3698 = vsel %vm284, %v3599, 0
      %v3701 = vsel %vm284, %v3600, 0
      %v3704 = vsel %vm284, %v3601, 0
      %v3707 = vsel %vm284, %v3602, 0
      %v3710 = vsel %vm284, %v3603, 0
      %v3713 = vsel %vm284, %v3604, 0
      %v3716 = vsel %vm459, %v3606, 0
      %3718 = vmatprep.subr.mxu0 0.0
      %3719 = vmatpush1.msra.mxu0 %v3716
      %3720 = vmatprep.subr.mxu0 0.0
      %3721 = vmatpush1.msra.mxu0 0.0
      %3722 = vmatprep.subr.mxu0 0.0
      %3723 = vmatpush1.msra.mxu0 0.0
      %3724 = vmatprep.subr.mxu0 0.0
      %3725 = vmatpush1.msra.mxu0 0.0
      %3726 = vmatprep.subr.mxu0 0.0
      %3727 = vmatpush1.msra.mxu0 0.0
      %3728 = vmatprep.subr.mxu0 0.0
      %3729 = vmatpush1.msra.mxu0 0.0
      %3730 = vmatprep.subr.mxu0 0.0
      %3731 = vmatpush1.msra.mxu0 0.0
      %3732 = vmatprep.subr.mxu0 0.0
      %3733 = vmatpush1.msra.mxu0 0.0
      %3734 = vmatprep.subr.mxu0 0.0
      %3735 = vmatpush1.msra.mxu0 0.0
      %3736 = vmatprep.subr.mxu0 0.0
      %3737 = vmatpush1.msra.mxu0 0.0
      %3738 = vmatprep.subr.mxu0 0.0
      %3739 = vmatpush1.msra.mxu0 0.0
      %3740 = vmatprep.subr.mxu0 0.0
      %3741 = vmatpush1.msra.mxu0 0.0
      %3742 = vmatprep.subr.mxu0 0.0
      %3743 = vmatpush1.msra.mxu0 0.0
      %3744 = vmatprep.subr.mxu0 0.0
      %3745 = vmatpush1.msra.mxu0 0.0
      %3746 = vmatprep.subr.mxu0 0.0
      %3747 = vmatpush1.msra.mxu0 0.0
      %3748 = vmatprep.subr.mxu0 0.0
      %3749 = vmatpush1.msra.mxu0 0.0
      %3750 = vmatprep.subr.mxu0 0.0
      %3751 = vmatpush1.msra.mxu0 0.0
      %3752 = vmatprep.subr.mxu0 0.0
      %3753 = vmatpush1.msra.mxu0 0.0
      %3754 = vmatprep.subr.mxu0 0.0
      %3755 = vmatpush1.msra.mxu0 0.0
      %3756 = vmatprep.subr.mxu0 0.0
      %3757 = vmatpush1.msra.mxu0 0.0
      %3758 = vmatprep.subr.mxu0 0.0
      %3759 = vmatpush1.msra.mxu0 0.0
      %3760 = vmatprep.subr.mxu0 0.0
      %3761 = vmatpush1.msra.mxu0 0.0
      %3762 = vmatprep.subr.mxu0 0.0
      %3763 = vmatpush1.msra.mxu0 0.0
      %3764 = vmatprep.subr.mxu0 0.0
      %3765 = vmatpush1.msra.mxu0 0.0
      %3766 = vmatprep.subr.mxu0 0.0
      %3767 = vmatpush1.msra.mxu0 0.0
      %3768 = vmatprep.subr.mxu0 0.0
      %3769 = vmatpush1.msra.mxu0 0.0
      %3770 = vmatprep.subr.mxu0 0.0
      %3771 = vmatpush1.msra.mxu0 0.0
      %3772 = vmatprep.subr.mxu0 0.0
      %3773 = vmatpush1.msra.mxu0 0.0
      %3774 = vmatprep.subr.mxu0 0.0
      %3775 = vmatpush1.msra.mxu0 0.0
      %3776 = vmatprep.subr.mxu0 0.0
      %3777 = vmatpush1.msra.mxu0 0.0
      %3778 = vmatprep.subr.mxu0 0.0
      %3779 = vmatpush1.msra.mxu0 0.0
      %3780 = vmatprep.subr.mxu0 0.0
      %3781 = vmatpush1.msra.mxu0 0.0
      %3782 = vmatprep.mubr.f32.mxu0 0.0
      %3783 = vmatmul.mubr.f32.gmra.mrb[0].mxu0 %v3608
      %v3784 = vpop.f32.mrb[0].mxu0
      %v3785 = vadd.f32 0.0, %v3784
      %v3786 = vpop.f32.mrb[0].mxu0
      %3787 = vmatprep.mubr.f32.mxu0 0.0
      %3788 = vmatmul.mubr.f32.gmra.mrb[0].mxu0 %v3611
      %v3789 = vpop.f32.mrb[0].mxu0
      %v3790 = vadd.f32 0.0, %v3789
      %v3791 = vpop.f32.mrb[0].mxu0
      %3792 = vmatprep.mubr.f32.mxu0 0.0
      %3793 = vmatmul.mubr.f32.gmra.mrb[0].mxu0 %v3614
      %v3794 = vpop.f32.mrb[0].mxu0
      %v3795 = vadd.f32 0.0, %v3794
      %v3796 = vpop.f32.mrb[0].mxu0
      %3797 = vmatprep.mubr.f32.mxu0 0.0
      %3798 = vmatmul.mubr.f32.gmra.mrb[0].mxu0 %v3617
      %v3799 = vpop.f32.mrb[0].mxu0
      %v3800 = vadd.f32 0.0, %v3799
      %v3801 = vpop.f32.mrb[0].mxu0
      %3802 = vmatprep.mubr.f32.mxu0 0.0
      %3803 = vmatmul.mubr.f32.gmra.mrb[0].mxu0 %v3620
      %v3804 = vpop.f32.mrb[0].mxu0
      %v3805 = vadd.f32 0.0, %v3804
      %v3806 = vpop.f32.mrb[0].mxu0
      %3807 = vmatprep.mubr.f32.mxu0 0.0
      %3808 = vmatmul.mubr.f32.gmra.mrb[0].mxu0 %v3623
      %v3809 = vpop.f32.mrb[0].mxu0
      %v3810 = vadd.f32 0.0, %v3809
      %v3811 = vpop.f32.mrb[0].mxu0
      %3812 = vmatprep.mubr.f32.mxu0 0.0
      %3813 = vmatmul.mubr.f32.gmra.mrb[0].mxu0 %v3626
      %v3814 = vpop.f32.mrb[0].mxu0
      %v3815 = vadd.f32 0.0, %v3814
      %v3816 = vpop.f32.mrb[0].mxu0
      %3817 = vmatprep.mubr.f32.mxu0 0.0
      %3818 = vmatmul.mubr.f32.gmra.mrb[0].mxu0 %v3629
      %v3819 = vpop.f32.mrb[0].mxu0
      %v3820 = vadd.f32 0.0, %v3819
      %v3821 = vpop.f32.mrb[0].mxu0
      %3822 = vmatprep.mubr.f32.mxu0 0.0
      %3823 = vmatmul.mubr.f32.gmra.mrb[0].mxu0 %v3632
      %v3824 = vpop.f32.mrb[0].mxu0
      %v3825 = vadd.f32 0.0, %v3824
      %v3826 = vpop.f32.mrb[0].mxu0
      %3827 = vmatprep.mubr.f32.mxu0 0.0
      %3828 = vmatmul.mubr.f32.gmra.mrb[0].mxu0 %v3635
      %v3829 = vpop.f32.mrb[0].mxu0
      %v3830 = vadd.f32 0.0, %v3829
      %v3831 = vpop.f32.mrb[0].mxu0
      %3832 = vmatprep.mubr.f32.mxu0 0.0
      %3833 = vmatmul.mubr.f32.gmra.mrb[0].mxu0 %v3638
      %v3834 = vpop.f32.mrb[0].mxu0
      %v3835 = vadd.f32 0.0, %v3834
      %v3836 = vpop.f32.mrb[0].mxu0
      %3837 = vmatprep.mubr.f32.mxu0 0.0
      %3838 = vmatmul.mubr.f32.gmra.mrb[0].mxu0 %v3641
      %v3839 = vpop.f32.mrb[0].mxu0
      %v3840 = vadd.f32 0.0, %v3839
      %v3841 = vpop.f32.mrb[0].mxu0
      %3842 = vmatprep.mubr.f32.mxu0 0.0
      %3843 = vmatmul.mubr.f32.gmra.mrb[0].mxu0 %v3644
      %v3844 = vpop.f32.mrb[0].mxu0
      %v3845 = vadd.f32 0.0, %v3844
      %v3846 = vpop.f32.mrb[0].mxu0
      %3847 = vmatprep.mubr.f32.mxu0 0.0
      %3848 = vmatmul.mubr.f32.gmra.mrb[0].mxu0 %v3647
      %v3849 = vpop.f32.mrb[0].mxu0
      %v3850 = vadd.f32 0.0, %v3849
      %v3851 = vpop.f32.mrb[0].mxu0
      %3852 = vmatprep.mubr.f32.mxu0 0.0
      %3853 = vmatmul.mubr.f32.gmra.mrb[0].mxu0 %v3650
      %v3854 = vpop.f32.mrb[0].mxu0
      %v3855 = vadd.f32 0.0, %v3854
      %v3856 = vpop.f32.mrb[0].mxu0
      %3857 = vmatprep.mubr.f32.mxu0 0.0
      %3858 = vmatmul.mubr.f32.gmra.mrb[0].mxu0 %v3653
      %v3859 = vpop.f32.mrb[0].mxu0
      %v3860 = vadd.f32 0.0, %v3859
      %v3861 = vpop.f32.mrb[0].mxu0
      %3862 = vmatprep.mubr.f32.mxu0 0.0
      %3863 = vmatmul.mubr.f32.gmra.mrb[0].mxu0 %v3656
      %v3864 = vpop.f32.mrb[0].mxu0
      %v3865 = vadd.f32 0.0, %v3864
      %v3866 = vpop.f32.mrb[0].mxu0
      %3867 = vmatprep.mubr.f32.mxu0 0.0
      %3868 = vmatmul.mubr.f32.gmra.mrb[0].mxu0 %v3659
      %v3869 = vpop.f32.mrb[0].mxu0
      %v3870 = vadd.f32 0.0, %v3869
      %v3871 = vpop.f32.mrb[0].mxu0
      %3872 = vmatprep.mubr.f32.mxu0 0.0
      %3873 = vmatmul.mubr.f32.gmra.mrb[0].mxu0 %v3662
      %v3874 = vpop.f32.mrb[0].mxu0
      %v3875 = vadd.f32 0.0, %v3874
      %v3876 = vpop.f32.mrb[0].mxu0
      %3877 = vmatprep.mubr.f32.mxu0 0.0
      %3878 = vmatmul.mubr.f32.gmra.mrb[0].mxu0 %v3665
      %v3879 = vpop.f32.mrb[0].mxu0
      %v3880 = vadd.f32 0.0, %v3879
      %v3881 = vpop.f32.mrb[0].mxu0
      %3882 = vmatprep.mubr.f32.mxu0 0.0
      %3883 = vmatmul.mubr.f32.gmra.mrb[0].mxu0 %v3668
      %v3884 = vpop.f32.mrb[0].mxu0
      %v3885 = vadd.f32 0.0, %v3884
      %v3886 = vpop.f32.mrb[0].mxu0
      %3887 = vmatprep.mubr.f32.mxu0 0.0
      %3888 = vmatmul.mubr.f32.gmra.mrb[0].mxu0 %v3671
      %v3889 = vpop.f32.mrb[0].mxu0
      %v3890 = vadd.f32 0.0, %v3889
      %v3891 = vpop.f32.mrb[0].mxu0
      %3892 = vmatprep.mubr.f32.mxu0 0.0
      %3893 = vmatmul.mubr.f32.gmra.mrb[0].mxu0 %v3674
      %v3894 = vpop.f32.mrb[0].mxu0
      %v3895 = vadd.f32 0.0, %v3894
      %v3896 = vpop.f32.mrb[0].mxu0
      %3897 = vmatprep.mubr.f32.mxu0 0.0
      %3898 = vmatmul.mubr.f32.gmra.mrb[0].mxu0 %v3677
      %v3899 = vpop.f32.mrb[0].mxu0
      %v3900 = vadd.f32 0.0, %v3899
      %v3901 = vpop.f32.mrb[0].mxu0
      %3902 = vmatprep.mubr.f32.mxu0 0.0
      %3903 = vmatmul.mubr.f32.gmra.mrb[0].mxu0 %v3680
      %v3904 = vpop.f32.mrb[0].mxu0
      %v3905 = vadd.f32 0.0, %v3904
      %v3906 = vpop.f32.mrb[0].mxu0
      %3907 = vmatprep.mubr.f32.mxu0 0.0
      %3908 = vmatmul.mubr.f32.gmra.mrb[0].mxu0 %v3683
      %v3909 = vpop.f32.mrb[0].mxu0
      %v3910 = vadd.f32 0.0, %v3909
      %v3911 = vpop.f32.mrb[0].mxu0
      %3912 = vmatprep.mubr.f32.mxu0 0.0
      %3913 = vmatmul.mubr.f32.gmra.mrb[0].mxu0 %v3686
      %v3914 = vpop.f32.mrb[0].mxu0
      %v3915 = vadd.f32 0.0, %v3914
      %v3916 = vpop.f32.mrb[0].mxu0
      %3917 = vmatprep.mubr.f32.mxu0 0.0
      %3918 = vmatmul.mubr.f32.gmra.mrb[0].mxu0 %v3689
      %v3919 = vpop.f32.mrb[0].mxu0
      %v3920 = vadd.f32 0.0, %v3919
      %v3921 = vpop.f32.mrb[0].mxu0
      %3922 = vmatprep.mubr.f32.mxu0 0.0
      %3923 = vmatmul.mubr.f32.gmra.mrb[0].mxu0 %v3692
      %v3924 = vpop.f32.mrb[0].mxu0
      %v3925 = vadd.f32 0.0, %v3924
      %v3926 = vpop.f32.mrb[0].mxu0
      %3927 = vmatprep.mubr.f32.mxu0 0.0
      %3928 = vmatmul.mubr.f32.gmra.mrb[0].mxu0 %v3695
      %v3929 = vpop.f32.mrb[0].mxu0
      %v3930 = vadd.f32 0.0, %v3929
      %v3931 = vpop.f32.mrb[0].mxu0
      %3932 = vmatprep.mubr.f32.mxu0 0.0
      %3933 = vmatmul.mubr.f32.gmra.mrb[0].mxu0 %v3698
      %v3934 = vpop.f32.mrb[0].mxu0
      %v3935 = vadd.f32 0.0, %v3934
      %v3936 = vpop.f32.mrb[0].mxu0
      %3937 = vmatprep.mubr.f32.mxu0 0.0
      %3938 = vmatmul.mubr.f32.gmra.mrb[0].mxu0 %v3701
      %v3939 = vpop.f32.mrb[0].mxu0
      %v3940 = vadd.f32 0.0, %v3939
      %v3941 = vpop.f32.mrb[0].mxu0
      %3942 = vmatprep.mubr.f32.mxu0 0.0
      %3943 = vmatmul.mubr.f32.gmra.mrb[0].mxu0 %v3704
      %v3944 = vpop.f32.mrb[0].mxu0
      %v3945 = vadd.f32 0.0, %v3944
      %v3946 = vpop.f32.mrb[0].mxu0
      %3947 = vmatprep.mubr.f32.mxu0 0.0
      %3948 = vmatmul.mubr.f32.gmra.mrb[0].mxu0 %v3707
      %v3949 = vpop.f32.mrb[0].mxu0
      %v3950 = vadd.f32 0.0, %v3949
      %v3951 = vpop.f32.mrb[0].mxu0
      %3952 = vmatprep.mubr.f32.mxu0 0.0
      %3953 = vmatmul.mubr.f32.gmra.mrb[0].mxu0 %v3710
      %v3954 = vpop.f32.mrb[0].mxu0
      %v3955 = vadd.f32 0.0, %v3954
      %v3956 = vpop.f32.mrb[0].mxu0
      %3957 = vmatprep.mubr.f32.mxu0 0.0
      %3958 = vmatmul.mubr.f32.gmra.mrb[0].mxu0 %v3713
      %v3959 = vpop.f32.mrb[0].mxu0
      %v3960 = vadd.f32 0.0, %v3959
      %v3961 = vpop.f32.mrb[0].mxu0
      %3962 = vdwg.mxu0
      %v3963 = vadd.f32 %v3533, %v3785
      %v3964 = vadd.f32 %v3534, %v3790
      %v3965 = vadd.f32 %v3535, %v3795
      %v3966 = vadd.f32 %v3536, %v3800
      %v3967 = vadd.f32 %v3537, %v3805
      %v3968 = vadd.f32 %v3538, %v3810
      %v3969 = vadd.f32 %v3539, %v3815
      %v3970 = vadd.f32 %v3540, %v3820
      %v3971 = vadd.f32 %v3541, %v3825
      %v3972 = vadd.f32 %v3542, %v3830
      %v3973 = vadd.f32 %v3543, %v3835
      %v3974 = vadd.f32 %v3544, %v3840
      %v3975 = vadd.f32 %v3545, %v3845
      %v3976 = vadd.f32 %v3546, %v3850
      %v3977 = vadd.f32 %v3547, %v3855
      %v3978 = vadd.f32 %v3548, %v3860
      %v3979 = vadd.f32 %v3549, %v3865
      %v3980 = vadd.f32 %v3550, %v3870
      %v3981 = vadd.f32 %v3551, %v3875
      %v3982 = vadd.f32 %v3552, %v3880
      %v3983 = vadd.f32 %v3553, %v3885
      %v3984 = vadd.f32 %v3554, %v3890
      %v3985 = vadd.f32 %v3555, %v3895
      %v3986 = vadd.f32 %v3556, %v3900
      %v3987 = vadd.f32 %v3557, %v3905
      %v3988 = vadd.f32 %v3558, %v3910
      %v3989 = vadd.f32 %v3559, %v3915
      %v3990 = vadd.f32 %v3560, %v3920
      %v3991 = vadd.f32 %v3561, %v3925
      %v3992 = vadd.f32 %v3562, %v3930
      %v3993 = vadd.f32 %v3563, %v3935
      %v3994 = vadd.f32 %v3564, %v3940
      %v3995 = vadd.f32 %v3565, %v3945
      %v3996 = vadd.f32 %v3566, %v3950
      %v3997 = vadd.f32 %v3567, %v3955
      %v3998 = vadd.f32 %v3568, %v3960
      %v3999 = vld [vmem:[#allocation2 + $0x25] sm:$0xff]
      %v4000 = vld [vmem:[#allocation2 + $0x2d] sm:$0xff]
      %v4001 = vld [vmem:[#allocation2 + $0x35] sm:$0xff]
      %v4002 = vld [vmem:[#allocation2 + $0x3d] sm:$0xff]
      %v4003 = vld [vmem:[#allocation2 + $0x45] sm:$0xff]
      %v4004 = vld [vmem:[#allocation2 + $0x4d] sm:$0xff]
      %v4005 = vld [vmem:[#allocation2 + $0x55] sm:$0xff]
      %v4006 = vld [vmem:[#allocation2 + $0x5d] sm:$0xff]
      %v4007 = vld [vmem:[#allocation2 + $0x65] sm:$0xff]
      %v4008 = vld [vmem:[#allocation2 + $0x6d] sm:$0xff]
      %v4009 = vld [vmem:[#allocation2 + $0x75] sm:$0xff]
      %v4010 = vld [vmem:[#allocation2 + $0x7d] sm:$0xff]
      %v4011 = vld [vmem:[#allocation2 + $0x85] sm:$0xff]
      %v4012 = vld [vmem:[#allocation2 + $0x8d] sm:$0xff]
      %v4013 = vld [vmem:[#allocation2 + $0x95] sm:$0xff]
      %v4014 = vld [vmem:[#allocation2 + $0x9d] sm:$0xff]
      %v4015 = vld [vmem:[#allocation2 + $0xa5] sm:$0xff]
      %v4016 = vld [vmem:[#allocation2 + $0xad] sm:$0xff]
      %v4017 = vld [vmem:[#allocation2 + $0xb5] sm:$0xff]
      %v4018 = vld [vmem:[#allocation2 + $0xbd] sm:$0xff]
      %v4019 = vld [vmem:[#allocation2 + $0xc5] sm:$0xff]
      %v4020 = vld [vmem:[#allocation2 + $0xcd] sm:$0xff]
      %v4021 = vld [vmem:[#allocation2 + $0xd5] sm:$0xff]
      %v4022 = vld [vmem:[#allocation2 + $0xdd] sm:$0xff]
      %v4023 = vld [vmem:[#allocation2 + $0xe5] sm:$0xff]
      %v4024 = vld [vmem:[#allocation2 + $0xed] sm:$0xff]
      %v4025 = vld [vmem:[#allocation2 + $0xf5] sm:$0xff]
      %v4026 = vld [vmem:[#allocation2 + $0xfd] sm:$0xff]
      %v4027 = vld [vmem:[#allocation2 + $0x105] sm:$0xff]
      %v4028 = vld [vmem:[#allocation2 + $0x10d] sm:$0xff]
      %v4029 = vld [vmem:[#allocation2 + $0x115] sm:$0xff]
      %v4030 = vld [vmem:[#allocation2 + $0x11d] sm:$0xff]
      %v4031 = vld [vmem:[#allocation2 + $0x125] sm:$0xff]
      %v4032 = vld [vmem:[#allocation2 + $0x12d] sm:$0xff]
      %v4033 = vld [vmem:[#allocation2 + $0x135] sm:$0xff]
      %v4034 = vld [vmem:[#allocation2 + $0x13d] sm:$0xff]
      %s4035 = scalar_lea.vmem %s4, 28
      %v4036 = vld [vmem:[%s4035] sm:$0xf]
      %v4038 = vsel %vm284, %v3999, 0
      %v4041 = vsel %vm284, %v4000, 0
      %v4044 = vsel %vm284, %v4001, 0
      %v4047 = vsel %vm284, %v4002, 0
      %v4050 = vsel %vm284, %v4003, 0
      %v4053 = vsel %vm284, %v4004, 0
      %v4056 = vsel %vm284, %v4005, 0
      %v4059 = vsel %vm284, %v4006, 0
      %v4062 = vsel %vm284, %v4007, 0
      %v4065 = vsel %vm284, %v4008, 0
      %v4068 = vsel %vm284, %v4009, 0
      %v4071 = vsel %vm284, %v4010, 0
      %v4074 = vsel %vm284, %v4011, 0
      %v4077 = vsel %vm284, %v4012, 0
      %v4080 = vsel %vm284, %v4013, 0
      %v4083 = vsel %vm284, %v4014, 0
      %v4086 = vsel %vm284, %v4015, 0
      %v4089 = vsel %vm284, %v4016, 0
      %v4092 = vsel %vm284, %v4017, 0
      %v4095 = vsel %vm284, %v4018, 0
      %v4098 = vsel %vm284, %v4019, 0
      %v4101 = vsel %vm284, %v4020, 0
      %v4104 = vsel %vm284, %v4021, 0
      %v4107 = vsel %vm284, %v4022, 0
      %v4110 = vsel %vm284, %v4023, 0
      %v4113 = vsel %vm284, %v4024, 0
      %v4116 = vsel %vm284, %v4025, 0
      %v4119 = vsel %vm284, %v4026, 0
      %v4122 = vsel %vm284, %v4027, 0
      %v4125 = vsel %vm284, %v4028, 0
      %v4128 = vsel %vm284, %v4029, 0
      %v4131 = vsel %vm284, %v4030, 0
      %v4134 = vsel %vm284, %v4031, 0
      %v4137 = vsel %vm284, %v4032, 0
      %v4140 = vsel %vm284, %v4033, 0
      %v4143 = vsel %vm284, %v4034, 0
      %v4146 = vsel %vm459, %v4036, 0
      %4148 = vmatprep.subr.mxu0 0.0
      %4149 = vmatpush1.msra.mxu0 %v4146
      %4150 = vmatprep.subr.mxu0 0.0
      %4151 = vmatpush1.msra.mxu0 0.0
      %4152 = vmatprep.subr.mxu0 0.0
      %4153 = vmatpush1.msra.mxu0 0.0
      %4154 = vmatprep.subr.mxu0 0.0
      %4155 = vmatpush1.msra.mxu0 0.0
      %4156 = vmatprep.subr.mxu0 0.0
      %4157 = vmatpush1.msra.mxu0 0.0
      %4158 = vmatprep.subr.mxu0 0.0
      %4159 = vmatpush1.msra.mxu0 0.0
      %4160 = vmatprep.subr.mxu0 0.0
      %4161 = vmatpush1.msra.mxu0 0.0
      %4162 = vmatprep.subr.mxu0 0.0
      %4163 = vmatpush1.msra.mxu0 0.0
      %4164 = vmatprep.subr.mxu0 0.0
      %4165 = vmatpush1.msra.mxu0 0.0
      %4166 = vmatprep.subr.mxu0 0.0
      %4167 = vmatpush1.msra.mxu0 0.0
      %4168 = vmatprep.subr.mxu0 0.0
      %4169 = vmatpush1.msra.mxu0 0.0
      %4170 = vmatprep.subr.mxu0 0.0
      %4171 = vmatpush1.msra.mxu0 0.0
      %4172 = vmatprep.subr.mxu0 0.0
      %4173 = vmatpush1.msra.mxu0 0.0
      %4174 = vmatprep.subr.mxu0 0.0
      %4175 = vmatpush1.msra.mxu0 0.0
      %4176 = vmatprep.subr.mxu0 0.0
      %4177 = vmatpush1.msra.mxu0 0.0
      %4178 = vmatprep.subr.mxu0 0.0
      %4179 = vmatpush1.msra.mxu0 0.0
      %4180 = vmatprep.subr.mxu0 0.0
      %4181 = vmatpush1.msra.mxu0 0.0
      %4182 = vmatprep.subr.mxu0 0.0
      %4183 = vmatpush1.msra.mxu0 0.0
      %4184 = vmatprep.subr.mxu0 0.0
      %4185 = vmatpush1.msra.mxu0 0.0
      %4186 = vmatprep.subr.mxu0 0.0
      %4187 = vmatpush1.msra.mxu0 0.0
      %4188 = vmatprep.subr.mxu0 0.0
      %4189 = vmatpush1.msra.mxu0 0.0
      %4190 = vmatprep.subr.mxu0 0.0
      %4191 = vmatpush1.msra.mxu0 0.0
      %4192 = vmatprep.subr.mxu0 0.0
      %4193 = vmatpush1.msra.mxu0 0.0
      %4194 = vmatprep.subr.mxu0 0.0
      %4195 = vmatpush1.msra.mxu0 0.0
      %4196 = vmatprep.subr.mxu0 0.0
      %4197 = vmatpush1.msra.mxu0 0.0
      %4198 = vmatprep.subr.mxu0 0.0
      %4199 = vmatpush1.msra.mxu0 0.0
      %4200 = vmatprep.subr.mxu0 0.0
      %4201 = vmatpush1.msra.mxu0 0.0
      %4202 = vmatprep.subr.mxu0 0.0
      %4203 = vmatpush1.msra.mxu0 0.0
      %4204 = vmatprep.subr.mxu0 0.0
      %4205 = vmatpush1.msra.mxu0 0.0
      %4206 = vmatprep.subr.mxu0 0.0
      %4207 = vmatpush1.msra.mxu0 0.0
      %4208 = vmatprep.subr.mxu0 0.0
      %4209 = vmatpush1.msra.mxu0 0.0
      %4210 = vmatprep.subr.mxu0 0.0
      %4211 = vmatpush1.msra.mxu0 0.0
      %4212 = vmatprep.mubr.f32.mxu0 0.0
      %4213 = vmatmul.mubr.f32.gmra.mrb[0].mxu0 %v4038
      %v4214 = vpop.f32.mrb[0].mxu0
      %v4215 = vadd.f32 0.0, %v4214
      %v4216 = vpop.f32.mrb[0].mxu0
      %4217 = vmatprep.mubr.f32.mxu0 0.0
      %4218 = vmatmul.mubr.f32.gmra.mrb[0].mxu0 %v4041
      %v4219 = vpop.f32.mrb[0].mxu0
      %v4220 = vadd.f32 0.0, %v4219
      %v4221 = vpop.f32.mrb[0].mxu0
      %4222 = vmatprep.mubr.f32.mxu0 0.0
      %4223 = vmatmul.mubr.f32.gmra.mrb[0].mxu0 %v4044
      %v4224 = vpop.f32.mrb[0].mxu0
      %v4225 = vadd.f32 0.0, %v4224
      %v4226 = vpop.f32.mrb[0].mxu0
      %4227 = vmatprep.mubr.f32.mxu0 0.0
      %4228 = vmatmul.mubr.f32.gmra.mrb[0].mxu0 %v4047
      %v4229 = vpop.f32.mrb[0].mxu0
      %v4230 = vadd.f32 0.0, %v4229
      %v4231 = vpop.f32.mrb[0].mxu0
      %4232 = vmatprep.mubr.f32.mxu0 0.0
      %4233 = vmatmul.mubr.f32.gmra.mrb[0].mxu0 %v4050
      %v4234 = vpop.f32.mrb[0].mxu0
      %v4235 = vadd.f32 0.0, %v4234
      %v4236 = vpop.f32.mrb[0].mxu0
      %4237 = vmatprep.mubr.f32.mxu0 0.0
      %4238 = vmatmul.mubr.f32.gmra.mrb[0].mxu0 %v4053
      %v4239 = vpop.f32.mrb[0].mxu0
      %v4240 = vadd.f32 0.0, %v4239
      %v4241 = vpop.f32.mrb[0].mxu0
      %4242 = vmatprep.mubr.f32.mxu0 0.0
      %4243 = vmatmul.mubr.f32.gmra.mrb[0].mxu0 %v4056
      %v4244 = vpop.f32.mrb[0].mxu0
      %v4245 = vadd.f32 0.0, %v4244
      %v4246 = vpop.f32.mrb[0].mxu0
      %4247 = vmatprep.mubr.f32.mxu0 0.0
      %4248 = vmatmul.mubr.f32.gmra.mrb[0].mxu0 %v4059
      %v4249 = vpop.f32.mrb[0].mxu0
      %v4250 = vadd.f32 0.0, %v4249
      %v4251 = vpop.f32.mrb[0].mxu0
      %4252 = vmatprep.mubr.f32.mxu0 0.0
      %4253 = vmatmul.mubr.f32.gmra.mrb[0].mxu0 %v4062
      %v4254 = vpop.f32.mrb[0].mxu0
      %v4255 = vadd.f32 0.0, %v4254
      %v4256 = vpop.f32.mrb[0].mxu0
      %4257 = vmatprep.mubr.f32.mxu0 0.0
      %4258 = vmatmul.mubr.f32.gmra.mrb[0].mxu0 %v4065
      %v4259 = vpop.f32.mrb[0].mxu0
      %v4260 = vadd.f32 0.0, %v4259
      %v4261 = vpop.f32.mrb[0].mxu0
      %4262 = vmatprep.mubr.f32.mxu0 0.0
      %4263 = vmatmul.mubr.f32.gmra.mrb[0].mxu0 %v4068
      %v4264 = vpop.f32.mrb[0].mxu0
      %v4265 = vadd.f32 0.0, %v4264
      %v4266 = vpop.f32.mrb[0].mxu0
      %4267 = vmatprep.mubr.f32.mxu0 0.0
      %4268 = vmatmul.mubr.f32.gmra.mrb[0].mxu0 %v4071
      %v4269 = vpop.f32.mrb[0].mxu0
      %v4270 = vadd.f32 0.0, %v4269
      %v4271 = vpop.f32.mrb[0].mxu0
      %4272 = vmatprep.mubr.f32.mxu0 0.0
      %4273 = vmatmul.mubr.f32.gmra.mrb[0].mxu0 %v4074
      %v4274 = vpop.f32.mrb[0].mxu0
      %v4275 = vadd.f32 0.0, %v4274
      %v4276 = vpop.f32.mrb[0].mxu0
      %4277 = vmatprep.mubr.f32.mxu0 0.0
      %4278 = vmatmul.mubr.f32.gmra.mrb[0].mxu0 %v4077
      %v4279 = vpop.f32.mrb[0].mxu0
      %v4280 = vadd.f32 0.0, %v4279
      %v4281 = vpop.f32.mrb[0].mxu0
      %4282 = vmatprep.mubr.f32.mxu0 0.0
      %4283 = vmatmul.mubr.f32.gmra.mrb[0].mxu0 %v4080
      %v4284 = vpop.f32.mrb[0].mxu0
      %v4285 = vadd.f32 0.0, %v4284
      %v4286 = vpop.f32.mrb[0].mxu0
      %4287 = vmatprep.mubr.f32.mxu0 0.0
      %4288 = vmatmul.mubr.f32.gmra.mrb[0].mxu0 %v4083
      %v4289 = vpop.f32.mrb[0].mxu0
      %v4290 = vadd.f32 0.0, %v4289
      %v4291 = vpop.f32.mrb[0].mxu0
      %4292 = vmatprep.mubr.f32.mxu0 0.0
      %4293 = vmatmul.mubr.f32.gmra.mrb[0].mxu0 %v4086
      %v4294 = vpop.f32.mrb[0].mxu0
      %v4295 = vadd.f32 0.0, %v4294
      %v4296 = vpop.f32.mrb[0].mxu0
      %4297 = vmatprep.mubr.f32.mxu0 0.0
      %4298 = vmatmul.mubr.f32.gmra.mrb[0].mxu0 %v4089
      %v4299 = vpop.f32.mrb[0].mxu0
      %v4300 = vadd.f32 0.0, %v4299
      %v4301 = vpop.f32.mrb[0].mxu0
      %4302 = vmatprep.mubr.f32.mxu0 0.0
      %4303 = vmatmul.mubr.f32.gmra.mrb[0].mxu0 %v4092
      %v4304 = vpop.f32.mrb[0].mxu0
      %v4305 = vadd.f32 0.0, %v4304
      %v4306 = vpop.f32.mrb[0].mxu0
      %4307 = vmatprep.mubr.f32.mxu0 0.0
      %4308 = vmatmul.mubr.f32.gmra.mrb[0].mxu0 %v4095
      %v4309 = vpop.f32.mrb[0].mxu0
      %v4310 = vadd.f32 0.0, %v4309
      %v4311 = vpop.f32.mrb[0].mxu0
      %4312 = vmatprep.mubr.f32.mxu0 0.0
      %4313 = vmatmul.mubr.f32.gmra.mrb[0].mxu0 %v4098
      %v4314 = vpop.f32.mrb[0].mxu0
      %v4315 = vadd.f32 0.0, %v4314
      %v4316 = vpop.f32.mrb[0].mxu0
      %4317 = vmatprep.mubr.f32.mxu0 0.0
      %4318 = vmatmul.mubr.f32.gmra.mrb[0].mxu0 %v4101
      %v4319 = vpop.f32.mrb[0].mxu0
      %v4320 = vadd.f32 0.0, %v4319
      %v4321 = vpop.f32.mrb[0].mxu0
      %4322 = vmatprep.mubr.f32.mxu0 0.0
      %4323 = vmatmul.mubr.f32.gmra.mrb[0].mxu0 %v4104
      %v4324 = vpop.f32.mrb[0].mxu0
      %v4325 = vadd.f32 0.0, %v4324
      %v4326 = vpop.f32.mrb[0].mxu0
      %4327 = vmatprep.mubr.f32.mxu0 0.0
      %4328 = vmatmul.mubr.f32.gmra.mrb[0].mxu0 %v4107
      %v4329 = vpop.f32.mrb[0].mxu0
      %v4330 = vadd.f32 0.0, %v4329
      %v4331 = vpop.f32.mrb[0].mxu0
      %4332 = vmatprep.mubr.f32.mxu0 0.0
      %4333 = vmatmul.mubr.f32.gmra.mrb[0].mxu0 %v4110
      %v4334 = vpop.f32.mrb[0].mxu0
      %v4335 = vadd.f32 0.0, %v4334
      %v4336 = vpop.f32.mrb[0].mxu0
      %4337 = vmatprep.mubr.f32.mxu0 0.0
      %4338 = vmatmul.mubr.f32.gmra.mrb[0].mxu0 %v4113
      %v4339 = vpop.f32.mrb[0].mxu0
      %v4340 = vadd.f32 0.0, %v4339
      %v4341 = vpop.f32.mrb[0].mxu0
      %4342 = vmatprep.mubr.f32.mxu0 0.0
      %4343 = vmatmul.mubr.f32.gmra.mrb[0].mxu0 %v4116
      %v4344 = vpop.f32.mrb[0].mxu0
      %v4345 = vadd.f32 0.0, %v4344
      %v4346 = vpop.f32.mrb[0].mxu0
      %4347 = vmatprep.mubr.f32.mxu0 0.0
      %4348 = vmatmul.mubr.f32.gmra.mrb[0].mxu0 %v4119
      %v4349 = vpop.f32.mrb[0].mxu0
      %v4350 = vadd.f32 0.0, %v4349
      %v4351 = vpop.f32.mrb[0].mxu0
      %4352 = vmatprep.mubr.f32.mxu0 0.0
      %4353 = vmatmul.mubr.f32.gmra.mrb[0].mxu0 %v4122
      %v4354 = vpop.f32.mrb[0].mxu0
      %v4355 = vadd.f32 0.0, %v4354
      %v4356 = vpop.f32.mrb[0].mxu0
      %4357 = vmatprep.mubr.f32.mxu0 0.0
      %4358 = vmatmul.mubr.f32.gmra.mrb[0].mxu0 %v4125
      %v4359 = vpop.f32.mrb[0].mxu0
      %v4360 = vadd.f32 0.0, %v4359
      %v4361 = vpop.f32.mrb[0].mxu0
      %4362 = vmatprep.mubr.f32.mxu0 0.0
      %4363 = vmatmul.mubr.f32.gmra.mrb[0].mxu0 %v4128
      %v4364 = vpop.f32.mrb[0].mxu0
      %v4365 = vadd.f32 0.0, %v4364
      %v4366 = vpop.f32.mrb[0].mxu0
      %4367 = vmatprep.mubr.f32.mxu0 0.0
      %4368 = vmatmul.mubr.f32.gmra.mrb[0].mxu0 %v4131
      %v4369 = vpop.f32.mrb[0].mxu0
      %v4370 = vadd.f32 0.0, %v4369
      %v4371 = vpop.f32.mrb[0].mxu0
      %4372 = vmatprep.mubr.f32.mxu0 0.0
      %4373 = vmatmul.mubr.f32.gmra.mrb[0].mxu0 %v4134
      %v4374 = vpop.f32.mrb[0].mxu0
      %v4375 = vadd.f32 0.0, %v4374
      %v4376 = vpop.f32.mrb[0].mxu0
      %4377 = vmatprep.mubr.f32.mxu0 0.0
      %4378 = vmatmul.mubr.f32.gmra.mrb[0].mxu0 %v4137
      %v4379 = vpop.f32.mrb[0].mxu0
      %v4380 = vadd.f32 0.0, %v4379
      %v4381 = vpop.f32.mrb[0].mxu0
      %4382 = vmatprep.mubr.f32.mxu0 0.0
      %4383 = vmatmul.mubr.f32.gmra.mrb[0].mxu0 %v4140
      %v4384 = vpop.f32.mrb[0].mxu0
      %v4385 = vadd.f32 0.0, %v4384
      %v4386 = vpop.f32.mrb[0].mxu0
      %4387 = vmatprep.mubr.f32.mxu0 0.0
      %4388 = vmatmul.mubr.f32.gmra.mrb[0].mxu0 %v4143
      %v4389 = vpop.f32.mrb[0].mxu0
      %v4390 = vadd.f32 0.0, %v4389
      %v4391 = vpop.f32.mrb[0].mxu0
      %4392 = vdwg.mxu0
      %v4393 = vadd.f32 %v3963, %v4215
      %v4394 = vadd.f32 %v3964, %v4220
      %v4395 = vadd.f32 %v3965, %v4225
      %v4396 = vadd.f32 %v3966, %v4230
      %v4397 = vadd.f32 %v3967, %v4235
      %v4398 = vadd.f32 %v3968, %v4240
      %v4399 = vadd.f32 %v3969, %v4245
      %v4400 = vadd.f32 %v3970, %v4250
      %v4401 = vadd.f32 %v3971, %v4255
      %v4402 = vadd.f32 %v3972, %v4260
      %v4403 = vadd.f32 %v3973, %v4265
      %v4404 = vadd.f32 %v3974, %v4270
      %v4405 = vadd.f32 %v3975, %v4275
      %v4406 = vadd.f32 %v3976, %v4280
      %v4407 = vadd.f32 %v3977, %v4285
      %v4408 = vadd.f32 %v3978, %v4290
      %v4409 = vadd.f32 %v3979, %v4295
      %v4410 = vadd.f32 %v3980, %v4300
      %v4411 = vadd.f32 %v3981, %v4305
      %v4412 = vadd.f32 %v3982, %v4310
      %v4413 = vadd.f32 %v3983, %v4315
      %v4414 = vadd.f32 %v3984, %v4320
      %v4415 = vadd.f32 %v3985, %v4325
      %v4416 = vadd.f32 %v3986, %v4330
      %v4417 = vadd.f32 %v3987, %v4335
      %v4418 = vadd.f32 %v3988, %v4340
      %v4419 = vadd.f32 %v3989, %v4345
      %v4420 = vadd.f32 %v3990, %v4350
      %v4421 = vadd.f32 %v3991, %v4355
      %v4422 = vadd.f32 %v3992, %v4360
      %v4423 = vadd.f32 %v3993, %v4365
      %v4424 = vadd.f32 %v3994, %v4370
      %v4425 = vadd.f32 %v3995, %v4375
      %v4426 = vadd.f32 %v3996, %v4380
      %v4427 = vadd.f32 %v3997, %v4385
      %v4428 = vadd.f32 %v3998, %v4390
      %v4429 = vld [vmem:[#allocation2 + $0x26] sm:$0xff]
      %v4430 = vld [vmem:[#allocation2 + $0x2e] sm:$0xff]
      %v4431 = vld [vmem:[#allocation2 + $0x36] sm:$0xff]
      %v4432 = vld [vmem:[#allocation2 + $0x3e] sm:$0xff]
      %v4433 = vld [vmem:[#allocation2 + $0x46] sm:$0xff]
      %v4434 = vld [vmem:[#allocation2 + $0x4e] sm:$0xff]
      %v4435 = vld [vmem:[#allocation2 + $0x56] sm:$0xff]
      %v4436 = vld [vmem:[#allocation2 + $0x5e] sm:$0xff]
      %v4437 = vld [vmem:[#allocation2 + $0x66] sm:$0xff]
      %v4438 = vld [vmem:[#allocation2 + $0x6e] sm:$0xff]
      %v4439 = vld [vmem:[#allocation2 + $0x76] sm:$0xff]
      %v4440 = vld [vmem:[#allocation2 + $0x7e] sm:$0xff]
      %v4441 = vld [vmem:[#allocation2 + $0x86] sm:$0xff]
      %v4442 = vld [vmem:[#allocation2 + $0x8e] sm:$0xff]
      %v4443 = vld [vmem:[#allocation2 + $0x96] sm:$0xff]
      %v4444 = vld [vmem:[#allocation2 + $0x9e] sm:$0xff]
      %v4445 = vld [vmem:[#allocation2 + $0xa6] sm:$0xff]
      %v4446 = vld [vmem:[#allocation2 + $0xae] sm:$0xff]
      %v4447 = vld [vmem:[#allocation2 + $0xb6] sm:$0xff]
      %v4448 = vld [vmem:[#allocation2 + $0xbe] sm:$0xff]
      %v4449 = vld [vmem:[#allocation2 + $0xc6] sm:$0xff]
      %v4450 = vld [vmem:[#allocation2 + $0xce] sm:$0xff]
      %v4451 = vld [vmem:[#allocation2 + $0xd6] sm:$0xff]
      %v4452 = vld [vmem:[#allocation2 + $0xde] sm:$0xff]
      %v4453 = vld [vmem:[#allocation2 + $0xe6] sm:$0xff]
      %v4454 = vld [vmem:[#allocation2 + $0xee] sm:$0xff]
      %v4455 = vld [vmem:[#allocation2 + $0xf6] sm:$0xff]
      %v4456 = vld [vmem:[#allocation2 + $0xfe] sm:$0xff]
      %v4457 = vld [vmem:[#allocation2 + $0x106] sm:$0xff]
      %v4458 = vld [vmem:[#allocation2 + $0x10e] sm:$0xff]
      %v4459 = vld [vmem:[#allocation2 + $0x116] sm:$0xff]
      %v4460 = vld [vmem:[#allocation2 + $0x11e] sm:$0xff]
      %v4461 = vld [vmem:[#allocation2 + $0x126] sm:$0xff]
      %v4462 = vld [vmem:[#allocation2 + $0x12e] sm:$0xff]
      %v4463 = vld [vmem:[#allocation2 + $0x136] sm:$0xff]
      %v4464 = vld [vmem:[#allocation2 + $0x13e] sm:$0xff]
      %s4465 = scalar_lea.vmem %s4, 32
      %v4466 = vld [vmem:[%s4465] sm:$0xf]
      %v4468 = vsel %vm284, %v4429, 0
      %v4471 = vsel %vm284, %v4430, 0
      %v4474 = vsel %vm284, %v4431, 0
      %v4477 = vsel %vm284, %v4432, 0
      %v4480 = vsel %vm284, %v4433, 0
      %v4483 = vsel %vm284, %v4434, 0
      %v4486 = vsel %vm284, %v4435, 0
      %v4489 = vsel %vm284, %v4436, 0
      %v4492 = vsel %vm284, %v4437, 0
      %v4495 = vsel %vm284, %v4438, 0
      %v4498 = vsel %vm284, %v4439, 0
      %v4501 = vsel %vm284, %v4440, 0
      %v4504 = vsel %vm284, %v4441, 0
      %v4507 = vsel %vm284, %v4442, 0
      %v4510 = vsel %vm284, %v4443, 0
      %v4513 = vsel %vm284, %v4444, 0
      %v4516 = vsel %vm284, %v4445, 0
      %v4519 = vsel %vm284, %v4446, 0
      %v4522 = vsel %vm284, %v4447, 0
      %v4525 = vsel %vm284, %v4448, 0
      %v4528 = vsel %vm284, %v4449, 0
      %v4531 = vsel %vm284, %v4450, 0
      %v4534 = vsel %vm284, %v4451, 0
      %v4537 = vsel %vm284, %v4452, 0
      %v4540 = vsel %vm284, %v4453, 0
      %v4543 = vsel %vm284, %v4454, 0
      %v4546 = vsel %vm284, %v4455, 0
      %v4549 = vsel %vm284, %v4456, 0
      %v4552 = vsel %vm284, %v4457, 0
      %v4555 = vsel %vm284, %v4458, 0
      %v4558 = vsel %vm284, %v4459, 0
      %v4561 = vsel %vm284, %v4460, 0
      %v4564 = vsel %vm284, %v4461, 0
      %v4567 = vsel %vm284, %v4462, 0
      %v4570 = vsel %vm284, %v4463, 0
      %v4573 = vsel %vm284, %v4464, 0
      %v4576 = vsel %vm459, %v4466, 0
      %4578 = vmatprep.subr.mxu0 0.0
      %4579 = vmatpush1.msra.mxu0 %v4576
      %4580 = vmatprep.subr.mxu0 0.0
      %4581 = vmatpush1.msra.mxu0 0.0
      %4582 = vmatprep.subr.mxu0 0.0
      %4583 = vmatpush1.msra.mxu0 0.0
      %4584 = vmatprep.subr.mxu0 0.0
      %4585 = vmatpush1.msra.mxu0 0.0
      %4586 = vmatprep.subr.mxu0 0.0
      %4587 = vmatpush1.msra.mxu0 0.0
      %4588 = vmatprep.subr.mxu0 0.0
      %4589 = vmatpush1.msra.mxu0 0.0
      %4590 = vmatprep.subr.mxu0 0.0
      %4591 = vmatpush1.msra.mxu0 0.0
      %4592 = vmatprep.subr.mxu0 0.0
      %4593 = vmatpush1.msra.mxu0 0.0
      %4594 = vmatprep.subr.mxu0 0.0
      %4595 = vmatpush1.msra.mxu0 0.0
      %4596 = vmatprep.subr.mxu0 0.0
      %4597 = vmatpush1.msra.mxu0 0.0
      %4598 = vmatprep.subr.mxu0 0.0
      %4599 = vmatpush1.msra.mxu0 0.0
      %4600 = vmatprep.subr.mxu0 0.0
      %4601 = vmatpush1.msra.mxu0 0.0
      %4602 = vmatprep.subr.mxu0 0.0
      %4603 = vmatpush1.msra.mxu0 0.0
      %4604 = vmatprep.subr.mxu0 0.0
      %4605 = vmatpush1.msra.mxu0 0.0
      %4606 = vmatprep.subr.mxu0 0.0
      %4607 = vmatpush1.msra.mxu0 0.0
      %4608 = vmatprep.subr.mxu0 0.0
      %4609 = vmatpush1.msra.mxu0 0.0
      %4610 = vmatprep.subr.mxu0 0.0
      %4611 = vmatpush1.msra.mxu0 0.0
      %4612 = vmatprep.subr.mxu0 0.0
      %4613 = vmatpush1.msra.mxu0 0.0
      %4614 = vmatprep.subr.mxu0 0.0
      %4615 = vmatpush1.msra.mxu0 0.0
      %4616 = vmatprep.subr.mxu0 0.0
      %4617 = vmatpush1.msra.mxu0 0.0
      %4618 = vmatprep.subr.mxu0 0.0
      %4619 = vmatpush1.msra.mxu0 0.0
      %4620 = vmatprep.subr.mxu0 0.0
      %4621 = vmatpush1.msra.mxu0 0.0
      %4622 = vmatprep.subr.mxu0 0.0
      %4623 = vmatpush1.msra.mxu0 0.0
      %4624 = vmatprep.subr.mxu0 0.0
      %4625 = vmatpush1.msra.mxu0 0.0
      %4626 = vmatprep.subr.mxu0 0.0
      %4627 = vmatpush1.msra.mxu0 0.0
      %4628 = vmatprep.subr.mxu0 0.0
      %4629 = vmatpush1.msra.mxu0 0.0
      %4630 = vmatprep.subr.mxu0 0.0
      %4631 = vmatpush1.msra.mxu0 0.0
      %4632 = vmatprep.subr.mxu0 0.0
      %4633 = vmatpush1.msra.mxu0 0.0
      %4634 = vmatprep.subr.mxu0 0.0
      %4635 = vmatpush1.msra.mxu0 0.0
      %4636 = vmatprep.subr.mxu0 0.0
      %4637 = vmatpush1.msra.mxu0 0.0
      %4638 = vmatprep.subr.mxu0 0.0
      %4639 = vmatpush1.msra.mxu0 0.0
      %4640 = vmatprep.subr.mxu0 0.0
      %4641 = vmatpush1.msra.mxu0 0.0
      %4642 = vmatprep.mubr.f32.mxu0 0.0
      %4643 = vmatmul.mubr.f32.gmra.mrb[0].mxu0 %v4468
      %v4644 = vpop.f32.mrb[0].mxu0
      %v4645 = vadd.f32 0.0, %v4644
      %v4646 = vpop.f32.mrb[0].mxu0
      %4647 = vmatprep.mubr.f32.mxu0 0.0
      %4648 = vmatmul.mubr.f32.gmra.mrb[0].mxu0 %v4471
      %v4649 = vpop.f32.mrb[0].mxu0
      %v4650 = vadd.f32 0.0, %v4649
      %v4651 = vpop.f32.mrb[0].mxu0
      %4652 = vmatprep.mubr.f32.mxu0 0.0
      %4653 = vmatmul.mubr.f32.gmra.mrb[0].mxu0 %v4474
      %v4654 = vpop.f32.mrb[0].mxu0
      %v4655 = vadd.f32 0.0, %v4654
      %v4656 = vpop.f32.mrb[0].mxu0
      %4657 = vmatprep.mubr.f32.mxu0 0.0
      %4658 = vmatmul.mubr.f32.gmra.mrb[0].mxu0 %v4477
      %v4659 = vpop.f32.mrb[0].mxu0
      %v4660 = vadd.f32 0.0, %v4659
      %v4661 = vpop.f32.mrb[0].mxu0
      %4662 = vmatprep.mubr.f32.mxu0 0.0
      %4663 = vmatmul.mubr.f32.gmra.mrb[0].mxu0 %v4480
      %v4664 = vpop.f32.mrb[0].mxu0
      %v4665 = vadd.f32 0.0, %v4664
      %v4666 = vpop.f32.mrb[0].mxu0
      %4667 = vmatprep.mubr.f32.mxu0 0.0
      %4668 = vmatmul.mubr.f32.gmra.mrb[0].mxu0 %v4483
      %v4669 = vpop.f32.mrb[0].mxu0
      %v4670 = vadd.f32 0.0, %v4669
      %v4671 = vpop.f32.mrb[0].mxu0
      %4672 = vmatprep.mubr.f32.mxu0 0.0
      %4673 = vmatmul.mubr.f32.gmra.mrb[0].mxu0 %v4486
      %v4674 = vpop.f32.mrb[0].mxu0
      %v4675 = vadd.f32 0.0, %v4674
      %v4676 = vpop.f32.mrb[0].mxu0
      %4677 = vmatprep.mubr.f32.mxu0 0.0
      %4678 = vmatmul.mubr.f32.gmra.mrb[0].mxu0 %v4489
      %v4679 = vpop.f32.mrb[0].mxu0
      %v4680 = vadd.f32 0.0, %v4679
      %v4681 = vpop.f32.mrb[0].mxu0
      %4682 = vmatprep.mubr.f32.mxu0 0.0
      %4683 = vmatmul.mubr.f32.gmra.mrb[0].mxu0 %v4492
      %v4684 = vpop.f32.mrb[0].mxu0
      %v4685 = vadd.f32 0.0, %v4684
      %v4686 = vpop.f32.mrb[0].mxu0
      %4687 = vmatprep.mubr.f32.mxu0 0.0
      %4688 = vmatmul.mubr.f32.gmra.mrb[0].mxu0 %v4495
      %v4689 = vpop.f32.mrb[0].mxu0
      %v4690 = vadd.f32 0.0, %v4689
      %v4691 = vpop.f32.mrb[0].mxu0
      %4692 = vmatprep.mubr.f32.mxu0 0.0
      %4693 = vmatmul.mubr.f32.gmra.mrb[0].mxu0 %v4498
      %v4694 = vpop.f32.mrb[0].mxu0
      %v4695 = vadd.f32 0.0, %v4694
      %v4696 = vpop.f32.mrb[0].mxu0
      %4697 = vmatprep.mubr.f32.mxu0 0.0
      %4698 = vmatmul.mubr.f32.gmra.mrb[0].mxu0 %v4501
      %v4699 = vpop.f32.mrb[0].mxu0
      %v4700 = vadd.f32 0.0, %v4699
      %v4701 = vpop.f32.mrb[0].mxu0
      %4702 = vmatprep.mubr.f32.mxu0 0.0
      %4703 = vmatmul.mubr.f32.gmra.mrb[0].mxu0 %v4504
      %v4704 = vpop.f32.mrb[0].mxu0
      %v4705 = vadd.f32 0.0, %v4704
      %v4706 = vpop.f32.mrb[0].mxu0
      %4707 = vmatprep.mubr.f32.mxu0 0.0
      %4708 = vmatmul.mubr.f32.gmra.mrb[0].mxu0 %v4507
      %v4709 = vpop.f32.mrb[0].mxu0
      %v4710 = vadd.f32 0.0, %v4709
      %v4711 = vpop.f32.mrb[0].mxu0
      %4712 = vmatprep.mubr.f32.mxu0 0.0
      %4713 = vmatmul.mubr.f32.gmra.mrb[0].mxu0 %v4510
      %v4714 = vpop.f32.mrb[0].mxu0
      %v4715 = vadd.f32 0.0, %v4714
      %v4716 = vpop.f32.mrb[0].mxu0
      %4717 = vmatprep.mubr.f32.mxu0 0.0
      %4718 = vmatmul.mubr.f32.gmra.mrb[0].mxu0 %v4513
      %v4719 = vpop.f32.mrb[0].mxu0
      %v4720 = vadd.f32 0.0, %v4719
      %v4721 = vpop.f32.mrb[0].mxu0
      %4722 = vmatprep.mubr.f32.mxu0 0.0
      %4723 = vmatmul.mubr.f32.gmra.mrb[0].mxu0 %v4516
      %v4724 = vpop.f32.mrb[0].mxu0
      %v4725 = vadd.f32 0.0, %v4724
      %v4726 = vpop.f32.mrb[0].mxu0
      %4727 = vmatprep.mubr.f32.mxu0 0.0
      %4728 = vmatmul.mubr.f32.gmra.mrb[0].mxu0 %v4519
      %v4729 = vpop.f32.mrb[0].mxu0
      %v4730 = vadd.f32 0.0, %v4729
      %v4731 = vpop.f32.mrb[0].mxu0
      %4732 = vmatprep.mubr.f32.mxu0 0.0
      %4733 = vmatmul.mubr.f32.gmra.mrb[0].mxu0 %v4522
      %v4734 = vpop.f32.mrb[0].mxu0
      %v4735 = vadd.f32 0.0, %v4734
      %v4736 = vpop.f32.mrb[0].mxu0
      %4737 = vmatprep.mubr.f32.mxu0 0.0
      %4738 = vmatmul.mubr.f32.gmra.mrb[0].mxu0 %v4525
      %v4739 = vpop.f32.mrb[0].mxu0
      %v4740 = vadd.f32 0.0, %v4739
      %v4741 = vpop.f32.mrb[0].mxu0
      %4742 = vmatprep.mubr.f32.mxu0 0.0
      %4743 = vmatmul.mubr.f32.gmra.mrb[0].mxu0 %v4528
      %v4744 = vpop.f32.mrb[0].mxu0
      %v4745 = vadd.f32 0.0, %v4744
      %v4746 = vpop.f32.mrb[0].mxu0
      %4747 = vmatprep.mubr.f32.mxu0 0.0
      %4748 = vmatmul.mubr.f32.gmra.mrb[0].mxu0 %v4531
      %v4749 = vpop.f32.mrb[0].mxu0
      %v4750 = vadd.f32 0.0, %v4749
      %v4751 = vpop.f32.mrb[0].mxu0
      %4752 = vmatprep.mubr.f32.mxu0 0.0
      %4753 = vmatmul.mubr.f32.gmra.mrb[0].mxu0 %v4534
      %v4754 = vpop.f32.mrb[0].mxu0
      %v4755 = vadd.f32 0.0, %v4754
      %v4756 = vpop.f32.mrb[0].mxu0
      %4757 = vmatprep.mubr.f32.mxu0 0.0
      %4758 = vmatmul.mubr.f32.gmra.mrb[0].mxu0 %v4537
      %v4759 = vpop.f32.mrb[0].mxu0
      %v4760 = vadd.f32 0.0, %v4759
      %v4761 = vpop.f32.mrb[0].mxu0
      %4762 = vmatprep.mubr.f32.mxu0 0.0
      %4763 = vmatmul.mubr.f32.gmra.mrb[0].mxu0 %v4540
      %v4764 = vpop.f32.mrb[0].mxu0
      %v4765 = vadd.f32 0.0, %v4764
      %v4766 = vpop.f32.mrb[0].mxu0
      %4767 = vmatprep.mubr.f32.mxu0 0.0
      %4768 = vmatmul.mubr.f32.gmra.mrb[0].mxu0 %v4543
      %v4769 = vpop.f32.mrb[0].mxu0
      %v4770 = vadd.f32 0.0, %v4769
      %v4771 = vpop.f32.mrb[0].mxu0
      %4772 = vmatprep.mubr.f32.mxu0 0.0
      %4773 = vmatmul.mubr.f32.gmra.mrb[0].mxu0 %v4546
      %v4774 = vpop.f32.mrb[0].mxu0
      %v4775 = vadd.f32 0.0, %v4774
      %v4776 = vpop.f32.mrb[0].mxu0
      %4777 = vmatprep.mubr.f32.mxu0 0.0
      %4778 = vmatmul.mubr.f32.gmra.mrb[0].mxu0 %v4549
      %v4779 = vpop.f32.mrb[0].mxu0
      %v4780 = vadd.f32 0.0, %v4779
      %v4781 = vpop.f32.mrb[0].mxu0
      %4782 = vmatprep.mubr.f32.mxu0 0.0
      %4783 = vmatmul.mubr.f32.gmra.mrb[0].mxu0 %v4552
      %v4784 = vpop.f32.mrb[0].mxu0
      %v4785 = vadd.f32 0.0, %v4784
      %v4786 = vpop.f32.mrb[0].mxu0
      %4787 = vmatprep.mubr.f32.mxu0 0.0
      %4788 = vmatmul.mubr.f32.gmra.mrb[0].mxu0 %v4555
      %v4789 = vpop.f32.mrb[0].mxu0
      %v4790 = vadd.f32 0.0, %v4789
      %v4791 = vpop.f32.mrb[0].mxu0
      %4792 = vmatprep.mubr.f32.mxu0 0.0
      %4793 = vmatmul.mubr.f32.gmra.mrb[0].mxu0 %v4558
      %v4794 = vpop.f32.mrb[0].mxu0
      %v4795 = vadd.f32 0.0, %v4794
      %v4796 = vpop.f32.mrb[0].mxu0
      %4797 = vmatprep.mubr.f32.mxu0 0.0
      %4798 = vmatmul.mubr.f32.gmra.mrb[0].mxu0 %v4561
      %v4799 = vpop.f32.mrb[0].mxu0
      %v4800 = vadd.f32 0.0, %v4799
      %v4801 = vpop.f32.mrb[0].mxu0
      %4802 = vmatprep.mubr.f32.mxu0 0.0
      %4803 = vmatmul.mubr.f32.gmra.mrb[0].mxu0 %v4564
      %v4804 = vpop.f32.mrb[0].mxu0
      %v4805 = vadd.f32 0.0, %v4804
      %v4806 = vpop.f32.mrb[0].mxu0
      %4807 = vmatprep.mubr.f32.mxu0 0.0
      %4808 = vmatmul.mubr.f32.gmra.mrb[0].mxu0 %v4567
      %v4809 = vpop.f32.mrb[0].mxu0
      %v4810 = vadd.f32 0.0, %v4809
      %v4811 = vpop.f32.mrb[0].mxu0
      %4812 = vmatprep.mubr.f32.mxu0 0.0
      %4813 = vmatmul.mubr.f32.gmra.mrb[0].mxu0 %v4570
      %v4814 = vpop.f32.mrb[0].mxu0
      %v4815 = vadd.f32 0.0, %v4814
      %v4816 = vpop.f32.mrb[0].mxu0
      %4817 = vmatprep.mubr.f32.mxu0 0.0
      %4818 = vmatmul.mubr.f32.gmra.mrb[0].mxu0 %v4573
      %v4819 = vpop.f32.mrb[0].mxu0
      %v4820 = vadd.f32 0.0, %v4819
      %v4821 = vpop.f32.mrb[0].mxu0
      %4822 = vdwg.mxu0
      %v4823 = vadd.f32 %v4393, %v4645
      %v4824 = vadd.f32 %v4394, %v4650
      %v4825 = vadd.f32 %v4395, %v4655
      %v4826 = vadd.f32 %v4396, %v4660
      %v4827 = vadd.f32 %v4397, %v4665
      %v4828 = vadd.f32 %v4398, %v4670
      %v4829 = vadd.f32 %v4399, %v4675
      %v4830 = vadd.f32 %v4400, %v4680
      %v4831 = vadd.f32 %v4401, %v4685
      %v4832 = vadd.f32 %v4402, %v4690
      %v4833 = vadd.f32 %v4403, %v4695
      %v4834 = vadd.f32 %v4404, %v4700
      %v4835 = vadd.f32 %v4405, %v4705
      %v4836 = vadd.f32 %v4406, %v4710
      %v4837 = vadd.f32 %v4407, %v4715
      %v4838 = vadd.f32 %v4408, %v4720
      %v4839 = vadd.f32 %v4409, %v4725
      %v4840 = vadd.f32 %v4410, %v4730
      %v4841 = vadd.f32 %v4411, %v4735
      %v4842 = vadd.f32 %v4412, %v4740
      %v4843 = vadd.f32 %v4413, %v4745
      %v4844 = vadd.f32 %v4414, %v4750
      %v4845 = vadd.f32 %v4415, %v4755
      %v4846 = vadd.f32 %v4416, %v4760
      %v4847 = vadd.f32 %v4417, %v4765
      %v4848 = vadd.f32 %v4418, %v4770
      %v4849 = vadd.f32 %v4419, %v4775
      %v4850 = vadd.f32 %v4420, %v4780
      %v4851 = vadd.f32 %v4421, %v4785
      %v4852 = vadd.f32 %v4422, %v4790
      %v4853 = vadd.f32 %v4423, %v4795
      %v4854 = vadd.f32 %v4424, %v4800
      %v4855 = vadd.f32 %v4425, %v4805
      %v4856 = vadd.f32 %v4426, %v4810
      %v4857 = vadd.f32 %v4427, %v4815
      %v4858 = vadd.f32 %v4428, %v4820
      %v4859 = vld [vmem:[%s5] sm:$0x1]
      %v4861 = vlaneseq
      %v4862 = vshrl.u32 %v4861, 7
      %v4863 = vsub.s32 0, %v4862
      %v4864 = vrot.slane %v4859, %v4863
      %v4866 = vadd.f32 %v4823, %v4864
      %v4867 = vadd.f32 %v4824, %v4864
      %4868 = vst.msk [vmem:[%s251] sm:$0xff] %vm284, %v4866
      %4869 = vst.msk [vmem:[%s251 + $0x8] sm:$0xff] %vm284, %v4867
      %v4870 = vadd.f32 %v4825, %v4864
      %v4871 = vadd.f32 %v4826, %v4864
      %v4872 = vadd.f32 %v4827, %v4864
      %vm4873 = vcmask 31746
      %4874 = vst.msk [vmem:[%s251 + $0xe] sm:$0xfc] %vm4873, %v4870
      %4875 = vst.msk [vmem:[%s251 + $0x16] sm:$0xff] %vm284, %v4871
      %vm4876 = vcmask 25600
      %4877 = vst.msk [vmem:[%s251 + $0x1e] sm:$0x3] %vm4876, %v4872
      %v4878 = vadd.f32 %v4828, %v4864
      %v4879 = vadd.f32 %v4829, %v4864
      %vm4880 = vcmask 31748
      %4881 = vst.msk [vmem:[%s251 + $0x1c] sm:$0xf0] %vm4880, %v4872
      %4882 = vst.msk [vmem:[%s251 + $0x24] sm:$0xff] %vm284, %v4878
      %vm4883 = vcmask 27648
      %4884 = vst.msk [vmem:[%s251 + $0x2c] sm:$0xf] %vm4883, %v4879
      %v4885 = vadd.f32 %v4830, %v4864
      %v4886 = vadd.f32 %v4831, %v4864
      %vm4887 = vcmask 31750
      %4888 = vst.msk [vmem:[%s251 + $0x2a] sm:$0xc0] %vm4887, %v4879
      %4889 = vst.msk [vmem:[%s251 + $0x32] sm:$0xff] %vm284, %v4885
      %4890 = vst.msk [vmem:[%s251 + $0x3a] sm:$0x3f] %vm1028, %v4886
      %v4891 = vadd.f32 %v4832, %v4864
      %v4892 = vadd.f32 %v4833, %v4864
      %4893 = vst.msk [vmem:[%s251 + $0x40] sm:$0xff] %vm284, %v4891
      %4894 = vst.msk [vmem:[%s251 + $0x48] sm:$0xff] %vm284, %v4892
      %v4895 = vadd.f32 %v4834, %v4864
      %v4896 = vadd.f32 %v4835, %v4864
      %v4897 = vadd.f32 %v4836, %v4864
      %4898 = vst.msk [vmem:[%s251 + $0x4e] sm:$0xfc] %vm4873, %v4895
      %4899 = vst.msk [vmem:[%s251 + $0x56] sm:$0xff] %vm284, %v4896
      %4900 = vst.msk [vmem:[%s251 + $0x5e] sm:$0x3] %vm4876, %v4897
      %v4901 = vadd.f32 %v4837, %v4864
      %v4902 = vadd.f32 %v4838, %v4864
      %4903 = vst.msk [vmem:[%s251 + $0x5c] sm:$0xf0] %vm4880, %v4897
      %4904 = vst.msk [vmem:[%s251 + $0x64] sm:$0xff] %vm284, %v4901
      %4905 = vst.msk [vmem:[%s251 + $0x6c] sm:$0xf] %vm4883, %v4902
      %v4906 = vadd.f32 %v4839, %v4864
      %v4907 = vadd.f32 %v4840, %v4864
      %4908 = vst.msk [vmem:[%s251 + $0x6a] sm:$0xc0] %vm4887, %v4902
      %4909 = vst.msk [vmem:[%s251 + $0x72] sm:$0xff] %vm284, %v4906
      %4910 = vst.msk [vmem:[%s251 + $0x7a] sm:$0x3f] %vm1028, %v4907
      %v4911 = vadd.f32 %v4841, %v4864
      %v4912 = vadd.f32 %v4842, %v4864
      %4913 = vst.msk [vmem:[%s251 + $0x80] sm:$0xff] %vm284, %v4911
      %4914 = vst.msk [vmem:[%s251 + $0x88] sm:$0xff] %vm284, %v4912
      %v4915 = vadd.f32 %v4843, %v4864
      %v4916 = vadd.f32 %v4844, %v4864
      %v4917 = vadd.f32 %v4845, %v4864
      %4918 = vst.msk [vmem:[%s251 + $0x8e] sm:$0xfc] %vm4873, %v4915
      %4919 = vst.msk [vmem:[%s251 + $0x96] sm:$0xff] %vm284, %v4916
      %4920 = vst.msk [vmem:[%s251 + $0x9e] sm:$0x3] %vm4876, %v4917
      %v4921 = vadd.f32 %v4846, %v4864
      %v4922 = vadd.f32 %v4847, %v4864
      %4923 = vst.msk [vmem:[%s251 + $0x9c] sm:$0xf0] %vm4880, %v4917
      %4924 = vst.msk [vmem:[%s251 + $0xa4] sm:$0xff] %vm284, %v4921
      %4925 = vst.msk [vmem:[%s251 + $0xac] sm:$0xf] %vm4883, %v4922
      %v4926 = vadd.f32 %v4848, %v4864
      %v4927 = vadd.f32 %v4849, %v4864
      %4928 = vst.msk [vmem:[%s251 + $0xaa] sm:$0xc0] %vm4887, %v4922
      %4929 = vst.msk [vmem:[%s251 + $0xb2] sm:$0xff] %vm284, %v4926
      %4930 = vst.msk [vmem:[%s251 + $0xba] sm:$0x3f] %vm1028, %v4927
      %v4931 = vadd.f32 %v4850, %v4864
      %v4932 = vadd.f32 %v4851, %v4864
      %4933 = vst.msk [vmem:[%s251 + $0xc0] sm:$0xff] %vm284, %v4931
      %4934 = vst.msk [vmem:[%s251 + $0xc8] sm:$0xff] %vm284, %v4932
      %v4935 = vadd.f32 %v4852, %v4864
      %v4936 = vadd.f32 %v4853, %v4864
      %v4937 = vadd.f32 %v4854, %v4864
      %4938 = vst.msk [vmem:[%s251 + $0xce] sm:$0xfc] %vm4873, %v4935
      %4939 = vst.msk [vmem:[%s251 + $0xd6] sm:$0xff] %vm284, %v4936
      %4940 = vst.msk [vmem:[%s251 + $0xde] sm:$0x3] %vm4876, %v4937
      %v4941 = vadd.f32 %v4855, %v4864
      %v4942 = vadd.f32 %v4856, %v4864
      %4943 = vst.msk [vmem:[%s251 + $0xdc] sm:$0xf0] %vm4880, %v4937
      %4944 = vst.msk [vmem:[%s251 + $0xe4] sm:$0xff] %vm284, %v4941
      %4945 = vst.msk [vmem:[%s251 + $0xec] sm:$0xf] %vm4883, %v4942
      %v4946 = vadd.f32 %v4857, %v4864
      %v4947 = vadd.f32 %v4858, %v4864
      %4948 = vst.msk [vmem:[%s251 + $0xea] sm:$0xc0] %vm4887, %v4942
      %4949 = vst.msk [vmem:[%s251 + $0xf2] sm:$0xff] %vm284, %v4946
      %4950 = vst.msk [vmem:[%s251 + $0xfa] sm:$0x3f] %vm1028, %v4947
      %p4951 = scmp.lt.s32.totalorder %s17, 1
      %s4952 = scalar_select %p4951, %s17, 1
      %s4953 = smul.addr %s4952, 32
      %s4954 = smul.addr %s4953, 8
      %s4955 = scalar_lea.vmem %s6, %s4954
      // Predicated region
      $region45: #{rtr_forward.2} parent=43 // pred_check
        %p4956 = pneg %p166
      $region46: #{rtr_forward.2} parent=43 // pred_check_branch
        %4958 = sbr.rel (%p4956) target = $region48
      $region47: #{rtr_forward.2} parent=43 // pred_region
        _
      $region48: #{rtr_forward.2} parent=43 // pred_fallthru
        _
    $region44: #{rtr_forward.2} parent=5 // pred_fallthru
      _
    %p4959 = scmp.le.s32.totalorder 2, %s12
    // Predicated region
    $region49: #{rtr_forward.2} parent=5 // pred_check
      %p4960 = pneg %p4959
    $region50: #{rtr_forward.2} parent=5 // pred_check_branch
      %4962 = sbr.rel (%p4960) target = $region52
    $region51: #{rtr_forward.2} parent=5 // pred_region
      %s4963 = ssub.s32 %s12, 2
      // Predicated region
      $region53: #{rtr_forward.2} parent=51 // pred_check
        %p4964 = pneg %p172
      $region54: #{rtr_forward.2} parent=51 // pred_check_branch
        %4966 = sbr.rel (%p4964) target = $region56
      $region55: #{rtr_forward.2} parent=51 // pred_region
        %p4967 = scmp.lt.s32.totalorder %s18, 1
        %s4968 = scalar_select %p4967, %s18, 1
        %s4969 = smul.addr %s4968, 32
        %s4970 = smul.addr %s4969, 8
        %s4971 = scalar_lea.vmem %s6, %s4970
      $region56: #{rtr_forward.2} parent=51 // pred_fallthru
        _
    $region52: #{rtr_forward.2} parent=5 // pred_fallthru
      _
  $region6: #{rtr_forward.2} parent=0 // loop_footer
    %s16 = sadd.s32 1, %s12
  $region7: #{rtr_forward.2} parent=0 // loop_footer_branch
    %11 = sbr.rel target = $region3
  $region8: #{rtr_forward.2} parent=0 // loop_exit
    _

</llo_original>
